<compile_context>
chip_gen: v7x
topology: tpu7x:2x2x1
jax: 0.10.0
libtpu: 0.0.40
codegen_flags: <defaults>
</compile_context>

<pallas_src>
import functools

import jax
import jax.numpy as jnp
from jax.experimental import pallas as pl
from jax.experimental.pallas import tpu as pltpu

BN_EPS = 1e-5
MATMUL_DTYPE = jnp.bfloat16   # MXU operand dtype (accumulation stays f32)
ACT_DTYPE = jnp.bfloat16      # inter-kernel activation dtype (halves HBM traffic)


def _default_vmem_limit():
    # Per-generation scoped-VMEM budget: use most of the 128 MiB on v5e/v6e,
    # leave headroom under the 64 MiB of a v7x TensorCore.
    try:
        cap = int(pltpu.get_tpu_info().vmem_capacity_bytes)
        if cap >= 64 * 1024 * 1024:
            return min((cap * 3) // 4, 100 * 1024 * 1024)
    except Exception:
        pass
    return 48 * 1024 * 1024


VMEM_LIMIT = _default_vmem_limit()


def _cparams(*sems):
    return pltpu.CompilerParams(dimension_semantics=sems,
                                vmem_limit_bytes=VMEM_LIMIT)


def _pick_tile(m, target):
    """Largest tile <= target that divides m and is a multiple of 8 (else m)."""
    if m <= target:
        return m
    t = (target // 8) * 8
    while t >= 8:
        if m % t == 0:
            return t
        t -= 8
    return m


# ---------------------------------------------------------------------------
# SSL front-end stand-in: per-frame linear projection, emitting the embedding
# already split into `nes` lane-dense channel chunks (no wrapper-side slicing).
# ---------------------------------------------------------------------------
def _ssl_proj_kernel(x_ref, w_ref, b_ref, *out_refs):
    x = x_ref[...].astype(MATMUL_DTYPE)
    for i, o_ref in enumerate(out_refs):
        y = jnp.dot(x, w_ref[i], preferred_element_type=jnp.float32)
        y = y + b_ref[i:i + 1, :]
        o_ref[...] = y.astype(o_ref.dtype)


def ssl_project_op(frames, w, b, nes, tile_rows=1024):
    m, hop = frames.shape
    d = w.shape[1]
    c = d // nes
    wc = jnp.transpose(w.reshape(hop, nes, c), (1, 0, 2)).astype(MATMUL_DTYPE)
    bc = b.reshape(nes, c)
    tm = _pick_tile(m, tile_rows)
    outs = pl.pallas_call(
        _ssl_proj_kernel,
        grid=(m // tm,),
        in_specs=[
            pl.BlockSpec((tm, hop), lambda i: (i, 0)),
            pl.BlockSpec((nes, hop, c), lambda i: (0, 0, 0)),
            pl.BlockSpec((nes, c), lambda i: (0, 0)),
        ],
        out_specs=tuple(pl.BlockSpec((tm, c), lambda i: (i, 0))
                        for _ in range(nes)),
        out_shape=tuple(jax.ShapeDtypeStruct((m, c), ACT_DTYPE)
                        for _ in range(nes)),
        compiler_params=_cparams("parallel"),
    )(frames, wc, bc)
    return list(outs)


# ---------------------------------------------------------------------------
# Fully fused Bottle2neck block (+ inter-block add, outer ReLU/BN, head pool).
# ---------------------------------------------------------------------------
def _bottle2neck_kernel(*refs, nums, ksize, dilation, t, width, has_add):
    n_in = len(refs) - 3
    ins = refs[:n_in]
    out_ref, pooled_ref, sp_buf = refs[n_in], refs[n_in + 1], refs[n_in + 2]

    idx = 0
    xa_ref = ins[idx]; idx += 1
    xb_ref = None
    if has_add:
        xb_ref = ins[idx]; idx += 1
    w1_ref = ins[idx]; idx += 1
    v1_ref = ins[idx]; idx += 1
    w3sel_ref = ins[idx]; idx += 1
    stage_refs = []
    for _ in range(nums):
        stage_refs.append((ins[idx], ins[idx + 1], ins[idx + 2]))
        idx += 3
    v3_ref = ins[idx]; idx += 1
    sew1_ref = ins[idx]; idx += 1
    seb1_ref = ins[idx]; idx += 1
    sew2_ref = ins[idx]; idx += 1
    vtail_ref = ins[idx]; idx += 1

    c = out_ref.shape[2]
    pad = (ksize // 2) * dilation

    # Block input (= residual); the inter-block add is fused here.
    x = xa_ref[0].astype(jnp.float32)
    if has_add:
        x = x + xb_ref[0].astype(jnp.float32)

    # conv1 -> ReLU -> bn1.  Output channels are pre-permuted to the stage
    # slot order [spx[scale-1], spx[0], ..., spx[scale-2]].
    y1 = jnp.dot(x.astype(MATMUL_DTYPE), w1_ref[...],
                 preferred_element_type=jnp.float32)
    y1 = jnp.maximum(y1 + v1_ref[0:1], 0.0) * v1_ref[1:2] + v1_ref[2:3]
    out1 = y1.astype(ACT_DTYPE)                                  # (t, c)

    # Seed the zero-padded temporal scratch with all `scale` slots.
    sp_buf[0:pad, :] = jnp.zeros((pad, c), ACT_DTYPE)
    sp_buf[pad + t:pad + t + pad, :] = jnp.zeros((pad, c), ACT_DTYPE)
    sp_buf[pad:pad + t, :] = out1

    # conv3 accumulator: bias + contribution of the untouched spx[scale-1].
    acc3 = jnp.dot(out1, w3sel_ref[...],
                   preferred_element_type=jnp.float32) + v3_ref[0:1]

    # Nested temporal stages: each tap is one full-K matmul against a
    # block-diagonal slot-masked weight; windows are ref-sliced from VMEM.
    for j in range(nums):
        wconv_ref, wsum3_ref, vst_ref = stage_refs[j]
        acc = jnp.zeros((t, c), jnp.float32)
        for k in range(ksize):
            o = k * dilation
            acc = acc + jnp.dot(sp_buf[o:o + t, :], wconv_ref[k],
                                preferred_element_type=jnp.float32)
        y = jnp.maximum(acc + vst_ref[0:1], 0.0) * vst_ref[1:2] + vst_ref[2:3]
        yb = y.astype(MATMUL_DTYPE)
        # Learned weighted sum over W folded into conv3 (full-K matmul).
        acc3 = acc3 + jnp.dot(yb, wsum3_ref[...],
                              preferred_element_type=jnp.float32)
        if j + 1 < nums:
            cf = (j + 2) * width
            # Write back only the valid slots; later spx slots stay intact.
            sp_buf[pad:pad + t, 0:cf] = yb[:, 0:cf]

    # conv3 -> ReLU -> bn3.
    y3 = jnp.maximum(acc3, 0.0) * v3_ref[1:2] + v3_ref[2:3]

    # SE module: global mean over T -> bottleneck MLP -> sigmoid gate.
    m = jnp.mean(y3, axis=0, keepdims=True)
    h = jnp.dot(m.astype(MATMUL_DTYPE), sew1_ref[...],
                preferred_element_type=jnp.float32) + seb1_ref[...]
    h = jnp.maximum(h, 0.0)
    g = jnp.dot(h.astype(MATMUL_DTYPE), sew2_ref[...],
                preferred_element_type=jnp.float32) + vtail_ref[0:1]
    g = jax.nn.sigmoid(g)

    # SE gate + residual + outer ReLU + outer BatchNorm1d (eval affine).
    z = jnp.maximum(y3 * g + x, 0.0) * vtail_ref[1:2] + vtail_ref[2:3]
    out_ref[0] = z.astype(out_ref.dtype)

    # Head (final BN -> ReLU -> mean over T) for this block's channel chunk.
    hp = jnp.maximum(z * vtail_ref[3:4] + vtail_ref[4:5], 0.0)
    pooled_ref[0] = (jnp.sum(hp, axis=0, keepdims=True) * (1.0 / t)
                     ).astype(pooled_ref.dtype)


def _stage_weights(conv_w, conv_b, bn_sc, bn_sh, ws, w3, j, scale, width, ksize):
    c = scale * width
    mask = jnp.concatenate([jnp.ones((j + 2,), jnp.float32),
                            jnp.zeros((scale - j - 2,), jnp.float32)])
    # Masked block-diagonal conv weight (same width x width kernel per W slot).
    wconv = jnp.einsum("ab,kij->kaibj", jnp.diag(mask), conv_w)
    wconv = wconv.reshape(ksize, c, c).astype(MATMUL_DTYPE)
    # Weighted sum over W folded into conv3's rows for this stage's chunk.
    ws_pad = jnp.concatenate([ws, jnp.zeros((scale - j - 2,), jnp.float32)])
    wsum = jnp.kron(ws_pad.reshape(scale, 1), jnp.eye(width, dtype=jnp.float32))
    wsum3 = (wsum @ w3[j * width:(j + 1) * width, :]).astype(MATMUL_DTYPE)
    vst = jnp.stack([jnp.tile(conv_b, scale), jnp.tile(bn_sc, scale),
                     jnp.tile(bn_sh, scale)])
    return wconv, wsum3, vst


def bottle2neck_op(xa, xb, p, outer_bn, head_bn, *, scale, ksize, dilation):
    b, t, c = xa.shape
    width = c // scale
    nums = scale - 1
    pad = (ksize // 2) * dilation
    perm = [scale - 1] + list(range(scale - 1))

    def permv(v):
        return v.reshape(scale, width)[perm, :].reshape(-1)

    w1p = p["conv1_w"].reshape(c, scale, width)[:, perm, :].reshape(c, c)
    w1p = w1p.astype(MATMUL_DTYPE)
    v1 = jnp.stack([permv(p["conv1_b"]), permv(p["bn1"][0]), permv(p["bn1"][1])])
    w3 = p["conv3_w"]
    w3sel = jnp.zeros((c, c), jnp.float32).at[0:width, :].set(
        w3[(scale - 1) * width:, :]).astype(MATMUL_DTYPE)
    v3 = jnp.stack([p["conv3_b"], p["bn3"][0], p["bn3"][1]])
    vtail = jnp.stack([p["se_b2"], outer_bn[0], outer_bn[1],
                       head_bn[0], head_bn[1]])
    cr = p["se_w1"].shape[1]

    inputs = [xa] + ([xb] if xb is not None else []) + [w1p, v1, w3sel]
    in_specs = ([pl.BlockSpec((1, t, c), lambda i: (i, 0, 0))]
                * (2 if xb is not None else 1))
    in_specs += [pl.BlockSpec((c, c), lambda i: (0, 0)),
                 pl.BlockSpec((3, c), lambda i: (0, 0)),
                 pl.BlockSpec((c, c), lambda i: (0, 0))]
    for j in range(nums):
        cfg = p["convs"][j]
        wconv, wsum3, vst = _stage_weights(cfg["w"], cfg["b"], cfg["bn"][0],
                                           cfg["bn"][1], cfg["ws"], w3,
                                           j, scale, width, ksize)
        inputs += [wconv, wsum3, vst]
        in_specs += [pl.BlockSpec((ksize, c, c), lambda i: (0, 0, 0)),
                     pl.BlockSpec((c, c), lambda i: (0, 0)),
                     pl.BlockSpec((3, c), lambda i: (0, 0))]
    inputs += [v3, p["se_w1"].astype(MATMUL_DTYPE), p["se_b1"].reshape(1, cr),
               p["se_w2"].astype(MATMUL_DTYPE), vtail]
    in_specs += [pl.BlockSpec((3, c), lambda i: (0, 0)),
                 pl.BlockSpec((c, cr), lambda i: (0, 0)),
                 pl.BlockSpec((1, cr), lambda i: (0, 0)),
                 pl.BlockSpec((cr, c), lambda i: (0, 0)),
                 pl.BlockSpec((5, c), lambda i: (0, 0))]

    kernel = functools.partial(_bottle2neck_kernel, nums=nums, ksize=ksize,
                               dilation=dilation, t=t, width=width,
                               has_add=xb is not None)
    # TODO(synk): the grid is batch-only; for very long T on v7x a second
    # T-tile grid axis (with halo handling) would further improve core balance.
    out, pooled = pl.pallas_call(
        kernel,
        grid=(b,),
        in_specs=in_specs,
        out_specs=(pl.BlockSpec((1, t, c), lambda i: (i, 0, 0)),
                   pl.BlockSpec((1, 1, c), lambda i: (i, 0, 0))),
        out_shape=(jax.ShapeDtypeStruct((b, t, c), ACT_DTYPE),
                   jax.ShapeDtypeStruct((b, 1, c), jnp.float32)),
        scratch_shapes=[pltpu.VMEM((t + 2 * pad, c), ACT_DTYPE)],
        compiler_params=_cparams("parallel"),
    )(*inputs)
    return out, pooled


# ---------------------------------------------------------------------------
# Head pooling for the last (pass-through) embedding chunk: BN -> ReLU -> mean.
# ---------------------------------------------------------------------------
def _pool_kernel(x_ref, v_ref, o_ref, *, t):
    y = x_ref[0].astype(jnp.float32) * v_ref[0:1] + v_ref[1:2]
    y = jnp.maximum(y, 0.0)
    o_ref[0] = (jnp.sum(y, axis=0, keepdims=True) * (1.0 / t)).astype(o_ref.dtype)


def pool_chunk_op(x, bn_scale, bn_shift):
    b, t, c = x.shape
    v = jnp.stack([bn_scale, bn_shift])
    return pl.pallas_call(
        functools.partial(_pool_kernel, t=t),
        grid=(b,),
        in_specs=[pl.BlockSpec((1, t, c), lambda i: (i, 0, 0)),
                  pl.BlockSpec((2, c), lambda i: (0, 0))],
        out_specs=pl.BlockSpec((1, 1, c), lambda i: (i, 0, 0)),
        out_shape=jax.ShapeDtypeStruct((b, 1, c), jnp.float32),
        compiler_params=_cparams("parallel"),
    )(x, v)


# ---------------------------------------------------------------------------
# Deterministic parameter construction
# ---------------------------------------------------------------------------
class _KeyGen:
    def __init__(self, seed=0):
        self._key = jax.random.PRNGKey(seed)

    def __call__(self):
        self._key, sub = jax.random.split(self._key)
        return sub


def _bn_affine(kg, c):
    # TODO(synk): BatchNorm is folded with running stats (inference semantics),
    # not training-mode batch statistics.
    gamma = 1.0 + 0.1 * jax.random.normal(kg(), (c,), jnp.float32)
    beta = 0.1 * jax.random.normal(kg(), (c,), jnp.float32)
    running_mean = jnp.zeros((c,), jnp.float32)
    running_var = jnp.ones((c,), jnp.float32)
    scale = gamma / jnp.sqrt(running_var + BN_EPS)
    shift = beta - running_mean * scale
    return scale, shift


def _init_bottle2neck(kg, C, scale, se_ratio, ksize):
    width = C // scale
    p = {
        "conv1_w": 0.1 * jax.random.normal(kg(), (C, width * scale), jnp.float32),
        "conv1_b": 0.01 * jax.random.normal(kg(), (width * scale,), jnp.float32),
        "bn1": _bn_affine(kg, width * scale),
        "conv3_w": 0.1 * jax.random.normal(kg(), (width * scale, C), jnp.float32),
        "conv3_b": 0.01 * jax.random.normal(kg(), (C,), jnp.float32),
        "bn3": _bn_affine(kg, C),
        "se_w1": 0.1 * jax.random.normal(kg(), (C, C // se_ratio), jnp.float32),
        "se_b1": 0.01 * jax.random.normal(kg(), (C // se_ratio,), jnp.float32),
        "se_w2": 0.1 * jax.random.normal(kg(), (C // se_ratio, C), jnp.float32),
        "se_b2": 0.01 * jax.random.normal(kg(), (C,), jnp.float32),
        "convs": [],
    }
    for i in range(scale - 1):
        p["convs"].append({
            "w": 0.1 * jax.random.normal(kg(), (ksize, width, width), jnp.float32),
            "b": 0.01 * jax.random.normal(kg(), (width,), jnp.float32),
            "bn": _bn_affine(kg, width),
            # PyTorch init: torch.ones(1,1,1,i+2) * (1/(i+2))
            "ws": jnp.full((i + 2,), 1.0 / (i + 2), jnp.float32),
        })
    return p


def init_params(seed, input_channel, nes_ratio, se_ratio, n_output_logits, hop):
    kg = _KeyGen(seed)
    D = input_channel
    C = D // nes_ratio[0]
    return {
        "ssl_w": 0.1 * jax.random.normal(kg(), (hop, D), jnp.float32),
        "ssl_b": 0.01 * jax.random.normal(kg(), (D,), jnp.float32),
        "blocks": [_init_bottle2neck(kg, C, nes_ratio[1], se_ratio[0], 3)
                   for _ in range(nes_ratio[0] - 1)],
        "outer_bns": [_bn_affine(kg, C) for _ in range(nes_ratio[0] - 1)],
        "bn": _bn_affine(kg, D),
        "fc_w": 0.1 * jax.random.normal(kg(), (D, n_output_logits), jnp.float32),
        "fc_b": 0.01 * jax.random.normal(kg(), (n_output_logits,), jnp.float32),
    }


# ---------------------------------------------------------------------------
# Forward pass (glue in JAX, compute in Pallas kernels)
# ---------------------------------------------------------------------------
def nested_res2net_forward(params, chunks, nes_ratio, dilation):
    nes, scale = nes_ratio
    b, t, c = chunks[0].shape
    head_sc, head_sh = params["bn"]
    pooled = []
    prev = None
    for i in range(nes - 1):
        hb = (head_sc[i * c:(i + 1) * c], head_sh[i * c:(i + 1) * c])
        prev, pool_i = bottle2neck_op(chunks[i], prev, params["blocks"][i],
                                      params["outer_bns"][i], hb,
                                      scale=scale, ksize=3, dilation=dilation)
        pooled.append(pool_i)
    pooled.append(pool_chunk_op(chunks[-1], head_sc[(nes - 1) * c:],
                                head_sh[(nes - 1) * c:]))
    feat = jnp.concatenate(pooled, axis=-1).reshape(b, nes * c)
    # Final Linear (tiny n_output_logits) stays in plain XLA.
    return feat @ params["fc_w"] + params["fc_b"]


def wav2vec2_nes2net_forward(params, x, *, hop, nes_ratio, dilation):
    # x: (B, L, 1) raw audio (the PyTorch module does x.squeeze(-1) first).
    x = jnp.squeeze(x, -1)
    b, l = x.shape
    t = l // hop
    frames = x[:, :t * hop].reshape(b * t, hop)
    # TODO(synk): the fairseq XLSR-300M wav2vec2 front-end (SSLModel) needs an
    # external pretrained checkpoint + transformer stack; it is replaced by a
    # deterministic per-frame linear projection with the same output contract
    # ((B, T, input_channel) features in channels-last layout).
    nes = nes_ratio[0]
    chunks = ssl_project_op(frames, params["ssl_w"], params["ssl_b"], nes)
    d = params["ssl_w"].shape[1]
    c = d // nes
    chunks = [ch.reshape(b, t, c) for ch in chunks]
    return nested_res2net_forward(params, chunks, nes_ratio, dilation)


if __name__ == "__main__":
    # Small config consistent with the module structure
    # (original: input_channel=1024, Nes_ratio=[8,8]; scaled down here).
    INPUT_CHANNEL = 128
    NES_RATIO = (4, 4)
    SE_RATIO = (4,)
    DILATION = 2
    N_OUT = 2
    HOP = 16
    B, T = 2, 8
    L = T * HOP

    params = init_params(0, INPUT_CHANNEL, NES_RATIO, SE_RATIO, N_OUT, HOP)
    x = jax.random.normal(jax.random.PRNGKey(0), (B, L, 1), jnp.float32)

    fwd = jax.jit(lambda p, xx: wav2vec2_nes2net_forward(
        p, xx, hop=HOP, nes_ratio=NES_RATIO, dilation=DILATION))
    out = jax.block_until_ready(fwd(params, x))
    assert out.shape == (B, N_OUT), out.shape
    assert bool(jnp.all(jnp.isfinite(out)))
    print("KERNEL_OK")
</pallas_src>

<mosaic_0001>
module attributes {stable_mosaic.version = 11 : i64} {
  func.func @_pool_kernel(%arg0: i32, %arg1: memref<1x8x32xbf16, #tpu.memory_space<vmem>>, %arg2: memref<2x32xf32, #tpu.memory_space<vmem>>, %arg3: memref<1x1x32xf32, #tpu.memory_space<vmem>>) attributes {dimension_semantics = [#tpu.dimension_semantics<parallel>], iteration_bounds = array<i64: 2>, scalar_prefetch = 0 : i64, scratch_operands = 0 : i64, tpu.core_type = #tpu.core_type<tc>, window_params = [{transform_indices = @transform_0, window_bounds = array<i64: 1, 8, 32>}, {pipeline_mode = #tpu.pipeline_mode<synchronous>, transform_indices = @transform_1, window_bounds = array<i64: 2, 32>}, {transform_indices = @transform_2, window_bounds = array<i64: 1, 1, 32>}]} {
    %c0 = arith.constant 0 : index
    %c0_0 = arith.constant 0 : index
    %c0_1 = arith.constant 0 : index
    %0 = vector.load %arg1[%c0, %c0_0, %c0_1] : memref<1x8x32xbf16, #tpu.memory_space<vmem>>, vector<1x8x32xbf16>
    %1 = vector.shape_cast %0 : vector<1x8x32xbf16> to vector<8x32xbf16>
    %2 = arith.extf %1 : vector<8x32xbf16> to vector<8x32xf32>
    %c0_2 = arith.constant 0 : index
    %c0_3 = arith.constant 0 : index
    %3 = vector.load %arg2[%c0_2, %c0_3] : memref<2x32xf32, #tpu.memory_space<vmem>>, vector<1x32xf32>
    %4 = vector.broadcast %3 : vector<1x32xf32> to vector<8x32xf32>
    %5 = arith.mulf %2, %4 : vector<8x32xf32>
    %c1 = arith.constant 1 : index
    %c0_4 = arith.constant 0 : index
    %6 = vector.load %arg2[%c1, %c0_4] : memref<2x32xf32, #tpu.memory_space<vmem>>, vector<1x32xf32>
    %7 = vector.broadcast %6 : vector<1x32xf32> to vector<8x32xf32>
    %8 = arith.addf %5, %7 : vector<8x32xf32>
    %cst = arith.constant 0.000000e+00 : f32
    %9 = vector.broadcast %cst : f32 to vector<8x32xf32>
    %10 = arith.maximumf %8, %9 : vector<8x32xf32>
    %cst_5 = arith.constant dense<0.000000e+00> : vector<32xf32>
    %11 = vector.multi_reduction <add>, %10, %cst_5 [0] : vector<8x32xf32> to vector<32xf32>
    %12 = vector.shape_cast %11 : vector<32xf32> to vector<1x32xf32>
    %cst_6 = arith.constant 1.250000e-01 : f32
    %13 = vector.broadcast %cst_6 : f32 to vector<1x32xf32>
    %14 = arith.mulf %12, %13 : vector<1x32xf32>
    %c0_7 = arith.constant 0 : index
    %c0_8 = arith.constant 0 : index
    %c0_9 = arith.constant 0 : index
    %15 = vector.load %arg3[%c0_7, %c0_8, %c0_9] : memref<1x1x32xf32, #tpu.memory_space<vmem>>, vector<1x1x32xf32>
    %16 = vector.shape_cast %15 : vector<1x1x32xf32> to vector<1x32xf32>
    %17 = vector.shape_cast %14 : vector<1x32xf32> to vector<1x1x32xf32>
    tpu.vector_store %arg3[%c0_7, %c0_8, %c0_9], %17 {strides = array<i32>} : memref<1x1x32xf32, #tpu.memory_space<vmem>>, vector<1x1x32xf32>,
    return
  }
  func.func @transform_0(%arg0: i32) -> (i32, i32, i32) {
    %c0_i32 = arith.constant 0 : i32
    %c0_i32_0 = arith.constant 0 : i32
    %c0_i32_1 = arith.constant 0 : i32
    return %arg0, %c0_i32, %c0_i32_0 : i32, i32, i32
  }
  func.func @transform_1(%arg0: i32) -> (i32, i32) {
    %c0_i32 = arith.constant 0 : i32
    %c0_i32_0 = arith.constant 0 : i32
    %c0_i32_1 = arith.constant 0 : i32
    return %c0_i32, %c0_i32_0 : i32, i32
  }
  func.func @transform_2(%arg0: i32) -> (i32, i32, i32) {
    %c0_i32 = arith.constant 0 : i32
    %c0_i32_0 = arith.constant 0 : i32
    %c0_i32_1 = arith.constant 0 : i32
    return %arg0, %c0_i32, %c0_i32_0 : i32, i32, i32
  }
}

module attributes {stable_mosaic.version = 11 : i64} {
  func.func @_ssl_proj_kernel(%arg0: i32, %arg1: memref<16x16xf32, #tpu.memory_space<vmem>>, %arg2: memref<4x16x32xbf16, #tpu.memory_space<vmem>>, %arg3: memref<4x32xf32, #tpu.memory_space<vmem>>, %arg4: memref<16x32xbf16, #tpu.memory_space<vmem>>, %arg5: memref<16x32xbf16, #tpu.memory_space<vmem>>, %arg6: memref<16x32xbf16, #tpu.memory_space<vmem>>, %arg7: memref<16x32xbf16, #tpu.memory_space<vmem>>) attributes {dimension_semantics = [#tpu.dimension_semantics<parallel>], iteration_bounds = array<i64: 1>, scalar_prefetch = 0 : i64, scratch_operands = 0 : i64, tpu.core_type = #tpu.core_type<tc>, window_params = [{transform_indices = @transform_0, window_bounds = array<i64: 16, 16>}, {pipeline_mode = #tpu.pipeline_mode<synchronous>, transform_indices = @transform_1, window_bounds = array<i64: 4, 16, 32>}, {pipeline_mode = #tpu.pipeline_mode<synchronous>, transform_indices = @transform_2, window_bounds = array<i64: 4, 32>}, {transform_indices = @transform_3, window_bounds = array<i64: 16, 32>}, {transform_indices = @transform_4, window_bounds = array<i64: 16, 32>}, {transform_indices = @transform_5, window_bounds = array<i64: 16, 32>}, {transform_indices = @transform_6, window_bounds = array<i64: 16, 32>}]} {
    %c0 = arith.constant 0 : index
    %c0_0 = arith.constant 0 : index
    %0 = vector.load %arg1[%c0, %c0_0] : memref<16x16xf32, #tpu.memory_space<vmem>>, vector<16x16xf32>
    %1 = arith.truncf %0 : vector<16x16xf32> to vector<16x16xbf16>
    %c0_1 = arith.constant 0 : index
    %c0_2 = arith.constant 0 : index
    %c0_3 = arith.constant 0 : index
    %2 = vector.load %arg2[%c0_1, %c0_2, %c0_3] : memref<4x16x32xbf16, #tpu.memory_space<vmem>>, vector<1x16x32xbf16>
    %3 = vector.shape_cast %2 : vector<1x16x32xbf16> to vector<16x32xbf16>
    %cst = arith.constant dense<0.000000e+00> : vector<16x32xf32>
    %4 = tpu.matmul %1, %3, %cst {dimension_numbers = #tpu.dot_dimension_numbers<[1], [0], [0], [1], [0, 0, 1, 1], [], []>} : vector<16x16xbf16>, vector<16x32xbf16>, vector<16x32xf32> -> vector<16x32xf32>
    %c0_4 = arith.constant 0 : index
    %c0_5 = arith.constant 0 : index
    %5 = vector.load %arg3[%c0_4, %c0_5] : memref<4x32xf32, #tpu.memory_space<vmem>>, vector<1x32xf32>
    %6 = vector.broadcast %5 : vector<1x32xf32> to vector<16x32xf32>
    %7 = arith.addf %4, %6 : vector<16x32xf32>
    %8 = arith.truncf %7 : vector<16x32xf32> to vector<16x32xbf16>
    %c0_6 = arith.constant 0 : index
    %c0_7 = arith.constant 0 : index
    %9 = vector.load %arg4[%c0_6, %c0_7] : memref<16x32xbf16, #tpu.memory_space<vmem>>, vector<16x32xbf16>
    tpu.vector_store %arg4[%c0_6, %c0_7], %8 {strides = array<i32>} : memref<16x32xbf16, #tpu.memory_space<vmem>>, vector<16x32xbf16>,
    %c1 = arith.constant 1 : index
    %c0_8 = arith.constant 0 : index
    %c0_9 = arith.constant 0 : index
    %10 = vector.load %arg2[%c1, %c0_8, %c0_9] : memref<4x16x32xbf16, #tpu.memory_space<vmem>>, vector<1x16x32xbf16>
    %11 = vector.shape_cast %10 : vector<1x16x32xbf16> to vector<16x32xbf16>
    %cst_10 = arith.constant dense<0.000000e+00> : vector<16x32xf32>
    %12 = tpu.matmul %1, %11, %cst_10 {dimension_numbers = #tpu.dot_dimension_numbers<[1], [0], [0], [1], [0, 0, 1, 1], [], []>} : vector<16x16xbf16>, vector<16x32xbf16>, vector<16x32xf32> -> vector<16x32xf32>
    %c1_11 = arith.constant 1 : index
    %c0_12 = arith.constant 0 : index
    %13 = vector.load %arg3[%c1_11, %c0_12] : memref<4x32xf32, #tpu.memory_space<vmem>>, vector<1x32xf32>
    %14 = vector.broadcast %13 : vector<1x32xf32> to vector<16x32xf32>
    %15 = arith.addf %12, %14 : vector<16x32xf32>
    %16 = arith.truncf %15 : vector<16x32xf32> to vector<16x32xbf16>
    %c0_13 = arith.constant 0 : index
    %c0_14 = arith.constant 0 : index
    %17 = vector.load %arg5[%c0_13, %c0_14] : memref<16x32xbf16, #tpu.memory_space<vmem>>, vector<16x32xbf16>
    tpu.vector_store %arg5[%c0_13, %c0_14], %16 {strides = array<i32>} : memref<16x32xbf16, #tpu.memory_space<vmem>>, vector<16x32xbf16>,
    %c2 = arith.constant 2 : index
    %c0_15 = arith.constant 0 : index
    %c0_16 = arith.constant 0 : index
    %18 = vector.load %arg2[%c2, %c0_15, %c0_16] : memref<4x16x32xbf16, #tpu.memory_space<vmem>>, vector<1x16x32xbf16>
    %19 = vector.shape_cast %18 : vector<1x16x32xbf16> to vector<16x32xbf16>
    %cst_17 = arith.constant dense<0.000000e+00> : vector<16x32xf32>
    %20 = tpu.matmul %1, %19, %cst_17 {dimension_numbers = #tpu.dot_dimension_numbers<[1], [0], [0], [1], [0, 0, 1, 1], [], []>} : vector<16x16xbf16>, vector<16x32xbf16>, vector<16x32xf32> -> vector<16x32xf32>
    %c2_18 = arith.constant 2 : index
    %c0_19 = arith.constant 0 : index
    %21 = vector.load %arg3[%c2_18, %c0_19] : memref<4x32xf32, #tpu.memory_space<vmem>>, vector<1x32xf32>
    %22 = vector.broadcast %21 : vector<1x32xf32> to vector<16x32xf32>
    %23 = arith.addf %20, %22 : vector<16x32xf32>
    %24 = arith.truncf %23 : vector<16x32xf32> to vector<16x32xbf16>
    %c0_20 = arith.constant 0 : index
    %c0_21 = arith.constant 0 : index
    %25 = vector.load %arg6[%c0_20, %c0_21] : memref<16x32xbf16, #tpu.memory_space<vmem>>, vector<16x32xbf16>
    tpu.vector_store %arg6[%c0_20, %c0_21], %24 {strides = array<i32>} : memref<16x32xbf16, #tpu.memory_space<vmem>>, vector<16x32xbf16>,
    %c3 = arith.constant 3 : index
    %c0_22 = arith.constant 0 : index
    %c0_23 = arith.constant 0 : index
    %26 = vector.load %arg2[%c3, %c0_22, %c0_23] : memref<4x16x32xbf16, #tpu.memory_space<vmem>>, vector<1x16x32xbf16>
    %27 = vector.shape_cast %26 : vector<1x16x32xbf16> to vector<16x32xbf16>
    %cst_24 = arith.constant dense<0.000000e+00> : vector<16x32xf32>
    %28 = tpu.matmul %1, %27, %cst_24 {dimension_numbers = #tpu.dot_dimension_numbers<[1], [0], [0], [1], [0, 0, 1, 1], [], []>} : vector<16x16xbf16>, vector<16x32xbf16>, vector<16x32xf32> -> vector<16x32xf32>
    %c3_25 = arith.constant 3 : index
    %c0_26 = arith.constant 0 : index
    %29 = vector.load %arg3[%c3_25, %c0_26] : memref<4x32xf32, #tpu.memory_space<vmem>>, vector<1x32xf32>
    %30 = vector.broadcast %29 : vector<1x32xf32> to vector<16x32xf32>
    %31 = arith.addf %28, %30 : vector<16x32xf32>
    %32 = arith.truncf %31 : vector<16x32xf32> to vector<16x32xbf16>
    %c0_27 = arith.constant 0 : index
    %c0_28 = arith.constant 0 : index
    %33 = vector.load %arg7[%c0_27, %c0_28] : memref<16x32xbf16, #tpu.memory_space<vmem>>, vector<16x32xbf16>
    tpu.vector_store %arg7[%c0_27, %c0_28], %32 {strides = array<i32>} : memref<16x32xbf16, #tpu.memory_space<vmem>>, vector<16x32xbf16>,
    return
  }
  func.func @transform_0(%arg0: i32) -> (i32, i32) {
    %c0_i32 = arith.constant 0 : i32
    %c0_i32_0 = arith.constant 0 : i32
    return %arg0, %c0_i32 : i32, i32
  }
  func.func @transform_1(%arg0: i32) -> (i32, i32, i32) {
    %c0_i32 = arith.constant 0 : i32
    %c0_i32_0 = arith.constant 0 : i32
    %c0_i32_1 = arith.constant 0 : i32
    %c0_i32_2 = arith.constant 0 : i32
    return %c0_i32, %c0_i32_0, %c0_i32_1 : i32, i32, i32
  }
  func.func @transform_2(%arg0: i32) -> (i32, i32) {
    %c0_i32 = arith.constant 0 : i32
    %c0_i32_0 = arith.constant 0 : i32
    %c0_i32_1 = arith.constant 0 : i32
    return %c0_i32, %c0_i32_0 : i32, i32
  }
  func.func @transform_3(%arg0: i32) -> (i32, i32) {
    %c0_i32 = arith.constant 0 : i32
    %c0_i32_0 = arith.constant 0 : i32
    return %arg0, %c0_i32 : i32, i32
  }
  func.func @transform_4(%arg0: i32) -> (i32, i32) {
    %c0_i32 = arith.constant 0 : i32
    %c0_i32_0 = arith.constant 0 : i32
    return %arg0, %c0_i32 : i32, i32
  }
  func.func @transform_5(%arg0: i32) -> (i32, i32) {
    %c0_i32 = arith.constant 0 : i32
    %c0_i32_0 = arith.constant 0 : i32
    return %arg0, %c0_i32 : i32, i32
  }
  func.func @transform_6(%arg0: i32) -> (i32, i32) {
    %c0_i32 = arith.constant 0 : i32
    %c0_i32_0 = arith.constant 0 : i32
    return %arg0, %c0_i32 : i32, i32
  }
}

module attributes {stable_mosaic.version = 11 : i64} {
  func.func @_bottle2neck_kernel(%arg0: i32, %arg1: memref<1x8x32xbf16, #tpu.memory_space<vmem>>, %arg2: memref<32x32xbf16, #tpu.memory_space<vmem>>, %arg3: memref<3x32xf32, #tpu.memory_space<vmem>>, %arg4: memref<32x32xbf16, #tpu.memory_space<vmem>>, %arg5: memref<3x32x32xbf16, #tpu.memory_space<vmem>>, %arg6: memref<32x32xbf16, #tpu.memory_space<vmem>>, %arg7: memref<3x32xf32, #tpu.memory_space<vmem>>, %arg8: memref<3x32x32xbf16, #tpu.memory_space<vmem>>, %arg9: memref<32x32xbf16, #tpu.memory_space<vmem>>, %arg10: memref<3x32xf32, #tpu.memory_space<vmem>>, %arg11: memref<3x32x32xbf16, #tpu.memory_space<vmem>>, %arg12: memref<32x32xbf16, #tpu.memory_space<vmem>>, %arg13: memref<3x32xf32, #tpu.memory_space<vmem>>, %arg14: memref<3x32xf32, #tpu.memory_space<vmem>>, %arg15: memref<32x8xbf16, #tpu.memory_space<vmem>>, %arg16: memref<1x8xf32, #tpu.memory_space<vmem>>, %arg17: memref<8x32xbf16, #tpu.memory_space<vmem>>, %arg18: memref<5x32xf32, #tpu.memory_space<vmem>>, %arg19: memref<1x8x32xbf16, #tpu.memory_space<vmem>>, %arg20: memref<1x1x32xf32, #tpu.memory_space<vmem>>, %arg21: memref<12x32xbf16, #tpu.memory_space<vmem>>) attributes {dimension_semantics = [#tpu.dimension_semantics<parallel>], iteration_bounds = array<i64: 2>, scalar_prefetch = 0 : i64, scratch_operands = 1 : i64, tpu.core_type = #tpu.core_type<tc>, window_params = [{transform_indices = @transform_0, window_bounds = array<i64: 1, 8, 32>}, {pipeline_mode = #tpu.pipeline_mode<synchronous>, transform_indices = @transform_1, window_bounds = array<i64: 32, 32>}, {pipeline_mode = #tpu.pipeline_mode<synchronous>, transform_indices = @transform_2, window_bounds = array<i64: 3, 32>}, {pipeline_mode = #tpu.pipeline_mode<synchronous>, transform_indices = @transform_3, window_bounds = array<i64: 32, 32>}, {pipeline_mode = #tpu.pipeline_mode<synchronous>, transform_indices = @transform_4, window_bounds = array<i64: 3, 32, 32>}, {pipeline_mode = #tpu.pipeline_mode<synchronous>, transform_indices = @transform_5, window_bounds = array<i64: 32, 32>}, {pipeline_mode = #tpu.pipeline_mode<synchronous>, transform_indices = @transform_6, window_bounds = array<i64: 3, 32>}, {pipeline_mode = #tpu.pipeline_mode<synchronous>, transform_indices = @transform_7, window_bounds = array<i64: 3, 32, 32>}, {pipeline_mode = #tpu.pipeline_mode<synchronous>, transform_indices = @transform_8, window_bounds = array<i64: 32, 32>}, {pipeline_mode = #tpu.pipeline_mode<synchronous>, transform_indices = @transform_9, window_bounds = array<i64: 3, 32>}, {pipeline_mode = #tpu.pipeline_mode<synchronous>, transform_indices = @transform_10, window_bounds = array<i64: 3, 32, 32>}, {pipeline_mode = #tpu.pipeline_mode<synchronous>, transform_indices = @transform_11, window_bounds = array<i64: 32, 32>}, {pipeline_mode = #tpu.pipeline_mode<synchronous>, transform_indices = @transform_12, window_bounds = array<i64: 3, 32>}, {pipeline_mode = #tpu.pipeline_mode<synchronous>, transform_indices = @transform_13, window_bounds = array<i64: 3, 32>}, {pipeline_mode = #tpu.pipeline_mode<synchronous>, transform_indices = @transform_14, window_bounds = array<i64: 32, 8>}, {pipeline_mode = #tpu.pipeline_mode<synchronous>, transform_indices = @transform_15, window_bounds = array<i64: 1, 8>}, {pipeline_mode = #tpu.pipeline_mode<synchronous>, transform_indices = @transform_16, window_bounds = array<i64: 8, 32>}, {pipeline_mode = #tpu.pipeline_mode<synchronous>, transform_indices = @transform_17, window_bounds = array<i64: 5, 32>}, {transform_indices = @transform_18, window_bounds = array<i64: 1, 8, 32>}, {transform_indices = @transform_19, window_bounds = array<i64: 1, 1, 32>}]} {
    %c0 = arith.constant 0 : index
    %c0_0 = arith.constant 0 : index
    %c0_1 = arith.constant 0 : index
    %0 = vector.load %arg1[%c0, %c0_0, %c0_1] : memref<1x8x32xbf16, #tpu.memory_space<vmem>>, vector<1x8x32xbf16>
    %1 = vector.shape_cast %0 : vector<1x8x32xbf16> to vector<8x32xbf16>
    %2 = arith.extf %1 : vector<8x32xbf16> to vector<8x32xf32>
    %3 = arith.truncf %2 : vector<8x32xf32> to vector<8x32xbf16>
    %c0_2 = arith.constant 0 : index
    %c0_3 = arith.constant 0 : index
    %4 = vector.load %arg2[%c0_2, %c0_3] : memref<32x32xbf16, #tpu.memory_space<vmem>>, vector<32x32xbf16>
    %cst = arith.constant dense<0.000000e+00> : vector<8x32xf32>
    %5 = tpu.matmul %3, %4, %cst {dimension_numbers = #tpu.dot_dimension_numbers<[1], [0], [0], [1], [0, 0, 1, 1], [], []>} : vector<8x32xbf16>, vector<32x32xbf16>, vector<8x32xf32> -> vector<8x32xf32>
    %c0_4 = arith.constant 0 : index
    %c0_5 = arith.constant 0 : index
    %6 = vector.load %arg3[%c0_4, %c0_5] : memref<3x32xf32, #tpu.memory_space<vmem>>, vector<1x32xf32>
    %7 = vector.broadcast %6 : vector<1x32xf32> to vector<8x32xf32>
    %8 = arith.addf %5, %7 : vector<8x32xf32>
    %cst_6 = arith.constant 0.000000e+00 : f32
    %9 = vector.broadcast %cst_6 : f32 to vector<8x32xf32>
    %10 = arith.maximumf %8, %9 : vector<8x32xf32>
    %c1 = arith.constant 1 : index
    %c0_7 = arith.constant 0 : index
    %11 = vector.load %arg3[%c1, %c0_7] : memref<3x32xf32, #tpu.memory_space<vmem>>, vector<1x32xf32>
    %12 = vector.broadcast %11 : vector<1x32xf32> to vector<8x32xf32>
    %13 = arith.mulf %10, %12 : vector<8x32xf32>
    %c2 = arith.constant 2 : index
    %c0_8 = arith.constant 0 : index
    %14 = vector.load %arg3[%c2, %c0_8] : memref<3x32xf32, #tpu.memory_space<vmem>>, vector<1x32xf32>
    %15 = vector.broadcast %14 : vector<1x32xf32> to vector<8x32xf32>
    %16 = arith.addf %13, %15 : vector<8x32xf32>
    %17 = arith.truncf %16 : vector<8x32xf32> to vector<8x32xbf16>
    %cst_9 = arith.constant 0.000000e+00 : bf16
    %18 = vector.broadcast %cst_9 : bf16 to vector<2x32xbf16>
    %c0_10 = arith.constant 0 : index
    %c0_11 = arith.constant 0 : index
    %19 = vector.load %arg21[%c0_10, %c0_11] : memref<12x32xbf16, #tpu.memory_space<vmem>>, vector<2x32xbf16>
    tpu.vector_store %arg21[%c0_10, %c0_11], %18 {strides = array<i32>} : memref<12x32xbf16, #tpu.memory_space<vmem>>, vector<2x32xbf16>,
    %cst_12 = arith.constant 0.000000e+00 : bf16
    %20 = vector.broadcast %cst_12 : bf16 to vector<2x32xbf16>
    %c10 = arith.constant 10 : index
    %c0_13 = arith.constant 0 : index
    %21 = vector.load %arg21[%c10, %c0_13] : memref<12x32xbf16, #tpu.memory_space<vmem>>, vector<2x32xbf16>
    tpu.vector_store %arg21[%c10, %c0_13], %20 {strides = array<i32>} : memref<12x32xbf16, #tpu.memory_space<vmem>>, vector<2x32xbf16>,
    %c2_14 = arith.constant 2 : index
    %c0_15 = arith.constant 0 : index
    %22 = vector.load %arg21[%c2_14, %c0_15] : memref<12x32xbf16, #tpu.memory_space<vmem>>, vector<8x32xbf16>
    tpu.vector_store %arg21[%c2_14, %c0_15], %17 {strides = array<i32>} : memref<12x32xbf16, #tpu.memory_space<vmem>>, vector<8x32xbf16>,
    %c0_16 = arith.constant 0 : index
    %c0_17 = arith.constant 0 : index
    %23 = vector.load %arg4[%c0_16, %c0_17] : memref<32x32xbf16, #tpu.memory_space<vmem>>, vector<32x32xbf16>
    %cst_18 = arith.constant dense<0.000000e+00> : vector<8x32xf32>
    %24 = tpu.matmul %17, %23, %cst_18 {dimension_numbers = #tpu.dot_dimension_numbers<[1], [0], [0], [1], [0, 0, 1, 1], [], []>} : vector<8x32xbf16>, vector<32x32xbf16>, vector<8x32xf32> -> vector<8x32xf32>
    %c0_19 = arith.constant 0 : index
    %c0_20 = arith.constant 0 : index
    %25 = vector.load %arg14[%c0_19, %c0_20] : memref<3x32xf32, #tpu.memory_space<vmem>>, vector<1x32xf32>
    %26 = vector.broadcast %25 : vector<1x32xf32> to vector<8x32xf32>
    %27 = arith.addf %24, %26 : vector<8x32xf32>
    %cst_21 = arith.constant 0.000000e+00 : f32
    %28 = vector.broadcast %cst_21 : f32 to vector<8x32xf32>
    %c0_22 = arith.constant 0 : index
    %c0_23 = arith.constant 0 : index
    %29 = vector.load %arg21[%c0_22, %c0_23] : memref<12x32xbf16, #tpu.memory_space<vmem>>, vector<8x32xbf16>
    %c0_24 = arith.constant 0 : index
    %c0_25 = arith.constant 0 : index
    %c0_26 = arith.constant 0 : index
    %30 = vector.load %arg5[%c0_24, %c0_25, %c0_26] : memref<3x32x32xbf16, #tpu.memory_space<vmem>>, vector<1x32x32xbf16>
    %31 = vector.shape_cast %30 : vector<1x32x32xbf16> to vector<32x32xbf16>
    %cst_27 = arith.constant dense<0.000000e+00> : vector<8x32xf32>
    %32 = tpu.matmul %29, %31, %cst_27 {dimension_numbers = #tpu.dot_dimension_numbers<[1], [0], [0], [1], [0, 0, 1, 1], [], []>} : vector<8x32xbf16>, vector<32x32xbf16>, vector<8x32xf32> -> vector<8x32xf32>
    %33 = arith.addf %28, %32 : vector<8x32xf32>
    %c2_28 = arith.constant 2 : index
    %c0_29 = arith.constant 0 : index
    %34 = vector.load %arg21[%c2_28, %c0_29] : memref<12x32xbf16, #tpu.memory_space<vmem>>, vector<8x32xbf16>
    %c1_30 = arith.constant 1 : index
    %c0_31 = arith.constant 0 : index
    %c0_32 = arith.constant 0 : index
    %35 = vector.load %arg5[%c1_30, %c0_31, %c0_32] : memref<3x32x32xbf16, #tpu.memory_space<vmem>>, vector<1x32x32xbf16>
    %36 = vector.shape_cast %35 : vector<1x32x32xbf16> to vector<32x32xbf16>
    %cst_33 = arith.constant dense<0.000000e+00> : vector<8x32xf32>
    %37 = tpu.matmul %34, %36, %cst_33 {dimension_numbers = #tpu.dot_dimension_numbers<[1], [0], [0], [1], [0, 0, 1, 1], [], []>} : vector<8x32xbf16>, vector<32x32xbf16>, vector<8x32xf32> -> vector<8x32xf32>
    %38 = arith.addf %33, %37 : vector<8x32xf32>
    %c4 = arith.constant 4 : index
    %c0_34 = arith.constant 0 : index
    %39 = vector.load %arg21[%c4, %c0_34] : memref<12x32xbf16, #tpu.memory_space<vmem>>, vector<8x32xbf16>
    %c2_35 = arith.constant 2 : index
    %c0_36 = arith.constant 0 : index
    %c0_37 = arith.constant 0 : index
    %40 = vector.load %arg5[%c2_35, %c0_36, %c0_37] : memref<3x32x32xbf16, #tpu.memory_space<vmem>>, vector<1x32x32xbf16>
    %41 = vector.shape_cast %40 : vector<1x32x32xbf16> to vector<32x32xbf16>
    %cst_38 = arith.constant dense<0.000000e+00> : vector<8x32xf32>
    %42 = tpu.matmul %39, %41, %cst_38 {dimension_numbers = #tpu.dot_dimension_numbers<[1], [0], [0], [1], [0, 0, 1, 1], [], []>} : vector<8x32xbf16>, vector<32x32xbf16>, vector<8x32xf32> -> vector<8x32xf32>
    %43 = arith.addf %38, %42 : vector<8x32xf32>
    %c0_39 = arith.constant 0 : index
    %c0_40 = arith.constant 0 : index
    %44 = vector.load %arg7[%c0_39, %c0_40] : memref<3x32xf32, #tpu.memory_space<vmem>>, vector<1x32xf32>
    %45 = vector.broadcast %44 : vector<1x32xf32> to vector<8x32xf32>
    %46 = arith.addf %43, %45 : vector<8x32xf32>
    %cst_41 = arith.constant 0.000000e+00 : f32
    %47 = vector.broadcast %cst_41 : f32 to vector<8x32xf32>
    %48 = arith.maximumf %46, %47 : vector<8x32xf32>
    %c1_42 = arith.constant 1 : index
    %c0_43 = arith.constant 0 : index
    %49 = vector.load %arg7[%c1_42, %c0_43] : memref<3x32xf32, #tpu.memory_space<vmem>>, vector<1x32xf32>
    %50 = vector.broadcast %49 : vector<1x32xf32> to vector<8x32xf32>
    %51 = arith.mulf %48, %50 : vector<8x32xf32>
    %c2_44 = arith.constant 2 : index
    %c0_45 = arith.constant 0 : index
    %52 = vector.load %arg7[%c2_44, %c0_45] : memref<3x32xf32, #tpu.memory_space<vmem>>, vector<1x32xf32>
    %53 = vector.broadcast %52 : vector<1x32xf32> to vector<8x32xf32>
    %54 = arith.addf %51, %53 : vector<8x32xf32>
    %55 = arith.truncf %54 : vector<8x32xf32> to vector<8x32xbf16>
    %c0_46 = arith.constant 0 : index
    %c0_47 = arith.constant 0 : index
    %56 = vector.load %arg6[%c0_46, %c0_47] : memref<32x32xbf16, #tpu.memory_space<vmem>>, vector<32x32xbf16>
    %cst_48 = arith.constant dense<0.000000e+00> : vector<8x32xf32>
    %57 = tpu.matmul %55, %56, %cst_48 {dimension_numbers = #tpu.dot_dimension_numbers<[1], [0], [0], [1], [0, 0, 1, 1], [], []>} : vector<8x32xbf16>, vector<32x32xbf16>, vector<8x32xf32> -> vector<8x32xf32>
    %58 = arith.addf %27, %57 : vector<8x32xf32>
    %59 = vector.extract_strided_slice %55 {offsets = [0, 0], sizes = [8, 16], strides = [1, 1]} : vector<8x32xbf16> to vector<8x16xbf16>
    %c2_49 = arith.constant 2 : index
    %c0_50 = arith.constant 0 : index
    %60 = vector.load %arg21[%c2_49, %c0_50] : memref<12x32xbf16, #tpu.memory_space<vmem>>, vector<8x16xbf16>
    tpu.vector_store %arg21[%c2_49, %c0_50], %59 {strides = array<i32>} : memref<12x32xbf16, #tpu.memory_space<vmem>>, vector<8x16xbf16>,
    %cst_51 = arith.constant 0.000000e+00 : f32
    %61 = vector.broadcast %cst_51 : f32 to vector<8x32xf32>
    %c0_52 = arith.constant 0 : index
    %c0_53 = arith.constant 0 : index
    %62 = vector.load %arg21[%c0_52, %c0_53] : memref<12x32xbf16, #tpu.memory_space<vmem>>, vector<8x32xbf16>
    %c0_54 = arith.constant 0 : index
    %c0_55 = arith.constant 0 : index
    %c0_56 = arith.constant 0 : index
    %63 = vector.load %arg8[%c0_54, %c0_55, %c0_56] : memref<3x32x32xbf16, #tpu.memory_space<vmem>>, vector<1x32x32xbf16>
    %64 = vector.shape_cast %63 : vector<1x32x32xbf16> to vector<32x32xbf16>
    %cst_57 = arith.constant dense<0.000000e+00> : vector<8x32xf32>
    %65 = tpu.matmul %62, %64, %cst_57 {dimension_numbers = #tpu.dot_dimension_numbers<[1], [0], [0], [1], [0, 0, 1, 1], [], []>} : vector<8x32xbf16>, vector<32x32xbf16>, vector<8x32xf32> -> vector<8x32xf32>
    %66 = arith.addf %61, %65 : vector<8x32xf32>
    %c2_58 = arith.constant 2 : index
    %c0_59 = arith.constant 0 : index
    %67 = vector.load %arg21[%c2_58, %c0_59] : memref<12x32xbf16, #tpu.memory_space<vmem>>, vector<8x32xbf16>
    %c1_60 = arith.constant 1 : index
    %c0_61 = arith.constant 0 : index
    %c0_62 = arith.constant 0 : index
    %68 = vector.load %arg8[%c1_60, %c0_61, %c0_62] : memref<3x32x32xbf16, #tpu.memory_space<vmem>>, vector<1x32x32xbf16>
    %69 = vector.shape_cast %68 : vector<1x32x32xbf16> to vector<32x32xbf16>
    %cst_63 = arith.constant dense<0.000000e+00> : vector<8x32xf32>
    %70 = tpu.matmul %67, %69, %cst_63 {dimension_numbers = #tpu.dot_dimension_numbers<[1], [0], [0], [1], [0, 0, 1, 1], [], []>} : vector<8x32xbf16>, vector<32x32xbf16>, vector<8x32xf32> -> vector<8x32xf32>
    %71 = arith.addf %66, %70 : vector<8x32xf32>
    %c4_64 = arith.constant 4 : index
    %c0_65 = arith.constant 0 : index
    %72 = vector.load %arg21[%c4_64, %c0_65] : memref<12x32xbf16, #tpu.memory_space<vmem>>, vector<8x32xbf16>
    %c2_66 = arith.constant 2 : index
    %c0_67 = arith.constant 0 : index
    %c0_68 = arith.constant 0 : index
    %73 = vector.load %arg8[%c2_66, %c0_67, %c0_68] : memref<3x32x32xbf16, #tpu.memory_space<vmem>>, vector<1x32x32xbf16>
    %74 = vector.shape_cast %73 : vector<1x32x32xbf16> to vector<32x32xbf16>
    %cst_69 = arith.constant dense<0.000000e+00> : vector<8x32xf32>
    %75 = tpu.matmul %72, %74, %cst_69 {dimension_numbers = #tpu.dot_dimension_numbers<[1], [0], [0], [1], [0, 0, 1, 1], [], []>} : vector<8x32xbf16>, vector<32x32xbf16>, vector<8x32xf32> -> vector<8x32xf32>
    %76 = arith.addf %71, %75 : vector<8x32xf32>
    %c0_70 = arith.constant 0 : index
    %c0_71 = arith.constant 0 : index
    %77 = vector.load %arg10[%c0_70, %c0_71] : memref<3x32xf32, #tpu.memory_space<vmem>>, vector<1x32xf32>
    %78 = vector.broadcast %77 : vector<1x32xf32> to vector<8x32xf32>
    %79 = arith.addf %76, %78 : vector<8x32xf32>
    %cst_72 = arith.constant 0.000000e+00 : f32
    %80 = vector.broadcast %cst_72 : f32 to vector<8x32xf32>
    %81 = arith.maximumf %79, %80 : vector<8x32xf32>
    %c1_73 = arith.constant 1 : index
    %c0_74 = arith.constant 0 : index
    %82 = vector.load %arg10[%c1_73, %c0_74] : memref<3x32xf32, #tpu.memory_space<vmem>>, vector<1x32xf32>
    %83 = vector.broadcast %82 : vector<1x32xf32> to vector<8x32xf32>
    %84 = arith.mulf %81, %83 : vector<8x32xf32>
    %c2_75 = arith.constant 2 : index
    %c0_76 = arith.constant 0 : index
    %85 = vector.load %arg10[%c2_75, %c0_76] : memref<3x32xf32, #tpu.memory_space<vmem>>, vector<1x32xf32>
    %86 = vector.broadcast %85 : vector<1x32xf32> to vector<8x32xf32>
    %87 = arith.addf %84, %86 : vector<8x32xf32>
    %88 = arith.truncf %87 : vector<8x32xf32> to vector<8x32xbf16>
    %c0_77 = arith.constant 0 : index
    %c0_78 = arith.constant 0 : index
    %89 = vector.load %arg9[%c0_77, %c0_78] : memref<32x32xbf16, #tpu.memory_space<vmem>>, vector<32x32xbf16>
    %cst_79 = arith.constant dense<0.000000e+00> : vector<8x32xf32>
    %90 = tpu.matmul %88, %89, %cst_79 {dimension_numbers = #tpu.dot_dimension_numbers<[1], [0], [0], [1], [0, 0, 1, 1], [], []>} : vector<8x32xbf16>, vector<32x32xbf16>, vector<8x32xf32> -> vector<8x32xf32>
    %91 = arith.addf %58, %90 : vector<8x32xf32>
    %92 = vector.extract_strided_slice %88 {offsets = [0, 0], sizes = [8, 24], strides = [1, 1]} : vector<8x32xbf16> to vector<8x24xbf16>
    %c2_80 = arith.constant 2 : index
    %c0_81 = arith.constant 0 : index
    %93 = vector.load %arg21[%c2_80, %c0_81] : memref<12x32xbf16, #tpu.memory_space<vmem>>, vector<8x24xbf16>
    tpu.vector_store %arg21[%c2_80, %c0_81], %92 {strides = array<i32>} : memref<12x32xbf16, #tpu.memory_space<vmem>>, vector<8x24xbf16>,
    %cst_82 = arith.constant 0.000000e+00 : f32
    %94 = vector.broadcast %cst_82 : f32 to vector<8x32xf32>
    %c0_83 = arith.constant 0 : index
    %c0_84 = arith.constant 0 : index
    %95 = vector.load %arg21[%c0_83, %c0_84] : memref<12x32xbf16, #tpu.memory_space<vmem>>, vector<8x32xbf16>
    %c0_85 = arith.constant 0 : index
    %c0_86 = arith.constant 0 : index
    %c0_87 = arith.constant 0 : index
    %96 = vector.load %arg11[%c0_85, %c0_86, %c0_87] : memref<3x32x32xbf16, #tpu.memory_space<vmem>>, vector<1x32x32xbf16>
    %97 = vector.shape_cast %96 : vector<1x32x32xbf16> to vector<32x32xbf16>
    %cst_88 = arith.constant dense<0.000000e+00> : vector<8x32xf32>
    %98 = tpu.matmul %95, %97, %cst_88 {dimension_numbers = #tpu.dot_dimension_numbers<[1], [0], [0], [1], [0, 0, 1, 1], [], []>} : vector<8x32xbf16>, vector<32x32xbf16>, vector<8x32xf32> -> vector<8x32xf32>
    %99 = arith.addf %94, %98 : vector<8x32xf32>
    %c2_89 = arith.constant 2 : index
    %c0_90 = arith.constant 0 : index
    %100 = vector.load %arg21[%c2_89, %c0_90] : memref<12x32xbf16, #tpu.memory_space<vmem>>, vector<8x32xbf16>
    %c1_91 = arith.constant 1 : index
    %c0_92 = arith.constant 0 : index
    %c0_93 = arith.constant 0 : index
    %101 = vector.load %arg11[%c1_91, %c0_92, %c0_93] : memref<3x32x32xbf16, #tpu.memory_space<vmem>>, vector<1x32x32xbf16>
    %102 = vector.shape_cast %101 : vector<1x32x32xbf16> to vector<32x32xbf16>
    %cst_94 = arith.constant dense<0.000000e+00> : vector<8x32xf32>
    %103 = tpu.matmul %100, %102, %cst_94 {dimension_numbers = #tpu.dot_dimension_numbers<[1], [0], [0], [1], [0, 0, 1, 1], [], []>} : vector<8x32xbf16>, vector<32x32xbf16>, vector<8x32xf32> -> vector<8x32xf32>
    %104 = arith.addf %99, %103 : vector<8x32xf32>
    %c4_95 = arith.constant 4 : index
    %c0_96 = arith.constant 0 : index
    %105 = vector.load %arg21[%c4_95, %c0_96] : memref<12x32xbf16, #tpu.memory_space<vmem>>, vector<8x32xbf16>
    %c2_97 = arith.constant 2 : index
    %c0_98 = arith.constant 0 : index
    %c0_99 = arith.constant 0 : index
    %106 = vector.load %arg11[%c2_97, %c0_98, %c0_99] : memref<3x32x32xbf16, #tpu.memory_space<vmem>>, vector<1x32x32xbf16>
    %107 = vector.shape_cast %106 : vector<1x32x32xbf16> to vector<32x32xbf16>
    %cst_100 = arith.constant dense<0.000000e+00> : vector<8x32xf32>
    %108 = tpu.matmul %105, %107, %cst_100 {dimension_numbers = #tpu.dot_dimension_numbers<[1], [0], [0], [1], [0, 0, 1, 1], [], []>} : vector<8x32xbf16>, vector<32x32xbf16>, vector<8x32xf32> -> vector<8x32xf32>
    %109 = arith.addf %104, %108 : vector<8x32xf32>
    %c0_101 = arith.constant 0 : index
    %c0_102 = arith.constant 0 : index
    %110 = vector.load %arg13[%c0_101, %c0_102] : memref<3x32xf32, #tpu.memory_space<vmem>>, vector<1x32xf32>
    %111 = vector.broadcast %110 : vector<1x32xf32> to vector<8x32xf32>
    %112 = arith.addf %109, %111 : vector<8x32xf32>
    %cst_103 = arith.constant 0.000000e+00 : f32
    %113 = vector.broadcast %cst_103 : f32 to vector<8x32xf32>
    %114 = arith.maximumf %112, %113 : vector<8x32xf32>
    %c1_104 = arith.constant 1 : index
    %c0_105 = arith.constant 0 : index
    %115 = vector.load %arg13[%c1_104, %c0_105] : memref<3x32xf32, #tpu.memory_space<vmem>>, vector<1x32xf32>
    %116 = vector.broadcast %115 : vector<1x32xf32> to vector<8x32xf32>
    %117 = arith.mulf %114, %116 : vector<8x32xf32>
    %c2_106 = arith.constant 2 : index
    %c0_107 = arith.constant 0 : index
    %118 = vector.load %arg13[%c2_106, %c0_107] : memref<3x32xf32, #tpu.memory_space<vmem>>, vector<1x32xf32>
    %119 = vector.broadcast %118 : vector<1x32xf32> to vector<8x32xf32>
    %120 = arith.addf %117, %119 : vector<8x32xf32>
    %121 = arith.truncf %120 : vector<8x32xf32> to vector<8x32xbf16>
    %c0_108 = arith.constant 0 : index
    %c0_109 = arith.constant 0 : index
    %122 = vector.load %arg12[%c0_108, %c0_109] : memref<32x32xbf16, #tpu.memory_space<vmem>>, vector<32x32xbf16>
    %cst_110 = arith.constant dense<0.000000e+00> : vector<8x32xf32>
    %123 = tpu.matmul %121, %122, %cst_110 {dimension_numbers = #tpu.dot_dimension_numbers<[1], [0], [0], [1], [0, 0, 1, 1], [], []>} : vector<8x32xbf16>, vector<32x32xbf16>, vector<8x32xf32> -> vector<8x32xf32>
    %124 = arith.addf %91, %123 : vector<8x32xf32>
    %cst_111 = arith.constant 0.000000e+00 : f32
    %125 = vector.broadcast %cst_111 : f32 to vector<8x32xf32>
    %126 = arith.maximumf %124, %125 : vector<8x32xf32>
    %c1_112 = arith.constant 1 : index
    %c0_113 = arith.constant 0 : index
    %127 = vector.load %arg14[%c1_112, %c0_113] : memref<3x32xf32, #tpu.memory_space<vmem>>, vector<1x32xf32>
    %128 = vector.broadcast %127 : vector<1x32xf32> to vector<8x32xf32>
    %129 = arith.mulf %126, %128 : vector<8x32xf32>
    %c2_114 = arith.constant 2 : index
    %c0_115 = arith.constant 0 : index
    %130 = vector.load %arg14[%c2_114, %c0_115] : memref<3x32xf32, #tpu.memory_space<vmem>>, vector<1x32xf32>
    %131 = vector.broadcast %130 : vector<1x32xf32> to vector<8x32xf32>
    %132 = arith.addf %129, %131 : vector<8x32xf32>
    %cst_116 = arith.constant dense<0.000000e+00> : vector<32xf32>
    %133 = vector.multi_reduction <add>, %132, %cst_116 [0] : vector<8x32xf32> to vector<32xf32>
    %134 = vector.shape_cast %133 : vector<32xf32> to vector<1x32xf32>
    %cst_117 = arith.constant 8.000000e+00 : f32
    %135 = vector.broadcast %cst_117 : f32 to vector<1x32xf32>
    %136 = arith.divf %134, %135 : vector<1x32xf32>
    %137 = arith.truncf %136 : vector<1x32xf32> to vector<1x32xbf16>
    %c0_118 = arith.constant 0 : index
    %c0_119 = arith.constant 0 : index
    %138 = vector.load %arg15[%c0_118, %c0_119] : memref<32x8xbf16, #tpu.memory_space<vmem>>, vector<32x8xbf16>
    %cst_120 = arith.constant dense<0.000000e+00> : vector<1x8xf32>
    %139 = tpu.matmul %137, %138, %cst_120 {dimension_numbers = #tpu.dot_dimension_numbers<[1], [0], [0], [1], [0, 0, 1, 1], [], []>} : vector<1x32xbf16>, vector<32x8xbf16>, vector<1x8xf32> -> vector<1x8xf32>
    %c0_121 = arith.constant 0 : index
    %c0_122 = arith.constant 0 : index
    %140 = vector.load %arg16[%c0_121, %c0_122] : memref<1x8xf32, #tpu.memory_space<vmem>>, vector<1x8xf32>
    %141 = arith.addf %139, %140 : vector<1x8xf32>
    %cst_123 = arith.constant 0.000000e+00 : f32
    %142 = vector.broadcast %cst_123 : f32 to vector<1x8xf32>
    %143 = arith.maximumf %141, %142 : vector<1x8xf32>
    %144 = arith.truncf %143 : vector<1x8xf32> to vector<1x8xbf16>
    %c0_124 = arith.constant 0 : index
    %c0_125 = arith.constant 0 : index
    %145 = vector.load %arg17[%c0_124, %c0_125] : memref<8x32xbf16, #tpu.memory_space<vmem>>, vector<8x32xbf16>
    %cst_126 = arith.constant dense<0.000000e+00> : vector<1x32xf32>
    %146 = tpu.matmul %144, %145, %cst_126 {dimension_numbers = #tpu.dot_dimension_numbers<[1], [0], [0], [1], [0, 0, 1, 1], [], []>} : vector<1x8xbf16>, vector<8x32xbf16>, vector<1x32xf32> -> vector<1x32xf32>
    %c0_127 = arith.constant 0 : index
    %c0_128 = arith.constant 0 : index
    %147 = vector.load %arg18[%c0_127, %c0_128] : memref<5x32xf32, #tpu.memory_space<vmem>>, vector<1x32xf32>
    %148 = arith.addf %146, %147 : vector<1x32xf32>
    %149 = arith.negf %148 : vector<1x32xf32>
    %150 = math.exp %149 : vector<1x32xf32>
    %cst_129 = arith.constant 1.000000e+00 : f32
    %151 = vector.broadcast %cst_129 : f32 to vector<1x32xf32>
    %152 = arith.addf %151, %150 : vector<1x32xf32>
    %153 = arith.divf %151, %152 : vector<1x32xf32>
    %154 = vector.broadcast %153 : vector<1x32xf32> to vector<8x32xf32>
    %155 = arith.mulf %132, %154 : vector<8x32xf32>
    %156 = arith.addf %155, %2 : vector<8x32xf32>
    %cst_130 = arith.constant 0.000000e+00 : f32
    %157 = vector.broadcast %cst_130 : f32 to vector<8x32xf32>
    %158 = arith.maximumf %156, %157 : vector<8x32xf32>
    %c1_131 = arith.constant 1 : index
    %c0_132 = arith.constant 0 : index
    %159 = vector.load %arg18[%c1_131, %c0_132] : memref<5x32xf32, #tpu.memory_space<vmem>>, vector<1x32xf32>
    %160 = vector.broadcast %159 : vector<1x32xf32> to vector<8x32xf32>
    %161 = arith.mulf %158, %160 : vector<8x32xf32>
    %c2_133 = arith.constant 2 : index
    %c0_134 = arith.constant 0 : index
    %162 = vector.load %arg18[%c2_133, %c0_134] : memref<5x32xf32, #tpu.memory_space<vmem>>, vector<1x32xf32>
    %163 = vector.broadcast %162 : vector<1x32xf32> to vector<8x32xf32>
    %164 = arith.addf %161, %163 : vector<8x32xf32>
    %165 = arith.truncf %164 : vector<8x32xf32> to vector<8x32xbf16>
    %c0_135 = arith.constant 0 : index
    %c0_136 = arith.constant 0 : index
    %c0_137 = arith.constant 0 : index
    %166 = vector.load %arg19[%c0_135, %c0_136, %c0_137] : memref<1x8x32xbf16, #tpu.memory_space<vmem>>, vector<1x8x32xbf16>
    %167 = vector.shape_cast %166 : vector<1x8x32xbf16> to vector<8x32xbf16>
    %168 = vector.shape_cast %165 : vector<8x32xbf16> to vector<1x8x32xbf16>
    tpu.vector_store %arg19[%c0_135, %c0_136, %c0_137], %168 {strides = array<i32>} : memref<1x8x32xbf16, #tpu.memory_space<vmem>>, vector<1x8x32xbf16>,
    %c3 = arith.constant 3 : index
    %c0_138 = arith.constant 0 : index
    %169 = vector.load %arg18[%c3, %c0_138] : memref<5x32xf32, #tpu.memory_space<vmem>>, vector<1x32xf32>
    %170 = vector.broadcast %169 : vector<1x32xf32> to vector<8x32xf32>
    %171 = arith.mulf %164, %170 : vector<8x32xf32>
    %c4_139 = arith.constant 4 : index
    %c0_140 = arith.constant 0 : index
    %172 = vector.load %arg18[%c4_139, %c0_140] : memref<5x32xf32, #tpu.memory_space<vmem>>, vector<1x32xf32>
    %173 = vector.broadcast %172 : vector<1x32xf32> to vector<8x32xf32>
    %174 = arith.addf %171, %173 : vector<8x32xf32>
    %cst_141 = arith.constant 0.000000e+00 : f32
    %175 = vector.broadcast %cst_141 : f32 to vector<8x32xf32>
    %176 = arith.maximumf %174, %175 : vector<8x32xf32>
    %cst_142 = arith.constant dense<0.000000e+00> : vector<32xf32>
    %177 = vector.multi_reduction <add>, %176, %cst_142 [0] : vector<8x32xf32> to vector<32xf32>
    %178 = vector.shape_cast %177 : vector<32xf32> to vector<1x32xf32>
    %cst_143 = arith.constant 1.250000e-01 : f32
    %179 = vector.broadcast %cst_143 : f32 to vector<1x32xf32>
    %180 = arith.mulf %178, %179 : vector<1x32xf32>
    %c0_144 = arith.constant 0 : index
    %c0_145 = arith.constant 0 : index
    %c0_146 = arith.constant 0 : index
    %181 = vector.load %arg20[%c0_144, %c0_145, %c0_146] : memref<1x1x32xf32, #tpu.memory_space<vmem>>, vector<1x1x32xf32>
    %182 = vector.shape_cast %181 : vector<1x1x32xf32> to vector<1x32xf32>
    %183 = vector.shape_cast %180 : vector<1x32xf32> to vector<1x1x32xf32>
    tpu.vector_store %arg20[%c0_144, %c0_145, %c0_146], %183 {strides = array<i32>} : memref<1x1x32xf32, #tpu.memory_space<vmem>>, vector<1x1x32xf32>,
    return
  }
  func.func @transform_0(%arg0: i32) -> (i32, i32, i32) {
    %c0_i32 = arith.constant 0 : i32
    %c0_i32_0 = arith.constant 0 : i32
    %c0_i32_1 = arith.constant 0 : i32
    return %arg0, %c0_i32, %c0_i32_0 : i32, i32, i32
  }
  func.func @transform_1(%arg0: i32) -> (i32, i32) {
    %c0_i32 = arith.constant 0 : i32
    %c0_i32_0 = arith.constant 0 : i32
    %c0_i32_1 = arith.constant 0 : i32
    return %c0_i32, %c0_i32_0 : i32, i32
  }
  func.func @transform_2(%arg0: i32) -> (i32, i32) {
    %c0_i32 = arith.constant 0 : i32
    %c0_i32_0 = arith.constant 0 : i32
    %c0_i32_1 = arith.constant 0 : i32
    return %c0_i32, %c0_i32_0 : i32, i32
  }
  func.func @transform_3(%arg0: i32) -> (i32, i32) {
    %c0_i32 = arith.constant 0 : i32
    %c0_i32_0 = arith.constant 0 : i32
    %c0_i32_1 = arith.constant 0 : i32
    return %c0_i32, %c0_i32_0 : i32, i32
  }
  func.func @transform_4(%arg0: i32) -> (i32, i32, i32) {
    %c0_i32 = arith.constant 0 : i32
    %c0_i32_0 = arith.constant 0 : i32
    %c0_i32_1 = arith.constant 0 : i32
    %c0_i32_2 = arith.constant 0 : i32
    return %c0_i32, %c0_i32_0, %c0_i32_1 : i32, i32, i32
  }
  func.func @transform_5(%arg0: i32) -> (i32, i32) {
    %c0_i32 = arith.constant 0 : i32
    %c0_i32_0 = arith.constant 0 : i32
    %c0_i32_1 = arith.constant 0 : i32
    return %c0_i32, %c0_i32_0 : i32, i32
  }
  func.func @transform_6(%arg0: i32) -> (i32, i32) {
    %c0_i32 = arith.constant 0 : i32
    %c0_i32_0 = arith.constant 0 : i32
    %c0_i32_1 = arith.constant 0 : i32
    return %c0_i32, %c0_i32_0 : i32, i32
  }
  func.func @transform_7(%arg0: i32) -> (i32, i32, i32) {
    %c0_i32 = arith.constant 0 : i32
    %c0_i32_0 = arith.constant 0 : i32
    %c0_i32_1 = arith.constant 0 : i32
    %c0_i32_2 = arith.constant 0 : i32
    return %c0_i32, %c0_i32_0, %c0_i32_1 : i32, i32, i32
  }
  func.func @transform_8(%arg0: i32) -> (i32, i32) {
    %c0_i32 = arith.constant 0 : i32
    %c0_i32_0 = arith.constant 0 : i32
    %c0_i32_1 = arith.constant 0 : i32
    return %c0_i32, %c0_i32_0 : i32, i32
  }
  func.func @transform_9(%arg0: i32) -> (i32, i32) {
    %c0_i32 = arith.constant 0 : i32
    %c0_i32_0 = arith.constant 0 : i32
    %c0_i32_1 = arith.constant 0 : i32
    return %c0_i32, %c0_i32_0 : i32, i32
  }
  func.func @transform_10(%arg0: i32) -> (i32, i32, i32) {
    %c0_i32 = arith.constant 0 : i32
    %c0_i32_0 = arith.constant 0 : i32
    %c0_i32_1 = arith.constant 0 : i32
    %c0_i32_2 = arith.constant 0 : i32
    return %c0_i32, %c0_i32_0, %c0_i32_1 : i32, i32, i32
  }
  func.func @transform_11(%arg0: i32) -> (i32, i32) {
    %c0_i32 = arith.constant 0 : i32
    %c0_i32_0 = arith.constant 0 : i32
    %c0_i32_1 = arith.constant 0 : i32
    return %c0_i32, %c0_i32_0 : i32, i32
  }
  func.func @transform_12(%arg0: i32) -> (i32, i32) {
    %c0_i32 = arith.constant 0 : i32
    %c0_i32_0 = arith.constant 0 : i32
    %c0_i32_1 = arith.constant 0 : i32
    return %c0_i32, %c0_i32_0 : i32, i32
  }
  func.func @transform_13(%arg0: i32) -> (i32, i32) {
    %c0_i32 = arith.constant 0 : i32
    %c0_i32_0 = arith.constant 0 : i32
    %c0_i32_1 = arith.constant 0 : i32
    return %c0_i32, %c0_i32_0 : i32, i32
  }
  func.func @transform_14(%arg0: i32) -> (i32, i32) {
    %c0_i32 = arith.constant 0 : i32
    %c0_i32_0 = arith.constant 0 : i32
    %c0_i32_1 = arith.constant 0 : i32
    return %c0_i32, %c0_i32_0 : i32, i32
  }
  func.func @transform_15(%arg0: i32) -> (i32, i32) {
    %c0_i32 = arith.constant 0 : i32
    %c0_i32_0 = arith.constant 0 : i32
    %c0_i32_1 = arith.constant 0 : i32
    return %c0_i32, %c0_i32_0 : i32, i32
  }
  func.func @transform_16(%arg0: i32) -> (i32, i32) {
    %c0_i32 = arith.constant 0 : i32
    %c0_i32_0 = arith.constant 0 : i32
    %c0_i32_1 = arith.constant 0 : i32
    return %c0_i32, %c0_i32_0 : i32, i32
  }
  func.func @transform_17(%arg0: i32) -> (i32, i32) {
    %c0_i32 = arith.constant 0 : i32
    %c0_i32_0 = arith.constant 0 : i32
    %c0_i32_1 = arith.constant 0 : i32
    return %c0_i32, %c0_i32_0 : i32, i32
  }
  func.func @transform_18(%arg0: i32) -> (i32, i32, i32) {
    %c0_i32 = arith.constant 0 : i32
    %c0_i32_0 = arith.constant 0 : i32
    %c0_i32_1 = arith.constant 0 : i32
    return %arg0, %c0_i32, %c0_i32_0 : i32, i32, i32
  }
  func.func @transform_19(%arg0: i32) -> (i32, i32, i32) {
    %c0_i32 = arith.constant 0 : i32
    %c0_i32_0 = arith.constant 0 : i32
    %c0_i32_1 = arith.constant 0 : i32
    return %arg0, %c0_i32, %c0_i32_0 : i32, i32, i32
  }
}

module attributes {stable_mosaic.version = 11 : i64} {
  func.func @_bottle2neck_kernel(%arg0: i32, %arg1: memref<1x8x32xbf16, #tpu.memory_space<vmem>>, %arg2: memref<1x8x32xbf16, #tpu.memory_space<vmem>>, %arg3: memref<32x32xbf16, #tpu.memory_space<vmem>>, %arg4: memref<3x32xf32, #tpu.memory_space<vmem>>, %arg5: memref<32x32xbf16, #tpu.memory_space<vmem>>, %arg6: memref<3x32x32xbf16, #tpu.memory_space<vmem>>, %arg7: memref<32x32xbf16, #tpu.memory_space<vmem>>, %arg8: memref<3x32xf32, #tpu.memory_space<vmem>>, %arg9: memref<3x32x32xbf16, #tpu.memory_space<vmem>>, %arg10: memref<32x32xbf16, #tpu.memory_space<vmem>>, %arg11: memref<3x32xf32, #tpu.memory_space<vmem>>, %arg12: memref<3x32x32xbf16, #tpu.memory_space<vmem>>, %arg13: memref<32x32xbf16, #tpu.memory_space<vmem>>, %arg14: memref<3x32xf32, #tpu.memory_space<vmem>>, %arg15: memref<3x32xf32, #tpu.memory_space<vmem>>, %arg16: memref<32x8xbf16, #tpu.memory_space<vmem>>, %arg17: memref<1x8xf32, #tpu.memory_space<vmem>>, %arg18: memref<8x32xbf16, #tpu.memory_space<vmem>>, %arg19: memref<5x32xf32, #tpu.memory_space<vmem>>, %arg20: memref<1x8x32xbf16, #tpu.memory_space<vmem>>, %arg21: memref<1x1x32xf32, #tpu.memory_space<vmem>>, %arg22: memref<12x32xbf16, #tpu.memory_space<vmem>>) attributes {dimension_semantics = [#tpu.dimension_semantics<parallel>], iteration_bounds = array<i64: 2>, scalar_prefetch = 0 : i64, scratch_operands = 1 : i64, tpu.core_type = #tpu.core_type<tc>, window_params = [{transform_indices = @transform_0, window_bounds = array<i64: 1, 8, 32>}, {transform_indices = @transform_1, window_bounds = array<i64: 1, 8, 32>}, {pipeline_mode = #tpu.pipeline_mode<synchronous>, transform_indices = @transform_2, window_bounds = array<i64: 32, 32>}, {pipeline_mode = #tpu.pipeline_mode<synchronous>, transform_indices = @transform_3, window_bounds = array<i64: 3, 32>}, {pipeline_mode = #tpu.pipeline_mode<synchronous>, transform_indices = @transform_4, window_bounds = array<i64: 32, 32>}, {pipeline_mode = #tpu.pipeline_mode<synchronous>, transform_indices = @transform_5, window_bounds = array<i64: 3, 32, 32>}, {pipeline_mode = #tpu.pipeline_mode<synchronous>, transform_indices = @transform_6, window_bounds = array<i64: 32, 32>}, {pipeline_mode = #tpu.pipeline_mode<synchronous>, transform_indices = @transform_7, window_bounds = array<i64: 3, 32>}, {pipeline_mode = #tpu.pipeline_mode<synchronous>, transform_indices = @transform_8, window_bounds = array<i64: 3, 32, 32>}, {pipeline_mode = #tpu.pipeline_mode<synchronous>, transform_indices = @transform_9, window_bounds = array<i64: 32, 32>}, {pipeline_mode = #tpu.pipeline_mode<synchronous>, transform_indices = @transform_10, window_bounds = array<i64: 3, 32>}, {pipeline_mode = #tpu.pipeline_mode<synchronous>, transform_indices = @transform_11, window_bounds = array<i64: 3, 32, 32>}, {pipeline_mode = #tpu.pipeline_mode<synchronous>, transform_indices = @transform_12, window_bounds = array<i64: 32, 32>}, {pipeline_mode = #tpu.pipeline_mode<synchronous>, transform_indices = @transform_13, window_bounds = array<i64: 3, 32>}, {pipeline_mode = #tpu.pipeline_mode<synchronous>, transform_indices = @transform_14, window_bounds = array<i64: 3, 32>}, {pipeline_mode = #tpu.pipeline_mode<synchronous>, transform_indices = @transform_15, window_bounds = array<i64: 32, 8>}, {pipeline_mode = #tpu.pipeline_mode<synchronous>, transform_indices = @transform_16, window_bounds = array<i64: 1, 8>}, {pipeline_mode = #tpu.pipeline_mode<synchronous>, transform_indices = @transform_17, window_bounds = array<i64: 8, 32>}, {pipeline_mode = #tpu.pipeline_mode<synchronous>, transform_indices = @transform_18, window_bounds = array<i64: 5, 32>}, {transform_indices = @transform_19, window_bounds = array<i64: 1, 8, 32>}, {transform_indices = @transform_20, window_bounds = array<i64: 1, 1, 32>}]} {
    %c0 = arith.constant 0 : index
    %c0_0 = arith.constant 0 : index
    %c0_1 = arith.constant 0 : index
    %0 = vector.load %arg1[%c0, %c0_0, %c0_1] : memref<1x8x32xbf16, #tpu.memory_space<vmem>>, vector<1x8x32xbf16>
    %1 = vector.shape_cast %0 : vector<1x8x32xbf16> to vector<8x32xbf16>
    %2 = arith.extf %1 : vector<8x32xbf16> to vector<8x32xf32>
    %c0_2 = arith.constant 0 : index
    %c0_3 = arith.constant 0 : index
    %c0_4 = arith.constant 0 : index
    %3 = vector.load %arg2[%c0_2, %c0_3, %c0_4] : memref<1x8x32xbf16, #tpu.memory_space<vmem>>, vector<1x8x32xbf16>
    %4 = vector.shape_cast %3 : vector<1x8x32xbf16> to vector<8x32xbf16>
    %5 = arith.extf %4 : vector<8x32xbf16> to vector<8x32xf32>
    %6 = arith.addf %2, %5 : vector<8x32xf32>
    %7 = arith.truncf %6 : vector<8x32xf32> to vector<8x32xbf16>
    %c0_5 = arith.constant 0 : index
    %c0_6 = arith.constant 0 : index
    %8 = vector.load %arg3[%c0_5, %c0_6] : memref<32x32xbf16, #tpu.memory_space<vmem>>, vector<32x32xbf16>
    %cst = arith.constant dense<0.000000e+00> : vector<8x32xf32>
    %9 = tpu.matmul %7, %8, %cst {dimension_numbers = #tpu.dot_dimension_numbers<[1], [0], [0], [1], [0, 0, 1, 1], [], []>} : vector<8x32xbf16>, vector<32x32xbf16>, vector<8x32xf32> -> vector<8x32xf32>
    %c0_7 = arith.constant 0 : index
    %c0_8 = arith.constant 0 : index
    %10 = vector.load %arg4[%c0_7, %c0_8] : memref<3x32xf32, #tpu.memory_space<vmem>>, vector<1x32xf32>
    %11 = vector.broadcast %10 : vector<1x32xf32> to vector<8x32xf32>
    %12 = arith.addf %9, %11 : vector<8x32xf32>
    %cst_9 = arith.constant 0.000000e+00 : f32
    %13 = vector.broadcast %cst_9 : f32 to vector<8x32xf32>
    %14 = arith.maximumf %12, %13 : vector<8x32xf32>
    %c1 = arith.constant 1 : index
    %c0_10 = arith.constant 0 : index
    %15 = vector.load %arg4[%c1, %c0_10] : memref<3x32xf32, #tpu.memory_space<vmem>>, vector<1x32xf32>
    %16 = vector.broadcast %15 : vector<1x32xf32> to vector<8x32xf32>
    %17 = arith.mulf %14, %16 : vector<8x32xf32>
    %c2 = arith.constant 2 : index
    %c0_11 = arith.constant 0 : index
    %18 = vector.load %arg4[%c2, %c0_11] : memref<3x32xf32, #tpu.memory_space<vmem>>, vector<1x32xf32>
    %19 = vector.broadcast %18 : vector<1x32xf32> to vector<8x32xf32>
    %20 = arith.addf %17, %19 : vector<8x32xf32>
    %21 = arith.truncf %20 : vector<8x32xf32> to vector<8x32xbf16>
    %cst_12 = arith.constant 0.000000e+00 : bf16
    %22 = vector.broadcast %cst_12 : bf16 to vector<2x32xbf16>
    %c0_13 = arith.constant 0 : index
    %c0_14 = arith.constant 0 : index
    %23 = vector.load %arg22[%c0_13, %c0_14] : memref<12x32xbf16, #tpu.memory_space<vmem>>, vector<2x32xbf16>
    tpu.vector_store %arg22[%c0_13, %c0_14], %22 {strides = array<i32>} : memref<12x32xbf16, #tpu.memory_space<vmem>>, vector<2x32xbf16>,
    %cst_15 = arith.constant 0.000000e+00 : bf16
    %24 = vector.broadcast %cst_15 : bf16 to vector<2x32xbf16>
    %c10 = arith.constant 10 : index
    %c0_16 = arith.constant 0 : index
    %25 = vector.load %arg22[%c10, %c0_16] : memref<12x32xbf16, #tpu.memory_space<vmem>>, vector<2x32xbf16>
    tpu.vector_store %arg22[%c10, %c0_16], %24 {strides = array<i32>} : memref<12x32xbf16, #tpu.memory_space<vmem>>, vector<2x32xbf16>,
    %c2_17 = arith.constant 2 : index
    %c0_18 = arith.constant 0 : index
    %26 = vector.load %arg22[%c2_17, %c0_18] : memref<12x32xbf16, #tpu.memory_space<vmem>>, vector<8x32xbf16>
    tpu.vector_store %arg22[%c2_17, %c0_18], %21 {strides = array<i32>} : memref<12x32xbf16, #tpu.memory_space<vmem>>, vector<8x32xbf16>,
    %c0_19 = arith.constant 0 : index
    %c0_20 = arith.constant 0 : index
    %27 = vector.load %arg5[%c0_19, %c0_20] : memref<32x32xbf16, #tpu.memory_space<vmem>>, vector<32x32xbf16>
    %cst_21 = arith.constant dense<0.000000e+00> : vector<8x32xf32>
    %28 = tpu.matmul %21, %27, %cst_21 {dimension_numbers = #tpu.dot_dimension_numbers<[1], [0], [0], [1], [0, 0, 1, 1], [], []>} : vector<8x32xbf16>, vector<32x32xbf16>, vector<8x32xf32> -> vector<8x32xf32>
    %c0_22 = arith.constant 0 : index
    %c0_23 = arith.constant 0 : index
    %29 = vector.load %arg15[%c0_22, %c0_23] : memref<3x32xf32, #tpu.memory_space<vmem>>, vector<1x32xf32>
    %30 = vector.broadcast %29 : vector<1x32xf32> to vector<8x32xf32>
    %31 = arith.addf %28, %30 : vector<8x32xf32>
    %cst_24 = arith.constant 0.000000e+00 : f32
    %32 = vector.broadcast %cst_24 : f32 to vector<8x32xf32>
    %c0_25 = arith.constant 0 : index
    %c0_26 = arith.constant 0 : index
    %33 = vector.load %arg22[%c0_25, %c0_26] : memref<12x32xbf16, #tpu.memory_space<vmem>>, vector<8x32xbf16>
    %c0_27 = arith.constant 0 : index
    %c0_28 = arith.constant 0 : index
    %c0_29 = arith.constant 0 : index
    %34 = vector.load %arg6[%c0_27, %c0_28, %c0_29] : memref<3x32x32xbf16, #tpu.memory_space<vmem>>, vector<1x32x32xbf16>
    %35 = vector.shape_cast %34 : vector<1x32x32xbf16> to vector<32x32xbf16>
    %cst_30 = arith.constant dense<0.000000e+00> : vector<8x32xf32>
    %36 = tpu.matmul %33, %35, %cst_30 {dimension_numbers = #tpu.dot_dimension_numbers<[1], [0], [0], [1], [0, 0, 1, 1], [], []>} : vector<8x32xbf16>, vector<32x32xbf16>, vector<8x32xf32> -> vector<8x32xf32>
    %37 = arith.addf %32, %36 : vector<8x32xf32>
    %c2_31 = arith.constant 2 : index
    %c0_32 = arith.constant 0 : index
    %38 = vector.load %arg22[%c2_31, %c0_32] : memref<12x32xbf16, #tpu.memory_space<vmem>>, vector<8x32xbf16>
    %c1_33 = arith.constant 1 : index
    %c0_34 = arith.constant 0 : index
    %c0_35 = arith.constant 0 : index
    %39 = vector.load %arg6[%c1_33, %c0_34, %c0_35] : memref<3x32x32xbf16, #tpu.memory_space<vmem>>, vector<1x32x32xbf16>
    %40 = vector.shape_cast %39 : vector<1x32x32xbf16> to vector<32x32xbf16>
    %cst_36 = arith.constant dense<0.000000e+00> : vector<8x32xf32>
    %41 = tpu.matmul %38, %40, %cst_36 {dimension_numbers = #tpu.dot_dimension_numbers<[1], [0], [0], [1], [0, 0, 1, 1], [], []>} : vector<8x32xbf16>, vector<32x32xbf16>, vector<8x32xf32> -> vector<8x32xf32>
    %42 = arith.addf %37, %41 : vector<8x32xf32>
    %c4 = arith.constant 4 : index
    %c0_37 = arith.constant 0 : index
    %43 = vector.load %arg22[%c4, %c0_37] : memref<12x32xbf16, #tpu.memory_space<vmem>>, vector<8x32xbf16>
    %c2_38 = arith.constant 2 : index
    %c0_39 = arith.constant 0 : index
    %c0_40 = arith.constant 0 : index
    %44 = vector.load %arg6[%c2_38, %c0_39, %c0_40] : memref<3x32x32xbf16, #tpu.memory_space<vmem>>, vector<1x32x32xbf16>
    %45 = vector.shape_cast %44 : vector<1x32x32xbf16> to vector<32x32xbf16>
    %cst_41 = arith.constant dense<0.000000e+00> : vector<8x32xf32>
    %46 = tpu.matmul %43, %45, %cst_41 {dimension_numbers = #tpu.dot_dimension_numbers<[1], [0], [0], [1], [0, 0, 1, 1], [], []>} : vector<8x32xbf16>, vector<32x32xbf16>, vector<8x32xf32> -> vector<8x32xf32>
    %47 = arith.addf %42, %46 : vector<8x32xf32>
    %c0_42 = arith.constant 0 : index
    %c0_43 = arith.constant 0 : index
    %48 = vector.load %arg8[%c0_42, %c0_43] : memref<3x32xf32, #tpu.memory_space<vmem>>, vector<1x32xf32>
    %49 = vector.broadcast %48 : vector<1x32xf32> to vector<8x32xf32>
    %50 = arith.addf %47, %49 : vector<8x32xf32>
    %cst_44 = arith.constant 0.000000e+00 : f32
    %51 = vector.broadcast %cst_44 : f32 to vector<8x32xf32>
    %52 = arith.maximumf %50, %51 : vector<8x32xf32>
    %c1_45 = arith.constant 1 : index
    %c0_46 = arith.constant 0 : index
    %53 = vector.load %arg8[%c1_45, %c0_46] : memref<3x32xf32, #tpu.memory_space<vmem>>, vector<1x32xf32>
    %54 = vector.broadcast %53 : vector<1x32xf32> to vector<8x32xf32>
    %55 = arith.mulf %52, %54 : vector<8x32xf32>
    %c2_47 = arith.constant 2 : index
    %c0_48 = arith.constant 0 : index
    %56 = vector.load %arg8[%c2_47, %c0_48] : memref<3x32xf32, #tpu.memory_space<vmem>>, vector<1x32xf32>
    %57 = vector.broadcast %56 : vector<1x32xf32> to vector<8x32xf32>
    %58 = arith.addf %55, %57 : vector<8x32xf32>
    %59 = arith.truncf %58 : vector<8x32xf32> to vector<8x32xbf16>
    %c0_49 = arith.constant 0 : index
    %c0_50 = arith.constant 0 : index
    %60 = vector.load %arg7[%c0_49, %c0_50] : memref<32x32xbf16, #tpu.memory_space<vmem>>, vector<32x32xbf16>
    %cst_51 = arith.constant dense<0.000000e+00> : vector<8x32xf32>
    %61 = tpu.matmul %59, %60, %cst_51 {dimension_numbers = #tpu.dot_dimension_numbers<[1], [0], [0], [1], [0, 0, 1, 1], [], []>} : vector<8x32xbf16>, vector<32x32xbf16>, vector<8x32xf32> -> vector<8x32xf32>
    %62 = arith.addf %31, %61 : vector<8x32xf32>
    %63 = vector.extract_strided_slice %59 {offsets = [0, 0], sizes = [8, 16], strides = [1, 1]} : vector<8x32xbf16> to vector<8x16xbf16>
    %c2_52 = arith.constant 2 : index
    %c0_53 = arith.constant 0 : index
    %64 = vector.load %arg22[%c2_52, %c0_53] : memref<12x32xbf16, #tpu.memory_space<vmem>>, vector<8x16xbf16>
    tpu.vector_store %arg22[%c2_52, %c0_53], %63 {strides = array<i32>} : memref<12x32xbf16, #tpu.memory_space<vmem>>, vector<8x16xbf16>,
    %cst_54 = arith.constant 0.000000e+00 : f32
    %65 = vector.broadcast %cst_54 : f32 to vector<8x32xf32>
    %c0_55 = arith.constant 0 : index
    %c0_56 = arith.constant 0 : index
    %66 = vector.load %arg22[%c0_55, %c0_56] : memref<12x32xbf16, #tpu.memory_space<vmem>>, vector<8x32xbf16>
    %c0_57 = arith.constant 0 : index
    %c0_58 = arith.constant 0 : index
    %c0_59 = arith.constant 0 : index
    %67 = vector.load %arg9[%c0_57, %c0_58, %c0_59] : memref<3x32x32xbf16, #tpu.memory_space<vmem>>, vector<1x32x32xbf16>
    %68 = vector.shape_cast %67 : vector<1x32x32xbf16> to vector<32x32xbf16>
    %cst_60 = arith.constant dense<0.000000e+00> : vector<8x32xf32>
    %69 = tpu.matmul %66, %68, %cst_60 {dimension_numbers = #tpu.dot_dimension_numbers<[1], [0], [0], [1], [0, 0, 1, 1], [], []>} : vector<8x32xbf16>, vector<32x32xbf16>, vector<8x32xf32> -> vector<8x32xf32>
    %70 = arith.addf %65, %69 : vector<8x32xf32>
    %c2_61 = arith.constant 2 : index
    %c0_62 = arith.constant 0 : index
    %71 = vector.load %arg22[%c2_61, %c0_62] : memref<12x32xbf16, #tpu.memory_space<vmem>>, vector<8x32xbf16>
    %c1_63 = arith.constant 1 : index
    %c0_64 = arith.constant 0 : index
    %c0_65 = arith.constant 0 : index
    %72 = vector.load %arg9[%c1_63, %c0_64, %c0_65] : memref<3x32x32xbf16, #tpu.memory_space<vmem>>, vector<1x32x32xbf16>
    %73 = vector.shape_cast %72 : vector<1x32x32xbf16> to vector<32x32xbf16>
    %cst_66 = arith.constant dense<0.000000e+00> : vector<8x32xf32>
    %74 = tpu.matmul %71, %73, %cst_66 {dimension_numbers = #tpu.dot_dimension_numbers<[1], [0], [0], [1], [0, 0, 1, 1], [], []>} : vector<8x32xbf16>, vector<32x32xbf16>, vector<8x32xf32> -> vector<8x32xf32>
    %75 = arith.addf %70, %74 : vector<8x32xf32>
    %c4_67 = arith.constant 4 : index
    %c0_68 = arith.constant 0 : index
    %76 = vector.load %arg22[%c4_67, %c0_68] : memref<12x32xbf16, #tpu.memory_space<vmem>>, vector<8x32xbf16>
    %c2_69 = arith.constant 2 : index
    %c0_70 = arith.constant 0 : index
    %c0_71 = arith.constant 0 : index
    %77 = vector.load %arg9[%c2_69, %c0_70, %c0_71] : memref<3x32x32xbf16, #tpu.memory_space<vmem>>, vector<1x32x32xbf16>
    %78 = vector.shape_cast %77 : vector<1x32x32xbf16> to vector<32x32xbf16>
    %cst_72 = arith.constant dense<0.000000e+00> : vector<8x32xf32>
    %79 = tpu.matmul %76, %78, %cst_72 {dimension_numbers = #tpu.dot_dimension_numbers<[1], [0], [0], [1], [0, 0, 1, 1], [], []>} : vector<8x32xbf16>, vector<32x32xbf16>, vector<8x32xf32> -> vector<8x32xf32>
    %80 = arith.addf %75, %79 : vector<8x32xf32>
    %c0_73 = arith.constant 0 : index
    %c0_74 = arith.constant 0 : index
    %81 = vector.load %arg11[%c0_73, %c0_74] : memref<3x32xf32, #tpu.memory_space<vmem>>, vector<1x32xf32>
    %82 = vector.broadcast %81 : vector<1x32xf32> to vector<8x32xf32>
    %83 = arith.addf %80, %82 : vector<8x32xf32>
    %cst_75 = arith.constant 0.000000e+00 : f32
    %84 = vector.broadcast %cst_75 : f32 to vector<8x32xf32>
    %85 = arith.maximumf %83, %84 : vector<8x32xf32>
    %c1_76 = arith.constant 1 : index
    %c0_77 = arith.constant 0 : index
    %86 = vector.load %arg11[%c1_76, %c0_77] : memref<3x32xf32, #tpu.memory_space<vmem>>, vector<1x32xf32>
    %87 = vector.broadcast %86 : vector<1x32xf32> to vector<8x32xf32>
    %88 = arith.mulf %85, %87 : vector<8x32xf32>
    %c2_78 = arith.constant 2 : index
    %c0_79 = arith.constant 0 : index
    %89 = vector.load %arg11[%c2_78, %c0_79] : memref<3x32xf32, #tpu.memory_space<vmem>>, vector<1x32xf32>
    %90 = vector.broadcast %89 : vector<1x32xf32> to vector<8x32xf32>
    %91 = arith.addf %88, %90 : vector<8x32xf32>
    %92 = arith.truncf %91 : vector<8x32xf32> to vector<8x32xbf16>
    %c0_80 = arith.constant 0 : index
    %c0_81 = arith.constant 0 : index
    %93 = vector.load %arg10[%c0_80, %c0_81] : memref<32x32xbf16, #tpu.memory_space<vmem>>, vector<32x32xbf16>
    %cst_82 = arith.constant dense<0.000000e+00> : vector<8x32xf32>
    %94 = tpu.matmul %92, %93, %cst_82 {dimension_numbers = #tpu.dot_dimension_numbers<[1], [0], [0], [1], [0, 0, 1, 1], [], []>} : vector<8x32xbf16>, vector<32x32xbf16>, vector<8x32xf32> -> vector<8x32xf32>
    %95 = arith.addf %62, %94 : vector<8x32xf32>
    %96 = vector.extract_strided_slice %92 {offsets = [0, 0], sizes = [8, 24], strides = [1, 1]} : vector<8x32xbf16> to vector<8x24xbf16>
    %c2_83 = arith.constant 2 : index
    %c0_84 = arith.constant 0 : index
    %97 = vector.load %arg22[%c2_83, %c0_84] : memref<12x32xbf16, #tpu.memory_space<vmem>>, vector<8x24xbf16>
    tpu.vector_store %arg22[%c2_83, %c0_84], %96 {strides = array<i32>} : memref<12x32xbf16, #tpu.memory_space<vmem>>, vector<8x24xbf16>,
    %cst_85 = arith.constant 0.000000e+00 : f32
    %98 = vector.broadcast %cst_85 : f32 to vector<8x32xf32>
    %c0_86 = arith.constant 0 : index
    %c0_87 = arith.constant 0 : index
    %99 = vector.load %arg22[%c0_86, %c0_87] : memref<12x32xbf16, #tpu.memory_space<vmem>>, vector<8x32xbf16>
    %c0_88 = arith.constant 0 : index
    %c0_89 = arith.constant 0 : index
    %c0_90 = arith.constant 0 : index
    %100 = vector.load %arg12[%c0_88, %c0_89, %c0_90] : memref<3x32x32xbf16, #tpu.memory_space<vmem>>, vector<1x32x32xbf16>
    %101 = vector.shape_cast %100 : vector<1x32x32xbf16> to vector<32x32xbf16>
    %cst_91 = arith.constant dense<0.000000e+00> : vector<8x32xf32>
    %102 = tpu.matmul %99, %101, %cst_91 {dimension_numbers = #tpu.dot_dimension_numbers<[1], [0], [0], [1], [0, 0, 1, 1], [], []>} : vector<8x32xbf16>, vector<32x32xbf16>, vector<8x32xf32> -> vector<8x32xf32>
    %103 = arith.addf %98, %102 : vector<8x32xf32>
    %c2_92 = arith.constant 2 : index
    %c0_93 = arith.constant 0 : index
    %104 = vector.load %arg22[%c2_92, %c0_93] : memref<12x32xbf16, #tpu.memory_space<vmem>>, vector<8x32xbf16>
    %c1_94 = arith.constant 1 : index
    %c0_95 = arith.constant 0 : index
    %c0_96 = arith.constant 0 : index
    %105 = vector.load %arg12[%c1_94, %c0_95, %c0_96] : memref<3x32x32xbf16, #tpu.memory_space<vmem>>, vector<1x32x32xbf16>
    %106 = vector.shape_cast %105 : vector<1x32x32xbf16> to vector<32x32xbf16>
    %cst_97 = arith.constant dense<0.000000e+00> : vector<8x32xf32>
    %107 = tpu.matmul %104, %106, %cst_97 {dimension_numbers = #tpu.dot_dimension_numbers<[1], [0], [0], [1], [0, 0, 1, 1], [], []>} : vector<8x32xbf16>, vector<32x32xbf16>, vector<8x32xf32> -> vector<8x32xf32>
    %108 = arith.addf %103, %107 : vector<8x32xf32>
    %c4_98 = arith.constant 4 : index
    %c0_99 = arith.constant 0 : index
    %109 = vector.load %arg22[%c4_98, %c0_99] : memref<12x32xbf16, #tpu.memory_space<vmem>>, vector<8x32xbf16>
    %c2_100 = arith.constant 2 : index
    %c0_101 = arith.constant 0 : index
    %c0_102 = arith.constant 0 : index
    %110 = vector.load %arg12[%c2_100, %c0_101, %c0_102] : memref<3x32x32xbf16, #tpu.memory_space<vmem>>, vector<1x32x32xbf16>
    %111 = vector.shape_cast %110 : vector<1x32x32xbf16> to vector<32x32xbf16>
    %cst_103 = arith.constant dense<0.000000e+00> : vector<8x32xf32>
    %112 = tpu.matmul %109, %111, %cst_103 {dimension_numbers = #tpu.dot_dimension_numbers<[1], [0], [0], [1], [0, 0, 1, 1], [], []>} : vector<8x32xbf16>, vector<32x32xbf16>, vector<8x32xf32> -> vector<8x32xf32>
    %113 = arith.addf %108, %112 : vector<8x32xf32>
    %c0_104 = arith.constant 0 : index
    %c0_105 = arith.constant 0 : index
    %114 = vector.load %arg14[%c0_104, %c0_105] : memref<3x32xf32, #tpu.memory_space<vmem>>, vector<1x32xf32>
    %115 = vector.broadcast %114 : vector<1x32xf32> to vector<8x32xf32>
    %116 = arith.addf %113, %115 : vector<8x32xf32>
    %cst_106 = arith.constant 0.000000e+00 : f32
    %117 = vector.broadcast %cst_106 : f32 to vector<8x32xf32>
    %118 = arith.maximumf %116, %117 : vector<8x32xf32>
    %c1_107 = arith.constant 1 : index
    %c0_108 = arith.constant 0 : index
    %119 = vector.load %arg14[%c1_107, %c0_108] : memref<3x32xf32, #tpu.memory_space<vmem>>, vector<1x32xf32>
    %120 = vector.broadcast %119 : vector<1x32xf32> to vector<8x32xf32>
    %121 = arith.mulf %118, %120 : vector<8x32xf32>
    %c2_109 = arith.constant 2 : index
    %c0_110 = arith.constant 0 : index
    %122 = vector.load %arg14[%c2_109, %c0_110] : memref<3x32xf32, #tpu.memory_space<vmem>>, vector<1x32xf32>
    %123 = vector.broadcast %122 : vector<1x32xf32> to vector<8x32xf32>
    %124 = arith.addf %121, %123 : vector<8x32xf32>
    %125 = arith.truncf %124 : vector<8x32xf32> to vector<8x32xbf16>
    %c0_111 = arith.constant 0 : index
    %c0_112 = arith.constant 0 : index
    %126 = vector.load %arg13[%c0_111, %c0_112] : memref<32x32xbf16, #tpu.memory_space<vmem>>, vector<32x32xbf16>
    %cst_113 = arith.constant dense<0.000000e+00> : vector<8x32xf32>
    %127 = tpu.matmul %125, %126, %cst_113 {dimension_numbers = #tpu.dot_dimension_numbers<[1], [0], [0], [1], [0, 0, 1, 1], [], []>} : vector<8x32xbf16>, vector<32x32xbf16>, vector<8x32xf32> -> vector<8x32xf32>
    %128 = arith.addf %95, %127 : vector<8x32xf32>
    %cst_114 = arith.constant 0.000000e+00 : f32
    %129 = vector.broadcast %cst_114 : f32 to vector<8x32xf32>
    %130 = arith.maximumf %128, %129 : vector<8x32xf32>
    %c1_115 = arith.constant 1 : index
    %c0_116 = arith.constant 0 : index
    %131 = vector.load %arg15[%c1_115, %c0_116] : memref<3x32xf32, #tpu.memory_space<vmem>>, vector<1x32xf32>
    %132 = vector.broadcast %131 : vector<1x32xf32> to vector<8x32xf32>
    %133 = arith.mulf %130, %132 : vector<8x32xf32>
    %c2_117 = arith.constant 2 : index
    %c0_118 = arith.constant 0 : index
    %134 = vector.load %arg15[%c2_117, %c0_118] : memref<3x32xf32, #tpu.memory_space<vmem>>, vector<1x32xf32>
    %135 = vector.broadcast %134 : vector<1x32xf32> to vector<8x32xf32>
    %136 = arith.addf %133, %135 : vector<8x32xf32>
    %cst_119 = arith.constant dense<0.000000e+00> : vector<32xf32>
    %137 = vector.multi_reduction <add>, %136, %cst_119 [0] : vector<8x32xf32> to vector<32xf32>
    %138 = vector.shape_cast %137 : vector<32xf32> to vector<1x32xf32>
    %cst_120 = arith.constant 8.000000e+00 : f32
    %139 = vector.broadcast %cst_120 : f32 to vector<1x32xf32>
    %140 = arith.divf %138, %139 : vector<1x32xf32>
    %141 = arith.truncf %140 : vector<1x32xf32> to vector<1x32xbf16>
    %c0_121 = arith.constant 0 : index
    %c0_122 = arith.constant 0 : index
    %142 = vector.load %arg16[%c0_121, %c0_122] : memref<32x8xbf16, #tpu.memory_space<vmem>>, vector<32x8xbf16>
    %cst_123 = arith.constant dense<0.000000e+00> : vector<1x8xf32>
    %143 = tpu.matmul %141, %142, %cst_123 {dimension_numbers = #tpu.dot_dimension_numbers<[1], [0], [0], [1], [0, 0, 1, 1], [], []>} : vector<1x32xbf16>, vector<32x8xbf16>, vector<1x8xf32> -> vector<1x8xf32>
    %c0_124 = arith.constant 0 : index
    %c0_125 = arith.constant 0 : index
    %144 = vector.load %arg17[%c0_124, %c0_125] : memref<1x8xf32, #tpu.memory_space<vmem>>, vector<1x8xf32>
    %145 = arith.addf %143, %144 : vector<1x8xf32>
    %cst_126 = arith.constant 0.000000e+00 : f32
    %146 = vector.broadcast %cst_126 : f32 to vector<1x8xf32>
    %147 = arith.maximumf %145, %146 : vector<1x8xf32>
    %148 = arith.truncf %147 : vector<1x8xf32> to vector<1x8xbf16>
    %c0_127 = arith.constant 0 : index
    %c0_128 = arith.constant 0 : index
    %149 = vector.load %arg18[%c0_127, %c0_128] : memref<8x32xbf16, #tpu.memory_space<vmem>>, vector<8x32xbf16>
    %cst_129 = arith.constant dense<0.000000e+00> : vector<1x32xf32>
    %150 = tpu.matmul %148, %149, %cst_129 {dimension_numbers = #tpu.dot_dimension_numbers<[1], [0], [0], [1], [0, 0, 1, 1], [], []>} : vector<1x8xbf16>, vector<8x32xbf16>, vector<1x32xf32> -> vector<1x32xf32>
    %c0_130 = arith.constant 0 : index
    %c0_131 = arith.constant 0 : index
    %151 = vector.load %arg19[%c0_130, %c0_131] : memref<5x32xf32, #tpu.memory_space<vmem>>, vector<1x32xf32>
    %152 = arith.addf %150, %151 : vector<1x32xf32>
    %153 = arith.negf %152 : vector<1x32xf32>
    %154 = math.exp %153 : vector<1x32xf32>
    %cst_132 = arith.constant 1.000000e+00 : f32
    %155 = vector.broadcast %cst_132 : f32 to vector<1x32xf32>
    %156 = arith.addf %155, %154 : vector<1x32xf32>
    %157 = arith.divf %155, %156 : vector<1x32xf32>
    %158 = vector.broadcast %157 : vector<1x32xf32> to vector<8x32xf32>
    %159 = arith.mulf %136, %158 : vector<8x32xf32>
    %160 = arith.addf %159, %6 : vector<8x32xf32>
    %cst_133 = arith.constant 0.000000e+00 : f32
    %161 = vector.broadcast %cst_133 : f32 to vector<8x32xf32>
    %162 = arith.maximumf %160, %161 : vector<8x32xf32>
    %c1_134 = arith.constant 1 : index
    %c0_135 = arith.constant 0 : index
    %163 = vector.load %arg19[%c1_134, %c0_135] : memref<5x32xf32, #tpu.memory_space<vmem>>, vector<1x32xf32>
    %164 = vector.broadcast %163 : vector<1x32xf32> to vector<8x32xf32>
    %165 = arith.mulf %162, %164 : vector<8x32xf32>
    %c2_136 = arith.constant 2 : index
    %c0_137 = arith.constant 0 : index
    %166 = vector.load %arg19[%c2_136, %c0_137] : memref<5x32xf32, #tpu.memory_space<vmem>>, vector<1x32xf32>
    %167 = vector.broadcast %166 : vector<1x32xf32> to vector<8x32xf32>
    %168 = arith.addf %165, %167 : vector<8x32xf32>
    %169 = arith.truncf %168 : vector<8x32xf32> to vector<8x32xbf16>
    %c0_138 = arith.constant 0 : index
    %c0_139 = arith.constant 0 : index
    %c0_140 = arith.constant 0 : index
    %170 = vector.load %arg20[%c0_138, %c0_139, %c0_140] : memref<1x8x32xbf16, #tpu.memory_space<vmem>>, vector<1x8x32xbf16>
    %171 = vector.shape_cast %170 : vector<1x8x32xbf16> to vector<8x32xbf16>
    %172 = vector.shape_cast %169 : vector<8x32xbf16> to vector<1x8x32xbf16>
    tpu.vector_store %arg20[%c0_138, %c0_139, %c0_140], %172 {strides = array<i32>} : memref<1x8x32xbf16, #tpu.memory_space<vmem>>, vector<1x8x32xbf16>,
    %c3 = arith.constant 3 : index
    %c0_141 = arith.constant 0 : index
    %173 = vector.load %arg19[%c3, %c0_141] : memref<5x32xf32, #tpu.memory_space<vmem>>, vector<1x32xf32>
    %174 = vector.broadcast %173 : vector<1x32xf32> to vector<8x32xf32>
    %175 = arith.mulf %168, %174 : vector<8x32xf32>
    %c4_142 = arith.constant 4 : index
    %c0_143 = arith.constant 0 : index
    %176 = vector.load %arg19[%c4_142, %c0_143] : memref<5x32xf32, #tpu.memory_space<vmem>>, vector<1x32xf32>
    %177 = vector.broadcast %176 : vector<1x32xf32> to vector<8x32xf32>
    %178 = arith.addf %175, %177 : vector<8x32xf32>
    %cst_144 = arith.constant 0.000000e+00 : f32
    %179 = vector.broadcast %cst_144 : f32 to vector<8x32xf32>
    %180 = arith.maximumf %178, %179 : vector<8x32xf32>
    %cst_145 = arith.constant dense<0.000000e+00> : vector<32xf32>
    %181 = vector.multi_reduction <add>, %180, %cst_145 [0] : vector<8x32xf32> to vector<32xf32>
    %182 = vector.shape_cast %181 : vector<32xf32> to vector<1x32xf32>
    %cst_146 = arith.constant 1.250000e-01 : f32
    %183 = vector.broadcast %cst_146 : f32 to vector<1x32xf32>
    %184 = arith.mulf %182, %183 : vector<1x32xf32>
    %c0_147 = arith.constant 0 : index
    %c0_148 = arith.constant 0 : index
    %c0_149 = arith.constant 0 : index
    %185 = vector.load %arg21[%c0_147, %c0_148, %c0_149] : memref<1x1x32xf32, #tpu.memory_space<vmem>>, vector<1x1x32xf32>
    %186 = vector.shape_cast %185 : vector<1x1x32xf32> to vector<1x32xf32>
    %187 = vector.shape_cast %184 : vector<1x32xf32> to vector<1x1x32xf32>
    tpu.vector_store %arg21[%c0_147, %c0_148, %c0_149], %187 {strides = array<i32>} : memref<1x1x32xf32, #tpu.memory_space<vmem>>, vector<1x1x32xf32>,
    return
  }
  func.func @transform_0(%arg0: i32) -> (i32, i32, i32) {
    %c0_i32 = arith.constant 0 : i32
    %c0_i32_0 = arith.constant 0 : i32
    %c0_i32_1 = arith.constant 0 : i32
    return %arg0, %c0_i32, %c0_i32_0 : i32, i32, i32
  }
  func.func @transform_1(%arg0: i32) -> (i32, i32, i32) {
    %c0_i32 = arith.constant 0 : i32
    %c0_i32_0 = arith.constant 0 : i32
    %c0_i32_1 = arith.constant 0 : i32
    return %arg0, %c0_i32, %c0_i32_0 : i32, i32, i32
  }
  func.func @transform_2(%arg0: i32) -> (i32, i32) {
    %c0_i32 = arith.constant 0 : i32
    %c0_i32_0 = arith.constant 0 : i32
    %c0_i32_1 = arith.constant 0 : i32
    return %c0_i32, %c0_i32_0 : i32, i32
  }
  func.func @transform_3(%arg0: i32) -> (i32, i32) {
    %c0_i32 = arith.constant 0 : i32
    %c0_i32_0 = arith.constant 0 : i32
    %c0_i32_1 = arith.constant 0 : i32
    return %c0_i32, %c0_i32_0 : i32, i32
  }
  func.func @transform_4(%arg0: i32) -> (i32, i32) {
    %c0_i32 = arith.constant 0 : i32
    %c0_i32_0 = arith.constant 0 : i32
    %c0_i32_1 = arith.constant 0 : i32
    return %c0_i32, %c0_i32_0 : i32, i32
  }
  func.func @transform_5(%arg0: i32) -> (i32, i32, i32) {
    %c0_i32 = arith.constant 0 : i32
    %c0_i32_0 = arith.constant 0 : i32
    %c0_i32_1 = arith.constant 0 : i32
    %c0_i32_2 = arith.constant 0 : i32
    return %c0_i32, %c0_i32_0, %c0_i32_1 : i32, i32, i32
  }
  func.func @transform_6(%arg0: i32) -> (i32, i32) {
    %c0_i32 = arith.constant 0 : i32
    %c0_i32_0 = arith.constant 0 : i32
    %c0_i32_1 = arith.constant 0 : i32
    return %c0_i32, %c0_i32_0 : i32, i32
  }
  func.func @transform_7(%arg0: i32) -> (i32, i32) {
    %c0_i32 = arith.constant 0 : i32
    %c0_i32_0 = arith.constant 0 : i32
    %c0_i32_1 = arith.constant 0 : i32
    return %c0_i32, %c0_i32_0 : i32, i32
  }
  func.func @transform_8(%arg0: i32) -> (i32, i32, i32) {
    %c0_i32 = arith.constant 0 : i32
    %c0_i32_0 = arith.constant 0 : i32
    %c0_i32_1 = arith.constant 0 : i32
    %c0_i32_2 = arith.constant 0 : i32
    return %c0_i32, %c0_i32_0, %c0_i32_1 : i32, i32, i32
  }
  func.func @transform_9(%arg0: i32) -> (i32, i32) {
    %c0_i32 = arith.constant 0 : i32
    %c0_i32_0 = arith.constant 0 : i32
    %c0_i32_1 = arith.constant 0 : i32
    return %c0_i32, %c0_i32_0 : i32, i32
  }
  func.func @transform_10(%arg0: i32) -> (i32, i32) {
    %c0_i32 = arith.constant 0 : i32
    %c0_i32_0 = arith.constant 0 : i32
    %c0_i32_1 = arith.constant 0 : i32
    return %c0_i32, %c0_i32_0 : i32, i32
  }
  func.func @transform_11(%arg0: i32) -> (i32, i32, i32) {
    %c0_i32 = arith.constant 0 : i32
    %c0_i32_0 = arith.constant 0 : i32
    %c0_i32_1 = arith.constant 0 : i32
    %c0_i32_2 = arith.constant 0 : i32
    return %c0_i32, %c0_i32_0, %c0_i32_1 : i32, i32, i32
  }
  func.func @transform_12(%arg0: i32) -> (i32, i32) {
    %c0_i32 = arith.constant 0 : i32
    %c0_i32_0 = arith.constant 0 : i32
    %c0_i32_1 = arith.constant 0 : i32
    return %c0_i32, %c0_i32_0 : i32, i32
  }
  func.func @transform_13(%arg0: i32) -> (i32, i32) {
    %c0_i32 = arith.constant 0 : i32
    %c0_i32_0 = arith.constant 0 : i32
    %c0_i32_1 = arith.constant 0 : i32
    return %c0_i32, %c0_i32_0 : i32, i32
  }
  func.func @transform_14(%arg0: i32) -> (i32, i32) {
    %c0_i32 = arith.constant 0 : i32
    %c0_i32_0 = arith.constant 0 : i32
    %c0_i32_1 = arith.constant 0 : i32
    return %c0_i32, %c0_i32_0 : i32, i32
  }
  func.func @transform_15(%arg0: i32) -> (i32, i32) {
    %c0_i32 = arith.constant 0 : i32
    %c0_i32_0 = arith.constant 0 : i32
    %c0_i32_1 = arith.constant 0 : i32
    return %c0_i32, %c0_i32_0 : i32, i32
  }
  func.func @transform_16(%arg0: i32) -> (i32, i32) {
    %c0_i32 = arith.constant 0 : i32
    %c0_i32_0 = arith.constant 0 : i32
    %c0_i32_1 = arith.constant 0 : i32
    return %c0_i32, %c0_i32_0 : i32, i32
  }
  func.func @transform_17(%arg0: i32) -> (i32, i32) {
    %c0_i32 = arith.constant 0 : i32
    %c0_i32_0 = arith.constant 0 : i32
    %c0_i32_1 = arith.constant 0 : i32
    return %c0_i32, %c0_i32_0 : i32, i32
  }
  func.func @transform_18(%arg0: i32) -> (i32, i32) {
    %c0_i32 = arith.constant 0 : i32
    %c0_i32_0 = arith.constant 0 : i32
    %c0_i32_1 = arith.constant 0 : i32
    return %c0_i32, %c0_i32_0 : i32, i32
  }
  func.func @transform_19(%arg0: i32) -> (i32, i32, i32) {
    %c0_i32 = arith.constant 0 : i32
    %c0_i32_0 = arith.constant 0 : i32
    %c0_i32_1 = arith.constant 0 : i32
    return %arg0, %c0_i32, %c0_i32_0 : i32, i32, i32
  }
  func.func @transform_20(%arg0: i32) -> (i32, i32, i32) {
    %c0_i32 = arith.constant 0 : i32
    %c0_i32_0 = arith.constant 0 : i32
    %c0_i32_1 = arith.constant 0 : i32
    return %arg0, %c0_i32, %c0_i32_0 : i32, i32, i32
  }
}

module attributes {stable_mosaic.version = 11 : i64} {
  func.func @_bottle2neck_kernel(%arg0: i32, %arg1: memref<1x8x32xbf16, #tpu.memory_space<vmem>>, %arg2: memref<1x8x32xbf16, #tpu.memory_space<vmem>>, %arg3: memref<32x32xbf16, #tpu.memory_space<vmem>>, %arg4: memref<3x32xf32, #tpu.memory_space<vmem>>, %arg5: memref<32x32xbf16, #tpu.memory_space<vmem>>, %arg6: memref<3x32x32xbf16, #tpu.memory_space<vmem>>, %arg7: memref<32x32xbf16, #tpu.memory_space<vmem>>, %arg8: memref<3x32xf32, #tpu.memory_space<vmem>>, %arg9: memref<3x32x32xbf16, #tpu.memory_space<vmem>>, %arg10: memref<32x32xbf16, #tpu.memory_space<vmem>>, %arg11: memref<3x32xf32, #tpu.memory_space<vmem>>, %arg12: memref<3x32x32xbf16, #tpu.memory_space<vmem>>, %arg13: memref<32x32xbf16, #tpu.memory_space<vmem>>, %arg14: memref<3x32xf32, #tpu.memory_space<vmem>>, %arg15: memref<3x32xf32, #tpu.memory_space<vmem>>, %arg16: memref<32x8xbf16, #tpu.memory_space<vmem>>, %arg17: memref<1x8xf32, #tpu.memory_space<vmem>>, %arg18: memref<8x32xbf16, #tpu.memory_space<vmem>>, %arg19: memref<5x32xf32, #tpu.memory_space<vmem>>, %arg20: memref<1x8x32xbf16, #tpu.memory_space<vmem>>, %arg21: memref<1x1x32xf32, #tpu.memory_space<vmem>>, %arg22: memref<12x32xbf16, #tpu.memory_space<vmem>>) attributes {dimension_semantics = [#tpu.dimension_semantics<parallel>], iteration_bounds = array<i64: 2>, scalar_prefetch = 0 : i64, scratch_operands = 1 : i64, tpu.core_type = #tpu.core_type<tc>, window_params = [{transform_indices = @transform_0, window_bounds = array<i64: 1, 8, 32>}, {transform_indices = @transform_1, window_bounds = array<i64: 1, 8, 32>}, {pipeline_mode = #tpu.pipeline_mode<synchronous>, transform_indices = @transform_2, window_bounds = array<i64: 32, 32>}, {pipeline_mode = #tpu.pipeline_mode<synchronous>, transform_indices = @transform_3, window_bounds = array<i64: 3, 32>}, {pipeline_mode = #tpu.pipeline_mode<synchronous>, transform_indices = @transform_4, window_bounds = array<i64: 32, 32>}, {pipeline_mode = #tpu.pipeline_mode<synchronous>, transform_indices = @transform_5, window_bounds = array<i64: 3, 32, 32>}, {pipeline_mode = #tpu.pipeline_mode<synchronous>, transform_indices = @transform_6, window_bounds = array<i64: 32, 32>}, {pipeline_mode = #tpu.pipeline_mode<synchronous>, transform_indices = @transform_7, window_bounds = array<i64: 3, 32>}, {pipeline_mode = #tpu.pipeline_mode<synchronous>, transform_indices = @transform_8, window_bounds = array<i64: 3, 32, 32>}, {pipeline_mode = #tpu.pipeline_mode<synchronous>, transform_indices = @transform_9, window_bounds = array<i64: 32, 32>}, {pipeline_mode = #tpu.pipeline_mode<synchronous>, transform_indices = @transform_10, window_bounds = array<i64: 3, 32>}, {pipeline_mode = #tpu.pipeline_mode<synchronous>, transform_indices = @transform_11, window_bounds = array<i64: 3, 32, 32>}, {pipeline_mode = #tpu.pipeline_mode<synchronous>, transform_indices = @transform_12, window_bounds = array<i64: 32, 32>}, {pipeline_mode = #tpu.pipeline_mode<synchronous>, transform_indices = @transform_13, window_bounds = array<i64: 3, 32>}, {pipeline_mode = #tpu.pipeline_mode<synchronous>, transform_indices = @transform_14, window_bounds = array<i64: 3, 32>}, {pipeline_mode = #tpu.pipeline_mode<synchronous>, transform_indices = @transform_15, window_bounds = array<i64: 32, 8>}, {pipeline_mode = #tpu.pipeline_mode<synchronous>, transform_indices = @transform_16, window_bounds = array<i64: 1, 8>}, {pipeline_mode = #tpu.pipeline_mode<synchronous>, transform_indices = @transform_17, window_bounds = array<i64: 8, 32>}, {pipeline_mode = #tpu.pipeline_mode<synchronous>, transform_indices = @transform_18, window_bounds = array<i64: 5, 32>}, {transform_indices = @transform_19, window_bounds = array<i64: 1, 8, 32>}, {transform_indices = @transform_20, window_bounds = array<i64: 1, 1, 32>}]} {
    %c0 = arith.constant 0 : index
    %c0_0 = arith.constant 0 : index
    %c0_1 = arith.constant 0 : index
    %0 = vector.load %arg1[%c0, %c0_0, %c0_1] : memref<1x8x32xbf16, #tpu.memory_space<vmem>>, vector<1x8x32xbf16>
    %1 = vector.shape_cast %0 : vector<1x8x32xbf16> to vector<8x32xbf16>
    %2 = arith.extf %1 : vector<8x32xbf16> to vector<8x32xf32>
    %c0_2 = arith.constant 0 : index
    %c0_3 = arith.constant 0 : index
    %c0_4 = arith.constant 0 : index
    %3 = vector.load %arg2[%c0_2, %c0_3, %c0_4] : memref<1x8x32xbf16, #tpu.memory_space<vmem>>, vector<1x8x32xbf16>
    %4 = vector.shape_cast %3 : vector<1x8x32xbf16> to vector<8x32xbf16>
    %5 = arith.extf %4 : vector<8x32xbf16> to vector<8x32xf32>
    %6 = arith.addf %2, %5 : vector<8x32xf32>
    %7 = arith.truncf %6 : vector<8x32xf32> to vector<8x32xbf16>
    %c0_5 = arith.constant 0 : index
    %c0_6 = arith.constant 0 : index
    %8 = vector.load %arg3[%c0_5, %c0_6] : memref<32x32xbf16, #tpu.memory_space<vmem>>, vector<32x32xbf16>
    %cst = arith.constant dense<0.000000e+00> : vector<8x32xf32>
    %9 = tpu.matmul %7, %8, %cst {dimension_numbers = #tpu.dot_dimension_numbers<[1], [0], [0], [1], [0, 0, 1, 1], [], []>} : vector<8x32xbf16>, vector<32x32xbf16>, vector<8x32xf32> -> vector<8x32xf32>
    %c0_7 = arith.constant 0 : index
    %c0_8 = arith.constant 0 : index
    %10 = vector.load %arg4[%c0_7, %c0_8] : memref<3x32xf32, #tpu.memory_space<vmem>>, vector<1x32xf32>
    %11 = vector.broadcast %10 : vector<1x32xf32> to vector<8x32xf32>
    %12 = arith.addf %9, %11 : vector<8x32xf32>
    %cst_9 = arith.constant 0.000000e+00 : f32
    %13 = vector.broadcast %cst_9 : f32 to vector<8x32xf32>
    %14 = arith.maximumf %12, %13 : vector<8x32xf32>
    %c1 = arith.constant 1 : index
    %c0_10 = arith.constant 0 : index
    %15 = vector.load %arg4[%c1, %c0_10] : memref<3x32xf32, #tpu.memory_space<vmem>>, vector<1x32xf32>
    %16 = vector.broadcast %15 : vector<1x32xf32> to vector<8x32xf32>
    %17 = arith.mulf %14, %16 : vector<8x32xf32>
    %c2 = arith.constant 2 : index
    %c0_11 = arith.constant 0 : index
    %18 = vector.load %arg4[%c2, %c0_11] : memref<3x32xf32, #tpu.memory_space<vmem>>, vector<1x32xf32>
    %19 = vector.broadcast %18 : vector<1x32xf32> to vector<8x32xf32>
    %20 = arith.addf %17, %19 : vector<8x32xf32>
    %21 = arith.truncf %20 : vector<8x32xf32> to vector<8x32xbf16>
    %cst_12 = arith.constant 0.000000e+00 : bf16
    %22 = vector.broadcast %cst_12 : bf16 to vector<2x32xbf16>
    %c0_13 = arith.constant 0 : index
    %c0_14 = arith.constant 0 : index
    %23 = vector.load %arg22[%c0_13, %c0_14] : memref<12x32xbf16, #tpu.memory_space<vmem>>, vector<2x32xbf16>
    tpu.vector_store %arg22[%c0_13, %c0_14], %22 {strides = array<i32>} : memref<12x32xbf16, #tpu.memory_space<vmem>>, vector<2x32xbf16>,
    %cst_15 = arith.constant 0.000000e+00 : bf16
    %24 = vector.broadcast %cst_15 : bf16 to vector<2x32xbf16>
    %c10 = arith.constant 10 : index
    %c0_16 = arith.constant 0 : index
    %25 = vector.load %arg22[%c10, %c0_16] : memref<12x32xbf16, #tpu.memory_space<vmem>>, vector<2x32xbf16>
    tpu.vector_store %arg22[%c10, %c0_16], %24 {strides = array<i32>} : memref<12x32xbf16, #tpu.memory_space<vmem>>, vector<2x32xbf16>,
    %c2_17 = arith.constant 2 : index
    %c0_18 = arith.constant 0 : index
    %26 = vector.load %arg22[%c2_17, %c0_18] : memref<12x32xbf16, #tpu.memory_space<vmem>>, vector<8x32xbf16>
    tpu.vector_store %arg22[%c2_17, %c0_18], %21 {strides = array<i32>} : memref<12x32xbf16, #tpu.memory_space<vmem>>, vector<8x32xbf16>,
    %c0_19 = arith.constant 0 : index
    %c0_20 = arith.constant 0 : index
    %27 = vector.load %arg5[%c0_19, %c0_20] : memref<32x32xbf16, #tpu.memory_space<vmem>>, vector<32x32xbf16>
    %cst_21 = arith.constant dense<0.000000e+00> : vector<8x32xf32>
    %28 = tpu.matmul %21, %27, %cst_21 {dimension_numbers = #tpu.dot_dimension_numbers<[1], [0], [0], [1], [0, 0, 1, 1], [], []>} : vector<8x32xbf16>, vector<32x32xbf16>, vector<8x32xf32> -> vector<8x32xf32>
    %c0_22 = arith.constant 0 : index
    %c0_23 = arith.constant 0 : index
    %29 = vector.load %arg15[%c0_22, %c0_23] : memref<3x32xf32, #tpu.memory_space<vmem>>, vector<1x32xf32>
    %30 = vector.broadcast %29 : vector<1x32xf32> to vector<8x32xf32>
    %31 = arith.addf %28, %30 : vector<8x32xf32>
    %cst_24 = arith.constant 0.000000e+00 : f32
    %32 = vector.broadcast %cst_24 : f32 to vector<8x32xf32>
    %c0_25 = arith.constant 0 : index
    %c0_26 = arith.constant 0 : index
    %33 = vector.load %arg22[%c0_25, %c0_26] : memref<12x32xbf16, #tpu.memory_space<vmem>>, vector<8x32xbf16>
    %c0_27 = arith.constant 0 : index
    %c0_28 = arith.constant 0 : index
    %c0_29 = arith.constant 0 : index
    %34 = vector.load %arg6[%c0_27, %c0_28, %c0_29] : memref<3x32x32xbf16, #tpu.memory_space<vmem>>, vector<1x32x32xbf16>
    %35 = vector.shape_cast %34 : vector<1x32x32xbf16> to vector<32x32xbf16>
    %cst_30 = arith.constant dense<0.000000e+00> : vector<8x32xf32>
    %36 = tpu.matmul %33, %35, %cst_30 {dimension_numbers = #tpu.dot_dimension_numbers<[1], [0], [0], [1], [0, 0, 1, 1], [], []>} : vector<8x32xbf16>, vector<32x32xbf16>, vector<8x32xf32> -> vector<8x32xf32>
    %37 = arith.addf %32, %36 : vector<8x32xf32>
    %c2_31 = arith.constant 2 : index
    %c0_32 = arith.constant 0 : index
    %38 = vector.load %arg22[%c2_31, %c0_32] : memref<12x32xbf16, #tpu.memory_space<vmem>>, vector<8x32xbf16>
    %c1_33 = arith.constant 1 : index
    %c0_34 = arith.constant 0 : index
    %c0_35 = arith.constant 0 : index
    %39 = vector.load %arg6[%c1_33, %c0_34, %c0_35] : memref<3x32x32xbf16, #tpu.memory_space<vmem>>, vector<1x32x32xbf16>
    %40 = vector.shape_cast %39 : vector<1x32x32xbf16> to vector<32x32xbf16>
    %cst_36 = arith.constant dense<0.000000e+00> : vector<8x32xf32>
    %41 = tpu.matmul %38, %40, %cst_36 {dimension_numbers = #tpu.dot_dimension_numbers<[1], [0], [0], [1], [0, 0, 1, 1], [], []>} : vector<8x32xbf16>, vector<32x32xbf16>, vector<8x32xf32> -> vector<8x32xf32>
    %42 = arith.addf %37, %41 : vector<8x32xf32>
    %c4 = arith.constant 4 : index
    %c0_37 = arith.constant 0 : index
    %43 = vector.load %arg22[%c4, %c0_37] : memref<12x32xbf16, #tpu.memory_space<vmem>>, vector<8x32xbf16>
    %c2_38 = arith.constant 2 : index
    %c0_39 = arith.constant 0 : index
    %c0_40 = arith.constant 0 : index
    %44 = vector.load %arg6[%c2_38, %c0_39, %c0_40] : memref<3x32x32xbf16, #tpu.memory_space<vmem>>, vector<1x32x32xbf16>
    %45 = vector.shape_cast %44 : vector<1x32x32xbf16> to vector<32x32xbf16>
    %cst_41 = arith.constant dense<0.000000e+00> : vector<8x32xf32>
    %46 = tpu.matmul %43, %45, %cst_41 {dimension_numbers = #tpu.dot_dimension_numbers<[1], [0], [0], [1], [0, 0, 1, 1], [], []>} : vector<8x32xbf16>, vector<32x32xbf16>, vector<8x32xf32> -> vector<8x32xf32>
    %47 = arith.addf %42, %46 : vector<8x32xf32>
    %c0_42 = arith.constant 0 : index
    %c0_43 = arith.constant 0 : index
    %48 = vector.load %arg8[%c0_42, %c0_43] : memref<3x32xf32, #tpu.memory_space<vmem>>, vector<1x32xf32>
    %49 = vector.broadcast %48 : vector<1x32xf32> to vector<8x32xf32>
    %50 = arith.addf %47, %49 : vector<8x32xf32>
    %cst_44 = arith.constant 0.000000e+00 : f32
    %51 = vector.broadcast %cst_44 : f32 to vector<8x32xf32>
    %52 = arith.maximumf %50, %51 : vector<8x32xf32>
    %c1_45 = arith.constant 1 : index
    %c0_46 = arith.constant 0 : index
    %53 = vector.load %arg8[%c1_45, %c0_46] : memref<3x32xf32, #tpu.memory_space<vmem>>, vector<1x32xf32>
    %54 = vector.broadcast %53 : vector<1x32xf32> to vector<8x32xf32>
    %55 = arith.mulf %52, %54 : vector<8x32xf32>
    %c2_47 = arith.constant 2 : index
    %c0_48 = arith.constant 0 : index
    %56 = vector.load %arg8[%c2_47, %c0_48] : memref<3x32xf32, #tpu.memory_space<vmem>>, vector<1x32xf32>
    %57 = vector.broadcast %56 : vector<1x32xf32> to vector<8x32xf32>
    %58 = arith.addf %55, %57 : vector<8x32xf32>
    %59 = arith.truncf %58 : vector<8x32xf32> to vector<8x32xbf16>
    %c0_49 = arith.constant 0 : index
    %c0_50 = arith.constant 0 : index
    %60 = vector.load %arg7[%c0_49, %c0_50] : memref<32x32xbf16, #tpu.memory_space<vmem>>, vector<32x32xbf16>
    %cst_51 = arith.constant dense<0.000000e+00> : vector<8x32xf32>
    %61 = tpu.matmul %59, %60, %cst_51 {dimension_numbers = #tpu.dot_dimension_numbers<[1], [0], [0], [1], [0, 0, 1, 1], [], []>} : vector<8x32xbf16>, vector<32x32xbf16>, vector<8x32xf32> -> vector<8x32xf32>
    %62 = arith.addf %31, %61 : vector<8x32xf32>
    %63 = vector.extract_strided_slice %59 {offsets = [0, 0], sizes = [8, 16], strides = [1, 1]} : vector<8x32xbf16> to vector<8x16xbf16>
    %c2_52 = arith.constant 2 : index
    %c0_53 = arith.constant 0 : index
    %64 = vector.load %arg22[%c2_52, %c0_53] : memref<12x32xbf16, #tpu.memory_space<vmem>>, vector<8x16xbf16>
    tpu.vector_store %arg22[%c2_52, %c0_53], %63 {strides = array<i32>} : memref<12x32xbf16, #tpu.memory_space<vmem>>, vector<8x16xbf16>,
    %cst_54 = arith.constant 0.000000e+00 : f32
    %65 = vector.broadcast %cst_54 : f32 to vector<8x32xf32>
    %c0_55 = arith.constant 0 : index
    %c0_56 = arith.constant 0 : index
    %66 = vector.load %arg22[%c0_55, %c0_56] : memref<12x32xbf16, #tpu.memory_space<vmem>>, vector<8x32xbf16>
    %c0_57 = arith.constant 0 : index
    %c0_58 = arith.constant 0 : index
    %c0_59 = arith.constant 0 : index
    %67 = vector.load %arg9[%c0_57, %c0_58, %c0_59] : memref<3x32x32xbf16, #tpu.memory_space<vmem>>, vector<1x32x32xbf16>
    %68 = vector.shape_cast %67 : vector<1x32x32xbf16> to vector<32x32xbf16>
    %cst_60 = arith.constant dense<0.000000e+00> : vector<8x32xf32>
    %69 = tpu.matmul %66, %68, %cst_60 {dimension_numbers = #tpu.dot_dimension_numbers<[1], [0], [0], [1], [0, 0, 1, 1], [], []>} : vector<8x32xbf16>, vector<32x32xbf16>, vector<8x32xf32> -> vector<8x32xf32>
    %70 = arith.addf %65, %69 : vector<8x32xf32>
    %c2_61 = arith.constant 2 : index
    %c0_62 = arith.constant 0 : index
    %71 = vector.load %arg22[%c2_61, %c0_62] : memref<12x32xbf16, #tpu.memory_space<vmem>>, vector<8x32xbf16>
    %c1_63 = arith.constant 1 : index
    %c0_64 = arith.constant 0 : index
    %c0_65 = arith.constant 0 : index
    %72 = vector.load %arg9[%c1_63, %c0_64, %c0_65] : memref<3x32x32xbf16, #tpu.memory_space<vmem>>, vector<1x32x32xbf16>
    %73 = vector.shape_cast %72 : vector<1x32x32xbf16> to vector<32x32xbf16>
    %cst_66 = arith.constant dense<0.000000e+00> : vector<8x32xf32>
    %74 = tpu.matmul %71, %73, %cst_66 {dimension_numbers = #tpu.dot_dimension_numbers<[1], [0], [0], [1], [0, 0, 1, 1], [], []>} : vector<8x32xbf16>, vector<32x32xbf16>, vector<8x32xf32> -> vector<8x32xf32>
    %75 = arith.addf %70, %74 : vector<8x32xf32>
    %c4_67 = arith.constant 4 : index
    %c0_68 = arith.constant 0 : index
    %76 = vector.load %arg22[%c4_67, %c0_68] : memref<12x32xbf16, #tpu.memory_space<vmem>>, vector<8x32xbf16>
    %c2_69 = arith.constant 2 : index
    %c0_70 = arith.constant 0 : index
    %c0_71 = arith.constant 0 : index
    %77 = vector.load %arg9[%c2_69, %c0_70, %c0_71] : memref<3x32x32xbf16, #tpu.memory_space<vmem>>, vector<1x32x32xbf16>
    %78 = vector.shape_cast %77 : vector<1x32x32xbf16> to vector<32x32xbf16>
    %cst_72 = arith.constant dense<0.000000e+00> : vector<8x32xf32>
    %79 = tpu.matmul %76, %78, %cst_72 {dimension_numbers = #tpu.dot_dimension_numbers<[1], [0], [0], [1], [0, 0, 1, 1], [], []>} : vector<8x32xbf16>, vector<32x32xbf16>, vector<8x32xf32> -> vector<8x32xf32>
    %80 = arith.addf %75, %79 : vector<8x32xf32>
    %c0_73 = arith.constant 0 : index
    %c0_74 = arith.constant 0 : index
    %81 = vector.load %arg11[%c0_73, %c0_74] : memref<3x32xf32, #tpu.memory_space<vmem>>, vector<1x32xf32>
    %82 = vector.broadcast %81 : vector<1x32xf32> to vector<8x32xf32>
    %83 = arith.addf %80, %82 : vector<8x32xf32>
    %cst_75 = arith.constant 0.000000e+00 : f32
    %84 = vector.broadcast %cst_75 : f32 to vector<8x32xf32>
    %85 = arith.maximumf %83, %84 : vector<8x32xf32>
    %c1_76 = arith.constant 1 : index
    %c0_77 = arith.constant 0 : index
    %86 = vector.load %arg11[%c1_76, %c0_77] : memref<3x32xf32, #tpu.memory_space<vmem>>, vector<1x32xf32>
    %87 = vector.broadcast %86 : vector<1x32xf32> to vector<8x32xf32>
    %88 = arith.mulf %85, %87 : vector<8x32xf32>
    %c2_78 = arith.constant 2 : index
    %c0_79 = arith.constant 0 : index
    %89 = vector.load %arg11[%c2_78, %c0_79] : memref<3x32xf32, #tpu.memory_space<vmem>>, vector<1x32xf32>
    %90 = vector.broadcast %89 : vector<1x32xf32> to vector<8x32xf32>
    %91 = arith.addf %88, %90 : vector<8x32xf32>
    %92 = arith.truncf %91 : vector<8x32xf32> to vector<8x32xbf16>
    %c0_80 = arith.constant 0 : index
    %c0_81 = arith.constant 0 : index
    %93 = vector.load %arg10[%c0_80, %c0_81] : memref<32x32xbf16, #tpu.memory_space<vmem>>, vector<32x32xbf16>
    %cst_82 = arith.constant dense<0.000000e+00> : vector<8x32xf32>
    %94 = tpu.matmul %92, %93, %cst_82 {dimension_numbers = #tpu.dot_dimension_numbers<[1], [0], [0], [1], [0, 0, 1, 1], [], []>} : vector<8x32xbf16>, vector<32x32xbf16>, vector<8x32xf32> -> vector<8x32xf32>
    %95 = arith.addf %62, %94 : vector<8x32xf32>
    %96 = vector.extract_strided_slice %92 {offsets = [0, 0], sizes = [8, 24], strides = [1, 1]} : vector<8x32xbf16> to vector<8x24xbf16>
    %c2_83 = arith.constant 2 : index
    %c0_84 = arith.constant 0 : index
    %97 = vector.load %arg22[%c2_83, %c0_84] : memref<12x32xbf16, #tpu.memory_space<vmem>>, vector<8x24xbf16>
    tpu.vector_store %arg22[%c2_83, %c0_84], %96 {strides = array<i32>} : memref<12x32xbf16, #tpu.memory_space<vmem>>, vector<8x24xbf16>,
    %cst_85 = arith.constant 0.000000e+00 : f32
    %98 = vector.broadcast %cst_85 : f32 to vector<8x32xf32>
    %c0_86 = arith.constant 0 : index
    %c0_87 = arith.constant 0 : index
    %99 = vector.load %arg22[%c0_86, %c0_87] : memref<12x32xbf16, #tpu.memory_space<vmem>>, vector<8x32xbf16>
    %c0_88 = arith.constant 0 : index
    %c0_89 = arith.constant 0 : index
    %c0_90 = arith.constant 0 : index
    %100 = vector.load %arg12[%c0_88, %c0_89, %c0_90] : memref<3x32x32xbf16, #tpu.memory_space<vmem>>, vector<1x32x32xbf16>
    %101 = vector.shape_cast %100 : vector<1x32x32xbf16> to vector<32x32xbf16>
    %cst_91 = arith.constant dense<0.000000e+00> : vector<8x32xf32>
    %102 = tpu.matmul %99, %101, %cst_91 {dimension_numbers = #tpu.dot_dimension_numbers<[1], [0], [0], [1], [0, 0, 1, 1], [], []>} : vector<8x32xbf16>, vector<32x32xbf16>, vector<8x32xf32> -> vector<8x32xf32>
    %103 = arith.addf %98, %102 : vector<8x32xf32>
    %c2_92 = arith.constant 2 : index
    %c0_93 = arith.constant 0 : index
    %104 = vector.load %arg22[%c2_92, %c0_93] : memref<12x32xbf16, #tpu.memory_space<vmem>>, vector<8x32xbf16>
    %c1_94 = arith.constant 1 : index
    %c0_95 = arith.constant 0 : index
    %c0_96 = arith.constant 0 : index
    %105 = vector.load %arg12[%c1_94, %c0_95, %c0_96] : memref<3x32x32xbf16, #tpu.memory_space<vmem>>, vector<1x32x32xbf16>
    %106 = vector.shape_cast %105 : vector<1x32x32xbf16> to vector<32x32xbf16>
    %cst_97 = arith.constant dense<0.000000e+00> : vector<8x32xf32>
    %107 = tpu.matmul %104, %106, %cst_97 {dimension_numbers = #tpu.dot_dimension_numbers<[1], [0], [0], [1], [0, 0, 1, 1], [], []>} : vector<8x32xbf16>, vector<32x32xbf16>, vector<8x32xf32> -> vector<8x32xf32>
    %108 = arith.addf %103, %107 : vector<8x32xf32>
    %c4_98 = arith.constant 4 : index
    %c0_99 = arith.constant 0 : index
    %109 = vector.load %arg22[%c4_98, %c0_99] : memref<12x32xbf16, #tpu.memory_space<vmem>>, vector<8x32xbf16>
    %c2_100 = arith.constant 2 : index
    %c0_101 = arith.constant 0 : index
    %c0_102 = arith.constant 0 : index
    %110 = vector.load %arg12[%c2_100, %c0_101, %c0_102] : memref<3x32x32xbf16, #tpu.memory_space<vmem>>, vector<1x32x32xbf16>
    %111 = vector.shape_cast %110 : vector<1x32x32xbf16> to vector<32x32xbf16>
    %cst_103 = arith.constant dense<0.000000e+00> : vector<8x32xf32>
    %112 = tpu.matmul %109, %111, %cst_103 {dimension_numbers = #tpu.dot_dimension_numbers<[1], [0], [0], [1], [0, 0, 1, 1], [], []>} : vector<8x32xbf16>, vector<32x32xbf16>, vector<8x32xf32> -> vector<8x32xf32>
    %113 = arith.addf %108, %112 : vector<8x32xf32>
    %c0_104 = arith.constant 0 : index
    %c0_105 = arith.constant 0 : index
    %114 = vector.load %arg14[%c0_104, %c0_105] : memref<3x32xf32, #tpu.memory_space<vmem>>, vector<1x32xf32>
    %115 = vector.broadcast %114 : vector<1x32xf32> to vector<8x32xf32>
    %116 = arith.addf %113, %115 : vector<8x32xf32>
    %cst_106 = arith.constant 0.000000e+00 : f32
    %117 = vector.broadcast %cst_106 : f32 to vector<8x32xf32>
    %118 = arith.maximumf %116, %117 : vector<8x32xf32>
    %c1_107 = arith.constant 1 : index
    %c0_108 = arith.constant 0 : index
    %119 = vector.load %arg14[%c1_107, %c0_108] : memref<3x32xf32, #tpu.memory_space<vmem>>, vector<1x32xf32>
    %120 = vector.broadcast %119 : vector<1x32xf32> to vector<8x32xf32>
    %121 = arith.mulf %118, %120 : vector<8x32xf32>
    %c2_109 = arith.constant 2 : index
    %c0_110 = arith.constant 0 : index
    %122 = vector.load %arg14[%c2_109, %c0_110] : memref<3x32xf32, #tpu.memory_space<vmem>>, vector<1x32xf32>
    %123 = vector.broadcast %122 : vector<1x32xf32> to vector<8x32xf32>
    %124 = arith.addf %121, %123 : vector<8x32xf32>
    %125 = arith.truncf %124 : vector<8x32xf32> to vector<8x32xbf16>
    %c0_111 = arith.constant 0 : index
    %c0_112 = arith.constant 0 : index
    %126 = vector.load %arg13[%c0_111, %c0_112] : memref<32x32xbf16, #tpu.memory_space<vmem>>, vector<32x32xbf16>
    %cst_113 = arith.constant dense<0.000000e+00> : vector<8x32xf32>
    %127 = tpu.matmul %125, %126, %cst_113 {dimension_numbers = #tpu.dot_dimension_numbers<[1], [0], [0], [1], [0, 0, 1, 1], [], []>} : vector<8x32xbf16>, vector<32x32xbf16>, vector<8x32xf32> -> vector<8x32xf32>
    %128 = arith.addf %95, %127 : vector<8x32xf32>
    %cst_114 = arith.constant 0.000000e+00 : f32
    %129 = vector.broadcast %cst_114 : f32 to vector<8x32xf32>
    %130 = arith.maximumf %128, %129 : vector<8x32xf32>
    %c1_115 = arith.constant 1 : index
    %c0_116 = arith.constant 0 : index
    %131 = vector.load %arg15[%c1_115, %c0_116] : memref<3x32xf32, #tpu.memory_space<vmem>>, vector<1x32xf32>
    %132 = vector.broadcast %131 : vector<1x32xf32> to vector<8x32xf32>
    %133 = arith.mulf %130, %132 : vector<8x32xf32>
    %c2_117 = arith.constant 2 : index
    %c0_118 = arith.constant 0 : index
    %134 = vector.load %arg15[%c2_117, %c0_118] : memref<3x32xf32, #tpu.memory_space<vmem>>, vector<1x32xf32>
    %135 = vector.broadcast %134 : vector<1x32xf32> to vector<8x32xf32>
    %136 = arith.addf %133, %135 : vector<8x32xf32>
    %cst_119 = arith.constant dense<0.000000e+00> : vector<32xf32>
    %137 = vector.multi_reduction <add>, %136, %cst_119 [0] : vector<8x32xf32> to vector<32xf32>
    %138 = vector.shape_cast %137 : vector<32xf32> to vector<1x32xf32>
    %cst_120 = arith.constant 8.000000e+00 : f32
    %139 = vector.broadcast %cst_120 : f32 to vector<1x32xf32>
    %140 = arith.divf %138, %139 : vector<1x32xf32>
    %141 = arith.truncf %140 : vector<1x32xf32> to vector<1x32xbf16>
    %c0_121 = arith.constant 0 : index
    %c0_122 = arith.constant 0 : index
    %142 = vector.load %arg16[%c0_121, %c0_122] : memref<32x8xbf16, #tpu.memory_space<vmem>>, vector<32x8xbf16>
    %cst_123 = arith.constant dense<0.000000e+00> : vector<1x8xf32>
    %143 = tpu.matmul %141, %142, %cst_123 {dimension_numbers = #tpu.dot_dimension_numbers<[1], [0], [0], [1], [0, 0, 1, 1], [], []>} : vector<1x32xbf16>, vector<32x8xbf16>, vector<1x8xf32> -> vector<1x8xf32>
    %c0_124 = arith.constant 0 : index
    %c0_125 = arith.constant 0 : index
    %144 = vector.load %arg17[%c0_124, %c0_125] : memref<1x8xf32, #tpu.memory_space<vmem>>, vector<1x8xf32>
    %145 = arith.addf %143, %144 : vector<1x8xf32>
    %cst_126 = arith.constant 0.000000e+00 : f32
    %146 = vector.broadcast %cst_126 : f32 to vector<1x8xf32>
    %147 = arith.maximumf %145, %146 : vector<1x8xf32>
    %148 = arith.truncf %147 : vector<1x8xf32> to vector<1x8xbf16>
    %c0_127 = arith.constant 0 : index
    %c0_128 = arith.constant 0 : index
    %149 = vector.load %arg18[%c0_127, %c0_128] : memref<8x32xbf16, #tpu.memory_space<vmem>>, vector<8x32xbf16>
    %cst_129 = arith.constant dense<0.000000e+00> : vector<1x32xf32>
    %150 = tpu.matmul %148, %149, %cst_129 {dimension_numbers = #tpu.dot_dimension_numbers<[1], [0], [0], [1], [0, 0, 1, 1], [], []>} : vector<1x8xbf16>, vector<8x32xbf16>, vector<1x32xf32> -> vector<1x32xf32>
    %c0_130 = arith.constant 0 : index
    %c0_131 = arith.constant 0 : index
    %151 = vector.load %arg19[%c0_130, %c0_131] : memref<5x32xf32, #tpu.memory_space<vmem>>, vector<1x32xf32>
    %152 = arith.addf %150, %151 : vector<1x32xf32>
    %153 = arith.negf %152 : vector<1x32xf32>
    %154 = math.exp %153 : vector<1x32xf32>
    %cst_132 = arith.constant 1.000000e+00 : f32
    %155 = vector.broadcast %cst_132 : f32 to vector<1x32xf32>
    %156 = arith.addf %155, %154 : vector<1x32xf32>
    %157 = arith.divf %155, %156 : vector<1x32xf32>
    %158 = vector.broadcast %157 : vector<1x32xf32> to vector<8x32xf32>
    %159 = arith.mulf %136, %158 : vector<8x32xf32>
    %160 = arith.addf %159, %6 : vector<8x32xf32>
    %cst_133 = arith.constant 0.000000e+00 : f32
    %161 = vector.broadcast %cst_133 : f32 to vector<8x32xf32>
    %162 = arith.maximumf %160, %161 : vector<8x32xf32>
    %c1_134 = arith.constant 1 : index
    %c0_135 = arith.constant 0 : index
    %163 = vector.load %arg19[%c1_134, %c0_135] : memref<5x32xf32, #tpu.memory_space<vmem>>, vector<1x32xf32>
    %164 = vector.broadcast %163 : vector<1x32xf32> to vector<8x32xf32>
    %165 = arith.mulf %162, %164 : vector<8x32xf32>
    %c2_136 = arith.constant 2 : index
    %c0_137 = arith.constant 0 : index
    %166 = vector.load %arg19[%c2_136, %c0_137] : memref<5x32xf32, #tpu.memory_space<vmem>>, vector<1x32xf32>
    %167 = vector.broadcast %166 : vector<1x32xf32> to vector<8x32xf32>
    %168 = arith.addf %165, %167 : vector<8x32xf32>
    %169 = arith.truncf %168 : vector<8x32xf32> to vector<8x32xbf16>
    %c0_138 = arith.constant 0 : index
    %c0_139 = arith.constant 0 : index
    %c0_140 = arith.constant 0 : index
    %170 = vector.load %arg20[%c0_138, %c0_139, %c0_140] : memref<1x8x32xbf16, #tpu.memory_space<vmem>>, vector<1x8x32xbf16>
    %171 = vector.shape_cast %170 : vector<1x8x32xbf16> to vector<8x32xbf16>
    %172 = vector.shape_cast %169 : vector<8x32xbf16> to vector<1x8x32xbf16>
    tpu.vector_store %arg20[%c0_138, %c0_139, %c0_140], %172 {strides = array<i32>} : memref<1x8x32xbf16, #tpu.memory_space<vmem>>, vector<1x8x32xbf16>,
    %c3 = arith.constant 3 : index
    %c0_141 = arith.constant 0 : index
    %173 = vector.load %arg19[%c3, %c0_141] : memref<5x32xf32, #tpu.memory_space<vmem>>, vector<1x32xf32>
    %174 = vector.broadcast %173 : vector<1x32xf32> to vector<8x32xf32>
    %175 = arith.mulf %168, %174 : vector<8x32xf32>
    %c4_142 = arith.constant 4 : index
    %c0_143 = arith.constant 0 : index
    %176 = vector.load %arg19[%c4_142, %c0_143] : memref<5x32xf32, #tpu.memory_space<vmem>>, vector<1x32xf32>
    %177 = vector.broadcast %176 : vector<1x32xf32> to vector<8x32xf32>
    %178 = arith.addf %175, %177 : vector<8x32xf32>
    %cst_144 = arith.constant 0.000000e+00 : f32
    %179 = vector.broadcast %cst_144 : f32 to vector<8x32xf32>
    %180 = arith.maximumf %178, %179 : vector<8x32xf32>
    %cst_145 = arith.constant dense<0.000000e+00> : vector<32xf32>
    %181 = vector.multi_reduction <add>, %180, %cst_145 [0] : vector<8x32xf32> to vector<32xf32>
    %182 = vector.shape_cast %181 : vector<32xf32> to vector<1x32xf32>
    %cst_146 = arith.constant 1.250000e-01 : f32
    %183 = vector.broadcast %cst_146 : f32 to vector<1x32xf32>
    %184 = arith.mulf %182, %183 : vector<1x32xf32>
    %c0_147 = arith.constant 0 : index
    %c0_148 = arith.constant 0 : index
    %c0_149 = arith.constant 0 : index
    %185 = vector.load %arg21[%c0_147, %c0_148, %c0_149] : memref<1x1x32xf32, #tpu.memory_space<vmem>>, vector<1x1x32xf32>
    %186 = vector.shape_cast %185 : vector<1x1x32xf32> to vector<1x32xf32>
    %187 = vector.shape_cast %184 : vector<1x32xf32> to vector<1x1x32xf32>
    tpu.vector_store %arg21[%c0_147, %c0_148, %c0_149], %187 {strides = array<i32>} : memref<1x1x32xf32, #tpu.memory_space<vmem>>, vector<1x1x32xf32>,
    return
  }
  func.func @transform_0(%arg0: i32) -> (i32, i32, i32) {
    %c0_i32 = arith.constant 0 : i32
    %c0_i32_0 = arith.constant 0 : i32
    %c0_i32_1 = arith.constant 0 : i32
    return %arg0, %c0_i32, %c0_i32_0 : i32, i32, i32
  }
  func.func @transform_1(%arg0: i32) -> (i32, i32, i32) {
    %c0_i32 = arith.constant 0 : i32
    %c0_i32_0 = arith.constant 0 : i32
    %c0_i32_1 = arith.constant 0 : i32
    return %arg0, %c0_i32, %c0_i32_0 : i32, i32, i32
  }
  func.func @transform_2(%arg0: i32) -> (i32, i32) {
    %c0_i32 = arith.constant 0 : i32
    %c0_i32_0 = arith.constant 0 : i32
    %c0_i32_1 = arith.constant 0 : i32
    return %c0_i32, %c0_i32_0 : i32, i32
  }
  func.func @transform_3(%arg0: i32) -> (i32, i32) {
    %c0_i32 = arith.constant 0 : i32
    %c0_i32_0 = arith.constant 0 : i32
    %c0_i32_1 = arith.constant 0 : i32
    return %c0_i32, %c0_i32_0 : i32, i32
  }
  func.func @transform_4(%arg0: i32) -> (i32, i32) {
    %c0_i32 = arith.constant 0 : i32
    %c0_i32_0 = arith.constant 0 : i32
    %c0_i32_1 = arith.constant 0 : i32
    return %c0_i32, %c0_i32_0 : i32, i32
  }
  func.func @transform_5(%arg0: i32) -> (i32, i32, i32) {
    %c0_i32 = arith.constant 0 : i32
    %c0_i32_0 = arith.constant 0 : i32
    %c0_i32_1 = arith.constant 0 : i32
    %c0_i32_2 = arith.constant 0 : i32
    return %c0_i32, %c0_i32_0, %c0_i32_1 : i32, i32, i32
  }
  func.func @transform_6(%arg0: i32) -> (i32, i32) {
    %c0_i32 = arith.constant 0 : i32
    %c0_i32_0 = arith.constant 0 : i32
    %c0_i32_1 = arith.constant 0 : i32
    return %c0_i32, %c0_i32_0 : i32, i32
  }
  func.func @transform_7(%arg0: i32) -> (i32, i32) {
    %c0_i32 = arith.constant 0 : i32
    %c0_i32_0 = arith.constant 0 : i32
    %c0_i32_1 = arith.constant 0 : i32
    return %c0_i32, %c0_i32_0 : i32, i32
  }
  func.func @transform_8(%arg0: i32) -> (i32, i32, i32) {
    %c0_i32 = arith.constant 0 : i32
    %c0_i32_0 = arith.constant 0 : i32
    %c0_i32_1 = arith.constant 0 : i32
    %c0_i32_2 = arith.constant 0 : i32
    return %c0_i32, %c0_i32_0, %c0_i32_1 : i32, i32, i32
  }
  func.func @transform_9(%arg0: i32) -> (i32, i32) {
    %c0_i32 = arith.constant 0 : i32
    %c0_i32_0 = arith.constant 0 : i32
    %c0_i32_1 = arith.constant 0 : i32
    return %c0_i32, %c0_i32_0 : i32, i32
  }
  func.func @transform_10(%arg0: i32) -> (i32, i32) {
    %c0_i32 = arith.constant 0 : i32
    %c0_i32_0 = arith.constant 0 : i32
    %c0_i32_1 = arith.constant 0 : i32
    return %c0_i32, %c0_i32_0 : i32, i32
  }
  func.func @transform_11(%arg0: i32) -> (i32, i32, i32) {
    %c0_i32 = arith.constant 0 : i32
    %c0_i32_0 = arith.constant 0 : i32
    %c0_i32_1 = arith.constant 0 : i32
    %c0_i32_2 = arith.constant 0 : i32
    return %c0_i32, %c0_i32_0, %c0_i32_1 : i32, i32, i32
  }
  func.func @transform_12(%arg0: i32) -> (i32, i32) {
    %c0_i32 = arith.constant 0 : i32
    %c0_i32_0 = arith.constant 0 : i32
    %c0_i32_1 = arith.constant 0 : i32
    return %c0_i32, %c0_i32_0 : i32, i32
  }
  func.func @transform_13(%arg0: i32) -> (i32, i32) {
    %c0_i32 = arith.constant 0 : i32
    %c0_i32_0 = arith.constant 0 : i32
    %c0_i32_1 = arith.constant 0 : i32
    return %c0_i32, %c0_i32_0 : i32, i32
  }
  func.func @transform_14(%arg0: i32) -> (i32, i32) {
    %c0_i32 = arith.constant 0 : i32
    %c0_i32_0 = arith.constant 0 : i32
    %c0_i32_1 = arith.constant 0 : i32
    return %c0_i32, %c0_i32_0 : i32, i32
  }
  func.func @transform_15(%arg0: i32) -> (i32, i32) {
    %c0_i32 = arith.constant 0 : i32
    %c0_i32_0 = arith.constant 0 : i32
    %c0_i32_1 = arith.constant 0 : i32
    return %c0_i32, %c0_i32_0 : i32, i32
  }
  func.func @transform_16(%arg0: i32) -> (i32, i32) {
    %c0_i32 = arith.constant 0 : i32
    %c0_i32_0 = arith.constant 0 : i32
    %c0_i32_1 = arith.constant 0 : i32
    return %c0_i32, %c0_i32_0 : i32, i32
  }
  func.func @transform_17(%arg0: i32) -> (i32, i32) {
    %c0_i32 = arith.constant 0 : i32
    %c0_i32_0 = arith.constant 0 : i32
    %c0_i32_1 = arith.constant 0 : i32
    return %c0_i32, %c0_i32_0 : i32, i32
  }
  func.func @transform_18(%arg0: i32) -> (i32, i32) {
    %c0_i32 = arith.constant 0 : i32
    %c0_i32_0 = arith.constant 0 : i32
    %c0_i32_1 = arith.constant 0 : i32
    return %c0_i32, %c0_i32_0 : i32, i32
  }
  func.func @transform_19(%arg0: i32) -> (i32, i32, i32) {
    %c0_i32 = arith.constant 0 : i32
    %c0_i32_0 = arith.constant 0 : i32
    %c0_i32_1 = arith.constant 0 : i32
    return %arg0, %c0_i32, %c0_i32_0 : i32, i32, i32
  }
  func.func @transform_20(%arg0: i32) -> (i32, i32, i32) {
    %c0_i32 = arith.constant 0 : i32
    %c0_i32_0 = arith.constant 0 : i32
    %c0_i32_1 = arith.constant 0 : i32
    return %arg0, %c0_i32, %c0_i32_0 : i32, i32, i32
  }
}

</mosaic_0001>

<llo_original>
// kernel: tile.138
$region0: #{tile.138}
  #allocation0 [shape = 's32[1]{0}', space=sflag, size = 0x4, scoped, tag = 'scoped memory for tile.138']
  %s0 = inlined_call_operand.vmem [shape: f32[8], index: 0, kind: input, shape index: {}]
  %s1 = inlined_call_operand.vmem [shape: f32[4,8], index: 1, kind: output, shape index: {}]
  // Predicated region
  $region2: #{tile.138} parent=0 // pred_check
    _
  $region3: #{tile.138} parent=0 // pred_check_branch
    %3 = sbr.rel (0) target = $region5
  $region4: #{tile.138} parent=0 // pred_region
    _
  $region5: #{tile.138} parent=0 // pred_fallthru
    _
  %v4 = vld [vmem:[%s0] ss:$0 sm:$0xff]
  %5 = vst [vmem:[%s1] sm:$0xf] %v4

// kernel: tile.147
$region0: #{tile.147}
  %s0 = inlined_call_operand.vmem [shape: f32[4,8], index: 0, kind: input, shape index: {}]
  %s1 = inlined_call_operand.vmem [shape: f32[1,32], index: 1, kind: output, shape index: {}]
  $region1: #{tile.147} parent=0
    #allocation0 [shape = 'u8[4096]{0}', space=vmem, size = 0x1000, scoped, tag = 'scoped mem for output reshape']
    #allocation1 [shape = 'u8[4096]{0}', space=vmem, size = 0x1000, scoped, tag = 'scoped mem for input reshape']
    %s3 = sshllo.u32 0, 4
    %v4 = vld [vmem:[%s0] sm:%s3]
    %5 = vst [vmem:[#allocation1] sm:%s3] %v4
    %v6 = vld [vmem:[#allocation1] sm:$0x1]
    %vm7 = vcmask 64512
    %8 = vst.msk [vmem:[#allocation0] sm:$0x1] %vm7, %v6
    %s9 = scalar_lea.vmem [#allocation1], 3
    %v10 = vld [vmem:[%s9] sm:$0x1]
    %11 = vrot.lane.b32.xlu0 %v10, 24
    %v12 = vpop.permute.xlu0 %11
    %vm13 = vcmask 261312
    %14 = vst.msk [vmem:[#allocation0] sm:$0x1] %vm13, %v12
    %s15 = scalar_lea.vmem [#allocation1], 2
    %v16 = vld [vmem:[%s15] sm:$0x1]
    %17 = vrot.lane.b32.xlu0 %v16, 16
    %v18 = vpop.permute.xlu0 %17
    %vm19 = vcmask 195712
    %20 = vst.msk [vmem:[#allocation0] sm:$0x1] %vm19, %v18
    %s21 = scalar_lea.vmem [#allocation1], 1
    %v22 = vld [vmem:[%s21] sm:$0x1]
    %23 = vrot.lane.b32.xlu0 %v22, 8
    %v24 = vpop.permute.xlu0 %23
    %vm25 = vcmask 130112
    %26 = vst.msk [vmem:[#allocation0] sm:$0x1] %vm25, %v24
    %s28 = sshllo.u32 0, 1
    %v30 = vld [vmem:[#allocation0] sm:%s28]
    %s31 = sshllo.u32 0, 1
    %32 = vst [vmem:[%s1] sm:%s31] %v30

// kernel: squeeze.1
$region0: #{squeeze.1}
  %s0 = inlined_call_operand.vmem [shape: f32[2,128], index: 0, kind: input, shape index: {}]
  %s1 = inlined_call_operand.vmem [shape: f32[16,16], index: 1, kind: output, shape index: {}]
  $region1: #{squeeze.1} parent=0
    #allocation0 [shape = 'u8[4096]{0}', space=vmem, size = 0x1000, scoped, tag = 'scoped mem for input reshape']
    %s3 = sshllo.u32 0, 2
    %v4 = vld [vmem:[%s0] sm:%s3]
    %5 = vst [vmem:[#allocation0] sm:%s3] %v4
    %v6 = vld [vmem:[#allocation0] sm:$0x3]
    %vm7 = vcmask 130048
    %8 = vst.msk [vmem:[%s1] ss:$8 sm:$0x3] %vm7, %v6
    %v9 = vld [vmem:[#allocation0] sm:$0x3]
    %10 = vrot.lane.b32.xlu0 %v9, 112
    %v11 = vpop.permute.xlu0 %10
    %vm12 = vcmask 130048
    %s13 = scalar_lea.vmem %s1, 1
    %14 = vst.msk [vmem:[%s13] ss:$8 sm:$0x3] %vm12, %v11
    %v15 = vld [vmem:[#allocation0] sm:$0x3]
    %16 = vrot.lane.b32.xlu0 %v15, 96
    %v17 = vpop.permute.xlu0 %16
    %vm18 = vcmask 130048
    %s19 = scalar_lea.vmem %s1, 2
    %20 = vst.msk [vmem:[%s19] ss:$8 sm:$0x3] %vm18, %v17
    %v21 = vld [vmem:[#allocation0] sm:$0x3]
    %22 = vrot.lane.b32.xlu0 %v21, 80
    %v23 = vpop.permute.xlu0 %22
    %vm24 = vcmask 130048
    %s25 = scalar_lea.vmem %s1, 3
    %26 = vst.msk [vmem:[%s25] ss:$8 sm:$0x3] %vm24, %v23
    %v27 = vld [vmem:[#allocation0] sm:$0x3]
    %28 = vrot.lane.b32.xlu0 %v27, 64
    %v29 = vpop.permute.xlu0 %28
    %vm30 = vcmask 130048
    %s31 = scalar_lea.vmem %s1, 4
    %32 = vst.msk [vmem:[%s31] ss:$8 sm:$0x3] %vm30, %v29
    %v33 = vld [vmem:[#allocation0] sm:$0x3]
    %34 = vrot.lane.b32.xlu0 %v33, 48
    %v35 = vpop.permute.xlu0 %34
    %vm36 = vcmask 130048
    %s37 = scalar_lea.vmem %s1, 5
    %38 = vst.msk [vmem:[%s37] ss:$8 sm:$0x3] %vm36, %v35
    %v39 = vld [vmem:[#allocation0] sm:$0x3]
    %40 = vrot.lane.b32.xlu0 %v39, 32
    %v41 = vpop.permute.xlu0 %40
    %vm42 = vcmask 130048
    %s43 = scalar_lea.vmem %s1, 6
    %44 = vst.msk [vmem:[%s43] ss:$8 sm:$0x3] %vm42, %v41
    %v45 = vld [vmem:[#allocation0] sm:$0x3]
    %46 = vrot.lane.b32.xlu0 %v45, 16
    %v47 = vpop.permute.xlu0 %46
    %vm48 = vcmask 130048
    %s49 = scalar_lea.vmem %s1, 7
    %50 = vst.msk [vmem:[%s49] ss:$8 sm:$0x3] %vm48, %v47

// kernel: _lambda_.5
$region0: #{_lambda_.5}
  #allocation0 [shape = 'u32[]', space=smem, size = 0x4, offset = 0x4, fixed_abs, tag = 'smem constant byte address 0x4 - core index']
  #allocation1 [shape = 'u32[144,128]{1,0:T(1,128)}', space=vmem, size = 0x12000, scoped, tag = 'internal scratch']
  %s0 = inlined_call_operand.vmem [shape: f32[16,16], index: 0, kind: input, shape index: {}]
  %s1 = inlined_call_operand.vmem [shape: bf16[4,16,32], index: 1, kind: input, shape index: {}]
  %s2 = inlined_call_operand.vmem [shape: f32[4,32], index: 2, kind: input, shape index: {}]
  %s3 = inlined_call_operand.vmem [shape: bf16[16,32], index: 3, kind: output, shape index: {0}]
  %s4 = inlined_call_operand.vmem [shape: bf16[16,32], index: 4, kind: output, shape index: {1}]
  %s5 = inlined_call_operand.vmem [shape: bf16[16,32], index: 5, kind: output, shape index: {2}]
  %s6 = inlined_call_operand.vmem [shape: bf16[16,32], index: 6, kind: output, shape index: {3}]
  %7 = xla_tuple %s3, %s4, %s5, %s6
  %s8 = sld [smem:[#allocation0]]
  $region46: #{_lambda_.5} parent=0
    _
  %s10 = ssub.s32 1, %s8
  %s11 = scalar_select 0, %s10, %s8
  // Predicated region
  $region2: #{_lambda_.5} parent=0 // pred_check
    _
  $region3: #{_lambda_.5} parent=0 // pred_check_branch
    %13 = sbr.rel (0) target = $region5
  $region4: #{_lambda_.5} parent=0 // pred_region
    _
  $region5: #{_lambda_.5} parent=0 // pred_fallthru
    _
  // Predicated region
  $region6: #{_lambda_.5} parent=0 // pred_check
    _
  $region7: #{_lambda_.5} parent=0 // pred_check_branch
    %15 = sbr.rel (0) target = $region9
  $region8: #{_lambda_.5} parent=0 // pred_region
    _
  $region9: #{_lambda_.5} parent=0 // pred_fallthru
    _
  // Predicated region
  $region10: #{_lambda_.5} parent=0 // pred_check
    _
  $region11: #{_lambda_.5} parent=0 // pred_check_branch
    %17 = sbr.rel (0) target = $region13
  $region12: #{_lambda_.5} parent=0 // pred_region
    _
  $region13: #{_lambda_.5} parent=0 // pred_fallthru
    _
  %v19 = vld [vmem:[%s0] sm:$0xff]
  %v20 = vld [vmem:[%s0 + $0x8] sm:$0xff]
  %v21 = vpack.c.bf16 %v20, %v19
  %v22 = vld [vmem:[%s1] sm:$0xf]
  %v23 = vld [vmem:[%s1 + $0x4] sm:$0xf]
  %v24 = vld [vmem:[%s2] sm:$0x1]
  %v25 = vlaneseq
  %v26 = vshrl.u32 %v25, 7
  %v27 = vsub.s32 0, %v26
  %v28 = vrot.slane %v24, %v27
  %v31 = vunpack.c.l.b16 %v22
  %v32 = vunpack.c.l.b16 %v23
  %v33 = vpack.c.b16 %v32, %v31
  %vm35 = vcmask 130048
  %v37 = vsel %vm35, %v21, 0
  %39 = vmatprep.subr.bf16.mxu0 0
  %40 = vmatpush1.bf16.msra.mxu0 %v33
  %41 = vmatprep.subr.bf16.mxu0 0
  %42 = vmatpush1.bf16.msra.mxu0 0
  %43 = vmatprep.subr.bf16.mxu0 0
  %44 = vmatpush1.bf16.msra.mxu0 0
  %45 = vmatprep.subr.bf16.mxu0 0
  %46 = vmatpush1.bf16.msra.mxu0 0
  %47 = vmatprep.subr.bf16.mxu0 0
  %48 = vmatpush1.bf16.msra.mxu0 0
  %49 = vmatprep.subr.bf16.mxu0 0
  %50 = vmatpush1.bf16.msra.mxu0 0
  %51 = vmatprep.subr.bf16.mxu0 0
  %52 = vmatpush1.bf16.msra.mxu0 0
  %53 = vmatprep.subr.bf16.mxu0 0
  %54 = vmatpush1.bf16.msra.mxu0 0
  %55 = vmatprep.subr.bf16.mxu0 0
  %56 = vmatpush1.bf16.msra.mxu0 0
  %57 = vmatprep.subr.bf16.mxu0 0
  %58 = vmatpush1.bf16.msra.mxu0 0
  %59 = vmatprep.subr.bf16.mxu0 0
  %60 = vmatpush1.bf16.msra.mxu0 0
  %61 = vmatprep.subr.bf16.mxu0 0
  %62 = vmatpush1.bf16.msra.mxu0 0
  %63 = vmatprep.subr.bf16.mxu0 0
  %64 = vmatpush1.bf16.msra.mxu0 0
  %65 = vmatprep.subr.bf16.mxu0 0
  %66 = vmatpush1.bf16.msra.mxu0 0
  %67 = vmatprep.subr.bf16.mxu0 0
  %68 = vmatpush1.bf16.msra.mxu0 0
  %69 = vmatprep.subr.bf16.mxu0 0
  %70 = vmatpush1.bf16.msra.mxu0 0
  %71 = vmatprep.mubr.bf16.mxu0 0
  %72 = vmatmul.mubr.bf16.gmra.mrb[0].mxu0 %v37
  %v73 = vpop.f32.mrb[0].mxu0
  %v74 = vadd.f32 %v28, %v73
  %v75 = vpop.f32.mrb[0].mxu0
  %v76 = vpop.f32.mrb[0].mxu0
  %v77 = vadd.f32 %v28, %v76
  %v78 = vpop.f32.mrb[0].mxu0
  %79 = vdwg.mxu0
  %v80 = vpack.c.bf16 %v77, %v74
  %v82 = vunpack.c.l.b16 %v80
  %v83 = vunpack.c.h.b16 %v80
  %v84 = vpack.c.b16 %v82, %v82
  %v85 = vpack.c.b16 %v83, %v83
  %vm88 = vcmask 257024
  %89 = vst.msk [vmem:[%s3] sm:$0xf] %vm88, %v84
  %90 = vst.msk [vmem:[%s3 + $0x4] sm:$0xf] %vm88, %v85
  %s91 = scalar_lea.vmem %s1, 8
  %v92 = vld [vmem:[%s91] sm:$0xf]
  %v93 = vld [vmem:[%s91 + $0x4] sm:$0xf]
  %v94 = vld [vmem:[%s2 + $0x1] sm:$0x1]
  %v95 = vlaneseq
  %v96 = vshrl.u32 %v95, 7
  %v97 = vsub.s32 0, %v96
  %v98 = vrot.slane %v94, %v97
  %v101 = vunpack.c.l.b16 %v92
  %v102 = vunpack.c.l.b16 %v93
  %v103 = vpack.c.b16 %v102, %v101
  %105 = vmatprep.subr.bf16.mxu0 0
  %106 = vmatpush1.bf16.msra.mxu0 %v103
  %107 = vmatprep.subr.bf16.mxu0 0
  %108 = vmatpush1.bf16.msra.mxu0 0
  %109 = vmatprep.subr.bf16.mxu0 0
  %110 = vmatpush1.bf16.msra.mxu0 0
  %111 = vmatprep.subr.bf16.mxu0 0
  %112 = vmatpush1.bf16.msra.mxu0 0
  %113 = vmatprep.subr.bf16.mxu0 0
  %114 = vmatpush1.bf16.msra.mxu0 0
  %115 = vmatprep.subr.bf16.mxu0 0
  %116 = vmatpush1.bf16.msra.mxu0 0
  %117 = vmatprep.subr.bf16.mxu0 0
  %118 = vmatpush1.bf16.msra.mxu0 0
  %119 = vmatprep.subr.bf16.mxu0 0
  %120 = vmatpush1.bf16.msra.mxu0 0
  %121 = vmatprep.subr.bf16.mxu0 0
  %122 = vmatpush1.bf16.msra.mxu0 0
  %123 = vmatprep.subr.bf16.mxu0 0
  %124 = vmatpush1.bf16.msra.mxu0 0
  %125 = vmatprep.subr.bf16.mxu0 0
  %126 = vmatpush1.bf16.msra.mxu0 0
  %127 = vmatprep.subr.bf16.mxu0 0
  %128 = vmatpush1.bf16.msra.mxu0 0
  %129 = vmatprep.subr.bf16.mxu0 0
  %130 = vmatpush1.bf16.msra.mxu0 0
  %131 = vmatprep.subr.bf16.mxu0 0
  %132 = vmatpush1.bf16.msra.mxu0 0
  %133 = vmatprep.subr.bf16.mxu0 0
  %134 = vmatpush1.bf16.msra.mxu0 0
  %135 = vmatprep.subr.bf16.mxu0 0
  %136 = vmatpush1.bf16.msra.mxu0 0
  %137 = vmatprep.mubr.bf16.mxu0 0
  %138 = vmatmul.mubr.bf16.gmra.mrb[0].mxu0 %v37
  %v139 = vpop.f32.mrb[0].mxu0
  %v140 = vadd.f32 %v98, %v139
  %v141 = vpop.f32.mrb[0].mxu0
  %v142 = vpop.f32.mrb[0].mxu0
  %v143 = vadd.f32 %v98, %v142
  %v144 = vpop.f32.mrb[0].mxu0
  %145 = vdwg.mxu0
  %v146 = vpack.c.bf16 %v143, %v140
  %v148 = vunpack.c.l.b16 %v146
  %v149 = vunpack.c.h.b16 %v146
  %v150 = vpack.c.b16 %v148, %v148
  %v151 = vpack.c.b16 %v149, %v149
  %154 = vst.msk [vmem:[%s4] sm:$0xf] %vm88, %v150
  %155 = vst.msk [vmem:[%s4 + $0x4] sm:$0xf] %vm88, %v151
  %s156 = scalar_lea.vmem %s1, 16
  %v157 = vld [vmem:[%s156] sm:$0xf]
  %v158 = vld [vmem:[%s156 + $0x4] sm:$0xf]
  %v159 = vld [vmem:[%s2 + $0x2] sm:$0x1]
  %v160 = vlaneseq
  %v161 = vshrl.u32 %v160, 7
  %v162 = vsub.s32 0, %v161
  %v163 = vrot.slane %v159, %v162
  %v166 = vunpack.c.l.b16 %v157
  %v167 = vunpack.c.l.b16 %v158
  %v168 = vpack.c.b16 %v167, %v166
  %170 = vmatprep.subr.bf16.mxu0 0
  %171 = vmatpush1.bf16.msra.mxu0 %v168
  %172 = vmatprep.subr.bf16.mxu0 0
  %173 = vmatpush1.bf16.msra.mxu0 0
  %174 = vmatprep.subr.bf16.mxu0 0
  %175 = vmatpush1.bf16.msra.mxu0 0
  %176 = vmatprep.subr.bf16.mxu0 0
  %177 = vmatpush1.bf16.msra.mxu0 0
  %178 = vmatprep.subr.bf16.mxu0 0
  %179 = vmatpush1.bf16.msra.mxu0 0
  %180 = vmatprep.subr.bf16.mxu0 0
  %181 = vmatpush1.bf16.msra.mxu0 0
  %182 = vmatprep.subr.bf16.mxu0 0
  %183 = vmatpush1.bf16.msra.mxu0 0
  %184 = vmatprep.subr.bf16.mxu0 0
  %185 = vmatpush1.bf16.msra.mxu0 0
  %186 = vmatprep.subr.bf16.mxu0 0
  %187 = vmatpush1.bf16.msra.mxu0 0
  %188 = vmatprep.subr.bf16.mxu0 0
  %189 = vmatpush1.bf16.msra.mxu0 0
  %190 = vmatprep.subr.bf16.mxu0 0
  %191 = vmatpush1.bf16.msra.mxu0 0
  %192 = vmatprep.subr.bf16.mxu0 0
  %193 = vmatpush1.bf16.msra.mxu0 0
  %194 = vmatprep.subr.bf16.mxu0 0
  %195 = vmatpush1.bf16.msra.mxu0 0
  %196 = vmatprep.subr.bf16.mxu0 0
  %197 = vmatpush1.bf16.msra.mxu0 0
  %198 = vmatprep.subr.bf16.mxu0 0
  %199 = vmatpush1.bf16.msra.mxu0 0
  %200 = vmatprep.subr.bf16.mxu0 0
  %201 = vmatpush1.bf16.msra.mxu0 0
  %202 = vmatprep.mubr.bf16.mxu0 0
  %203 = vmatmul.mubr.bf16.gmra.mrb[0].mxu0 %v37
  %v204 = vpop.f32.mrb[0].mxu0
  %v205 = vadd.f32 %v163, %v204
  %v206 = vpop.f32.mrb[0].mxu0
  %v207 = vpop.f32.mrb[0].mxu0
  %v208 = vadd.f32 %v163, %v207
  %v209 = vpop.f32.mrb[0].mxu0
  %210 = vdwg.mxu0
  %v211 = vpack.c.bf16 %v208, %v205
  %v213 = vunpack.c.l.b16 %v211
  %v214 = vunpack.c.h.b16 %v211
  %v215 = vpack.c.b16 %v213, %v213
  %v216 = vpack.c.b16 %v214, %v214
  %219 = vst.msk [vmem:[%s5] sm:$0xf] %vm88, %v215
  %220 = vst.msk [vmem:[%s5 + $0x4] sm:$0xf] %vm88, %v216
  %s221 = scalar_lea.vmem %s1, 24
  %v222 = vld [vmem:[%s221] sm:$0xf]
  %v223 = vld [vmem:[%s221 + $0x4] sm:$0xf]
  %v224 = vld [vmem:[%s2 + $0x3] sm:$0x1]
  %v225 = vlaneseq
  %v226 = vshrl.u32 %v225, 7
  %v227 = vsub.s32 0, %v226
  %v228 = vrot.slane %v224, %v227
  %v231 = vunpack.c.l.b16 %v222
  %v232 = vunpack.c.l.b16 %v223
  %v233 = vpack.c.b16 %v232, %v231
  %235 = vmatprep.subr.bf16.mxu0 0
  %236 = vmatpush1.bf16.msra.mxu0 %v233
  %237 = vmatprep.subr.bf16.mxu0 0
  %238 = vmatpush1.bf16.msra.mxu0 0
  %239 = vmatprep.subr.bf16.mxu0 0
  %240 = vmatpush1.bf16.msra.mxu0 0
  %241 = vmatprep.subr.bf16.mxu0 0
  %242 = vmatpush1.bf16.msra.mxu0 0
  %243 = vmatprep.subr.bf16.mxu0 0
  %244 = vmatpush1.bf16.msra.mxu0 0
  %245 = vmatprep.subr.bf16.mxu0 0
  %246 = vmatpush1.bf16.msra.mxu0 0
  %247 = vmatprep.subr.bf16.mxu0 0
  %248 = vmatpush1.bf16.msra.mxu0 0
  %249 = vmatprep.subr.bf16.mxu0 0
  %250 = vmatpush1.bf16.msra.mxu0 0
  %251 = vmatprep.subr.bf16.mxu0 0
  %252 = vmatpush1.bf16.msra.mxu0 0
  %253 = vmatprep.subr.bf16.mxu0 0
  %254 = vmatpush1.bf16.msra.mxu0 0
  %255 = vmatprep.subr.bf16.mxu0 0
  %256 = vmatpush1.bf16.msra.mxu0 0
  %257 = vmatprep.subr.bf16.mxu0 0
  %258 = vmatpush1.bf16.msra.mxu0 0
  %259 = vmatprep.subr.bf16.mxu0 0
  %260 = vmatpush1.bf16.msra.mxu0 0
  %261 = vmatprep.subr.bf16.mxu0 0
  %262 = vmatpush1.bf16.msra.mxu0 0
  %263 = vmatprep.subr.bf16.mxu0 0
  %264 = vmatpush1.bf16.msra.mxu0 0
  %265 = vmatprep.subr.bf16.mxu0 0
  %266 = vmatpush1.bf16.msra.mxu0 0
  %267 = vmatprep.mubr.bf16.mxu0 0
  %268 = vmatmul.mubr.bf16.gmra.mrb[0].mxu0 %v37
  %v269 = vpop.f32.mrb[0].mxu0
  %v270 = vadd.f32 %v228, %v269
  %v271 = vpop.f32.mrb[0].mxu0
  %v272 = vpop.f32.mrb[0].mxu0
  %v273 = vadd.f32 %v228, %v272
  %v274 = vpop.f32.mrb[0].mxu0
  %275 = vdwg.mxu0
  %v276 = vpack.c.bf16 %v273, %v270
  %v278 = vunpack.c.l.b16 %v276
  %v279 = vunpack.c.h.b16 %v276
  %v280 = vpack.c.b16 %v278, %v278
  %v281 = vpack.c.b16 %v279, %v279
  %284 = vst.msk [vmem:[%s6] sm:$0xf] %vm88, %v280
  %285 = vst.msk [vmem:[%s6 + $0x4] sm:$0xf] %vm88, %v281
  // Predicated region
  $region14: #{_lambda_.5} parent=0 // pred_check
    _
  $region15: #{_lambda_.5} parent=0 // pred_check_branch
    %287 = sbr.rel (0) target = $region17
  $region16: #{_lambda_.5} parent=0 // pred_region
    _
  $region17: #{_lambda_.5} parent=0 // pred_fallthru
    _
  // Predicated region
  $region18: #{_lambda_.5} parent=0 // pred_check
    _
  $region19: #{_lambda_.5} parent=0 // pred_check_branch
    %289 = sbr.rel (0) target = $region21
  $region20: #{_lambda_.5} parent=0 // pred_region
    _
  $region21: #{_lambda_.5} parent=0 // pred_fallthru
    _
  // Predicated region
  $region22: #{_lambda_.5} parent=0 // pred_check
    _
  $region23: #{_lambda_.5} parent=0 // pred_check_branch
    %291 = sbr.rel (0) target = $region25
  $region24: #{_lambda_.5} parent=0 // pred_region
    _
  $region25: #{_lambda_.5} parent=0 // pred_fallthru
    _
  // Predicated region
  $region26: #{_lambda_.5} parent=0 // pred_check
    _
  $region27: #{_lambda_.5} parent=0 // pred_check_branch
    %293 = sbr.rel (0) target = $region29
  $region28: #{_lambda_.5} parent=0 // pred_region
    _
  $region29: #{_lambda_.5} parent=0 // pred_fallthru
    _
  // Predicated region
  $region30: #{_lambda_.5} parent=0 // pred_check
    _
  $region31: #{_lambda_.5} parent=0 // pred_check_branch
    %295 = sbr.rel (0) target = $region33
  $region32: #{_lambda_.5} parent=0 // pred_region
    _
  $region33: #{_lambda_.5} parent=0 // pred_fallthru
    _
  // Predicated region
  $region34: #{_lambda_.5} parent=0 // pred_check
    _
  $region35: #{_lambda_.5} parent=0 // pred_check_branch
    %297 = sbr.rel (0) target = $region37
  $region36: #{_lambda_.5} parent=0 // pred_region
    _
  $region37: #{_lambda_.5} parent=0 // pred_fallthru
    _
  // Predicated region
  $region38: #{_lambda_.5} parent=0 // pred_check
    _
  $region39: #{_lambda_.5} parent=0 // pred_check_branch
    %299 = sbr.rel (0) target = $region41
  $region40: #{_lambda_.5} parent=0 // pred_region
    _
  $region41: #{_lambda_.5} parent=0 // pred_fallthru
    _
  // Predicated region
  $region42: #{_lambda_.5} parent=0 // pred_check
    _
  $region43: #{_lambda_.5} parent=0 // pred_check_branch
    %301 = sbr.rel (0) target = $region45
  $region44: #{_lambda_.5} parent=0 // pred_region
    _
  $region45: #{_lambda_.5} parent=0 // pred_fallthru
    _

// kernel: _lambda_.9
$region0: #{_lambda_.9}
  #allocation0 [shape = 'u32[]', space=smem, size = 0x4, offset = 0x4, fixed_abs, tag = 'smem constant byte address 0x4 - core index']
  #allocation1 [shape = 'u32[144,128]{1,0:T(1,128)}', space=vmem, size = 0x12000, scoped, tag = 'internal scratch']
  %s0 = inlined_call_operand.vmem [shape: bf16[2,8,32], index: 0, kind: input, shape index: {}]
  %s1 = inlined_call_operand.vmem [shape: f32[2,32], index: 1, kind: input, shape index: {}]
  %s2 = inlined_call_operand.vmem [shape: f32[2,1,32], index: 2, kind: output, shape index: {}]
  %s3 = sld [smem:[#allocation0]]
  $region41: #{_lambda_.9} parent=0
    _
  %s5 = ssub.s32 1, %s3
  %s6 = scalar_select 0, %s5, %s3
  loop: start=0, step=1, limit=4
  $region2: #{_lambda_.9} parent=0 // loop_pre_header
    _
  $region3: #{_lambda_.9} parent=0 // loop_header
    %s8 = sphi 0, %s12
    %p9 = scmp.ge.s32.totalorder %s8, 4
    %s18 = sphi 0, %s20
    %s21 = sphi 0, %s18
    %s22 = sphi 0, %s21
    %s38 = sphi 0, %s22
    %s42 = sphi 0, %s42
    %s44 = sphi 0, %s42
    %s45 = sphi 0, %s44
    %s59 = sphi 0, %s45
    %s65 = sphi 0, %s67
    %s68 = sphi 0, %s65
    %s69 = sphi 0, %s68
    %s85 = sphi 0, %s69
  $region4: #{_lambda_.9} parent=0 // loop_header_branch
    %11 = sbr.rel (%p9) target = $region8
  $region5: #{_lambda_.9} parent=0 // loop_body
    %s13 = ssub.s32 %s8, 1
    %s14 = ssub.s32 %s8, 2
    %s15 = sadd.s32 %s8, 1
    %s16 = ssub.s32 %s8, %s15
    %p17 = scmp.eq.s32.totalorder %s16, 0
    %s19 = sadd.s32 %s18, 1
    %s20 = scalar_select %p17, %s18, %s19
    %p23 = pneg %p17
    %p24 = scmp.eq.s32.totalorder %s8, 1
    %p25 = por %p23, %p24
    %p26 = scmp.ne.s32.totalorder %s18, %s21
    %p27 = scmp.eq.s32.totalorder %s8, 0
    %p28 = por %p26, %p27
    %p29 = scmp.ne.s32.totalorder %s18, %s21
    %p30 = scmp.eq.s32.totalorder %s13, 1
    %p31 = por %p29, %p30
    %p32 = scmp.ne.s32.totalorder %s21, %s22
    %p33 = scmp.eq.s32.totalorder %s13, 0
    %p34 = por %p32, %p33
    %p35 = scmp.ne.s32.totalorder %s21, %s22
    %p36 = scmp.eq.s32.totalorder %s14, 1
    %p37 = por %p35, %p36
    %p39 = scmp.ne.s32.totalorder %s22, %s38
    %p40 = scmp.eq.s32.totalorder %s14, 0
    %p41 = por %p39, %p40
    %s43 = sadd.s32 %s42, 1
    %p46 = scmp.eq.s32.totalorder %s8, 1
    %p47 = scmp.ne.s32.totalorder %s42, %s44
    %p48 = scmp.eq.s32.totalorder %s8, 0
    %p49 = por %p47, %p48
    %p50 = scmp.ne.s32.totalorder %s42, %s44
    %p51 = scmp.eq.s32.totalorder %s13, 1
    %p52 = por %p50, %p51
    %p53 = scmp.ne.s32.totalorder %s44, %s45
    %p54 = scmp.eq.s32.totalorder %s13, 0
    %p55 = por %p53, %p54
    %p56 = scmp.ne.s32.totalorder %s44, %s45
    %p57 = scmp.eq.s32.totalorder %s14, 1
    %p58 = por %p56, %p57
    %p60 = scmp.ne.s32.totalorder %s45, %s59
    %p61 = scmp.eq.s32.totalorder %s14, 0
    %p62 = por %p60, %p61
    %s63 = ssub.s32 %s8, %s15
    %p64 = scmp.eq.s32.totalorder %s63, 0
    %s66 = sadd.s32 %s65, 1
    %s67 = scalar_select %p64, %s65, %s66
    %p70 = pneg %p64
    %p71 = scmp.eq.s32.totalorder %s8, 1
    %p72 = por %p70, %p71
    %p73 = scmp.ne.s32.totalorder %s65, %s68
    %p74 = scmp.eq.s32.totalorder %s8, 0
    %p75 = por %p73, %p74
    %p76 = scmp.ne.s32.totalorder %s65, %s68
    %p77 = scmp.eq.s32.totalorder %s13, 1
    %p78 = por %p76, %p77
    %p79 = scmp.ne.s32.totalorder %s68, %s69
    %p80 = scmp.eq.s32.totalorder %s13, 0
    %p81 = por %p79, %p80
    %p82 = scmp.ne.s32.totalorder %s68, %s69
    %p83 = scmp.eq.s32.totalorder %s14, 1
    %p84 = por %p82, %p83
    %p86 = scmp.ne.s32.totalorder %s69, %s85
    %p87 = scmp.eq.s32.totalorder %s14, 0
    %p88 = por %p86, %p87
    %p89 = scmp.le.s32.totalorder 1, %s8
    %p90 = scmp.lt.s32.totalorder %s8, 3
    %p91 = pnand %p89, %p90
    %p92 = pneg %p91
    // Predicated region
    $region9: #{_lambda_.9} parent=5 // pred_check
      _
    $region10: #{_lambda_.9} parent=5 // pred_check_branch
      %94 = sbr.rel (%p91) target = $region12
    $region11: #{_lambda_.9} parent=5 // pred_region
      %s95 = ssub.s32 %s8, 1
      // Predicated region
      $region13: #{_lambda_.9} parent=11 // pred_check
        %p96 = pneg %p55
      $region14: #{_lambda_.9} parent=11 // pred_check_branch
        %98 = sbr.rel (%p96) target = $region16
      $region15: #{_lambda_.9} parent=11 // pred_region
        _
      $region16: #{_lambda_.9} parent=11 // pred_fallthru
        _
    $region12: #{_lambda_.9} parent=5 // pred_fallthru
      _
    %p99 = scmp.lt.s32.totalorder %s8, 2
    // Predicated region
    $region17: #{_lambda_.9} parent=5 // pred_check
      %p100 = pneg %p99
    $region18: #{_lambda_.9} parent=5 // pred_check_branch
      %102 = sbr.rel (%p100) target = $region20
    $region19: #{_lambda_.9} parent=5 // pred_region
      // Predicated region
      $region21: #{_lambda_.9} parent=19 // pred_check
        %p103 = pneg %p28
      $region22: #{_lambda_.9} parent=19 // pred_check_branch
        %105 = sbr.rel (%p103) target = $region24
      $region23: #{_lambda_.9} parent=19 // pred_region
        %p106 = scmp.lt.s32.totalorder %s8, 1
        %s107 = scalar_select %p106, %s8, 1
        %s108 = smul.addr %s107, 4
        %s109 = scalar_lea.vmem %s0, %s108
      $region24: #{_lambda_.9} parent=19 // pred_fallthru
        _
    $region20: #{_lambda_.9} parent=5 // pred_fallthru
      _
    %p110 = scmp.le.s32.totalorder 1, %s8
    %p111 = scmp.lt.s32.totalorder %s8, 3
    %p112 = pnand %p110, %p111
    %p113 = pneg %p112
    // Predicated region
    $region25: #{_lambda_.9} parent=5 // pred_check
      _
    $region26: #{_lambda_.9} parent=5 // pred_check_branch
      %115 = sbr.rel (%p112) target = $region28
    $region27: #{_lambda_.9} parent=5 // pred_region
      %s116 = ssub.s32 %s8, 1
      %p117 = scmp.lt.s32.totalorder %s13, 1
      %s118 = scalar_select %p117, %s13, 1
      %s119 = smul.addr %s118, 4
      %s120 = scalar_lea.vmem %s0, %s119
      %p121 = pneg %p34
      %p122 = pneg %p31
      %p123 = pneg %p55
      %p124 = pneg %p52
      %p125 = pneg %p81
      %p126 = pneg %p78
      %p127 = scmp.lt.s32.totalorder %s13, 1
      %s128 = scalar_select %p127, %s13, 1
      %s129 = scalar_lea.vmem %s2, %s128
      %p130 = scmp.lt.s32.totalorder %s13, 1
      %s131 = scalar_select %p130, %s13, 1
      %s132 = smul.addr %s131, 4
      %s133 = scalar_lea.vmem %s0, %s132
      %p134 = scmp.lt.s32.totalorder %s13, 1
      %s135 = scalar_select %p134, %s13, 1
      %s136 = scalar_lea.vmem %s2, %s135
      %v137 = vld [vmem:[%s133] sm:$0xf]
      %v138 = vunpack.c.l.bf16 %v137
      %v139 = vld [vmem:[%s1] sm:$0x1]
      %v140 = vlaneseq
      %v141 = vshrl.u32 %v140, 7
      %v142 = vsub.s32 0, %v141
      %v143 = vrot.slane %v139, %v142
      %v144 = vmul.f32 %v138, %v143
      %v145 = vld [vmem:[%s1 + $0x1] sm:$0x1]
      %v146 = vlaneseq
      %v147 = vshrl.u32 %v146, 7
      %v148 = vsub.s32 0, %v147
      %v149 = vrot.slane %v145, %v148
      %v150 = vadd.f32 %v144, %v149
      %v151 = vmax.f32 %v150, 0.0
      %vm152 = vcmask 261120
      %v153 = vsel %vm152, %v151, 0.0
      %v154 = vrot.slane %v153, 4
      %v155 = vadd.f32 %v153, %v154
      %v156 = vrot.slane %v155, 2
      %v157 = vadd.f32 %v155, %v156
      %v158 = vrot.slane %v157, 1
      %v159 = vadd.f32 %v157, %v158
      %v160 = vmul.f32 %v159, 0.125
      %vm161 = vcmask 253952
      %162 = vst.msk [vmem:[%s136] sm:$0x1] %vm161, %v160
      %p163 = scmp.lt.s32.totalorder %s13, 1
      %s164 = scalar_select %p163, %s13, 1
      %s165 = scalar_lea.vmem %s2, %s164
      // Predicated region
      $region29: #{_lambda_.9} parent=27 // pred_check
        %p166 = pneg %p78
      $region30: #{_lambda_.9} parent=27 // pred_check_branch
        %168 = sbr.rel (%p166) target = $region32
      $region31: #{_lambda_.9} parent=27 // pred_region
        _
      $region32: #{_lambda_.9} parent=27 // pred_fallthru
        _
    $region28: #{_lambda_.9} parent=5 // pred_fallthru
      _
    %p169 = scmp.le.s32.totalorder 2, %s8
    // Predicated region
    $region33: #{_lambda_.9} parent=5 // pred_check
      %p170 = pneg %p169
    $region34: #{_lambda_.9} parent=5 // pred_check_branch
      %172 = sbr.rel (%p170) target = $region36
    $region35: #{_lambda_.9} parent=5 // pred_region
      %s173 = ssub.s32 %s8, 2
      // Predicated region
      $region37: #{_lambda_.9} parent=35 // pred_check
        %p174 = pneg %p84
      $region38: #{_lambda_.9} parent=35 // pred_check_branch
        %176 = sbr.rel (%p174) target = $region40
      $region39: #{_lambda_.9} parent=35 // pred_region
        %p177 = scmp.lt.s32.totalorder %s14, 1
        %s178 = scalar_select %p177, %s14, 1
        %s179 = scalar_lea.vmem %s2, %s178
      $region40: #{_lambda_.9} parent=35 // pred_fallthru
        _
    $region36: #{_lambda_.9} parent=5 // pred_fallthru
      _
  $region6: #{_lambda_.9} parent=0 // loop_footer
    %s12 = sadd.s32 1, %s8
  $region7: #{_lambda_.9} parent=0 // loop_footer_branch
    %7 = sbr.rel target = $region3
  $region8: #{_lambda_.9} parent=0 // loop_exit
    _

// kernel: _lambda_.6
$region0: #{_lambda_.6}
  #allocation0 [shape = 'u32[]', space=smem, size = 0x4, offset = 0x4, fixed_abs, tag = 'smem constant byte address 0x4 - core index']
  #allocation1 [shape = 'u32[144,128]{1,0:T(1,128)}', space=vmem, size = 0x12000, scoped, tag = 'internal scratch']
  #allocation2 [shape = 'bf16[12,32]{1,0:T(8,128)(2,1)}', space=vmem, size = 0x1000, scoped, tag = 'scratch operand']
  %s0 = inlined_call_operand.vmem [shape: bf16[2,8,32], index: 0, kind: input, shape index: {}]
  %s1 = inlined_call_operand.vmem [shape: bf16[32,32], index: 1, kind: input, shape index: {}]
  %s2 = inlined_call_operand.vmem [shape: f32[3,32], index: 2, kind: input, shape index: {}]
  %s3 = inlined_call_operand.vmem [shape: bf16[32,32], index: 3, kind: input, shape index: {}]
  %s4 = inlined_call_operand.vmem [shape: bf16[3,32,32], index: 4, kind: input, shape index: {}]
  %s5 = inlined_call_operand.vmem [shape: bf16[32,32], index: 5, kind: input, shape index: {}]
  %s6 = inlined_call_operand.vmem [shape: f32[3,32], index: 6, kind: input, shape index: {}]
  %s7 = inlined_call_operand.vmem [shape: bf16[3,32,32], index: 7, kind: input, shape index: {}]
  %s8 = inlined_call_operand.vmem [shape: bf16[32,32], index: 8, kind: input, shape index: {}]
  %s9 = inlined_call_operand.vmem [shape: f32[3,32], index: 9, kind: input, shape index: {}]
  %s10 = inlined_call_operand.vmem [shape: bf16[3,32,32], index: 10, kind: input, shape index: {}]
  %s11 = inlined_call_operand.vmem [shape: bf16[32,32], index: 11, kind: input, shape index: {}]
  %s12 = inlined_call_operand.vmem [shape: f32[3,32], index: 12, kind: input, shape index: {}]
  %s13 = inlined_call_operand.vmem [shape: f32[3,32], index: 13, kind: input, shape index: {}]
  %s14 = inlined_call_operand.vmem [shape: bf16[32,8], index: 14, kind: input, shape index: {}]
  %s15 = inlined_call_operand.vmem [shape: f32[1,8], index: 15, kind: input, shape index: {}]
  %s16 = inlined_call_operand.vmem [shape: bf16[8,32], index: 16, kind: input, shape index: {}]
  %s17 = inlined_call_operand.vmem [shape: f32[5,32], index: 17, kind: input, shape index: {}]
  %s18 = inlined_call_operand.vmem [shape: bf16[2,8,32], index: 18, kind: output, shape index: {0}]
  %s19 = inlined_call_operand.vmem [shape: f32[2,1,32], index: 19, kind: output, shape index: {1}]
  %20 = xla_tuple %s18, %s19
  %s21 = sld [smem:[#allocation0]]
  $region113: #{_lambda_.6} parent=0
    _
  %s23 = ssub.s32 1, %s21
  %s24 = scalar_select 0, %s23, %s21
  loop: start=0, step=1, limit=4
  $region2: #{_lambda_.6} parent=0 // loop_pre_header
    _
  $region3: #{_lambda_.6} parent=0 // loop_header
    %s26 = sphi 0, %s30
    %p27 = scmp.ge.s32.totalorder %s26, 4
    %s36 = sphi 0, %s38
    %s39 = sphi 0, %s36
    %s40 = sphi 0, %s39
    %s56 = sphi 0, %s40
    %s60 = sphi 0, %s60
    %s62 = sphi 0, %s60
    %s63 = sphi 0, %s62
    %s77 = sphi 0, %s63
    %s81 = sphi 0, %s81
    %s83 = sphi 0, %s81
    %s84 = sphi 0, %s83
    %s98 = sphi 0, %s84
    %s102 = sphi 0, %s102
    %s104 = sphi 0, %s102
    %s105 = sphi 0, %s104
    %s119 = sphi 0, %s105
    %s123 = sphi 0, %s123
    %s125 = sphi 0, %s123
    %s126 = sphi 0, %s125
    %s140 = sphi 0, %s126
    %s144 = sphi 0, %s144
    %s146 = sphi 0, %s144
    %s147 = sphi 0, %s146
    %s161 = sphi 0, %s147
    %s165 = sphi 0, %s165
    %s167 = sphi 0, %s165
    %s168 = sphi 0, %s167
    %s182 = sphi 0, %s168
    %s186 = sphi 0, %s186
    %s188 = sphi 0, %s186
    %s189 = sphi 0, %s188
    %s203 = sphi 0, %s189
    %s207 = sphi 0, %s207
    %s209 = sphi 0, %s207
    %s210 = sphi 0, %s209
    %s224 = sphi 0, %s210
    %s228 = sphi 0, %s228
    %s230 = sphi 0, %s228
    %s231 = sphi 0, %s230
    %s245 = sphi 0, %s231
    %s249 = sphi 0, %s249
    %s251 = sphi 0, %s249
    %s252 = sphi 0, %s251
    %s266 = sphi 0, %s252
    %s270 = sphi 0, %s270
    %s272 = sphi 0, %s270
    %s273 = sphi 0, %s272
    %s287 = sphi 0, %s273
    %s291 = sphi 0, %s291
    %s293 = sphi 0, %s291
    %s294 = sphi 0, %s293
    %s308 = sphi 0, %s294
    %s312 = sphi 0, %s312
    %s314 = sphi 0, %s312
    %s315 = sphi 0, %s314
    %s329 = sphi 0, %s315
    %s333 = sphi 0, %s333
    %s335 = sphi 0, %s333
    %s336 = sphi 0, %s335
    %s350 = sphi 0, %s336
    %s354 = sphi 0, %s354
    %s356 = sphi 0, %s354
    %s357 = sphi 0, %s356
    %s371 = sphi 0, %s357
    %s375 = sphi 0, %s375
    %s377 = sphi 0, %s375
    %s378 = sphi 0, %s377
    %s392 = sphi 0, %s378
    %s396 = sphi 0, %s396
    %s398 = sphi 0, %s396
    %s399 = sphi 0, %s398
    %s413 = sphi 0, %s399
    %s419 = sphi 0, %s421
    %s422 = sphi 0, %s419
    %s423 = sphi 0, %s422
    %s439 = sphi 0, %s423
    %s445 = sphi 0, %s447
    %s448 = sphi 0, %s445
    %s449 = sphi 0, %s448
    %s465 = sphi 0, %s449
  $region4: #{_lambda_.6} parent=0 // loop_header_branch
    %29 = sbr.rel (%p27) target = $region8
  $region5: #{_lambda_.6} parent=0 // loop_body
    %s31 = ssub.s32 %s26, 1
    %s32 = ssub.s32 %s26, 2
    %s33 = sadd.s32 %s26, 1
    %s34 = ssub.s32 %s26, %s33
    %p35 = scmp.eq.s32.totalorder %s34, 0
    %s37 = sadd.s32 %s36, 1
    %s38 = scalar_select %p35, %s36, %s37
    %p41 = pneg %p35
    %p42 = scmp.eq.s32.totalorder %s26, 1
    %p43 = por %p41, %p42
    %p44 = scmp.ne.s32.totalorder %s36, %s39
    %p45 = scmp.eq.s32.totalorder %s26, 0
    %p46 = por %p44, %p45
    %p47 = scmp.ne.s32.totalorder %s36, %s39
    %p48 = scmp.eq.s32.totalorder %s31, 1
    %p49 = por %p47, %p48
    %p50 = scmp.ne.s32.totalorder %s39, %s40
    %p51 = scmp.eq.s32.totalorder %s31, 0
    %p52 = por %p50, %p51
    %p53 = scmp.ne.s32.totalorder %s39, %s40
    %p54 = scmp.eq.s32.totalorder %s32, 1
    %p55 = por %p53, %p54
    %p57 = scmp.ne.s32.totalorder %s40, %s56
    %p58 = scmp.eq.s32.totalorder %s32, 0
    %p59 = por %p57, %p58
    %s61 = sadd.s32 %s60, 1
    %p64 = scmp.eq.s32.totalorder %s26, 1
    %p65 = scmp.ne.s32.totalorder %s60, %s62
    %p66 = scmp.eq.s32.totalorder %s26, 0
    %p67 = por %p65, %p66
    %p68 = scmp.ne.s32.totalorder %s60, %s62
    %p69 = scmp.eq.s32.totalorder %s31, 1
    %p70 = por %p68, %p69
    %p71 = scmp.ne.s32.totalorder %s62, %s63
    %p72 = scmp.eq.s32.totalorder %s31, 0
    %p73 = por %p71, %p72
    %p74 = scmp.ne.s32.totalorder %s62, %s63
    %p75 = scmp.eq.s32.totalorder %s32, 1
    %p76 = por %p74, %p75
    %p78 = scmp.ne.s32.totalorder %s63, %s77
    %p79 = scmp.eq.s32.totalorder %s32, 0
    %p80 = por %p78, %p79
    %s82 = sadd.s32 %s81, 1
    %p85 = scmp.eq.s32.totalorder %s26, 1
    %p86 = scmp.ne.s32.totalorder %s81, %s83
    %p87 = scmp.eq.s32.totalorder %s26, 0
    %p88 = por %p86, %p87
    %p89 = scmp.ne.s32.totalorder %s81, %s83
    %p90 = scmp.eq.s32.totalorder %s31, 1
    %p91 = por %p89, %p90
    %p92 = scmp.ne.s32.totalorder %s83, %s84
    %p93 = scmp.eq.s32.totalorder %s31, 0
    %p94 = por %p92, %p93
    %p95 = scmp.ne.s32.totalorder %s83, %s84
    %p96 = scmp.eq.s32.totalorder %s32, 1
    %p97 = por %p95, %p96
    %p99 = scmp.ne.s32.totalorder %s84, %s98
    %p100 = scmp.eq.s32.totalorder %s32, 0
    %p101 = por %p99, %p100
    %s103 = sadd.s32 %s102, 1
    %p106 = scmp.eq.s32.totalorder %s26, 1
    %p107 = scmp.ne.s32.totalorder %s102, %s104
    %p108 = scmp.eq.s32.totalorder %s26, 0
    %p109 = por %p107, %p108
    %p110 = scmp.ne.s32.totalorder %s102, %s104
    %p111 = scmp.eq.s32.totalorder %s31, 1
    %p112 = por %p110, %p111
    %p113 = scmp.ne.s32.totalorder %s104, %s105
    %p114 = scmp.eq.s32.totalorder %s31, 0
    %p115 = por %p113, %p114
    %p116 = scmp.ne.s32.totalorder %s104, %s105
    %p117 = scmp.eq.s32.totalorder %s32, 1
    %p118 = por %p116, %p117
    %p120 = scmp.ne.s32.totalorder %s105, %s119
    %p121 = scmp.eq.s32.totalorder %s32, 0
    %p122 = por %p120, %p121
    %s124 = sadd.s32 %s123, 1
    %p127 = scmp.eq.s32.totalorder %s26, 1
    %p128 = scmp.ne.s32.totalorder %s123, %s125
    %p129 = scmp.eq.s32.totalorder %s26, 0
    %p130 = por %p128, %p129
    %p131 = scmp.ne.s32.totalorder %s123, %s125
    %p132 = scmp.eq.s32.totalorder %s31, 1
    %p133 = por %p131, %p132
    %p134 = scmp.ne.s32.totalorder %s125, %s126
    %p135 = scmp.eq.s32.totalorder %s31, 0
    %p136 = por %p134, %p135
    %p137 = scmp.ne.s32.totalorder %s125, %s126
    %p138 = scmp.eq.s32.totalorder %s32, 1
    %p139 = por %p137, %p138
    %p141 = scmp.ne.s32.totalorder %s126, %s140
    %p142 = scmp.eq.s32.totalorder %s32, 0
    %p143 = por %p141, %p142
    %s145 = sadd.s32 %s144, 1
    %p148 = scmp.eq.s32.totalorder %s26, 1
    %p149 = scmp.ne.s32.totalorder %s144, %s146
    %p150 = scmp.eq.s32.totalorder %s26, 0
    %p151 = por %p149, %p150
    %p152 = scmp.ne.s32.totalorder %s144, %s146
    %p153 = scmp.eq.s32.totalorder %s31, 1
    %p154 = por %p152, %p153
    %p155 = scmp.ne.s32.totalorder %s146, %s147
    %p156 = scmp.eq.s32.totalorder %s31, 0
    %p157 = por %p155, %p156
    %p158 = scmp.ne.s32.totalorder %s146, %s147
    %p159 = scmp.eq.s32.totalorder %s32, 1
    %p160 = por %p158, %p159
    %p162 = scmp.ne.s32.totalorder %s147, %s161
    %p163 = scmp.eq.s32.totalorder %s32, 0
    %p164 = por %p162, %p163
    %s166 = sadd.s32 %s165, 1
    %p169 = scmp.eq.s32.totalorder %s26, 1
    %p170 = scmp.ne.s32.totalorder %s165, %s167
    %p171 = scmp.eq.s32.totalorder %s26, 0
    %p172 = por %p170, %p171
    %p173 = scmp.ne.s32.totalorder %s165, %s167
    %p174 = scmp.eq.s32.totalorder %s31, 1
    %p175 = por %p173, %p174
    %p176 = scmp.ne.s32.totalorder %s167, %s168
    %p177 = scmp.eq.s32.totalorder %s31, 0
    %p178 = por %p176, %p177
    %p179 = scmp.ne.s32.totalorder %s167, %s168
    %p180 = scmp.eq.s32.totalorder %s32, 1
    %p181 = por %p179, %p180
    %p183 = scmp.ne.s32.totalorder %s168, %s182
    %p184 = scmp.eq.s32.totalorder %s32, 0
    %p185 = por %p183, %p184
    %s187 = sadd.s32 %s186, 1
    %p190 = scmp.eq.s32.totalorder %s26, 1
    %p191 = scmp.ne.s32.totalorder %s186, %s188
    %p192 = scmp.eq.s32.totalorder %s26, 0
    %p193 = por %p191, %p192
    %p194 = scmp.ne.s32.totalorder %s186, %s188
    %p195 = scmp.eq.s32.totalorder %s31, 1
    %p196 = por %p194, %p195
    %p197 = scmp.ne.s32.totalorder %s188, %s189
    %p198 = scmp.eq.s32.totalorder %s31, 0
    %p199 = por %p197, %p198
    %p200 = scmp.ne.s32.totalorder %s188, %s189
    %p201 = scmp.eq.s32.totalorder %s32, 1
    %p202 = por %p200, %p201
    %p204 = scmp.ne.s32.totalorder %s189, %s203
    %p205 = scmp.eq.s32.totalorder %s32, 0
    %p206 = por %p204, %p205
    %s208 = sadd.s32 %s207, 1
    %p211 = scmp.eq.s32.totalorder %s26, 1
    %p212 = scmp.ne.s32.totalorder %s207, %s209
    %p213 = scmp.eq.s32.totalorder %s26, 0
    %p214 = por %p212, %p213
    %p215 = scmp.ne.s32.totalorder %s207, %s209
    %p216 = scmp.eq.s32.totalorder %s31, 1
    %p217 = por %p215, %p216
    %p218 = scmp.ne.s32.totalorder %s209, %s210
    %p219 = scmp.eq.s32.totalorder %s31, 0
    %p220 = por %p218, %p219
    %p221 = scmp.ne.s32.totalorder %s209, %s210
    %p222 = scmp.eq.s32.totalorder %s32, 1
    %p223 = por %p221, %p222
    %p225 = scmp.ne.s32.totalorder %s210, %s224
    %p226 = scmp.eq.s32.totalorder %s32, 0
    %p227 = por %p225, %p226
    %s229 = sadd.s32 %s228, 1
    %p232 = scmp.eq.s32.totalorder %s26, 1
    %p233 = scmp.ne.s32.totalorder %s228, %s230
    %p234 = scmp.eq.s32.totalorder %s26, 0
    %p235 = por %p233, %p234
    %p236 = scmp.ne.s32.totalorder %s228, %s230
    %p237 = scmp.eq.s32.totalorder %s31, 1
    %p238 = por %p236, %p237
    %p239 = scmp.ne.s32.totalorder %s230, %s231
    %p240 = scmp.eq.s32.totalorder %s31, 0
    %p241 = por %p239, %p240
    %p242 = scmp.ne.s32.totalorder %s230, %s231
    %p243 = scmp.eq.s32.totalorder %s32, 1
    %p244 = por %p242, %p243
    %p246 = scmp.ne.s32.totalorder %s231, %s245
    %p247 = scmp.eq.s32.totalorder %s32, 0
    %p248 = por %p246, %p247
    %s250 = sadd.s32 %s249, 1
    %p253 = scmp.eq.s32.totalorder %s26, 1
    %p254 = scmp.ne.s32.totalorder %s249, %s251
    %p255 = scmp.eq.s32.totalorder %s26, 0
    %p256 = por %p254, %p255
    %p257 = scmp.ne.s32.totalorder %s249, %s251
    %p258 = scmp.eq.s32.totalorder %s31, 1
    %p259 = por %p257, %p258
    %p260 = scmp.ne.s32.totalorder %s251, %s252
    %p261 = scmp.eq.s32.totalorder %s31, 0
    %p262 = por %p260, %p261
    %p263 = scmp.ne.s32.totalorder %s251, %s252
    %p264 = scmp.eq.s32.totalorder %s32, 1
    %p265 = por %p263, %p264
    %p267 = scmp.ne.s32.totalorder %s252, %s266
    %p268 = scmp.eq.s32.totalorder %s32, 0
    %p269 = por %p267, %p268
    %s271 = sadd.s32 %s270, 1
    %p274 = scmp.eq.s32.totalorder %s26, 1
    %p275 = scmp.ne.s32.totalorder %s270, %s272
    %p276 = scmp.eq.s32.totalorder %s26, 0
    %p277 = por %p275, %p276
    %p278 = scmp.ne.s32.totalorder %s270, %s272
    %p279 = scmp.eq.s32.totalorder %s31, 1
    %p280 = por %p278, %p279
    %p281 = scmp.ne.s32.totalorder %s272, %s273
    %p282 = scmp.eq.s32.totalorder %s31, 0
    %p283 = por %p281, %p282
    %p284 = scmp.ne.s32.totalorder %s272, %s273
    %p285 = scmp.eq.s32.totalorder %s32, 1
    %p286 = por %p284, %p285
    %p288 = scmp.ne.s32.totalorder %s273, %s287
    %p289 = scmp.eq.s32.totalorder %s32, 0
    %p290 = por %p288, %p289
    %s292 = sadd.s32 %s291, 1
    %p295 = scmp.eq.s32.totalorder %s26, 1
    %p296 = scmp.ne.s32.totalorder %s291, %s293
    %p297 = scmp.eq.s32.totalorder %s26, 0
    %p298 = por %p296, %p297
    %p299 = scmp.ne.s32.totalorder %s291, %s293
    %p300 = scmp.eq.s32.totalorder %s31, 1
    %p301 = por %p299, %p300
    %p302 = scmp.ne.s32.totalorder %s293, %s294
    %p303 = scmp.eq.s32.totalorder %s31, 0
    %p304 = por %p302, %p303
    %p305 = scmp.ne.s32.totalorder %s293, %s294
    %p306 = scmp.eq.s32.totalorder %s32, 1
    %p307 = por %p305, %p306
    %p309 = scmp.ne.s32.totalorder %s294, %s308
    %p310 = scmp.eq.s32.totalorder %s32, 0
    %p311 = por %p309, %p310
    %s313 = sadd.s32 %s312, 1
    %p316 = scmp.eq.s32.totalorder %s26, 1
    %p317 = scmp.ne.s32.totalorder %s312, %s314
    %p318 = scmp.eq.s32.totalorder %s26, 0
    %p319 = por %p317, %p318
    %p320 = scmp.ne.s32.totalorder %s312, %s314
    %p321 = scmp.eq.s32.totalorder %s31, 1
    %p322 = por %p320, %p321
    %p323 = scmp.ne.s32.totalorder %s314, %s315
    %p324 = scmp.eq.s32.totalorder %s31, 0
    %p325 = por %p323, %p324
    %p326 = scmp.ne.s32.totalorder %s314, %s315
    %p327 = scmp.eq.s32.totalorder %s32, 1
    %p328 = por %p326, %p327
    %p330 = scmp.ne.s32.totalorder %s315, %s329
    %p331 = scmp.eq.s32.totalorder %s32, 0
    %p332 = por %p330, %p331
    %s334 = sadd.s32 %s333, 1
    %p337 = scmp.eq.s32.totalorder %s26, 1
    %p338 = scmp.ne.s32.totalorder %s333, %s335
    %p339 = scmp.eq.s32.totalorder %s26, 0
    %p340 = por %p338, %p339
    %p341 = scmp.ne.s32.totalorder %s333, %s335
    %p342 = scmp.eq.s32.totalorder %s31, 1
    %p343 = por %p341, %p342
    %p344 = scmp.ne.s32.totalorder %s335, %s336
    %p345 = scmp.eq.s32.totalorder %s31, 0
    %p346 = por %p344, %p345
    %p347 = scmp.ne.s32.totalorder %s335, %s336
    %p348 = scmp.eq.s32.totalorder %s32, 1
    %p349 = por %p347, %p348
    %p351 = scmp.ne.s32.totalorder %s336, %s350
    %p352 = scmp.eq.s32.totalorder %s32, 0
    %p353 = por %p351, %p352
    %s355 = sadd.s32 %s354, 1
    %p358 = scmp.eq.s32.totalorder %s26, 1
    %p359 = scmp.ne.s32.totalorder %s354, %s356
    %p360 = scmp.eq.s32.totalorder %s26, 0
    %p361 = por %p359, %p360
    %p362 = scmp.ne.s32.totalorder %s354, %s356
    %p363 = scmp.eq.s32.totalorder %s31, 1
    %p364 = por %p362, %p363
    %p365 = scmp.ne.s32.totalorder %s356, %s357
    %p366 = scmp.eq.s32.totalorder %s31, 0
    %p367 = por %p365, %p366
    %p368 = scmp.ne.s32.totalorder %s356, %s357
    %p369 = scmp.eq.s32.totalorder %s32, 1
    %p370 = por %p368, %p369
    %p372 = scmp.ne.s32.totalorder %s357, %s371
    %p373 = scmp.eq.s32.totalorder %s32, 0
    %p374 = por %p372, %p373
    %s376 = sadd.s32 %s375, 1
    %p379 = scmp.eq.s32.totalorder %s26, 1
    %p380 = scmp.ne.s32.totalorder %s375, %s377
    %p381 = scmp.eq.s32.totalorder %s26, 0
    %p382 = por %p380, %p381
    %p383 = scmp.ne.s32.totalorder %s375, %s377
    %p384 = scmp.eq.s32.totalorder %s31, 1
    %p385 = por %p383, %p384
    %p386 = scmp.ne.s32.totalorder %s377, %s378
    %p387 = scmp.eq.s32.totalorder %s31, 0
    %p388 = por %p386, %p387
    %p389 = scmp.ne.s32.totalorder %s377, %s378
    %p390 = scmp.eq.s32.totalorder %s32, 1
    %p391 = por %p389, %p390
    %p393 = scmp.ne.s32.totalorder %s378, %s392
    %p394 = scmp.eq.s32.totalorder %s32, 0
    %p395 = por %p393, %p394
    %s397 = sadd.s32 %s396, 1
    %p400 = scmp.eq.s32.totalorder %s26, 1
    %p401 = scmp.ne.s32.totalorder %s396, %s398
    %p402 = scmp.eq.s32.totalorder %s26, 0
    %p403 = por %p401, %p402
    %p404 = scmp.ne.s32.totalorder %s396, %s398
    %p405 = scmp.eq.s32.totalorder %s31, 1
    %p406 = por %p404, %p405
    %p407 = scmp.ne.s32.totalorder %s398, %s399
    %p408 = scmp.eq.s32.totalorder %s31, 0
    %p409 = por %p407, %p408
    %p410 = scmp.ne.s32.totalorder %s398, %s399
    %p411 = scmp.eq.s32.totalorder %s32, 1
    %p412 = por %p410, %p411
    %p414 = scmp.ne.s32.totalorder %s399, %s413
    %p415 = scmp.eq.s32.totalorder %s32, 0
    %p416 = por %p414, %p415
    %s417 = ssub.s32 %s26, %s33
    %p418 = scmp.eq.s32.totalorder %s417, 0
    %s420 = sadd.s32 %s419, 1
    %s421 = scalar_select %p418, %s419, %s420
    %p424 = pneg %p418
    %p425 = scmp.eq.s32.totalorder %s26, 1
    %p426 = por %p424, %p425
    %p427 = scmp.ne.s32.totalorder %s419, %s422
    %p428 = scmp.eq.s32.totalorder %s26, 0
    %p429 = por %p427, %p428
    %p430 = scmp.ne.s32.totalorder %s419, %s422
    %p431 = scmp.eq.s32.totalorder %s31, 1
    %p432 = por %p430, %p431
    %p433 = scmp.ne.s32.totalorder %s422, %s423
    %p434 = scmp.eq.s32.totalorder %s31, 0
    %p435 = por %p433, %p434
    %p436 = scmp.ne.s32.totalorder %s422, %s423
    %p437 = scmp.eq.s32.totalorder %s32, 1
    %p438 = por %p436, %p437
    %p440 = scmp.ne.s32.totalorder %s423, %s439
    %p441 = scmp.eq.s32.totalorder %s32, 0
    %p442 = por %p440, %p441
    %s443 = ssub.s32 %s26, %s33
    %p444 = scmp.eq.s32.totalorder %s443, 0
    %s446 = sadd.s32 %s445, 1
    %s447 = scalar_select %p444, %s445, %s446
    %p450 = pneg %p444
    %p451 = scmp.eq.s32.totalorder %s26, 1
    %p452 = por %p450, %p451
    %p453 = scmp.ne.s32.totalorder %s445, %s448
    %p454 = scmp.eq.s32.totalorder %s26, 0
    %p455 = por %p453, %p454
    %p456 = scmp.ne.s32.totalorder %s445, %s448
    %p457 = scmp.eq.s32.totalorder %s31, 1
    %p458 = por %p456, %p457
    %p459 = scmp.ne.s32.totalorder %s448, %s449
    %p460 = scmp.eq.s32.totalorder %s31, 0
    %p461 = por %p459, %p460
    %p462 = scmp.ne.s32.totalorder %s448, %s449
    %p463 = scmp.eq.s32.totalorder %s32, 1
    %p464 = por %p462, %p463
    %p466 = scmp.ne.s32.totalorder %s449, %s465
    %p467 = scmp.eq.s32.totalorder %s32, 0
    %p468 = por %p466, %p467
    %p469 = scmp.le.s32.totalorder 1, %s26
    %p470 = scmp.lt.s32.totalorder %s26, 3
    %p471 = pnand %p469, %p470
    %p472 = pneg %p471
    // Predicated region
    $region9: #{_lambda_.6} parent=5 // pred_check
      _
    $region10: #{_lambda_.6} parent=5 // pred_check_branch
      %474 = sbr.rel (%p471) target = $region12
    $region11: #{_lambda_.6} parent=5 // pred_region
      %s475 = ssub.s32 %s26, 1
      // Predicated region
      $region13: #{_lambda_.6} parent=11 // pred_check
        %p476 = pneg %p73
      $region14: #{_lambda_.6} parent=11 // pred_check_branch
        %478 = sbr.rel (%p476) target = $region16
      $region15: #{_lambda_.6} parent=11 // pred_region
        _
      $region16: #{_lambda_.6} parent=11 // pred_fallthru
        _
      // Predicated region
      $region17: #{_lambda_.6} parent=11 // pred_check
        %p479 = pneg %p94
      $region18: #{_lambda_.6} parent=11 // pred_check_branch
        %481 = sbr.rel (%p479) target = $region20
      $region19: #{_lambda_.6} parent=11 // pred_region
        _
      $region20: #{_lambda_.6} parent=11 // pred_fallthru
        _
      // Predicated region
      $region21: #{_lambda_.6} parent=11 // pred_check
        %p482 = pneg %p115
      $region22: #{_lambda_.6} parent=11 // pred_check_branch
        %484 = sbr.rel (%p482) target = $region24
      $region23: #{_lambda_.6} parent=11 // pred_region
        _
      $region24: #{_lambda_.6} parent=11 // pred_fallthru
        _
      // Predicated region
      $region25: #{_lambda_.6} parent=11 // pred_check
        %p485 = pneg %p136
      $region26: #{_lambda_.6} parent=11 // pred_check_branch
        %487 = sbr.rel (%p485) target = $region28
      $region27: #{_lambda_.6} parent=11 // pred_region
        _
      $region28: #{_lambda_.6} parent=11 // pred_fallthru
        _
      // Predicated region
      $region29: #{_lambda_.6} parent=11 // pred_check
        %p488 = pneg %p157
      $region30: #{_lambda_.6} parent=11 // pred_check_branch
        %490 = sbr.rel (%p488) target = $region32
      $region31: #{_lambda_.6} parent=11 // pred_region
        _
      $region32: #{_lambda_.6} parent=11 // pred_fallthru
        _
      // Predicated region
      $region33: #{_lambda_.6} parent=11 // pred_check
        %p491 = pneg %p178
      $region34: #{_lambda_.6} parent=11 // pred_check_branch
        %493 = sbr.rel (%p491) target = $region36
      $region35: #{_lambda_.6} parent=11 // pred_region
        _
      $region36: #{_lambda_.6} parent=11 // pred_fallthru
        _
      // Predicated region
      $region37: #{_lambda_.6} parent=11 // pred_check
        %p494 = pneg %p199
      $region38: #{_lambda_.6} parent=11 // pred_check_branch
        %496 = sbr.rel (%p494) target = $region40
      $region39: #{_lambda_.6} parent=11 // pred_region
        _
      $region40: #{_lambda_.6} parent=11 // pred_fallthru
        _
      // Predicated region
      $region41: #{_lambda_.6} parent=11 // pred_check
        %p497 = pneg %p220
      $region42: #{_lambda_.6} parent=11 // pred_check_branch
        %499 = sbr.rel (%p497) target = $region44
      $region43: #{_lambda_.6} parent=11 // pred_region
        _
      $region44: #{_lambda_.6} parent=11 // pred_fallthru
        _
      // Predicated region
      $region45: #{_lambda_.6} parent=11 // pred_check
        %p500 = pneg %p241
      $region46: #{_lambda_.6} parent=11 // pred_check_branch
        %502 = sbr.rel (%p500) target = $region48
      $region47: #{_lambda_.6} parent=11 // pred_region
        _
      $region48: #{_lambda_.6} parent=11 // pred_fallthru
        _
      // Predicated region
      $region49: #{_lambda_.6} parent=11 // pred_check
        %p503 = pneg %p262
      $region50: #{_lambda_.6} parent=11 // pred_check_branch
        %505 = sbr.rel (%p503) target = $region52
      $region51: #{_lambda_.6} parent=11 // pred_region
        _
      $region52: #{_lambda_.6} parent=11 // pred_fallthru
        _
      // Predicated region
      $region53: #{_lambda_.6} parent=11 // pred_check
        %p506 = pneg %p283
      $region54: #{_lambda_.6} parent=11 // pred_check_branch
        %508 = sbr.rel (%p506) target = $region56
      $region55: #{_lambda_.6} parent=11 // pred_region
        _
      $region56: #{_lambda_.6} parent=11 // pred_fallthru
        _
      // Predicated region
      $region57: #{_lambda_.6} parent=11 // pred_check
        %p509 = pneg %p304
      $region58: #{_lambda_.6} parent=11 // pred_check_branch
        %511 = sbr.rel (%p509) target = $region60
      $region59: #{_lambda_.6} parent=11 // pred_region
        _
      $region60: #{_lambda_.6} parent=11 // pred_fallthru
        _
      // Predicated region
      $region61: #{_lambda_.6} parent=11 // pred_check
        %p512 = pneg %p325
      $region62: #{_lambda_.6} parent=11 // pred_check_branch
        %514 = sbr.rel (%p512) target = $region64
      $region63: #{_lambda_.6} parent=11 // pred_region
        _
      $region64: #{_lambda_.6} parent=11 // pred_fallthru
        _
      // Predicated region
      $region65: #{_lambda_.6} parent=11 // pred_check
        %p515 = pneg %p346
      $region66: #{_lambda_.6} parent=11 // pred_check_branch
        %517 = sbr.rel (%p515) target = $region68
      $region67: #{_lambda_.6} parent=11 // pred_region
        _
      $region68: #{_lambda_.6} parent=11 // pred_fallthru
        _
      // Predicated region
      $region69: #{_lambda_.6} parent=11 // pred_check
        %p518 = pneg %p367
      $region70: #{_lambda_.6} parent=11 // pred_check_branch
        %520 = sbr.rel (%p518) target = $region72
      $region71: #{_lambda_.6} parent=11 // pred_region
        _
      $region72: #{_lambda_.6} parent=11 // pred_fallthru
        _
      // Predicated region
      $region73: #{_lambda_.6} parent=11 // pred_check
        %p521 = pneg %p388
      $region74: #{_lambda_.6} parent=11 // pred_check_branch
        %523 = sbr.rel (%p521) target = $region76
      $region75: #{_lambda_.6} parent=11 // pred_region
        _
      $region76: #{_lambda_.6} parent=11 // pred_fallthru
        _
      // Predicated region
      $region77: #{_lambda_.6} parent=11 // pred_check
        %p524 = pneg %p409
      $region78: #{_lambda_.6} parent=11 // pred_check_branch
        %526 = sbr.rel (%p524) target = $region80
      $region79: #{_lambda_.6} parent=11 // pred_region
        _
      $region80: #{_lambda_.6} parent=11 // pred_fallthru
        _
    $region12: #{_lambda_.6} parent=5 // pred_fallthru
      _
    %p527 = scmp.lt.s32.totalorder %s26, 2
    // Predicated region
    $region81: #{_lambda_.6} parent=5 // pred_check
      %p528 = pneg %p527
    $region82: #{_lambda_.6} parent=5 // pred_check_branch
      %530 = sbr.rel (%p528) target = $region84
    $region83: #{_lambda_.6} parent=5 // pred_region
      // Predicated region
      $region85: #{_lambda_.6} parent=83 // pred_check
        %p531 = pneg %p46
      $region86: #{_lambda_.6} parent=83 // pred_check_branch
        %533 = sbr.rel (%p531) target = $region88
      $region87: #{_lambda_.6} parent=83 // pred_region
        %p534 = scmp.lt.s32.totalorder %s26, 1
        %s535 = scalar_select %p534, %s26, 1
        %s536 = smul.addr %s535, 4
        %s537 = scalar_lea.vmem %s0, %s536
      $region88: #{_lambda_.6} parent=83 // pred_fallthru
        _
    $region84: #{_lambda_.6} parent=5 // pred_fallthru
      _
    %p538 = scmp.le.s32.totalorder 1, %s26
    %p539 = scmp.lt.s32.totalorder %s26, 3
    %p540 = pnand %p538, %p539
    %p541 = pneg %p540
    // Predicated region
    $region89: #{_lambda_.6} parent=5 // pred_check
      _
    $region90: #{_lambda_.6} parent=5 // pred_check_branch
      %543 = sbr.rel (%p540) target = $region92
    $region91: #{_lambda_.6} parent=5 // pred_region
      %s544 = ssub.s32 %s26, 1
      %p545 = scmp.lt.s32.totalorder %s31, 1
      %s546 = scalar_select %p545, %s31, 1
      %s547 = smul.addr %s546, 4
      %s548 = scalar_lea.vmem %s0, %s547
      %p549 = pneg %p52
      %p550 = pneg %p49
      %p551 = pneg %p73
      %p552 = pneg %p70
      %p553 = pneg %p94
      %p554 = pneg %p91
      %p555 = pneg %p115
      %p556 = pneg %p112
      %p557 = pneg %p136
      %p558 = pneg %p133
      %p559 = pneg %p157
      %p560 = pneg %p154
      %p561 = pneg %p178
      %p562 = pneg %p175
      %p563 = pneg %p199
      %p564 = pneg %p196
      %p565 = pneg %p220
      %p566 = pneg %p217
      %p567 = pneg %p241
      %p568 = pneg %p238
      %p569 = pneg %p262
      %p570 = pneg %p259
      %p571 = pneg %p283
      %p572 = pneg %p280
      %p573 = pneg %p304
      %p574 = pneg %p301
      %p575 = pneg %p325
      %p576 = pneg %p322
      %p577 = pneg %p346
      %p578 = pneg %p343
      %p579 = pneg %p367
      %p580 = pneg %p364
      %p581 = pneg %p388
      %p582 = pneg %p385
      %p583 = pneg %p409
      %p584 = pneg %p406
      %p585 = pneg %p435
      %p586 = pneg %p432
      %p587 = scmp.lt.s32.totalorder %s31, 1
      %s588 = scalar_select %p587, %s31, 1
      %s589 = smul.addr %s588, 4
      %s590 = scalar_lea.vmem %s18, %s589
      %p591 = pneg %p461
      %p592 = pneg %p458
      %p593 = scmp.lt.s32.totalorder %s31, 1
      %s594 = scalar_select %p593, %s31, 1
      %s595 = scalar_lea.vmem %s19, %s594
      %p596 = scmp.lt.s32.totalorder %s31, 1
      %s597 = scalar_select %p596, %s31, 1
      %s598 = smul.addr %s597, 4
      %s599 = scalar_lea.vmem %s0, %s598
      %p600 = scmp.lt.s32.totalorder %s31, 1
      %s601 = scalar_select %p600, %s31, 1
      %s602 = smul.addr %s601, 4
      %s603 = scalar_lea.vmem %s18, %s602
      %p604 = scmp.lt.s32.totalorder %s31, 1
      %s605 = scalar_select %p604, %s31, 1
      %s606 = scalar_lea.vmem %s19, %s605
      %v608 = vld [vmem:[%s599] sm:$0xf]
      %v609 = vunpack.c.l.bf16 %v608
      %v610 = vld [vmem:[%s1] sm:$0xf]
      %v611 = vld [vmem:[%s1 + $0x4] sm:$0xf]
      %v612 = vld [vmem:[%s1 + $0x8] sm:$0xf]
      %v613 = vld [vmem:[%s1 + $0xc] sm:$0xf]
      %v614 = vld [vmem:[%s2] sm:$0x1]
      %v615 = vlaneseq
      %v616 = vshrl.u32 %v615, 7
      %v617 = vsub.s32 0, %v616
      %v618 = vrot.slane %v614, %v617
      %v623 = vunpack.c.l.b16 %v610
      %v624 = vunpack.c.l.b16 %v611
      %v625 = vunpack.c.l.b16 %v612
      %v626 = vunpack.c.l.b16 %v613
      %v627 = vpack.c.b16 %v624, %v623
      %v628 = vpack.c.b16 %v626, %v625
      %vm631 = vcmask 261120
      %v633 = vsel %vm631, %v608, 0
      %635 = vmatprep.subr.bf16.mxu0 0
      %636 = vmatpush1.bf16.msra.mxu0 %v627
      %637 = vmatprep.subr.bf16.mxu0 0
      %638 = vmatpush1.bf16.msra.mxu0 %v628
      %639 = vmatprep.subr.bf16.mxu0 0
      %640 = vmatpush1.bf16.msra.mxu0 0
      %641 = vmatprep.subr.bf16.mxu0 0
      %642 = vmatpush1.bf16.msra.mxu0 0
      %643 = vmatprep.subr.bf16.mxu0 0
      %644 = vmatpush1.bf16.msra.mxu0 0
      %645 = vmatprep.subr.bf16.mxu0 0
      %646 = vmatpush1.bf16.msra.mxu0 0
      %647 = vmatprep.subr.bf16.mxu0 0
      %648 = vmatpush1.bf16.msra.mxu0 0
      %649 = vmatprep.subr.bf16.mxu0 0
      %650 = vmatpush1.bf16.msra.mxu0 0
      %651 = vmatprep.subr.bf16.mxu0 0
      %652 = vmatpush1.bf16.msra.mxu0 0
      %653 = vmatprep.subr.bf16.mxu0 0
      %654 = vmatpush1.bf16.msra.mxu0 0
      %655 = vmatprep.subr.bf16.mxu0 0
      %656 = vmatpush1.bf16.msra.mxu0 0
      %657 = vmatprep.subr.bf16.mxu0 0
      %658 = vmatpush1.bf16.msra.mxu0 0
      %659 = vmatprep.subr.bf16.mxu0 0
      %660 = vmatpush1.bf16.msra.mxu0 0
      %661 = vmatprep.subr.bf16.mxu0 0
      %662 = vmatpush1.bf16.msra.mxu0 0
      %663 = vmatprep.subr.bf16.mxu0 0
      %664 = vmatpush1.bf16.msra.mxu0 0
      %665 = vmatprep.subr.bf16.mxu0 0
      %666 = vmatpush1.bf16.msra.mxu0 0
      %667 = vmatprep.mubr.bf16.mxu0 0
      %668 = vmatmul.mubr.bf16.gmra.mrb[0].mxu0 %v633
      %v669 = vpop.f32.mrb[0].mxu0
      %v670 = vadd.f32 %v618, %v669
      %v671 = vpop.f32.mrb[0].mxu0
      %v672 = vpop.f32.mrb[0].mxu0
      %v673 = vpop.f32.mrb[0].mxu0
      %674 = vdwg.mxu0
      %v675 = vmax.f32 %v670, 0.0
      %v676 = vld [vmem:[%s2 + $0x1] sm:$0x1]
      %v677 = vlaneseq
      %v678 = vshrl.u32 %v677, 7
      %v679 = vsub.s32 0, %v678
      %v680 = vrot.slane %v676, %v679
      %v681 = vmul.f32 %v675, %v680
      %v682 = vld [vmem:[%s2 + $0x2] sm:$0x1]
      %v683 = vlaneseq
      %v684 = vshrl.u32 %v683, 7
      %v685 = vsub.s32 0, %v684
      %v686 = vrot.slane %v682, %v685
      %v687 = vadd.f32 %v681, %v686
      %v688 = vpack.c.bf16 %v687, %v687
      %vm689 = vcmask 253952
      %690 = vst.msk [vmem:[#allocation2] sm:$0x1] %vm689, 0
      %vm691 = vcmask 254977
      %692 = vst.msk [vmem:[#allocation2 + $0x4] sm:$0x2] %vm691, 0
      %v694 = vunpack.c.l.b16 %v688
      %v695 = vpack.c.b16 %v694, %v694
      %v696 = vrot.slane %v695, 7
      %v697 = vrot.slane %v696, 4
      %vm700 = vcmask 257025
      %701 = vst.msk [vmem:[#allocation2] sm:$0xe] %vm700, %v696
      %702 = vst.msk [vmem:[#allocation2 + $0x4] sm:$0x1] %vm689, %v697
      %v703 = vld [vmem:[%s3] sm:$0xf]
      %v704 = vld [vmem:[%s3 + $0x4] sm:$0xf]
      %v705 = vld [vmem:[%s3 + $0x8] sm:$0xf]
      %v706 = vld [vmem:[%s3 + $0xc] sm:$0xf]
      %v707 = vld [vmem:[%s13] sm:$0x1]
      %v708 = vlaneseq
      %v709 = vshrl.u32 %v708, 7
      %v710 = vsub.s32 0, %v709
      %v711 = vrot.slane %v707, %v710
      %v716 = vunpack.c.l.b16 %v703
      %v717 = vunpack.c.l.b16 %v704
      %v718 = vunpack.c.l.b16 %v705
      %v719 = vunpack.c.l.b16 %v706
      %v720 = vpack.c.b16 %v717, %v716
      %v721 = vpack.c.b16 %v719, %v718
      %v725 = vsel %vm631, %v688, 0
      %727 = vmatprep.subr.bf16.mxu0 0
      %728 = vmatpush1.bf16.msra.mxu0 %v720
      %729 = vmatprep.subr.bf16.mxu0 0
      %730 = vmatpush1.bf16.msra.mxu0 %v721
      %731 = vmatprep.subr.bf16.mxu0 0
      %732 = vmatpush1.bf16.msra.mxu0 0
      %733 = vmatprep.subr.bf16.mxu0 0
      %734 = vmatpush1.bf16.msra.mxu0 0
      %735 = vmatprep.subr.bf16.mxu0 0
      %736 = vmatpush1.bf16.msra.mxu0 0
      %737 = vmatprep.subr.bf16.mxu0 0
      %738 = vmatpush1.bf16.msra.mxu0 0
      %739 = vmatprep.subr.bf16.mxu0 0
      %740 = vmatpush1.bf16.msra.mxu0 0
      %741 = vmatprep.subr.bf16.mxu0 0
      %742 = vmatpush1.bf16.msra.mxu0 0
      %743 = vmatprep.subr.bf16.mxu0 0
      %744 = vmatpush1.bf16.msra.mxu0 0
      %745 = vmatprep.subr.bf16.mxu0 0
      %746 = vmatpush1.bf16.msra.mxu0 0
      %747 = vmatprep.subr.bf16.mxu0 0
      %748 = vmatpush1.bf16.msra.mxu0 0
      %749 = vmatprep.subr.bf16.mxu0 0
      %750 = vmatpush1.bf16.msra.mxu0 0
      %751 = vmatprep.subr.bf16.mxu0 0
      %752 = vmatpush1.bf16.msra.mxu0 0
      %753 = vmatprep.subr.bf16.mxu0 0
      %754 = vmatpush1.bf16.msra.mxu0 0
      %755 = vmatprep.subr.bf16.mxu0 0
      %756 = vmatpush1.bf16.msra.mxu0 0
      %757 = vmatprep.subr.bf16.mxu0 0
      %758 = vmatpush1.bf16.msra.mxu0 0
      %759 = vmatprep.mubr.bf16.mxu0 0
      %760 = vmatmul.mubr.bf16.gmra.mrb[0].mxu0 %v725
      %v761 = vpop.f32.mrb[0].mxu0
      %v762 = vadd.f32 %v711, %v761
      %v763 = vpop.f32.mrb[0].mxu0
      %v764 = vpop.f32.mrb[0].mxu0
      %v765 = vpop.f32.mrb[0].mxu0
      %766 = vdwg.mxu0
      %v767 = vld [vmem:[#allocation2] sm:$0xf]
      %v768 = vld [vmem:[%s4] sm:$0xf]
      %v769 = vld [vmem:[%s4 + $0x4] sm:$0xf]
      %v770 = vld [vmem:[%s4 + $0x8] sm:$0xf]
      %v771 = vld [vmem:[%s4 + $0xc] sm:$0xf]
      %v772 = vld [vmem:[#allocation2] sm:$0xe]
      %v773 = vld [vmem:[#allocation2 + $0x4] sm:$0x1]
      %s774 = scalar_lea.vmem %s4, 16
      %v775 = vld [vmem:[%s774] sm:$0xf]
      %v776 = vld [vmem:[%s774 + $0x4] sm:$0xf]
      %v777 = vld [vmem:[%s774 + $0x8] sm:$0xf]
      %v778 = vld [vmem:[%s774 + $0xc] sm:$0xf]
      %v781 = vunpack.c.l.b16 %v772
      %v782 = vunpack.c.l.b16 %v773
      %v783 = vpack.c.b16 %v782, %v781
      %v784 = vrot.slane %v783, 1
      %v789 = vunpack.c.l.b16 %v775
      %v790 = vunpack.c.l.b16 %v776
      %v791 = vunpack.c.l.b16 %v777
      %v792 = vunpack.c.l.b16 %v778
      %v793 = vpack.c.b16 %v790, %v789
      %v794 = vpack.c.b16 %v792, %v791
      %v798 = vsel %vm631, %v784, 0
      %800 = vmatprep.subr.bf16.mxu0 0
      %801 = vmatpush1.bf16.msra.mxu0 %v793
      %802 = vmatprep.subr.bf16.mxu0 0
      %803 = vmatpush1.bf16.msra.mxu0 %v794
      %804 = vmatprep.subr.bf16.mxu0 0
      %805 = vmatpush1.bf16.msra.mxu0 0
      %806 = vmatprep.subr.bf16.mxu0 0
      %807 = vmatpush1.bf16.msra.mxu0 0
      %808 = vmatprep.subr.bf16.mxu0 0
      %809 = vmatpush1.bf16.msra.mxu0 0
      %810 = vmatprep.subr.bf16.mxu0 0
      %811 = vmatpush1.bf16.msra.mxu0 0
      %812 = vmatprep.subr.bf16.mxu0 0
      %813 = vmatpush1.bf16.msra.mxu0 0
      %814 = vmatprep.subr.bf16.mxu0 0
      %815 = vmatpush1.bf16.msra.mxu0 0
      %816 = vmatprep.subr.bf16.mxu0 0
      %817 = vmatpush1.bf16.msra.mxu0 0
      %818 = vmatprep.subr.bf16.mxu0 0
      %819 = vmatpush1.bf16.msra.mxu0 0
      %820 = vmatprep.subr.bf16.mxu0 0
      %821 = vmatpush1.bf16.msra.mxu0 0
      %822 = vmatprep.subr.bf16.mxu0 0
      %823 = vmatpush1.bf16.msra.mxu0 0
      %824 = vmatprep.subr.bf16.mxu0 0
      %825 = vmatpush1.bf16.msra.mxu0 0
      %826 = vmatprep.subr.bf16.mxu0 0
      %827 = vmatpush1.bf16.msra.mxu0 0
      %828 = vmatprep.subr.bf16.mxu0 0
      %829 = vmatpush1.bf16.msra.mxu0 0
      %830 = vmatprep.subr.bf16.mxu0 0
      %831 = vmatpush1.bf16.msra.mxu0 0
      %832 = vmatprep.mubr.bf16.mxu0 0
      %833 = vmatmul.mubr.bf16.gmra.mrb[0].mxu0 %v798
      %v834 = vpop.f32.mrb[0].mxu0
      %v835 = vadd.f32 0.0, %v834
      %v836 = vpop.f32.mrb[0].mxu0
      %v837 = vpop.f32.mrb[0].mxu0
      %v838 = vpop.f32.mrb[0].mxu0
      %839 = vdwg.mxu0
      %v844 = vunpack.c.l.b16 %v768
      %v845 = vunpack.c.l.b16 %v769
      %v846 = vunpack.c.l.b16 %v770
      %v847 = vunpack.c.l.b16 %v771
      %v848 = vpack.c.b16 %v845, %v844
      %v849 = vpack.c.b16 %v847, %v846
      %v853 = vsel %vm631, %v767, 0
      %855 = vmatprep.subr.bf16.mxu0 0
      %856 = vmatpush1.bf16.msra.mxu0 %v848
      %857 = vmatprep.subr.bf16.mxu0 0
      %858 = vmatpush1.bf16.msra.mxu0 %v849
      %859 = vmatprep.subr.bf16.mxu0 0
      %860 = vmatpush1.bf16.msra.mxu0 0
      %861 = vmatprep.subr.bf16.mxu0 0
      %862 = vmatpush1.bf16.msra.mxu0 0
      %863 = vmatprep.subr.bf16.mxu0 0
      %864 = vmatpush1.bf16.msra.mxu0 0
      %865 = vmatprep.subr.bf16.mxu0 0
      %866 = vmatpush1.bf16.msra.mxu0 0
      %867 = vmatprep.subr.bf16.mxu0 0
      %868 = vmatpush1.bf16.msra.mxu0 0
      %869 = vmatprep.subr.bf16.mxu0 0
      %870 = vmatpush1.bf16.msra.mxu0 0
      %871 = vmatprep.subr.bf16.mxu0 0
      %872 = vmatpush1.bf16.msra.mxu0 0
      %873 = vmatprep.subr.bf16.mxu0 0
      %874 = vmatpush1.bf16.msra.mxu0 0
      %875 = vmatprep.subr.bf16.mxu0 0
      %876 = vmatpush1.bf16.msra.mxu0 0
      %877 = vmatprep.subr.bf16.mxu0 0
      %878 = vmatpush1.bf16.msra.mxu0 0
      %879 = vmatprep.subr.bf16.mxu0 0
      %880 = vmatpush1.bf16.msra.mxu0 0
      %881 = vmatprep.subr.bf16.mxu0 0
      %882 = vmatpush1.bf16.msra.mxu0 0
      %883 = vmatprep.subr.bf16.mxu0 0
      %884 = vmatpush1.bf16.msra.mxu0 0
      %885 = vmatprep.subr.bf16.mxu0 0
      %886 = vmatpush1.bf16.msra.mxu0 0
      %887 = vmatprep.mubr.bf16.mxu0 0
      %888 = vmatmul.mubr.bf16.gmra.mrb[0].mxu0 %v853
      %v889 = vpop.f32.mrb[0].mxu0
      %v890 = vadd.f32 %v835, %v889
      %v891 = vpop.f32.mrb[0].mxu0
      %v892 = vpop.f32.mrb[0].mxu0
      %v893 = vpop.f32.mrb[0].mxu0
      %894 = vdwg.mxu0
      %v895 = vld [vmem:[#allocation2] sm:$0xc]
      %v896 = vld [vmem:[#allocation2 + $0x4] sm:$0x3]
      %s897 = scalar_lea.vmem %s4, 32
      %v898 = vld [vmem:[%s897] sm:$0xf]
      %v899 = vld [vmem:[%s897 + $0x4] sm:$0xf]
      %v900 = vld [vmem:[%s897 + $0x8] sm:$0xf]
      %v901 = vld [vmem:[%s897 + $0xc] sm:$0xf]
      %v904 = vunpack.c.l.b16 %v895
      %v905 = vunpack.c.l.b16 %v896
      %v906 = vpack.c.b16 %v905, %v904
      %v907 = vrot.slane %v906, 2
      %v912 = vunpack.c.l.b16 %v898
      %v913 = vunpack.c.l.b16 %v899
      %v914 = vunpack.c.l.b16 %v900
      %v915 = vunpack.c.l.b16 %v901
      %v916 = vpack.c.b16 %v913, %v912
      %v917 = vpack.c.b16 %v915, %v914
      %v921 = vsel %vm631, %v907, 0
      %923 = vmatprep.subr.bf16.mxu0 0
      %924 = vmatpush1.bf16.msra.mxu0 %v916
      %925 = vmatprep.subr.bf16.mxu0 0
      %926 = vmatpush1.bf16.msra.mxu0 %v917
      %927 = vmatprep.subr.bf16.mxu0 0
      %928 = vmatpush1.bf16.msra.mxu0 0
      %929 = vmatprep.subr.bf16.mxu0 0
      %930 = vmatpush1.bf16.msra.mxu0 0
      %931 = vmatprep.subr.bf16.mxu0 0
      %932 = vmatpush1.bf16.msra.mxu0 0
      %933 = vmatprep.subr.bf16.mxu0 0
      %934 = vmatpush1.bf16.msra.mxu0 0
      %935 = vmatprep.subr.bf16.mxu0 0
      %936 = vmatpush1.bf16.msra.mxu0 0
      %937 = vmatprep.subr.bf16.mxu0 0
      %938 = vmatpush1.bf16.msra.mxu0 0
      %939 = vmatprep.subr.bf16.mxu0 0
      %940 = vmatpush1.bf16.msra.mxu0 0
      %941 = vmatprep.subr.bf16.mxu0 0
      %942 = vmatpush1.bf16.msra.mxu0 0
      %943 = vmatprep.subr.bf16.mxu0 0
      %944 = vmatpush1.bf16.msra.mxu0 0
      %945 = vmatprep.subr.bf16.mxu0 0
      %946 = vmatpush1.bf16.msra.mxu0 0
      %947 = vmatprep.subr.bf16.mxu0 0
      %948 = vmatpush1.bf16.msra.mxu0 0
      %949 = vmatprep.subr.bf16.mxu0 0
      %950 = vmatpush1.bf16.msra.mxu0 0
      %951 = vmatprep.subr.bf16.mxu0 0
      %952 = vmatpush1.bf16.msra.mxu0 0
      %953 = vmatprep.subr.bf16.mxu0 0
      %954 = vmatpush1.bf16.msra.mxu0 0
      %955 = vmatprep.mubr.bf16.mxu0 0
      %956 = vmatmul.mubr.bf16.gmra.mrb[0].mxu0 %v921
      %v957 = vpop.f32.mrb[0].mxu0
      %v958 = vadd.f32 0.0, %v957
      %v959 = vpop.f32.mrb[0].mxu0
      %v960 = vpop.f32.mrb[0].mxu0
      %v961 = vpop.f32.mrb[0].mxu0
      %962 = vdwg.mxu0
      %v963 = vadd.f32 %v890, %v958
      %v964 = vld [vmem:[%s6] sm:$0x1]
      %v965 = vlaneseq
      %v966 = vshrl.u32 %v965, 7
      %v967 = vsub.s32 0, %v966
      %v968 = vrot.slane %v964, %v967
      %v969 = vadd.f32 %v963, %v968
      %v970 = vmax.f32 %v969, 0.0
      %v971 = vld [vmem:[%s6 + $0x1] sm:$0x1]
      %v972 = vlaneseq
      %v973 = vshrl.u32 %v972, 7
      %v974 = vsub.s32 0, %v973
      %v975 = vrot.slane %v971, %v974
      %v976 = vmul.f32 %v970, %v975
      %v977 = vld [vmem:[%s6 + $0x2] sm:$0x1]
      %v978 = vlaneseq
      %v979 = vshrl.u32 %v978, 7
      %v980 = vsub.s32 0, %v979
      %v981 = vrot.slane %v977, %v980
      %v982 = vadd.f32 %v976, %v981
      %v983 = vpack.c.bf16 %v982, %v982
      %v984 = vld [vmem:[%s5] sm:$0xf]
      %v985 = vld [vmem:[%s5 + $0x4] sm:$0xf]
      %v986 = vld [vmem:[%s5 + $0x8] sm:$0xf]
      %v987 = vld [vmem:[%s5 + $0xc] sm:$0xf]
      %v992 = vunpack.c.l.b16 %v984
      %v993 = vunpack.c.l.b16 %v985
      %v994 = vunpack.c.l.b16 %v986
      %v995 = vunpack.c.l.b16 %v987
      %v996 = vpack.c.b16 %v993, %v992
      %v997 = vpack.c.b16 %v995, %v994
      %v1001 = vsel %vm631, %v983, 0
      %1003 = vmatprep.subr.bf16.mxu0 0
      %1004 = vmatpush1.bf16.msra.mxu0 %v996
      %1005 = vmatprep.subr.bf16.mxu0 0
      %1006 = vmatpush1.bf16.msra.mxu0 %v997
      %1007 = vmatprep.subr.bf16.mxu0 0
      %1008 = vmatpush1.bf16.msra.mxu0 0
      %1009 = vmatprep.subr.bf16.mxu0 0
      %1010 = vmatpush1.bf16.msra.mxu0 0
      %1011 = vmatprep.subr.bf16.mxu0 0
      %1012 = vmatpush1.bf16.msra.mxu0 0
      %1013 = vmatprep.subr.bf16.mxu0 0
      %1014 = vmatpush1.bf16.msra.mxu0 0
      %1015 = vmatprep.subr.bf16.mxu0 0
      %1016 = vmatpush1.bf16.msra.mxu0 0
      %1017 = vmatprep.subr.bf16.mxu0 0
      %1018 = vmatpush1.bf16.msra.mxu0 0
      %1019 = vmatprep.subr.bf16.mxu0 0
      %1020 = vmatpush1.bf16.msra.mxu0 0
      %1021 = vmatprep.subr.bf16.mxu0 0
      %1022 = vmatpush1.bf16.msra.mxu0 0
      %1023 = vmatprep.subr.bf16.mxu0 0
      %1024 = vmatpush1.bf16.msra.mxu0 0
      %1025 = vmatprep.subr.bf16.mxu0 0
      %1026 = vmatpush1.bf16.msra.mxu0 0
      %1027 = vmatprep.subr.bf16.mxu0 0
      %1028 = vmatpush1.bf16.msra.mxu0 0
      %1029 = vmatprep.subr.bf16.mxu0 0
      %1030 = vmatpush1.bf16.msra.mxu0 0
      %1031 = vmatprep.subr.bf16.mxu0 0
      %1032 = vmatpush1.bf16.msra.mxu0 0
      %1033 = vmatprep.subr.bf16.mxu0 0
      %1034 = vmatpush1.bf16.msra.mxu0 0
      %1035 = vmatprep.mubr.bf16.mxu0 0
      %1036 = vmatmul.mubr.bf16.gmra.mrb[0].mxu0 %v1001
      %v1037 = vpop.f32.mrb[0].mxu0
      %v1038 = vadd.f32 0.0, %v1037
      %v1039 = vpop.f32.mrb[0].mxu0
      %v1040 = vpop.f32.mrb[0].mxu0
      %v1041 = vpop.f32.mrb[0].mxu0
      %1042 = vdwg.mxu0
      %v1043 = vadd.f32 %v762, %v1038
      %v1045 = vunpack.c.l.b16 %v983
      %v1046 = vpack.c.b16 %v1045, %v1045
      %v1047 = vrot.slane %v1046, 7
      %v1048 = vrot.slane %v1047, 4
      %vm1051 = vcmask 125953
      %1052 = vst.msk [vmem:[#allocation2] sm:$0xe] %vm1051, %v1047
      %vm1053 = vcmask 122880
      %1054 = vst.msk [vmem:[#allocation2 + $0x4] sm:$0x1] %vm1053, %v1048
      %v1055 = vld [vmem:[#allocation2] sm:$0xf]
      %v1056 = vld [vmem:[%s7] sm:$0xf]
      %v1057 = vld [vmem:[%s7 + $0x4] sm:$0xf]
      %v1058 = vld [vmem:[%s7 + $0x8] sm:$0xf]
      %v1059 = vld [vmem:[%s7 + $0xc] sm:$0xf]
      %v1060 = vld [vmem:[#allocation2] sm:$0xe]
      %v1061 = vld [vmem:[#allocation2 + $0x4] sm:$0x1]
      %s1062 = scalar_lea.vmem %s7, 16
      %v1063 = vld [vmem:[%s1062] sm:$0xf]
      %v1064 = vld [vmem:[%s1062 + $0x4] sm:$0xf]
      %v1065 = vld [vmem:[%s1062 + $0x8] sm:$0xf]
      %v1066 = vld [vmem:[%s1062 + $0xc] sm:$0xf]
      %v1069 = vunpack.c.l.b16 %v1060
      %v1070 = vunpack.c.l.b16 %v1061
      %v1071 = vpack.c.b16 %v1070, %v1069
      %v1072 = vrot.slane %v1071, 1
      %v1077 = vunpack.c.l.b16 %v1063
      %v1078 = vunpack.c.l.b16 %v1064
      %v1079 = vunpack.c.l.b16 %v1065
      %v1080 = vunpack.c.l.b16 %v1066
      %v1081 = vpack.c.b16 %v1078, %v1077
      %v1082 = vpack.c.b16 %v1080, %v1079
      %v1086 = vsel %vm631, %v1072, 0
      %1088 = vmatprep.subr.bf16.mxu0 0
      %1089 = vmatpush1.bf16.msra.mxu0 %v1081
      %1090 = vmatprep.subr.bf16.mxu0 0
      %1091 = vmatpush1.bf16.msra.mxu0 %v1082
      %1092 = vmatprep.subr.bf16.mxu0 0
      %1093 = vmatpush1.bf16.msra.mxu0 0
      %1094 = vmatprep.subr.bf16.mxu0 0
      %1095 = vmatpush1.bf16.msra.mxu0 0
      %1096 = vmatprep.subr.bf16.mxu0 0
      %1097 = vmatpush1.bf16.msra.mxu0 0
      %1098 = vmatprep.subr.bf16.mxu0 0
      %1099 = vmatpush1.bf16.msra.mxu0 0
      %1100 = vmatprep.subr.bf16.mxu0 0
      %1101 = vmatpush1.bf16.msra.mxu0 0
      %1102 = vmatprep.subr.bf16.mxu0 0
      %1103 = vmatpush1.bf16.msra.mxu0 0
      %1104 = vmatprep.subr.bf16.mxu0 0
      %1105 = vmatpush1.bf16.msra.mxu0 0
      %1106 = vmatprep.subr.bf16.mxu0 0
      %1107 = vmatpush1.bf16.msra.mxu0 0
      %1108 = vmatprep.subr.bf16.mxu0 0
      %1109 = vmatpush1.bf16.msra.mxu0 0
      %1110 = vmatprep.subr.bf16.mxu0 0
      %1111 = vmatpush1.bf16.msra.mxu0 0
      %1112 = vmatprep.subr.bf16.mxu0 0
      %1113 = vmatpush1.bf16.msra.mxu0 0
      %1114 = vmatprep.subr.bf16.mxu0 0
      %1115 = vmatpush1.bf16.msra.mxu0 0
      %1116 = vmatprep.subr.bf16.mxu0 0
      %1117 = vmatpush1.bf16.msra.mxu0 0
      %1118 = vmatprep.subr.bf16.mxu0 0
      %1119 = vmatpush1.bf16.msra.mxu0 0
      %1120 = vmatprep.mubr.bf16.mxu0 0
      %1121 = vmatmul.mubr.bf16.gmra.mrb[0].mxu0 %v1086
      %v1122 = vpop.f32.mrb[0].mxu0
      %v1123 = vadd.f32 0.0, %v1122
      %v1124 = vpop.f32.mrb[0].mxu0
      %v1125 = vpop.f32.mrb[0].mxu0
      %v1126 = vpop.f32.mrb[0].mxu0
      %1127 = vdwg.mxu0
      %v1132 = vunpack.c.l.b16 %v1056
      %v1133 = vunpack.c.l.b16 %v1057
      %v1134 = vunpack.c.l.b16 %v1058
      %v1135 = vunpack.c.l.b16 %v1059
      %v1136 = vpack.c.b16 %v1133, %v1132
      %v1137 = vpack.c.b16 %v1135, %v1134
      %v1141 = vsel %vm631, %v1055, 0
      %1143 = vmatprep.subr.bf16.mxu0 0
      %1144 = vmatpush1.bf16.msra.mxu0 %v1136
      %1145 = vmatprep.subr.bf16.mxu0 0
      %1146 = vmatpush1.bf16.msra.mxu0 %v1137
      %1147 = vmatprep.subr.bf16.mxu0 0
      %1148 = vmatpush1.bf16.msra.mxu0 0
      %1149 = vmatprep.subr.bf16.mxu0 0
      %1150 = vmatpush1.bf16.msra.mxu0 0
      %1151 = vmatprep.subr.bf16.mxu0 0
      %1152 = vmatpush1.bf16.msra.mxu0 0
      %1153 = vmatprep.subr.bf16.mxu0 0
      %1154 = vmatpush1.bf16.msra.mxu0 0
      %1155 = vmatprep.subr.bf16.mxu0 0
      %1156 = vmatpush1.bf16.msra.mxu0 0
      %1157 = vmatprep.subr.bf16.mxu0 0
      %1158 = vmatpush1.bf16.msra.mxu0 0
      %1159 = vmatprep.subr.bf16.mxu0 0
      %1160 = vmatpush1.bf16.msra.mxu0 0
      %1161 = vmatprep.subr.bf16.mxu0 0
      %1162 = vmatpush1.bf16.msra.mxu0 0
      %1163 = vmatprep.subr.bf16.mxu0 0
      %1164 = vmatpush1.bf16.msra.mxu0 0
      %1165 = vmatprep.subr.bf16.mxu0 0
      %1166 = vmatpush1.bf16.msra.mxu0 0
      %1167 = vmatprep.subr.bf16.mxu0 0
      %1168 = vmatpush1.bf16.msra.mxu0 0
      %1169 = vmatprep.subr.bf16.mxu0 0
      %1170 = vmatpush1.bf16.msra.mxu0 0
      %1171 = vmatprep.subr.bf16.mxu0 0
      %1172 = vmatpush1.bf16.msra.mxu0 0
      %1173 = vmatprep.subr.bf16.mxu0 0
      %1174 = vmatpush1.bf16.msra.mxu0 0
      %1175 = vmatprep.mubr.bf16.mxu0 0
      %1176 = vmatmul.mubr.bf16.gmra.mrb[0].mxu0 %v1141
      %v1177 = vpop.f32.mrb[0].mxu0
      %v1178 = vadd.f32 %v1123, %v1177
      %v1179 = vpop.f32.mrb[0].mxu0
      %v1180 = vpop.f32.mrb[0].mxu0
      %v1181 = vpop.f32.mrb[0].mxu0
      %1182 = vdwg.mxu0
      %v1183 = vld [vmem:[#allocation2] sm:$0xc]
      %v1184 = vld [vmem:[#allocation2 + $0x4] sm:$0x3]
      %s1185 = scalar_lea.vmem %s7, 32
      %v1186 = vld [vmem:[%s1185] sm:$0xf]
      %v1187 = vld [vmem:[%s1185 + $0x4] sm:$0xf]
      %v1188 = vld [vmem:[%s1185 + $0x8] sm:$0xf]
      %v1189 = vld [vmem:[%s1185 + $0xc] sm:$0xf]
      %v1192 = vunpack.c.l.b16 %v1183
      %v1193 = vunpack.c.l.b16 %v1184
      %v1194 = vpack.c.b16 %v1193, %v1192
      %v1195 = vrot.slane %v1194, 2
      %v1200 = vunpack.c.l.b16 %v1186
      %v1201 = vunpack.c.l.b16 %v1187
      %v1202 = vunpack.c.l.b16 %v1188
      %v1203 = vunpack.c.l.b16 %v1189
      %v1204 = vpack.c.b16 %v1201, %v1200
      %v1205 = vpack.c.b16 %v1203, %v1202
      %v1209 = vsel %vm631, %v1195, 0
      %1211 = vmatprep.subr.bf16.mxu0 0
      %1212 = vmatpush1.bf16.msra.mxu0 %v1204
      %1213 = vmatprep.subr.bf16.mxu0 0
      %1214 = vmatpush1.bf16.msra.mxu0 %v1205
      %1215 = vmatprep.subr.bf16.mxu0 0
      %1216 = vmatpush1.bf16.msra.mxu0 0
      %1217 = vmatprep.subr.bf16.mxu0 0
      %1218 = vmatpush1.bf16.msra.mxu0 0
      %1219 = vmatprep.subr.bf16.mxu0 0
      %1220 = vmatpush1.bf16.msra.mxu0 0
      %1221 = vmatprep.subr.bf16.mxu0 0
      %1222 = vmatpush1.bf16.msra.mxu0 0
      %1223 = vmatprep.subr.bf16.mxu0 0
      %1224 = vmatpush1.bf16.msra.mxu0 0
      %1225 = vmatprep.subr.bf16.mxu0 0
      %1226 = vmatpush1.bf16.msra.mxu0 0
      %1227 = vmatprep.subr.bf16.mxu0 0
      %1228 = vmatpush1.bf16.msra.mxu0 0
      %1229 = vmatprep.subr.bf16.mxu0 0
      %1230 = vmatpush1.bf16.msra.mxu0 0
      %1231 = vmatprep.subr.bf16.mxu0 0
      %1232 = vmatpush1.bf16.msra.mxu0 0
      %1233 = vmatprep.subr.bf16.mxu0 0
      %1234 = vmatpush1.bf16.msra.mxu0 0
      %1235 = vmatprep.subr.bf16.mxu0 0
      %1236 = vmatpush1.bf16.msra.mxu0 0
      %1237 = vmatprep.subr.bf16.mxu0 0
      %1238 = vmatpush1.bf16.msra.mxu0 0
      %1239 = vmatprep.subr.bf16.mxu0 0
      %1240 = vmatpush1.bf16.msra.mxu0 0
      %1241 = vmatprep.subr.bf16.mxu0 0
      %1242 = vmatpush1.bf16.msra.mxu0 0
      %1243 = vmatprep.mubr.bf16.mxu0 0
      %1244 = vmatmul.mubr.bf16.gmra.mrb[0].mxu0 %v1209
      %v1245 = vpop.f32.mrb[0].mxu0
      %v1246 = vadd.f32 0.0, %v1245
      %v1247 = vpop.f32.mrb[0].mxu0
      %v1248 = vpop.f32.mrb[0].mxu0
      %v1249 = vpop.f32.mrb[0].mxu0
      %1250 = vdwg.mxu0
      %v1251 = vadd.f32 %v1178, %v1246
      %v1252 = vld [vmem:[%s9] sm:$0x1]
      %v1253 = vlaneseq
      %v1254 = vshrl.u32 %v1253, 7
      %v1255 = vsub.s32 0, %v1254
      %v1256 = vrot.slane %v1252, %v1255
      %v1257 = vadd.f32 %v1251, %v1256
      %v1258 = vmax.f32 %v1257, 0.0
      %v1259 = vld [vmem:[%s9 + $0x1] sm:$0x1]
      %v1260 = vlaneseq
      %v1261 = vshrl.u32 %v1260, 7
      %v1262 = vsub.s32 0, %v1261
      %v1263 = vrot.slane %v1259, %v1262
      %v1264 = vmul.f32 %v1258, %v1263
      %v1265 = vld [vmem:[%s9 + $0x2] sm:$0x1]
      %v1266 = vlaneseq
      %v1267 = vshrl.u32 %v1266, 7
      %v1268 = vsub.s32 0, %v1267
      %v1269 = vrot.slane %v1265, %v1268
      %v1270 = vadd.f32 %v1264, %v1269
      %v1271 = vpack.c.bf16 %v1270, %v1270
      %v1272 = vld [vmem:[%s8] sm:$0xf]
      %v1273 = vld [vmem:[%s8 + $0x4] sm:$0xf]
      %v1274 = vld [vmem:[%s8 + $0x8] sm:$0xf]
      %v1275 = vld [vmem:[%s8 + $0xc] sm:$0xf]
      %v1280 = vunpack.c.l.b16 %v1272
      %v1281 = vunpack.c.l.b16 %v1273
      %v1282 = vunpack.c.l.b16 %v1274
      %v1283 = vunpack.c.l.b16 %v1275
      %v1284 = vpack.c.b16 %v1281, %v1280
      %v1285 = vpack.c.b16 %v1283, %v1282
      %v1289 = vsel %vm631, %v1271, 0
      %1291 = vmatprep.subr.bf16.mxu0 0
      %1292 = vmatpush1.bf16.msra.mxu0 %v1284
      %1293 = vmatprep.subr.bf16.mxu0 0
      %1294 = vmatpush1.bf16.msra.mxu0 %v1285
      %1295 = vmatprep.subr.bf16.mxu0 0
      %1296 = vmatpush1.bf16.msra.mxu0 0
      %1297 = vmatprep.subr.bf16.mxu0 0
      %1298 = vmatpush1.bf16.msra.mxu0 0
      %1299 = vmatprep.subr.bf16.mxu0 0
      %1300 = vmatpush1.bf16.msra.mxu0 0
      %1301 = vmatprep.subr.bf16.mxu0 0
      %1302 = vmatpush1.bf16.msra.mxu0 0
      %1303 = vmatprep.subr.bf16.mxu0 0
      %1304 = vmatpush1.bf16.msra.mxu0 0
      %1305 = vmatprep.subr.bf16.mxu0 0
      %1306 = vmatpush1.bf16.msra.mxu0 0
      %1307 = vmatprep.subr.bf16.mxu0 0
      %1308 = vmatpush1.bf16.msra.mxu0 0
      %1309 = vmatprep.subr.bf16.mxu0 0
      %1310 = vmatpush1.bf16.msra.mxu0 0
      %1311 = vmatprep.subr.bf16.mxu0 0
      %1312 = vmatpush1.bf16.msra.mxu0 0
      %1313 = vmatprep.subr.bf16.mxu0 0
      %1314 = vmatpush1.bf16.msra.mxu0 0
      %1315 = vmatprep.subr.bf16.mxu0 0
      %1316 = vmatpush1.bf16.msra.mxu0 0
      %1317 = vmatprep.subr.bf16.mxu0 0
      %1318 = vmatpush1.bf16.msra.mxu0 0
      %1319 = vmatprep.subr.bf16.mxu0 0
      %1320 = vmatpush1.bf16.msra.mxu0 0
      %1321 = vmatprep.subr.bf16.mxu0 0
      %1322 = vmatpush1.bf16.msra.mxu0 0
      %1323 = vmatprep.mubr.bf16.mxu0 0
      %1324 = vmatmul.mubr.bf16.gmra.mrb[0].mxu0 %v1289
      %v1325 = vpop.f32.mrb[0].mxu0
      %v1326 = vadd.f32 0.0, %v1325
      %v1327 = vpop.f32.mrb[0].mxu0
      %v1328 = vpop.f32.mrb[0].mxu0
      %v1329 = vpop.f32.mrb[0].mxu0
      %1330 = vdwg.mxu0
      %v1331 = vadd.f32 %v1043, %v1326
      %v1333 = vunpack.c.l.b16 %v1271
      %v1334 = vpack.c.b16 %v1333, %v1333
      %v1335 = vrot.slane %v1334, 7
      %v1336 = vrot.slane %v1335, 4
      %vm1339 = vcmask 191489
      %1340 = vst.msk [vmem:[#allocation2] sm:$0xe] %vm1339, %v1335
      %vm1341 = vcmask 188416
      %1342 = vst.msk [vmem:[#allocation2 + $0x4] sm:$0x1] %vm1341, %v1336
      %v1343 = vld [vmem:[#allocation2] sm:$0xf]
      %v1344 = vld [vmem:[%s10] sm:$0xf]
      %v1345 = vld [vmem:[%s10 + $0x4] sm:$0xf]
      %v1346 = vld [vmem:[%s10 + $0x8] sm:$0xf]
      %v1347 = vld [vmem:[%s10 + $0xc] sm:$0xf]
      %v1348 = vld [vmem:[#allocation2] sm:$0xe]
      %v1349 = vld [vmem:[#allocation2 + $0x4] sm:$0x1]
      %s1350 = scalar_lea.vmem %s10, 16
      %v1351 = vld [vmem:[%s1350] sm:$0xf]
      %v1352 = vld [vmem:[%s1350 + $0x4] sm:$0xf]
      %v1353 = vld [vmem:[%s1350 + $0x8] sm:$0xf]
      %v1354 = vld [vmem:[%s1350 + $0xc] sm:$0xf]
      %v1357 = vunpack.c.l.b16 %v1348
      %v1358 = vunpack.c.l.b16 %v1349
      %v1359 = vpack.c.b16 %v1358, %v1357
      %v1360 = vrot.slane %v1359, 1
      %v1365 = vunpack.c.l.b16 %v1351
      %v1366 = vunpack.c.l.b16 %v1352
      %v1367 = vunpack.c.l.b16 %v1353
      %v1368 = vunpack.c.l.b16 %v1354
      %v1369 = vpack.c.b16 %v1366, %v1365
      %v1370 = vpack.c.b16 %v1368, %v1367
      %v1374 = vsel %vm631, %v1360, 0
      %1376 = vmatprep.subr.bf16.mxu0 0
      %1377 = vmatpush1.bf16.msra.mxu0 %v1369
      %1378 = vmatprep.subr.bf16.mxu0 0
      %1379 = vmatpush1.bf16.msra.mxu0 %v1370
      %1380 = vmatprep.subr.bf16.mxu0 0
      %1381 = vmatpush1.bf16.msra.mxu0 0
      %1382 = vmatprep.subr.bf16.mxu0 0
      %1383 = vmatpush1.bf16.msra.mxu0 0
      %1384 = vmatprep.subr.bf16.mxu0 0
      %1385 = vmatpush1.bf16.msra.mxu0 0
      %1386 = vmatprep.subr.bf16.mxu0 0
      %1387 = vmatpush1.bf16.msra.mxu0 0
      %1388 = vmatprep.subr.bf16.mxu0 0
      %1389 = vmatpush1.bf16.msra.mxu0 0
      %1390 = vmatprep.subr.bf16.mxu0 0
      %1391 = vmatpush1.bf16.msra.mxu0 0
      %1392 = vmatprep.subr.bf16.mxu0 0
      %1393 = vmatpush1.bf16.msra.mxu0 0
      %1394 = vmatprep.subr.bf16.mxu0 0
      %1395 = vmatpush1.bf16.msra.mxu0 0
      %1396 = vmatprep.subr.bf16.mxu0 0
      %1397 = vmatpush1.bf16.msra.mxu0 0
      %1398 = vmatprep.subr.bf16.mxu0 0
      %1399 = vmatpush1.bf16.msra.mxu0 0
      %1400 = vmatprep.subr.bf16.mxu0 0
      %1401 = vmatpush1.bf16.msra.mxu0 0
      %1402 = vmatprep.subr.bf16.mxu0 0
      %1403 = vmatpush1.bf16.msra.mxu0 0
      %1404 = vmatprep.subr.bf16.mxu0 0
      %1405 = vmatpush1.bf16.msra.mxu0 0
      %1406 = vmatprep.subr.bf16.mxu0 0
      %1407 = vmatpush1.bf16.msra.mxu0 0
      %1408 = vmatprep.mubr.bf16.mxu0 0
      %1409 = vmatmul.mubr.bf16.gmra.mrb[0].mxu0 %v1374
      %v1410 = vpop.f32.mrb[0].mxu0
      %v1411 = vadd.f32 0.0, %v1410
      %v1412 = vpop.f32.mrb[0].mxu0
      %v1413 = vpop.f32.mrb[0].mxu0
      %v1414 = vpop.f32.mrb[0].mxu0
      %1415 = vdwg.mxu0
      %v1420 = vunpack.c.l.b16 %v1344
      %v1421 = vunpack.c.l.b16 %v1345
      %v1422 = vunpack.c.l.b16 %v1346
      %v1423 = vunpack.c.l.b16 %v1347
      %v1424 = vpack.c.b16 %v1421, %v1420
      %v1425 = vpack.c.b16 %v1423, %v1422
      %v1429 = vsel %vm631, %v1343, 0
      %1431 = vmatprep.subr.bf16.mxu0 0
      %1432 = vmatpush1.bf16.msra.mxu0 %v1424
      %1433 = vmatprep.subr.bf16.mxu0 0
      %1434 = vmatpush1.bf16.msra.mxu0 %v1425
      %1435 = vmatprep.subr.bf16.mxu0 0
      %1436 = vmatpush1.bf16.msra.mxu0 0
      %1437 = vmatprep.subr.bf16.mxu0 0
      %1438 = vmatpush1.bf16.msra.mxu0 0
      %1439 = vmatprep.subr.bf16.mxu0 0
      %1440 = vmatpush1.bf16.msra.mxu0 0
      %1441 = vmatprep.subr.bf16.mxu0 0
      %1442 = vmatpush1.bf16.msra.mxu0 0
      %1443 = vmatprep.subr.bf16.mxu0 0
      %1444 = vmatpush1.bf16.msra.mxu0 0
      %1445 = vmatprep.subr.bf16.mxu0 0
      %1446 = vmatpush1.bf16.msra.mxu0 0
      %1447 = vmatprep.subr.bf16.mxu0 0
      %1448 = vmatpush1.bf16.msra.mxu0 0
      %1449 = vmatprep.subr.bf16.mxu0 0
      %1450 = vmatpush1.bf16.msra.mxu0 0
      %1451 = vmatprep.subr.bf16.mxu0 0
      %1452 = vmatpush1.bf16.msra.mxu0 0
      %1453 = vmatprep.subr.bf16.mxu0 0
      %1454 = vmatpush1.bf16.msra.mxu0 0
      %1455 = vmatprep.subr.bf16.mxu0 0
      %1456 = vmatpush1.bf16.msra.mxu0 0
      %1457 = vmatprep.subr.bf16.mxu0 0
      %1458 = vmatpush1.bf16.msra.mxu0 0
      %1459 = vmatprep.subr.bf16.mxu0 0
      %1460 = vmatpush1.bf16.msra.mxu0 0
      %1461 = vmatprep.subr.bf16.mxu0 0
      %1462 = vmatpush1.bf16.msra.mxu0 0
      %1463 = vmatprep.mubr.bf16.mxu0 0
      %1464 = vmatmul.mubr.bf16.gmra.mrb[0].mxu0 %v1429
      %v1465 = vpop.f32.mrb[0].mxu0
      %v1466 = vadd.f32 %v1411, %v1465
      %v1467 = vpop.f32.mrb[0].mxu0
      %v1468 = vpop.f32.mrb[0].mxu0
      %v1469 = vpop.f32.mrb[0].mxu0
      %1470 = vdwg.mxu0
      %v1471 = vld [vmem:[#allocation2] sm:$0xc]
      %v1472 = vld [vmem:[#allocation2 + $0x4] sm:$0x3]
      %s1473 = scalar_lea.vmem %s10, 32
      %v1474 = vld [vmem:[%s1473] sm:$0xf]
      %v1475 = vld [vmem:[%s1473 + $0x4] sm:$0xf]
      %v1476 = vld [vmem:[%s1473 + $0x8] sm:$0xf]
      %v1477 = vld [vmem:[%s1473 + $0xc] sm:$0xf]
      %v1480 = vunpack.c.l.b16 %v1471
      %v1481 = vunpack.c.l.b16 %v1472
      %v1482 = vpack.c.b16 %v1481, %v1480
      %v1483 = vrot.slane %v1482, 2
      %v1488 = vunpack.c.l.b16 %v1474
      %v1489 = vunpack.c.l.b16 %v1475
      %v1490 = vunpack.c.l.b16 %v1476
      %v1491 = vunpack.c.l.b16 %v1477
      %v1492 = vpack.c.b16 %v1489, %v1488
      %v1493 = vpack.c.b16 %v1491, %v1490
      %v1497 = vsel %vm631, %v1483, 0
      %1499 = vmatprep.subr.bf16.mxu0 0
      %1500 = vmatpush1.bf16.msra.mxu0 %v1492
      %1501 = vmatprep.subr.bf16.mxu0 0
      %1502 = vmatpush1.bf16.msra.mxu0 %v1493
      %1503 = vmatprep.subr.bf16.mxu0 0
      %1504 = vmatpush1.bf16.msra.mxu0 0
      %1505 = vmatprep.subr.bf16.mxu0 0
      %1506 = vmatpush1.bf16.msra.mxu0 0
      %1507 = vmatprep.subr.bf16.mxu0 0
      %1508 = vmatpush1.bf16.msra.mxu0 0
      %1509 = vmatprep.subr.bf16.mxu0 0
      %1510 = vmatpush1.bf16.msra.mxu0 0
      %1511 = vmatprep.subr.bf16.mxu0 0
      %1512 = vmatpush1.bf16.msra.mxu0 0
      %1513 = vmatprep.subr.bf16.mxu0 0
      %1514 = vmatpush1.bf16.msra.mxu0 0
      %1515 = vmatprep.subr.bf16.mxu0 0
      %1516 = vmatpush1.bf16.msra.mxu0 0
      %1517 = vmatprep.subr.bf16.mxu0 0
      %1518 = vmatpush1.bf16.msra.mxu0 0
      %1519 = vmatprep.subr.bf16.mxu0 0
      %1520 = vmatpush1.bf16.msra.mxu0 0
      %1521 = vmatprep.subr.bf16.mxu0 0
      %1522 = vmatpush1.bf16.msra.mxu0 0
      %1523 = vmatprep.subr.bf16.mxu0 0
      %1524 = vmatpush1.bf16.msra.mxu0 0
      %1525 = vmatprep.subr.bf16.mxu0 0
      %1526 = vmatpush1.bf16.msra.mxu0 0
      %1527 = vmatprep.subr.bf16.mxu0 0
      %1528 = vmatpush1.bf16.msra.mxu0 0
      %1529 = vmatprep.subr.bf16.mxu0 0
      %1530 = vmatpush1.bf16.msra.mxu0 0
      %1531 = vmatprep.mubr.bf16.mxu0 0
      %1532 = vmatmul.mubr.bf16.gmra.mrb[0].mxu0 %v1497
      %v1533 = vpop.f32.mrb[0].mxu0
      %v1534 = vadd.f32 0.0, %v1533
      %v1535 = vpop.f32.mrb[0].mxu0
      %v1536 = vpop.f32.mrb[0].mxu0
      %v1537 = vpop.f32.mrb[0].mxu0
      %1538 = vdwg.mxu0
      %v1539 = vadd.f32 %v1466, %v1534
      %v1540 = vld [vmem:[%s12] sm:$0x1]
      %v1541 = vlaneseq
      %v1542 = vshrl.u32 %v1541, 7
      %v1543 = vsub.s32 0, %v1542
      %v1544 = vrot.slane %v1540, %v1543
      %v1545 = vadd.f32 %v1539, %v1544
      %v1546 = vmax.f32 %v1545, 0.0
      %v1547 = vld [vmem:[%s12 + $0x1] sm:$0x1]
      %v1548 = vlaneseq
      %v1549 = vshrl.u32 %v1548, 7
      %v1550 = vsub.s32 0, %v1549
      %v1551 = vrot.slane %v1547, %v1550
      %v1552 = vmul.f32 %v1546, %v1551
      %v1553 = vld [vmem:[%s12 + $0x2] sm:$0x1]
      %v1554 = vlaneseq
      %v1555 = vshrl.u32 %v1554, 7
      %v1556 = vsub.s32 0, %v1555
      %v1557 = vrot.slane %v1553, %v1556
      %v1558 = vadd.f32 %v1552, %v1557
      %v1559 = vpack.c.bf16 %v1558, %v1558
      %v1560 = vld [vmem:[%s11] sm:$0xf]
      %v1561 = vld [vmem:[%s11 + $0x4] sm:$0xf]
      %v1562 = vld [vmem:[%s11 + $0x8] sm:$0xf]
      %v1563 = vld [vmem:[%s11 + $0xc] sm:$0xf]
      %v1568 = vunpack.c.l.b16 %v1560
      %v1569 = vunpack.c.l.b16 %v1561
      %v1570 = vunpack.c.l.b16 %v1562
      %v1571 = vunpack.c.l.b16 %v1563
      %v1572 = vpack.c.b16 %v1569, %v1568
      %v1573 = vpack.c.b16 %v1571, %v1570
      %v1577 = vsel %vm631, %v1559, 0
      %1579 = vmatprep.subr.bf16.mxu0 0
      %1580 = vmatpush1.bf16.msra.mxu0 %v1572
      %1581 = vmatprep.subr.bf16.mxu0 0
      %1582 = vmatpush1.bf16.msra.mxu0 %v1573
      %1583 = vmatprep.subr.bf16.mxu0 0
      %1584 = vmatpush1.bf16.msra.mxu0 0
      %1585 = vmatprep.subr.bf16.mxu0 0
      %1586 = vmatpush1.bf16.msra.mxu0 0
      %1587 = vmatprep.subr.bf16.mxu0 0
      %1588 = vmatpush1.bf16.msra.mxu0 0
      %1589 = vmatprep.subr.bf16.mxu0 0
      %1590 = vmatpush1.bf16.msra.mxu0 0
      %1591 = vmatprep.subr.bf16.mxu0 0
      %1592 = vmatpush1.bf16.msra.mxu0 0
      %1593 = vmatprep.subr.bf16.mxu0 0
      %1594 = vmatpush1.bf16.msra.mxu0 0
      %1595 = vmatprep.subr.bf16.mxu0 0
      %1596 = vmatpush1.bf16.msra.mxu0 0
      %1597 = vmatprep.subr.bf16.mxu0 0
      %1598 = vmatpush1.bf16.msra.mxu0 0
      %1599 = vmatprep.subr.bf16.mxu0 0
      %1600 = vmatpush1.bf16.msra.mxu0 0
      %1601 = vmatprep.subr.bf16.mxu0 0
      %1602 = vmatpush1.bf16.msra.mxu0 0
      %1603 = vmatprep.subr.bf16.mxu0 0
      %1604 = vmatpush1.bf16.msra.mxu0 0
      %1605 = vmatprep.subr.bf16.mxu0 0
      %1606 = vmatpush1.bf16.msra.mxu0 0
      %1607 = vmatprep.subr.bf16.mxu0 0
      %1608 = vmatpush1.bf16.msra.mxu0 0
      %1609 = vmatprep.subr.bf16.mxu0 0
      %1610 = vmatpush1.bf16.msra.mxu0 0
      %1611 = vmatprep.mubr.bf16.mxu0 0
      %1612 = vmatmul.mubr.bf16.gmra.mrb[0].mxu0 %v1577
      %v1613 = vpop.f32.mrb[0].mxu0
      %v1614 = vadd.f32 0.0, %v1613
      %v1615 = vpop.f32.mrb[0].mxu0
      %v1616 = vpop.f32.mrb[0].mxu0
      %v1617 = vpop.f32.mrb[0].mxu0
      %1618 = vdwg.mxu0
      %v1619 = vadd.f32 %v1331, %v1614
      %v1620 = vmax.f32 %v1619, 0.0
      %v1621 = vld [vmem:[%s13 + $0x1] sm:$0x1]
      %v1622 = vlaneseq
      %v1623 = vshrl.u32 %v1622, 7
      %v1624 = vsub.s32 0, %v1623
      %v1625 = vrot.slane %v1621, %v1624
      %v1626 = vmul.f32 %v1620, %v1625
      %v1627 = vld [vmem:[%s13 + $0x2] sm:$0x1]
      %v1628 = vlaneseq
      %v1629 = vshrl.u32 %v1628, 7
      %v1630 = vsub.s32 0, %v1629
      %v1631 = vrot.slane %v1627, %v1630
      %v1632 = vadd.f32 %v1626, %v1631
      %v1633 = vsel %vm631, %v1632, 0.0
      %v1634 = vrot.slane %v1633, 4
      %v1635 = vadd.f32 %v1633, %v1634
      %v1636 = vrot.slane %v1635, 2
      %v1637 = vadd.f32 %v1635, %v1636
      %v1638 = vrot.slane %v1637, 1
      %v1639 = vadd.f32 %v1637, %v1638
      %v1640 = vrcp.pop 8.0
      %v1641 = vmul.f32 %v1639, %v1640
      %v1642 = vpack.c.bf16 %v1641, %v1641
      %v1643 = vld [vmem:[%s14] sm:$0xf]
      %v1644 = vld [vmem:[%s14 + $0x4] sm:$0xf]
      %v1645 = vld [vmem:[%s14 + $0x8] sm:$0xf]
      %v1646 = vld [vmem:[%s14 + $0xc] sm:$0xf]
      %v1647 = vld [vmem:[%s15] sm:$0x1]
      %v1652 = vunpack.c.l.b16 %v1643
      %v1653 = vunpack.c.l.b16 %v1644
      %v1654 = vunpack.c.l.b16 %v1645
      %v1655 = vunpack.c.l.b16 %v1646
      %v1656 = vpack.c.b16 %v1653, %v1652
      %v1657 = vpack.c.b16 %v1655, %v1654
      %v1661 = vsel %vm631, %v1642, 0
      %1663 = vmatprep.subr.bf16.mxu0 0
      %1664 = vmatpush1.bf16.msra.mxu0 %v1656
      %1665 = vmatprep.subr.bf16.mxu0 0
      %1666 = vmatpush1.bf16.msra.mxu0 %v1657
      %1667 = vmatprep.subr.bf16.mxu0 0
      %1668 = vmatpush1.bf16.msra.mxu0 0
      %1669 = vmatprep.subr.bf16.mxu0 0
      %1670 = vmatpush1.bf16.msra.mxu0 0
      %1671 = vmatprep.subr.bf16.mxu0 0
      %1672 = vmatpush1.bf16.msra.mxu0 0
      %1673 = vmatprep.subr.bf16.mxu0 0
      %1674 = vmatpush1.bf16.msra.mxu0 0
      %1675 = vmatprep.subr.bf16.mxu0 0
      %1676 = vmatpush1.bf16.msra.mxu0 0
      %1677 = vmatprep.subr.bf16.mxu0 0
      %1678 = vmatpush1.bf16.msra.mxu0 0
      %1679 = vmatprep.subr.bf16.mxu0 0
      %1680 = vmatpush1.bf16.msra.mxu0 0
      %1681 = vmatprep.subr.bf16.mxu0 0
      %1682 = vmatpush1.bf16.msra.mxu0 0
      %1683 = vmatprep.subr.bf16.mxu0 0
      %1684 = vmatpush1.bf16.msra.mxu0 0
      %1685 = vmatprep.subr.bf16.mxu0 0
      %1686 = vmatpush1.bf16.msra.mxu0 0
      %1687 = vmatprep.subr.bf16.mxu0 0
      %1688 = vmatpush1.bf16.msra.mxu0 0
      %1689 = vmatprep.subr.bf16.mxu0 0
      %1690 = vmatpush1.bf16.msra.mxu0 0
      %1691 = vmatprep.subr.bf16.mxu0 0
      %1692 = vmatpush1.bf16.msra.mxu0 0
      %1693 = vmatprep.subr.bf16.mxu0 0
      %1694 = vmatpush1.bf16.msra.mxu0 0
      %1695 = vmatprep.mubr.bf16.mxu0 0
      %1696 = vmatmul.mubr.bf16.gmra.mrb[0].mxu0 %v1661
      %v1697 = vpop.f32.mrb[0].mxu0
      %v1698 = vadd.f32 %v1647, %v1697
      %v1699 = vpop.f32.mrb[0].mxu0
      %v1700 = vpop.f32.mrb[0].mxu0
      %v1701 = vpop.f32.mrb[0].mxu0
      %1702 = vdwg.mxu0
      %v1703 = vmax.f32 %v1698, 0.0
      %v1704 = vpack.c.bf16 %v1703, %v1703
      %v1705 = vld [vmem:[%s16] sm:$0xf]
      %v1706 = vld [vmem:[%s17] sm:$0x1]
      %vm1707 = vcmask 64512
      %v1709 = vsel %vm1707, %v1704, 0
      %vm1711 = vcmask 1043456
      %v1713 = vsel %vm1711, %v1705, 0
      %1715 = vmatprep.subr.bf16.mxu0 0
      %1716 = vmatpush1.bf16.msra.mxu0 %v1713
      %1717 = vmatprep.subr.bf16.mxu0 0
      %1718 = vmatpush1.bf16.msra.mxu0 0
      %1719 = vmatprep.subr.bf16.mxu0 0
      %1720 = vmatpush1.bf16.msra.mxu0 0
      %1721 = vmatprep.subr.bf16.mxu0 0
      %1722 = vmatpush1.bf16.msra.mxu0 0
      %1723 = vmatprep.subr.bf16.mxu0 0
      %1724 = vmatpush1.bf16.msra.mxu0 0
      %1725 = vmatprep.subr.bf16.mxu0 0
      %1726 = vmatpush1.bf16.msra.mxu0 0
      %1727 = vmatprep.subr.bf16.mxu0 0
      %1728 = vmatpush1.bf16.msra.mxu0 0
      %1729 = vmatprep.subr.bf16.mxu0 0
      %1730 = vmatpush1.bf16.msra.mxu0 0
      %1731 = vmatprep.subr.bf16.mxu0 0
      %1732 = vmatpush1.bf16.msra.mxu0 0
      %1733 = vmatprep.subr.bf16.mxu0 0
      %1734 = vmatpush1.bf16.msra.mxu0 0
      %1735 = vmatprep.subr.bf16.mxu0 0
      %1736 = vmatpush1.bf16.msra.mxu0 0
      %1737 = vmatprep.subr.bf16.mxu0 0
      %1738 = vmatpush1.bf16.msra.mxu0 0
      %1739 = vmatprep.subr.bf16.mxu0 0
      %1740 = vmatpush1.bf16.msra.mxu0 0
      %1741 = vmatprep.subr.bf16.mxu0 0
      %1742 = vmatpush1.bf16.msra.mxu0 0
      %1743 = vmatprep.subr.bf16.mxu0 0
      %1744 = vmatpush1.bf16.msra.mxu0 0
      %1745 = vmatprep.subr.bf16.mxu0 0
      %1746 = vmatpush1.bf16.msra.mxu0 0
      %1747 = vmatprep.mubr.bf16.mxu0 0
      %1748 = vmatmul.mubr.bf16.gmra.mrb[0].mxu0 %v1709
      %v1749 = vpop.f32.mrb[0].mxu0
      %v1750 = vadd.f32 %v1706, %v1749
      %v1751 = vpop.f32.mrb[0].mxu0
      %v1752 = vpop.f32.mrb[0].mxu0
      %v1753 = vpop.f32.mrb[0].mxu0
      %1754 = vdwg.mxu0
      %v1755 = vxor.u32 %v1750, 2147483648
      %v1756 = vmul.f32 %v1755, 1.442695
      %v1757 = vpow.pop %v1756
      %v1758 = vadd.f32 %v1757, 1.0
      %v1759 = vrcp.pop %v1758
      %v1760 = vmul.f32 1.0, %v1759
      %v1761 = vlaneseq
      %v1762 = vshrl.u32 %v1761, 7
      %v1763 = vsub.s32 0, %v1762
      %v1764 = vrot.slane %v1760, %v1763
      %v1765 = vmul.f32 %v1632, %v1764
      %v1766 = vadd.f32 %v1765, %v609
      %v1767 = vmax.f32 %v1766, 0.0
      %v1768 = vld [vmem:[%s17 + $0x1] sm:$0x1]
      %v1769 = vlaneseq
      %v1770 = vshrl.u32 %v1769, 7
      %v1771 = vsub.s32 0, %v1770
      %v1772 = vrot.slane %v1768, %v1771
      %v1773 = vmul.f32 %v1767, %v1772
      %v1774 = vld [vmem:[%s17 + $0x2] sm:$0x1]
      %v1775 = vlaneseq
      %v1776 = vshrl.u32 %v1775, 7
      %v1777 = vsub.s32 0, %v1776
      %v1778 = vrot.slane %v1774, %v1777
      %v1779 = vadd.f32 %v1773, %v1778
      %v1780 = vpack.c.bf16 %v1779, %v1779
      %vm1781 = vcmask 257024
      %1782 = vst.msk [vmem:[%s603] sm:$0xf] %vm1781, %v1780
      %v1783 = vld [vmem:[%s17 + $0x3] sm:$0x1]
      %v1784 = vlaneseq
      %v1785 = vshrl.u32 %v1784, 7
      %v1786 = vsub.s32 0, %v1785
      %v1787 = vrot.slane %v1783, %v1786
      %v1788 = vmul.f32 %v1779, %v1787
      %v1789 = vld [vmem:[%s17 + $0x4] sm:$0x1]
      %v1790 = vlaneseq
      %v1791 = vshrl.u32 %v1790, 7
      %v1792 = vsub.s32 0, %v1791
      %v1793 = vrot.slane %v1789, %v1792
      %v1794 = vadd.f32 %v1788, %v1793
      %v1795 = vmax.f32 %v1794, 0.0
      %v1796 = vsel %vm631, %v1795, 0.0
      %v1797 = vrot.slane %v1796, 4
      %v1798 = vadd.f32 %v1796, %v1797
      %v1799 = vrot.slane %v1798, 2
      %v1800 = vadd.f32 %v1798, %v1799
      %v1801 = vrot.slane %v1800, 1
      %v1802 = vadd.f32 %v1800, %v1801
      %v1803 = vmul.f32 %v1802, 0.125
      %1804 = vst.msk [vmem:[%s606] sm:$0x1] %vm689, %v1803
      %p1805 = scmp.lt.s32.totalorder %s31, 1
      %s1806 = scalar_select %p1805, %s31, 1
      %s1807 = smul.addr %s1806, 4
      %s1808 = scalar_lea.vmem %s18, %s1807
      %p1809 = scmp.lt.s32.totalorder %s31, 1
      %s1810 = scalar_select %p1809, %s31, 1
      %s1811 = scalar_lea.vmem %s19, %s1810
      // Predicated region
      $region93: #{_lambda_.6} parent=91 // pred_check
        %p1812 = pneg %p432
      $region94: #{_lambda_.6} parent=91 // pred_check_branch
        %1814 = sbr.rel (%p1812) target = $region96
      $region95: #{_lambda_.6} parent=91 // pred_region
        _
      $region96: #{_lambda_.6} parent=91 // pred_fallthru
        _
      // Predicated region
      $region97: #{_lambda_.6} parent=91 // pred_check
        %p1815 = pneg %p458
      $region98: #{_lambda_.6} parent=91 // pred_check_branch
        %1817 = sbr.rel (%p1815) target = $region100
      $region99: #{_lambda_.6} parent=91 // pred_region
        _
      $region100: #{_lambda_.6} parent=91 // pred_fallthru
        _
    $region92: #{_lambda_.6} parent=5 // pred_fallthru
      _
    %p1818 = scmp.le.s32.totalorder 2, %s26
    // Predicated region
    $region101: #{_lambda_.6} parent=5 // pred_check
      %p1819 = pneg %p1818
    $region102: #{_lambda_.6} parent=5 // pred_check_branch
      %1821 = sbr.rel (%p1819) target = $region104
    $region103: #{_lambda_.6} parent=5 // pred_region
      %s1822 = ssub.s32 %s26, 2
      // Predicated region
      $region105: #{_lambda_.6} parent=103 // pred_check
        %p1823 = pneg %p438
      $region106: #{_lambda_.6} parent=103 // pred_check_branch
        %1825 = sbr.rel (%p1823) target = $region108
      $region107: #{_lambda_.6} parent=103 // pred_region
        %p1826 = scmp.lt.s32.totalorder %s32, 1
        %s1827 = scalar_select %p1826, %s32, 1
        %s1828 = smul.addr %s1827, 4
        %s1829 = scalar_lea.vmem %s18, %s1828
      $region108: #{_lambda_.6} parent=103 // pred_fallthru
        _
      // Predicated region
      $region109: #{_lambda_.6} parent=103 // pred_check
        %p1830 = pneg %p464
      $region110: #{_lambda_.6} parent=103 // pred_check_branch
        %1832 = sbr.rel (%p1830) target = $region112
      $region111: #{_lambda_.6} parent=103 // pred_region
        %p1833 = scmp.lt.s32.totalorder %s32, 1
        %s1834 = scalar_select %p1833, %s32, 1
        %s1835 = scalar_lea.vmem %s19, %s1834
      $region112: #{_lambda_.6} parent=103 // pred_fallthru
        _
    $region104: #{_lambda_.6} parent=5 // pred_fallthru
      _
  $region6: #{_lambda_.6} parent=0 // loop_footer
    %s30 = sadd.s32 1, %s26
  $region7: #{_lambda_.6} parent=0 // loop_footer_branch
    %25 = sbr.rel target = $region3
  $region8: #{_lambda_.6} parent=0 // loop_exit
    _

// kernel: _lambda_.7
$region0: #{_lambda_.7}
  #allocation0 [shape = 'u32[]', space=smem, size = 0x4, offset = 0x4, fixed_abs, tag = 'smem constant byte address 0x4 - core index']
  #allocation1 [shape = 'u32[144,128]{1,0:T(1,128)}', space=vmem, size = 0x12000, scoped, tag = 'internal scratch']
  #allocation2 [shape = 'bf16[12,32]{1,0:T(8,128)(2,1)}', space=vmem, size = 0x1000, scoped, tag = 'scratch operand']
  %s0 = inlined_call_operand.vmem [shape: bf16[2,8,32], index: 0, kind: input, shape index: {}]
  %s1 = inlined_call_operand.vmem [shape: bf16[2,8,32], index: 1, kind: input, shape index: {}]
  %s2 = inlined_call_operand.vmem [shape: bf16[32,32], index: 2, kind: input, shape index: {}]
  %s3 = inlined_call_operand.vmem [shape: f32[3,32], index: 3, kind: input, shape index: {}]
  %s4 = inlined_call_operand.vmem [shape: bf16[32,32], index: 4, kind: input, shape index: {}]
  %s5 = inlined_call_operand.vmem [shape: bf16[3,32,32], index: 5, kind: input, shape index: {}]
  %s6 = inlined_call_operand.vmem [shape: bf16[32,32], index: 6, kind: input, shape index: {}]
  %s7 = inlined_call_operand.vmem [shape: f32[3,32], index: 7, kind: input, shape index: {}]
  %s8 = inlined_call_operand.vmem [shape: bf16[3,32,32], index: 8, kind: input, shape index: {}]
  %s9 = inlined_call_operand.vmem [shape: bf16[32,32], index: 9, kind: input, shape index: {}]
  %s10 = inlined_call_operand.vmem [shape: f32[3,32], index: 10, kind: input, shape index: {}]
  %s11 = inlined_call_operand.vmem [shape: bf16[3,32,32], index: 11, kind: input, shape index: {}]
  %s12 = inlined_call_operand.vmem [shape: bf16[32,32], index: 12, kind: input, shape index: {}]
  %s13 = inlined_call_operand.vmem [shape: f32[3,32], index: 13, kind: input, shape index: {}]
  %s14 = inlined_call_operand.vmem [shape: f32[3,32], index: 14, kind: input, shape index: {}]
  %s15 = inlined_call_operand.vmem [shape: bf16[32,8], index: 15, kind: input, shape index: {}]
  %s16 = inlined_call_operand.vmem [shape: f32[1,8], index: 16, kind: input, shape index: {}]
  %s17 = inlined_call_operand.vmem [shape: bf16[8,32], index: 17, kind: input, shape index: {}]
  %s18 = inlined_call_operand.vmem [shape: f32[5,32], index: 18, kind: input, shape index: {}]
  %s19 = inlined_call_operand.vmem [shape: bf16[2,8,32], index: 19, kind: output, shape index: {0}]
  %s20 = inlined_call_operand.vmem [shape: f32[2,1,32], index: 20, kind: output, shape index: {1}]
  %21 = xla_tuple %s19, %s20
  %s22 = sld [smem:[#allocation0]]
  $region117: #{_lambda_.7} parent=0
    _
  %s24 = ssub.s32 1, %s22
  %s25 = scalar_select 0, %s24, %s22
  loop: start=0, step=1, limit=4
  $region2: #{_lambda_.7} parent=0 // loop_pre_header
    _
  $region3: #{_lambda_.7} parent=0 // loop_header
    %s27 = sphi 0, %s31
    %p28 = scmp.ge.s32.totalorder %s27, 4
    %s37 = sphi 0, %s39
    %s40 = sphi 0, %s37
    %s41 = sphi 0, %s40
    %s57 = sphi 0, %s41
    %s63 = sphi 0, %s65
    %s66 = sphi 0, %s63
    %s67 = sphi 0, %s66
    %s83 = sphi 0, %s67
    %s87 = sphi 0, %s87
    %s89 = sphi 0, %s87
    %s90 = sphi 0, %s89
    %s104 = sphi 0, %s90
    %s108 = sphi 0, %s108
    %s110 = sphi 0, %s108
    %s111 = sphi 0, %s110
    %s125 = sphi 0, %s111
    %s129 = sphi 0, %s129
    %s131 = sphi 0, %s129
    %s132 = sphi 0, %s131
    %s146 = sphi 0, %s132
    %s150 = sphi 0, %s150
    %s152 = sphi 0, %s150
    %s153 = sphi 0, %s152
    %s167 = sphi 0, %s153
    %s171 = sphi 0, %s171
    %s173 = sphi 0, %s171
    %s174 = sphi 0, %s173
    %s188 = sphi 0, %s174
    %s192 = sphi 0, %s192
    %s194 = sphi 0, %s192
    %s195 = sphi 0, %s194
    %s209 = sphi 0, %s195
    %s213 = sphi 0, %s213
    %s215 = sphi 0, %s213
    %s216 = sphi 0, %s215
    %s230 = sphi 0, %s216
    %s234 = sphi 0, %s234
    %s236 = sphi 0, %s234
    %s237 = sphi 0, %s236
    %s251 = sphi 0, %s237
    %s255 = sphi 0, %s255
    %s257 = sphi 0, %s255
    %s258 = sphi 0, %s257
    %s272 = sphi 0, %s258
    %s276 = sphi 0, %s276
    %s278 = sphi 0, %s276
    %s279 = sphi 0, %s278
    %s293 = sphi 0, %s279
    %s297 = sphi 0, %s297
    %s299 = sphi 0, %s297
    %s300 = sphi 0, %s299
    %s314 = sphi 0, %s300
    %s318 = sphi 0, %s318
    %s320 = sphi 0, %s318
    %s321 = sphi 0, %s320
    %s335 = sphi 0, %s321
    %s339 = sphi 0, %s339
    %s341 = sphi 0, %s339
    %s342 = sphi 0, %s341
    %s356 = sphi 0, %s342
    %s360 = sphi 0, %s360
    %s362 = sphi 0, %s360
    %s363 = sphi 0, %s362
    %s377 = sphi 0, %s363
    %s381 = sphi 0, %s381
    %s383 = sphi 0, %s381
    %s384 = sphi 0, %s383
    %s398 = sphi 0, %s384
    %s402 = sphi 0, %s402
    %s404 = sphi 0, %s402
    %s405 = sphi 0, %s404
    %s419 = sphi 0, %s405
    %s423 = sphi 0, %s423
    %s425 = sphi 0, %s423
    %s426 = sphi 0, %s425
    %s440 = sphi 0, %s426
    %s446 = sphi 0, %s448
    %s449 = sphi 0, %s446
    %s450 = sphi 0, %s449
    %s466 = sphi 0, %s450
    %s472 = sphi 0, %s474
    %s475 = sphi 0, %s472
    %s476 = sphi 0, %s475
    %s492 = sphi 0, %s476
  $region4: #{_lambda_.7} parent=0 // loop_header_branch
    %30 = sbr.rel (%p28) target = $region8
  $region5: #{_lambda_.7} parent=0 // loop_body
    %s32 = ssub.s32 %s27, 1
    %s33 = ssub.s32 %s27, 2
    %s34 = sadd.s32 %s27, 1
    %s35 = ssub.s32 %s27, %s34
    %p36 = scmp.eq.s32.totalorder %s35, 0
    %s38 = sadd.s32 %s37, 1
    %s39 = scalar_select %p36, %s37, %s38
    %p42 = pneg %p36
    %p43 = scmp.eq.s32.totalorder %s27, 1
    %p44 = por %p42, %p43
    %p45 = scmp.ne.s32.totalorder %s37, %s40
    %p46 = scmp.eq.s32.totalorder %s27, 0
    %p47 = por %p45, %p46
    %p48 = scmp.ne.s32.totalorder %s37, %s40
    %p49 = scmp.eq.s32.totalorder %s32, 1
    %p50 = por %p48, %p49
    %p51 = scmp.ne.s32.totalorder %s40, %s41
    %p52 = scmp.eq.s32.totalorder %s32, 0
    %p53 = por %p51, %p52
    %p54 = scmp.ne.s32.totalorder %s40, %s41
    %p55 = scmp.eq.s32.totalorder %s33, 1
    %p56 = por %p54, %p55
    %p58 = scmp.ne.s32.totalorder %s41, %s57
    %p59 = scmp.eq.s32.totalorder %s33, 0
    %p60 = por %p58, %p59
    %s61 = ssub.s32 %s27, %s34
    %p62 = scmp.eq.s32.totalorder %s61, 0
    %s64 = sadd.s32 %s63, 1
    %s65 = scalar_select %p62, %s63, %s64
    %p68 = pneg %p62
    %p69 = scmp.eq.s32.totalorder %s27, 1
    %p70 = por %p68, %p69
    %p71 = scmp.ne.s32.totalorder %s63, %s66
    %p72 = scmp.eq.s32.totalorder %s27, 0
    %p73 = por %p71, %p72
    %p74 = scmp.ne.s32.totalorder %s63, %s66
    %p75 = scmp.eq.s32.totalorder %s32, 1
    %p76 = por %p74, %p75
    %p77 = scmp.ne.s32.totalorder %s66, %s67
    %p78 = scmp.eq.s32.totalorder %s32, 0
    %p79 = por %p77, %p78
    %p80 = scmp.ne.s32.totalorder %s66, %s67
    %p81 = scmp.eq.s32.totalorder %s33, 1
    %p82 = por %p80, %p81
    %p84 = scmp.ne.s32.totalorder %s67, %s83
    %p85 = scmp.eq.s32.totalorder %s33, 0
    %p86 = por %p84, %p85
    %s88 = sadd.s32 %s87, 1
    %p91 = scmp.eq.s32.totalorder %s27, 1
    %p92 = scmp.ne.s32.totalorder %s87, %s89
    %p93 = scmp.eq.s32.totalorder %s27, 0
    %p94 = por %p92, %p93
    %p95 = scmp.ne.s32.totalorder %s87, %s89
    %p96 = scmp.eq.s32.totalorder %s32, 1
    %p97 = por %p95, %p96
    %p98 = scmp.ne.s32.totalorder %s89, %s90
    %p99 = scmp.eq.s32.totalorder %s32, 0
    %p100 = por %p98, %p99
    %p101 = scmp.ne.s32.totalorder %s89, %s90
    %p102 = scmp.eq.s32.totalorder %s33, 1
    %p103 = por %p101, %p102
    %p105 = scmp.ne.s32.totalorder %s90, %s104
    %p106 = scmp.eq.s32.totalorder %s33, 0
    %p107 = por %p105, %p106
    %s109 = sadd.s32 %s108, 1
    %p112 = scmp.eq.s32.totalorder %s27, 1
    %p113 = scmp.ne.s32.totalorder %s108, %s110
    %p114 = scmp.eq.s32.totalorder %s27, 0
    %p115 = por %p113, %p114
    %p116 = scmp.ne.s32.totalorder %s108, %s110
    %p117 = scmp.eq.s32.totalorder %s32, 1
    %p118 = por %p116, %p117
    %p119 = scmp.ne.s32.totalorder %s110, %s111
    %p120 = scmp.eq.s32.totalorder %s32, 0
    %p121 = por %p119, %p120
    %p122 = scmp.ne.s32.totalorder %s110, %s111
    %p123 = scmp.eq.s32.totalorder %s33, 1
    %p124 = por %p122, %p123
    %p126 = scmp.ne.s32.totalorder %s111, %s125
    %p127 = scmp.eq.s32.totalorder %s33, 0
    %p128 = por %p126, %p127
    %s130 = sadd.s32 %s129, 1
    %p133 = scmp.eq.s32.totalorder %s27, 1
    %p134 = scmp.ne.s32.totalorder %s129, %s131
    %p135 = scmp.eq.s32.totalorder %s27, 0
    %p136 = por %p134, %p135
    %p137 = scmp.ne.s32.totalorder %s129, %s131
    %p138 = scmp.eq.s32.totalorder %s32, 1
    %p139 = por %p137, %p138
    %p140 = scmp.ne.s32.totalorder %s131, %s132
    %p141 = scmp.eq.s32.totalorder %s32, 0
    %p142 = por %p140, %p141
    %p143 = scmp.ne.s32.totalorder %s131, %s132
    %p144 = scmp.eq.s32.totalorder %s33, 1
    %p145 = por %p143, %p144
    %p147 = scmp.ne.s32.totalorder %s132, %s146
    %p148 = scmp.eq.s32.totalorder %s33, 0
    %p149 = por %p147, %p148
    %s151 = sadd.s32 %s150, 1
    %p154 = scmp.eq.s32.totalorder %s27, 1
    %p155 = scmp.ne.s32.totalorder %s150, %s152
    %p156 = scmp.eq.s32.totalorder %s27, 0
    %p157 = por %p155, %p156
    %p158 = scmp.ne.s32.totalorder %s150, %s152
    %p159 = scmp.eq.s32.totalorder %s32, 1
    %p160 = por %p158, %p159
    %p161 = scmp.ne.s32.totalorder %s152, %s153
    %p162 = scmp.eq.s32.totalorder %s32, 0
    %p163 = por %p161, %p162
    %p164 = scmp.ne.s32.totalorder %s152, %s153
    %p165 = scmp.eq.s32.totalorder %s33, 1
    %p166 = por %p164, %p165
    %p168 = scmp.ne.s32.totalorder %s153, %s167
    %p169 = scmp.eq.s32.totalorder %s33, 0
    %p170 = por %p168, %p169
    %s172 = sadd.s32 %s171, 1
    %p175 = scmp.eq.s32.totalorder %s27, 1
    %p176 = scmp.ne.s32.totalorder %s171, %s173
    %p177 = scmp.eq.s32.totalorder %s27, 0
    %p178 = por %p176, %p177
    %p179 = scmp.ne.s32.totalorder %s171, %s173
    %p180 = scmp.eq.s32.totalorder %s32, 1
    %p181 = por %p179, %p180
    %p182 = scmp.ne.s32.totalorder %s173, %s174
    %p183 = scmp.eq.s32.totalorder %s32, 0
    %p184 = por %p182, %p183
    %p185 = scmp.ne.s32.totalorder %s173, %s174
    %p186 = scmp.eq.s32.totalorder %s33, 1
    %p187 = por %p185, %p186
    %p189 = scmp.ne.s32.totalorder %s174, %s188
    %p190 = scmp.eq.s32.totalorder %s33, 0
    %p191 = por %p189, %p190
    %s193 = sadd.s32 %s192, 1
    %p196 = scmp.eq.s32.totalorder %s27, 1
    %p197 = scmp.ne.s32.totalorder %s192, %s194
    %p198 = scmp.eq.s32.totalorder %s27, 0
    %p199 = por %p197, %p198
    %p200 = scmp.ne.s32.totalorder %s192, %s194
    %p201 = scmp.eq.s32.totalorder %s32, 1
    %p202 = por %p200, %p201
    %p203 = scmp.ne.s32.totalorder %s194, %s195
    %p204 = scmp.eq.s32.totalorder %s32, 0
    %p205 = por %p203, %p204
    %p206 = scmp.ne.s32.totalorder %s194, %s195
    %p207 = scmp.eq.s32.totalorder %s33, 1
    %p208 = por %p206, %p207
    %p210 = scmp.ne.s32.totalorder %s195, %s209
    %p211 = scmp.eq.s32.totalorder %s33, 0
    %p212 = por %p210, %p211
    %s214 = sadd.s32 %s213, 1
    %p217 = scmp.eq.s32.totalorder %s27, 1
    %p218 = scmp.ne.s32.totalorder %s213, %s215
    %p219 = scmp.eq.s32.totalorder %s27, 0
    %p220 = por %p218, %p219
    %p221 = scmp.ne.s32.totalorder %s213, %s215
    %p222 = scmp.eq.s32.totalorder %s32, 1
    %p223 = por %p221, %p222
    %p224 = scmp.ne.s32.totalorder %s215, %s216
    %p225 = scmp.eq.s32.totalorder %s32, 0
    %p226 = por %p224, %p225
    %p227 = scmp.ne.s32.totalorder %s215, %s216
    %p228 = scmp.eq.s32.totalorder %s33, 1
    %p229 = por %p227, %p228
    %p231 = scmp.ne.s32.totalorder %s216, %s230
    %p232 = scmp.eq.s32.totalorder %s33, 0
    %p233 = por %p231, %p232
    %s235 = sadd.s32 %s234, 1
    %p238 = scmp.eq.s32.totalorder %s27, 1
    %p239 = scmp.ne.s32.totalorder %s234, %s236
    %p240 = scmp.eq.s32.totalorder %s27, 0
    %p241 = por %p239, %p240
    %p242 = scmp.ne.s32.totalorder %s234, %s236
    %p243 = scmp.eq.s32.totalorder %s32, 1
    %p244 = por %p242, %p243
    %p245 = scmp.ne.s32.totalorder %s236, %s237
    %p246 = scmp.eq.s32.totalorder %s32, 0
    %p247 = por %p245, %p246
    %p248 = scmp.ne.s32.totalorder %s236, %s237
    %p249 = scmp.eq.s32.totalorder %s33, 1
    %p250 = por %p248, %p249
    %p252 = scmp.ne.s32.totalorder %s237, %s251
    %p253 = scmp.eq.s32.totalorder %s33, 0
    %p254 = por %p252, %p253
    %s256 = sadd.s32 %s255, 1
    %p259 = scmp.eq.s32.totalorder %s27, 1
    %p260 = scmp.ne.s32.totalorder %s255, %s257
    %p261 = scmp.eq.s32.totalorder %s27, 0
    %p262 = por %p260, %p261
    %p263 = scmp.ne.s32.totalorder %s255, %s257
    %p264 = scmp.eq.s32.totalorder %s32, 1
    %p265 = por %p263, %p264
    %p266 = scmp.ne.s32.totalorder %s257, %s258
    %p267 = scmp.eq.s32.totalorder %s32, 0
    %p268 = por %p266, %p267
    %p269 = scmp.ne.s32.totalorder %s257, %s258
    %p270 = scmp.eq.s32.totalorder %s33, 1
    %p271 = por %p269, %p270
    %p273 = scmp.ne.s32.totalorder %s258, %s272
    %p274 = scmp.eq.s32.totalorder %s33, 0
    %p275 = por %p273, %p274
    %s277 = sadd.s32 %s276, 1
    %p280 = scmp.eq.s32.totalorder %s27, 1
    %p281 = scmp.ne.s32.totalorder %s276, %s278
    %p282 = scmp.eq.s32.totalorder %s27, 0
    %p283 = por %p281, %p282
    %p284 = scmp.ne.s32.totalorder %s276, %s278
    %p285 = scmp.eq.s32.totalorder %s32, 1
    %p286 = por %p284, %p285
    %p287 = scmp.ne.s32.totalorder %s278, %s279
    %p288 = scmp.eq.s32.totalorder %s32, 0
    %p289 = por %p287, %p288
    %p290 = scmp.ne.s32.totalorder %s278, %s279
    %p291 = scmp.eq.s32.totalorder %s33, 1
    %p292 = por %p290, %p291
    %p294 = scmp.ne.s32.totalorder %s279, %s293
    %p295 = scmp.eq.s32.totalorder %s33, 0
    %p296 = por %p294, %p295
    %s298 = sadd.s32 %s297, 1
    %p301 = scmp.eq.s32.totalorder %s27, 1
    %p302 = scmp.ne.s32.totalorder %s297, %s299
    %p303 = scmp.eq.s32.totalorder %s27, 0
    %p304 = por %p302, %p303
    %p305 = scmp.ne.s32.totalorder %s297, %s299
    %p306 = scmp.eq.s32.totalorder %s32, 1
    %p307 = por %p305, %p306
    %p308 = scmp.ne.s32.totalorder %s299, %s300
    %p309 = scmp.eq.s32.totalorder %s32, 0
    %p310 = por %p308, %p309
    %p311 = scmp.ne.s32.totalorder %s299, %s300
    %p312 = scmp.eq.s32.totalorder %s33, 1
    %p313 = por %p311, %p312
    %p315 = scmp.ne.s32.totalorder %s300, %s314
    %p316 = scmp.eq.s32.totalorder %s33, 0
    %p317 = por %p315, %p316
    %s319 = sadd.s32 %s318, 1
    %p322 = scmp.eq.s32.totalorder %s27, 1
    %p323 = scmp.ne.s32.totalorder %s318, %s320
    %p324 = scmp.eq.s32.totalorder %s27, 0
    %p325 = por %p323, %p324
    %p326 = scmp.ne.s32.totalorder %s318, %s320
    %p327 = scmp.eq.s32.totalorder %s32, 1
    %p328 = por %p326, %p327
    %p329 = scmp.ne.s32.totalorder %s320, %s321
    %p330 = scmp.eq.s32.totalorder %s32, 0
    %p331 = por %p329, %p330
    %p332 = scmp.ne.s32.totalorder %s320, %s321
    %p333 = scmp.eq.s32.totalorder %s33, 1
    %p334 = por %p332, %p333
    %p336 = scmp.ne.s32.totalorder %s321, %s335
    %p337 = scmp.eq.s32.totalorder %s33, 0
    %p338 = por %p336, %p337
    %s340 = sadd.s32 %s339, 1
    %p343 = scmp.eq.s32.totalorder %s27, 1
    %p344 = scmp.ne.s32.totalorder %s339, %s341
    %p345 = scmp.eq.s32.totalorder %s27, 0
    %p346 = por %p344, %p345
    %p347 = scmp.ne.s32.totalorder %s339, %s341
    %p348 = scmp.eq.s32.totalorder %s32, 1
    %p349 = por %p347, %p348
    %p350 = scmp.ne.s32.totalorder %s341, %s342
    %p351 = scmp.eq.s32.totalorder %s32, 0
    %p352 = por %p350, %p351
    %p353 = scmp.ne.s32.totalorder %s341, %s342
    %p354 = scmp.eq.s32.totalorder %s33, 1
    %p355 = por %p353, %p354
    %p357 = scmp.ne.s32.totalorder %s342, %s356
    %p358 = scmp.eq.s32.totalorder %s33, 0
    %p359 = por %p357, %p358
    %s361 = sadd.s32 %s360, 1
    %p364 = scmp.eq.s32.totalorder %s27, 1
    %p365 = scmp.ne.s32.totalorder %s360, %s362
    %p366 = scmp.eq.s32.totalorder %s27, 0
    %p367 = por %p365, %p366
    %p368 = scmp.ne.s32.totalorder %s360, %s362
    %p369 = scmp.eq.s32.totalorder %s32, 1
    %p370 = por %p368, %p369
    %p371 = scmp.ne.s32.totalorder %s362, %s363
    %p372 = scmp.eq.s32.totalorder %s32, 0
    %p373 = por %p371, %p372
    %p374 = scmp.ne.s32.totalorder %s362, %s363
    %p375 = scmp.eq.s32.totalorder %s33, 1
    %p376 = por %p374, %p375
    %p378 = scmp.ne.s32.totalorder %s363, %s377
    %p379 = scmp.eq.s32.totalorder %s33, 0
    %p380 = por %p378, %p379
    %s382 = sadd.s32 %s381, 1
    %p385 = scmp.eq.s32.totalorder %s27, 1
    %p386 = scmp.ne.s32.totalorder %s381, %s383
    %p387 = scmp.eq.s32.totalorder %s27, 0
    %p388 = por %p386, %p387
    %p389 = scmp.ne.s32.totalorder %s381, %s383
    %p390 = scmp.eq.s32.totalorder %s32, 1
    %p391 = por %p389, %p390
    %p392 = scmp.ne.s32.totalorder %s383, %s384
    %p393 = scmp.eq.s32.totalorder %s32, 0
    %p394 = por %p392, %p393
    %p395 = scmp.ne.s32.totalorder %s383, %s384
    %p396 = scmp.eq.s32.totalorder %s33, 1
    %p397 = por %p395, %p396
    %p399 = scmp.ne.s32.totalorder %s384, %s398
    %p400 = scmp.eq.s32.totalorder %s33, 0
    %p401 = por %p399, %p400
    %s403 = sadd.s32 %s402, 1
    %p406 = scmp.eq.s32.totalorder %s27, 1
    %p407 = scmp.ne.s32.totalorder %s402, %s404
    %p408 = scmp.eq.s32.totalorder %s27, 0
    %p409 = por %p407, %p408
    %p410 = scmp.ne.s32.totalorder %s402, %s404
    %p411 = scmp.eq.s32.totalorder %s32, 1
    %p412 = por %p410, %p411
    %p413 = scmp.ne.s32.totalorder %s404, %s405
    %p414 = scmp.eq.s32.totalorder %s32, 0
    %p415 = por %p413, %p414
    %p416 = scmp.ne.s32.totalorder %s404, %s405
    %p417 = scmp.eq.s32.totalorder %s33, 1
    %p418 = por %p416, %p417
    %p420 = scmp.ne.s32.totalorder %s405, %s419
    %p421 = scmp.eq.s32.totalorder %s33, 0
    %p422 = por %p420, %p421
    %s424 = sadd.s32 %s423, 1
    %p427 = scmp.eq.s32.totalorder %s27, 1
    %p428 = scmp.ne.s32.totalorder %s423, %s425
    %p429 = scmp.eq.s32.totalorder %s27, 0
    %p430 = por %p428, %p429
    %p431 = scmp.ne.s32.totalorder %s423, %s425
    %p432 = scmp.eq.s32.totalorder %s32, 1
    %p433 = por %p431, %p432
    %p434 = scmp.ne.s32.totalorder %s425, %s426
    %p435 = scmp.eq.s32.totalorder %s32, 0
    %p436 = por %p434, %p435
    %p437 = scmp.ne.s32.totalorder %s425, %s426
    %p438 = scmp.eq.s32.totalorder %s33, 1
    %p439 = por %p437, %p438
    %p441 = scmp.ne.s32.totalorder %s426, %s440
    %p442 = scmp.eq.s32.totalorder %s33, 0
    %p443 = por %p441, %p442
    %s444 = ssub.s32 %s27, %s34
    %p445 = scmp.eq.s32.totalorder %s444, 0
    %s447 = sadd.s32 %s446, 1
    %s448 = scalar_select %p445, %s446, %s447
    %p451 = pneg %p445
    %p452 = scmp.eq.s32.totalorder %s27, 1
    %p453 = por %p451, %p452
    %p454 = scmp.ne.s32.totalorder %s446, %s449
    %p455 = scmp.eq.s32.totalorder %s27, 0
    %p456 = por %p454, %p455
    %p457 = scmp.ne.s32.totalorder %s446, %s449
    %p458 = scmp.eq.s32.totalorder %s32, 1
    %p459 = por %p457, %p458
    %p460 = scmp.ne.s32.totalorder %s449, %s450
    %p461 = scmp.eq.s32.totalorder %s32, 0
    %p462 = por %p460, %p461
    %p463 = scmp.ne.s32.totalorder %s449, %s450
    %p464 = scmp.eq.s32.totalorder %s33, 1
    %p465 = por %p463, %p464
    %p467 = scmp.ne.s32.totalorder %s450, %s466
    %p468 = scmp.eq.s32.totalorder %s33, 0
    %p469 = por %p467, %p468
    %s470 = ssub.s32 %s27, %s34
    %p471 = scmp.eq.s32.totalorder %s470, 0
    %s473 = sadd.s32 %s472, 1
    %s474 = scalar_select %p471, %s472, %s473
    %p477 = pneg %p471
    %p478 = scmp.eq.s32.totalorder %s27, 1
    %p479 = por %p477, %p478
    %p480 = scmp.ne.s32.totalorder %s472, %s475
    %p481 = scmp.eq.s32.totalorder %s27, 0
    %p482 = por %p480, %p481
    %p483 = scmp.ne.s32.totalorder %s472, %s475
    %p484 = scmp.eq.s32.totalorder %s32, 1
    %p485 = por %p483, %p484
    %p486 = scmp.ne.s32.totalorder %s475, %s476
    %p487 = scmp.eq.s32.totalorder %s32, 0
    %p488 = por %p486, %p487
    %p489 = scmp.ne.s32.totalorder %s475, %s476
    %p490 = scmp.eq.s32.totalorder %s33, 1
    %p491 = por %p489, %p490
    %p493 = scmp.ne.s32.totalorder %s476, %s492
    %p494 = scmp.eq.s32.totalorder %s33, 0
    %p495 = por %p493, %p494
    %p496 = scmp.le.s32.totalorder 1, %s27
    %p497 = scmp.lt.s32.totalorder %s27, 3
    %p498 = pnand %p496, %p497
    %p499 = pneg %p498
    // Predicated region
    $region9: #{_lambda_.7} parent=5 // pred_check
      _
    $region10: #{_lambda_.7} parent=5 // pred_check_branch
      %501 = sbr.rel (%p498) target = $region12
    $region11: #{_lambda_.7} parent=5 // pred_region
      %s502 = ssub.s32 %s27, 1
      // Predicated region
      $region13: #{_lambda_.7} parent=11 // pred_check
        %p503 = pneg %p100
      $region14: #{_lambda_.7} parent=11 // pred_check_branch
        %505 = sbr.rel (%p503) target = $region16
      $region15: #{_lambda_.7} parent=11 // pred_region
        _
      $region16: #{_lambda_.7} parent=11 // pred_fallthru
        _
      // Predicated region
      $region17: #{_lambda_.7} parent=11 // pred_check
        %p506 = pneg %p121
      $region18: #{_lambda_.7} parent=11 // pred_check_branch
        %508 = sbr.rel (%p506) target = $region20
      $region19: #{_lambda_.7} parent=11 // pred_region
        _
      $region20: #{_lambda_.7} parent=11 // pred_fallthru
        _
      // Predicated region
      $region21: #{_lambda_.7} parent=11 // pred_check
        %p509 = pneg %p142
      $region22: #{_lambda_.7} parent=11 // pred_check_branch
        %511 = sbr.rel (%p509) target = $region24
      $region23: #{_lambda_.7} parent=11 // pred_region
        _
      $region24: #{_lambda_.7} parent=11 // pred_fallthru
        _
      // Predicated region
      $region25: #{_lambda_.7} parent=11 // pred_check
        %p512 = pneg %p163
      $region26: #{_lambda_.7} parent=11 // pred_check_branch
        %514 = sbr.rel (%p512) target = $region28
      $region27: #{_lambda_.7} parent=11 // pred_region
        _
      $region28: #{_lambda_.7} parent=11 // pred_fallthru
        _
      // Predicated region
      $region29: #{_lambda_.7} parent=11 // pred_check
        %p515 = pneg %p184
      $region30: #{_lambda_.7} parent=11 // pred_check_branch
        %517 = sbr.rel (%p515) target = $region32
      $region31: #{_lambda_.7} parent=11 // pred_region
        _
      $region32: #{_lambda_.7} parent=11 // pred_fallthru
        _
      // Predicated region
      $region33: #{_lambda_.7} parent=11 // pred_check
        %p518 = pneg %p205
      $region34: #{_lambda_.7} parent=11 // pred_check_branch
        %520 = sbr.rel (%p518) target = $region36
      $region35: #{_lambda_.7} parent=11 // pred_region
        _
      $region36: #{_lambda_.7} parent=11 // pred_fallthru
        _
      // Predicated region
      $region37: #{_lambda_.7} parent=11 // pred_check
        %p521 = pneg %p226
      $region38: #{_lambda_.7} parent=11 // pred_check_branch
        %523 = sbr.rel (%p521) target = $region40
      $region39: #{_lambda_.7} parent=11 // pred_region
        _
      $region40: #{_lambda_.7} parent=11 // pred_fallthru
        _
      // Predicated region
      $region41: #{_lambda_.7} parent=11 // pred_check
        %p524 = pneg %p247
      $region42: #{_lambda_.7} parent=11 // pred_check_branch
        %526 = sbr.rel (%p524) target = $region44
      $region43: #{_lambda_.7} parent=11 // pred_region
        _
      $region44: #{_lambda_.7} parent=11 // pred_fallthru
        _
      // Predicated region
      $region45: #{_lambda_.7} parent=11 // pred_check
        %p527 = pneg %p268
      $region46: #{_lambda_.7} parent=11 // pred_check_branch
        %529 = sbr.rel (%p527) target = $region48
      $region47: #{_lambda_.7} parent=11 // pred_region
        _
      $region48: #{_lambda_.7} parent=11 // pred_fallthru
        _
      // Predicated region
      $region49: #{_lambda_.7} parent=11 // pred_check
        %p530 = pneg %p289
      $region50: #{_lambda_.7} parent=11 // pred_check_branch
        %532 = sbr.rel (%p530) target = $region52
      $region51: #{_lambda_.7} parent=11 // pred_region
        _
      $region52: #{_lambda_.7} parent=11 // pred_fallthru
        _
      // Predicated region
      $region53: #{_lambda_.7} parent=11 // pred_check
        %p533 = pneg %p310
      $region54: #{_lambda_.7} parent=11 // pred_check_branch
        %535 = sbr.rel (%p533) target = $region56
      $region55: #{_lambda_.7} parent=11 // pred_region
        _
      $region56: #{_lambda_.7} parent=11 // pred_fallthru
        _
      // Predicated region
      $region57: #{_lambda_.7} parent=11 // pred_check
        %p536 = pneg %p331
      $region58: #{_lambda_.7} parent=11 // pred_check_branch
        %538 = sbr.rel (%p536) target = $region60
      $region59: #{_lambda_.7} parent=11 // pred_region
        _
      $region60: #{_lambda_.7} parent=11 // pred_fallthru
        _
      // Predicated region
      $region61: #{_lambda_.7} parent=11 // pred_check
        %p539 = pneg %p352
      $region62: #{_lambda_.7} parent=11 // pred_check_branch
        %541 = sbr.rel (%p539) target = $region64
      $region63: #{_lambda_.7} parent=11 // pred_region
        _
      $region64: #{_lambda_.7} parent=11 // pred_fallthru
        _
      // Predicated region
      $region65: #{_lambda_.7} parent=11 // pred_check
        %p542 = pneg %p373
      $region66: #{_lambda_.7} parent=11 // pred_check_branch
        %544 = sbr.rel (%p542) target = $region68
      $region67: #{_lambda_.7} parent=11 // pred_region
        _
      $region68: #{_lambda_.7} parent=11 // pred_fallthru
        _
      // Predicated region
      $region69: #{_lambda_.7} parent=11 // pred_check
        %p545 = pneg %p394
      $region70: #{_lambda_.7} parent=11 // pred_check_branch
        %547 = sbr.rel (%p545) target = $region72
      $region71: #{_lambda_.7} parent=11 // pred_region
        _
      $region72: #{_lambda_.7} parent=11 // pred_fallthru
        _
      // Predicated region
      $region73: #{_lambda_.7} parent=11 // pred_check
        %p548 = pneg %p415
      $region74: #{_lambda_.7} parent=11 // pred_check_branch
        %550 = sbr.rel (%p548) target = $region76
      $region75: #{_lambda_.7} parent=11 // pred_region
        _
      $region76: #{_lambda_.7} parent=11 // pred_fallthru
        _
      // Predicated region
      $region77: #{_lambda_.7} parent=11 // pred_check
        %p551 = pneg %p436
      $region78: #{_lambda_.7} parent=11 // pred_check_branch
        %553 = sbr.rel (%p551) target = $region80
      $region79: #{_lambda_.7} parent=11 // pred_region
        _
      $region80: #{_lambda_.7} parent=11 // pred_fallthru
        _
    $region12: #{_lambda_.7} parent=5 // pred_fallthru
      _
    %p554 = scmp.lt.s32.totalorder %s27, 2
    // Predicated region
    $region81: #{_lambda_.7} parent=5 // pred_check
      %p555 = pneg %p554
    $region82: #{_lambda_.7} parent=5 // pred_check_branch
      %557 = sbr.rel (%p555) target = $region84
    $region83: #{_lambda_.7} parent=5 // pred_region
      // Predicated region
      $region85: #{_lambda_.7} parent=83 // pred_check
        %p558 = pneg %p47
      $region86: #{_lambda_.7} parent=83 // pred_check_branch
        %560 = sbr.rel (%p558) target = $region88
      $region87: #{_lambda_.7} parent=83 // pred_region
        %p561 = scmp.lt.s32.totalorder %s27, 1
        %s562 = scalar_select %p561, %s27, 1
        %s563 = smul.addr %s562, 4
        %s564 = scalar_lea.vmem %s0, %s563
      $region88: #{_lambda_.7} parent=83 // pred_fallthru
        _
      // Predicated region
      $region89: #{_lambda_.7} parent=83 // pred_check
        %p565 = pneg %p73
      $region90: #{_lambda_.7} parent=83 // pred_check_branch
        %567 = sbr.rel (%p565) target = $region92
      $region91: #{_lambda_.7} parent=83 // pred_region
        %p568 = scmp.lt.s32.totalorder %s27, 1
        %s569 = scalar_select %p568, %s27, 1
        %s570 = smul.addr %s569, 4
        %s571 = scalar_lea.vmem %s1, %s570
      $region92: #{_lambda_.7} parent=83 // pred_fallthru
        _
    $region84: #{_lambda_.7} parent=5 // pred_fallthru
      _
    %p572 = scmp.le.s32.totalorder 1, %s27
    %p573 = scmp.lt.s32.totalorder %s27, 3
    %p574 = pnand %p572, %p573
    %p575 = pneg %p574
    // Predicated region
    $region93: #{_lambda_.7} parent=5 // pred_check
      _
    $region94: #{_lambda_.7} parent=5 // pred_check_branch
      %577 = sbr.rel (%p574) target = $region96
    $region95: #{_lambda_.7} parent=5 // pred_region
      %s578 = ssub.s32 %s27, 1
      %p579 = scmp.lt.s32.totalorder %s32, 1
      %s580 = scalar_select %p579, %s32, 1
      %s581 = smul.addr %s580, 4
      %s582 = scalar_lea.vmem %s0, %s581
      %p583 = pneg %p53
      %p584 = pneg %p50
      %p585 = scmp.lt.s32.totalorder %s32, 1
      %s586 = scalar_select %p585, %s32, 1
      %s587 = smul.addr %s586, 4
      %s588 = scalar_lea.vmem %s1, %s587
      %p589 = pneg %p79
      %p590 = pneg %p76
      %p591 = pneg %p100
      %p592 = pneg %p97
      %p593 = pneg %p121
      %p594 = pneg %p118
      %p595 = pneg %p142
      %p596 = pneg %p139
      %p597 = pneg %p163
      %p598 = pneg %p160
      %p599 = pneg %p184
      %p600 = pneg %p181
      %p601 = pneg %p205
      %p602 = pneg %p202
      %p603 = pneg %p226
      %p604 = pneg %p223
      %p605 = pneg %p247
      %p606 = pneg %p244
      %p607 = pneg %p268
      %p608 = pneg %p265
      %p609 = pneg %p289
      %p610 = pneg %p286
      %p611 = pneg %p310
      %p612 = pneg %p307
      %p613 = pneg %p331
      %p614 = pneg %p328
      %p615 = pneg %p352
      %p616 = pneg %p349
      %p617 = pneg %p373
      %p618 = pneg %p370
      %p619 = pneg %p394
      %p620 = pneg %p391
      %p621 = pneg %p415
      %p622 = pneg %p412
      %p623 = pneg %p436
      %p624 = pneg %p433
      %p625 = pneg %p462
      %p626 = pneg %p459
      %p627 = scmp.lt.s32.totalorder %s32, 1
      %s628 = scalar_select %p627, %s32, 1
      %s629 = smul.addr %s628, 4
      %s630 = scalar_lea.vmem %s19, %s629
      %p631 = pneg %p488
      %p632 = pneg %p485
      %p633 = scmp.lt.s32.totalorder %s32, 1
      %s634 = scalar_select %p633, %s32, 1
      %s635 = scalar_lea.vmem %s20, %s634
      %p636 = scmp.lt.s32.totalorder %s32, 1
      %s637 = scalar_select %p636, %s32, 1
      %s638 = smul.addr %s637, 4
      %s639 = scalar_lea.vmem %s0, %s638
      %p640 = scmp.lt.s32.totalorder %s32, 1
      %s641 = scalar_select %p640, %s32, 1
      %s642 = smul.addr %s641, 4
      %s643 = scalar_lea.vmem %s1, %s642
      %p644 = scmp.lt.s32.totalorder %s32, 1
      %s645 = scalar_select %p644, %s32, 1
      %s646 = smul.addr %s645, 4
      %s647 = scalar_lea.vmem %s19, %s646
      %p648 = scmp.lt.s32.totalorder %s32, 1
      %s649 = scalar_select %p648, %s32, 1
      %s650 = scalar_lea.vmem %s20, %s649
      %v652 = vld [vmem:[%s639] sm:$0xf]
      %v653 = vunpack.c.l.bf16 %v652
      %v654 = vld [vmem:[%s643] sm:$0xf]
      %v655 = vunpack.c.l.bf16 %v654
      %v656 = vadd.f32 %v653, %v655
      %v657 = vpack.c.bf16 %v656, %v656
      %v658 = vld [vmem:[%s2] sm:$0xf]
      %v659 = vld [vmem:[%s2 + $0x4] sm:$0xf]
      %v660 = vld [vmem:[%s2 + $0x8] sm:$0xf]
      %v661 = vld [vmem:[%s2 + $0xc] sm:$0xf]
      %v662 = vld [vmem:[%s3] sm:$0x1]
      %v663 = vlaneseq
      %v664 = vshrl.u32 %v663, 7
      %v665 = vsub.s32 0, %v664
      %v666 = vrot.slane %v662, %v665
      %v671 = vunpack.c.l.b16 %v658
      %v672 = vunpack.c.l.b16 %v659
      %v673 = vunpack.c.l.b16 %v660
      %v674 = vunpack.c.l.b16 %v661
      %v675 = vpack.c.b16 %v672, %v671
      %v676 = vpack.c.b16 %v674, %v673
      %vm679 = vcmask 261120
      %v681 = vsel %vm679, %v657, 0
      %683 = vmatprep.subr.bf16.mxu0 0
      %684 = vmatpush1.bf16.msra.mxu0 %v675
      %685 = vmatprep.subr.bf16.mxu0 0
      %686 = vmatpush1.bf16.msra.mxu0 %v676
      %687 = vmatprep.subr.bf16.mxu0 0
      %688 = vmatpush1.bf16.msra.mxu0 0
      %689 = vmatprep.subr.bf16.mxu0 0
      %690 = vmatpush1.bf16.msra.mxu0 0
      %691 = vmatprep.subr.bf16.mxu0 0
      %692 = vmatpush1.bf16.msra.mxu0 0
      %693 = vmatprep.subr.bf16.mxu0 0
      %694 = vmatpush1.bf16.msra.mxu0 0
      %695 = vmatprep.subr.bf16.mxu0 0
      %696 = vmatpush1.bf16.msra.mxu0 0
      %697 = vmatprep.subr.bf16.mxu0 0
      %698 = vmatpush1.bf16.msra.mxu0 0
      %699 = vmatprep.subr.bf16.mxu0 0
      %700 = vmatpush1.bf16.msra.mxu0 0
      %701 = vmatprep.subr.bf16.mxu0 0
      %702 = vmatpush1.bf16.msra.mxu0 0
      %703 = vmatprep.subr.bf16.mxu0 0
      %704 = vmatpush1.bf16.msra.mxu0 0
      %705 = vmatprep.subr.bf16.mxu0 0
      %706 = vmatpush1.bf16.msra.mxu0 0
      %707 = vmatprep.subr.bf16.mxu0 0
      %708 = vmatpush1.bf16.msra.mxu0 0
      %709 = vmatprep.subr.bf16.mxu0 0
      %710 = vmatpush1.bf16.msra.mxu0 0
      %711 = vmatprep.subr.bf16.mxu0 0
      %712 = vmatpush1.bf16.msra.mxu0 0
      %713 = vmatprep.subr.bf16.mxu0 0
      %714 = vmatpush1.bf16.msra.mxu0 0
      %715 = vmatprep.mubr.bf16.mxu0 0
      %716 = vmatmul.mubr.bf16.gmra.mrb[0].mxu0 %v681
      %v717 = vpop.f32.mrb[0].mxu0
      %v718 = vadd.f32 %v666, %v717
      %v719 = vpop.f32.mrb[0].mxu0
      %v720 = vpop.f32.mrb[0].mxu0
      %v721 = vpop.f32.mrb[0].mxu0
      %722 = vdwg.mxu0
      %v723 = vmax.f32 %v718, 0.0
      %v724 = vld [vmem:[%s3 + $0x1] sm:$0x1]
      %v725 = vlaneseq
      %v726 = vshrl.u32 %v725, 7
      %v727 = vsub.s32 0, %v726
      %v728 = vrot.slane %v724, %v727
      %v729 = vmul.f32 %v723, %v728
      %v730 = vld [vmem:[%s3 + $0x2] sm:$0x1]
      %v731 = vlaneseq
      %v732 = vshrl.u32 %v731, 7
      %v733 = vsub.s32 0, %v732
      %v734 = vrot.slane %v730, %v733
      %v735 = vadd.f32 %v729, %v734
      %v736 = vpack.c.bf16 %v735, %v735
      %vm737 = vcmask 253952
      %738 = vst.msk [vmem:[#allocation2] sm:$0x1] %vm737, 0
      %vm739 = vcmask 254977
      %740 = vst.msk [vmem:[#allocation2 + $0x4] sm:$0x2] %vm739, 0
      %v742 = vunpack.c.l.b16 %v736
      %v743 = vpack.c.b16 %v742, %v742
      %v744 = vrot.slane %v743, 7
      %v745 = vrot.slane %v744, 4
      %vm748 = vcmask 257025
      %749 = vst.msk [vmem:[#allocation2] sm:$0xe] %vm748, %v744
      %750 = vst.msk [vmem:[#allocation2 + $0x4] sm:$0x1] %vm737, %v745
      %v751 = vld [vmem:[%s4] sm:$0xf]
      %v752 = vld [vmem:[%s4 + $0x4] sm:$0xf]
      %v753 = vld [vmem:[%s4 + $0x8] sm:$0xf]
      %v754 = vld [vmem:[%s4 + $0xc] sm:$0xf]
      %v755 = vld [vmem:[%s14] sm:$0x1]
      %v756 = vlaneseq
      %v757 = vshrl.u32 %v756, 7
      %v758 = vsub.s32 0, %v757
      %v759 = vrot.slane %v755, %v758
      %v764 = vunpack.c.l.b16 %v751
      %v765 = vunpack.c.l.b16 %v752
      %v766 = vunpack.c.l.b16 %v753
      %v767 = vunpack.c.l.b16 %v754
      %v768 = vpack.c.b16 %v765, %v764
      %v769 = vpack.c.b16 %v767, %v766
      %v773 = vsel %vm679, %v736, 0
      %775 = vmatprep.subr.bf16.mxu0 0
      %776 = vmatpush1.bf16.msra.mxu0 %v768
      %777 = vmatprep.subr.bf16.mxu0 0
      %778 = vmatpush1.bf16.msra.mxu0 %v769
      %779 = vmatprep.subr.bf16.mxu0 0
      %780 = vmatpush1.bf16.msra.mxu0 0
      %781 = vmatprep.subr.bf16.mxu0 0
      %782 = vmatpush1.bf16.msra.mxu0 0
      %783 = vmatprep.subr.bf16.mxu0 0
      %784 = vmatpush1.bf16.msra.mxu0 0
      %785 = vmatprep.subr.bf16.mxu0 0
      %786 = vmatpush1.bf16.msra.mxu0 0
      %787 = vmatprep.subr.bf16.mxu0 0
      %788 = vmatpush1.bf16.msra.mxu0 0
      %789 = vmatprep.subr.bf16.mxu0 0
      %790 = vmatpush1.bf16.msra.mxu0 0
      %791 = vmatprep.subr.bf16.mxu0 0
      %792 = vmatpush1.bf16.msra.mxu0 0
      %793 = vmatprep.subr.bf16.mxu0 0
      %794 = vmatpush1.bf16.msra.mxu0 0
      %795 = vmatprep.subr.bf16.mxu0 0
      %796 = vmatpush1.bf16.msra.mxu0 0
      %797 = vmatprep.subr.bf16.mxu0 0
      %798 = vmatpush1.bf16.msra.mxu0 0
      %799 = vmatprep.subr.bf16.mxu0 0
      %800 = vmatpush1.bf16.msra.mxu0 0
      %801 = vmatprep.subr.bf16.mxu0 0
      %802 = vmatpush1.bf16.msra.mxu0 0
      %803 = vmatprep.subr.bf16.mxu0 0
      %804 = vmatpush1.bf16.msra.mxu0 0
      %805 = vmatprep.subr.bf16.mxu0 0
      %806 = vmatpush1.bf16.msra.mxu0 0
      %807 = vmatprep.mubr.bf16.mxu0 0
      %808 = vmatmul.mubr.bf16.gmra.mrb[0].mxu0 %v773
      %v809 = vpop.f32.mrb[0].mxu0
      %v810 = vadd.f32 %v759, %v809
      %v811 = vpop.f32.mrb[0].mxu0
      %v812 = vpop.f32.mrb[0].mxu0
      %v813 = vpop.f32.mrb[0].mxu0
      %814 = vdwg.mxu0
      %v815 = vld [vmem:[#allocation2] sm:$0xf]
      %v816 = vld [vmem:[%s5] sm:$0xf]
      %v817 = vld [vmem:[%s5 + $0x4] sm:$0xf]
      %v818 = vld [vmem:[%s5 + $0x8] sm:$0xf]
      %v819 = vld [vmem:[%s5 + $0xc] sm:$0xf]
      %v820 = vld [vmem:[#allocation2] sm:$0xe]
      %v821 = vld [vmem:[#allocation2 + $0x4] sm:$0x1]
      %s822 = scalar_lea.vmem %s5, 16
      %v823 = vld [vmem:[%s822] sm:$0xf]
      %v824 = vld [vmem:[%s822 + $0x4] sm:$0xf]
      %v825 = vld [vmem:[%s822 + $0x8] sm:$0xf]
      %v826 = vld [vmem:[%s822 + $0xc] sm:$0xf]
      %v829 = vunpack.c.l.b16 %v820
      %v830 = vunpack.c.l.b16 %v821
      %v831 = vpack.c.b16 %v830, %v829
      %v832 = vrot.slane %v831, 1
      %v837 = vunpack.c.l.b16 %v823
      %v838 = vunpack.c.l.b16 %v824
      %v839 = vunpack.c.l.b16 %v825
      %v840 = vunpack.c.l.b16 %v826
      %v841 = vpack.c.b16 %v838, %v837
      %v842 = vpack.c.b16 %v840, %v839
      %v846 = vsel %vm679, %v832, 0
      %848 = vmatprep.subr.bf16.mxu0 0
      %849 = vmatpush1.bf16.msra.mxu0 %v841
      %850 = vmatprep.subr.bf16.mxu0 0
      %851 = vmatpush1.bf16.msra.mxu0 %v842
      %852 = vmatprep.subr.bf16.mxu0 0
      %853 = vmatpush1.bf16.msra.mxu0 0
      %854 = vmatprep.subr.bf16.mxu0 0
      %855 = vmatpush1.bf16.msra.mxu0 0
      %856 = vmatprep.subr.bf16.mxu0 0
      %857 = vmatpush1.bf16.msra.mxu0 0
      %858 = vmatprep.subr.bf16.mxu0 0
      %859 = vmatpush1.bf16.msra.mxu0 0
      %860 = vmatprep.subr.bf16.mxu0 0
      %861 = vmatpush1.bf16.msra.mxu0 0
      %862 = vmatprep.subr.bf16.mxu0 0
      %863 = vmatpush1.bf16.msra.mxu0 0
      %864 = vmatprep.subr.bf16.mxu0 0
      %865 = vmatpush1.bf16.msra.mxu0 0
      %866 = vmatprep.subr.bf16.mxu0 0
      %867 = vmatpush1.bf16.msra.mxu0 0
      %868 = vmatprep.subr.bf16.mxu0 0
      %869 = vmatpush1.bf16.msra.mxu0 0
      %870 = vmatprep.subr.bf16.mxu0 0
      %871 = vmatpush1.bf16.msra.mxu0 0
      %872 = vmatprep.subr.bf16.mxu0 0
      %873 = vmatpush1.bf16.msra.mxu0 0
      %874 = vmatprep.subr.bf16.mxu0 0
      %875 = vmatpush1.bf16.msra.mxu0 0
      %876 = vmatprep.subr.bf16.mxu0 0
      %877 = vmatpush1.bf16.msra.mxu0 0
      %878 = vmatprep.subr.bf16.mxu0 0
      %879 = vmatpush1.bf16.msra.mxu0 0
      %880 = vmatprep.mubr.bf16.mxu0 0
      %881 = vmatmul.mubr.bf16.gmra.mrb[0].mxu0 %v846
      %v882 = vpop.f32.mrb[0].mxu0
      %v883 = vadd.f32 0.0, %v882
      %v884 = vpop.f32.mrb[0].mxu0
      %v885 = vpop.f32.mrb[0].mxu0
      %v886 = vpop.f32.mrb[0].mxu0
      %887 = vdwg.mxu0
      %v892 = vunpack.c.l.b16 %v816
      %v893 = vunpack.c.l.b16 %v817
      %v894 = vunpack.c.l.b16 %v818
      %v895 = vunpack.c.l.b16 %v819
      %v896 = vpack.c.b16 %v893, %v892
      %v897 = vpack.c.b16 %v895, %v894
      %v901 = vsel %vm679, %v815, 0
      %903 = vmatprep.subr.bf16.mxu0 0
      %904 = vmatpush1.bf16.msra.mxu0 %v896
      %905 = vmatprep.subr.bf16.mxu0 0
      %906 = vmatpush1.bf16.msra.mxu0 %v897
      %907 = vmatprep.subr.bf16.mxu0 0
      %908 = vmatpush1.bf16.msra.mxu0 0
      %909 = vmatprep.subr.bf16.mxu0 0
      %910 = vmatpush1.bf16.msra.mxu0 0
      %911 = vmatprep.subr.bf16.mxu0 0
      %912 = vmatpush1.bf16.msra.mxu0 0
      %913 = vmatprep.subr.bf16.mxu0 0
      %914 = vmatpush1.bf16.msra.mxu0 0
      %915 = vmatprep.subr.bf16.mxu0 0
      %916 = vmatpush1.bf16.msra.mxu0 0
      %917 = vmatprep.subr.bf16.mxu0 0
      %918 = vmatpush1.bf16.msra.mxu0 0
      %919 = vmatprep.subr.bf16.mxu0 0
      %920 = vmatpush1.bf16.msra.mxu0 0
      %921 = vmatprep.subr.bf16.mxu0 0
      %922 = vmatpush1.bf16.msra.mxu0 0
      %923 = vmatprep.subr.bf16.mxu0 0
      %924 = vmatpush1.bf16.msra.mxu0 0
      %925 = vmatprep.subr.bf16.mxu0 0
      %926 = vmatpush1.bf16.msra.mxu0 0
      %927 = vmatprep.subr.bf16.mxu0 0
      %928 = vmatpush1.bf16.msra.mxu0 0
      %929 = vmatprep.subr.bf16.mxu0 0
      %930 = vmatpush1.bf16.msra.mxu0 0
      %931 = vmatprep.subr.bf16.mxu0 0
      %932 = vmatpush1.bf16.msra.mxu0 0
      %933 = vmatprep.subr.bf16.mxu0 0
      %934 = vmatpush1.bf16.msra.mxu0 0
      %935 = vmatprep.mubr.bf16.mxu0 0
      %936 = vmatmul.mubr.bf16.gmra.mrb[0].mxu0 %v901
      %v937 = vpop.f32.mrb[0].mxu0
      %v938 = vadd.f32 %v883, %v937
      %v939 = vpop.f32.mrb[0].mxu0
      %v940 = vpop.f32.mrb[0].mxu0
      %v941 = vpop.f32.mrb[0].mxu0
      %942 = vdwg.mxu0
      %v943 = vld [vmem:[#allocation2] sm:$0xc]
      %v944 = vld [vmem:[#allocation2 + $0x4] sm:$0x3]
      %s945 = scalar_lea.vmem %s5, 32
      %v946 = vld [vmem:[%s945] sm:$0xf]
      %v947 = vld [vmem:[%s945 + $0x4] sm:$0xf]
      %v948 = vld [vmem:[%s945 + $0x8] sm:$0xf]
      %v949 = vld [vmem:[%s945 + $0xc] sm:$0xf]
      %v952 = vunpack.c.l.b16 %v943
      %v953 = vunpack.c.l.b16 %v944
      %v954 = vpack.c.b16 %v953, %v952
      %v955 = vrot.slane %v954, 2
      %v960 = vunpack.c.l.b16 %v946
      %v961 = vunpack.c.l.b16 %v947
      %v962 = vunpack.c.l.b16 %v948
      %v963 = vunpack.c.l.b16 %v949
      %v964 = vpack.c.b16 %v961, %v960
      %v965 = vpack.c.b16 %v963, %v962
      %v969 = vsel %vm679, %v955, 0
      %971 = vmatprep.subr.bf16.mxu0 0
      %972 = vmatpush1.bf16.msra.mxu0 %v964
      %973 = vmatprep.subr.bf16.mxu0 0
      %974 = vmatpush1.bf16.msra.mxu0 %v965
      %975 = vmatprep.subr.bf16.mxu0 0
      %976 = vmatpush1.bf16.msra.mxu0 0
      %977 = vmatprep.subr.bf16.mxu0 0
      %978 = vmatpush1.bf16.msra.mxu0 0
      %979 = vmatprep.subr.bf16.mxu0 0
      %980 = vmatpush1.bf16.msra.mxu0 0
      %981 = vmatprep.subr.bf16.mxu0 0
      %982 = vmatpush1.bf16.msra.mxu0 0
      %983 = vmatprep.subr.bf16.mxu0 0
      %984 = vmatpush1.bf16.msra.mxu0 0
      %985 = vmatprep.subr.bf16.mxu0 0
      %986 = vmatpush1.bf16.msra.mxu0 0
      %987 = vmatprep.subr.bf16.mxu0 0
      %988 = vmatpush1.bf16.msra.mxu0 0
      %989 = vmatprep.subr.bf16.mxu0 0
      %990 = vmatpush1.bf16.msra.mxu0 0
      %991 = vmatprep.subr.bf16.mxu0 0
      %992 = vmatpush1.bf16.msra.mxu0 0
      %993 = vmatprep.subr.bf16.mxu0 0
      %994 = vmatpush1.bf16.msra.mxu0 0
      %995 = vmatprep.subr.bf16.mxu0 0
      %996 = vmatpush1.bf16.msra.mxu0 0
      %997 = vmatprep.subr.bf16.mxu0 0
      %998 = vmatpush1.bf16.msra.mxu0 0
      %999 = vmatprep.subr.bf16.mxu0 0
      %1000 = vmatpush1.bf16.msra.mxu0 0
      %1001 = vmatprep.subr.bf16.mxu0 0
      %1002 = vmatpush1.bf16.msra.mxu0 0
      %1003 = vmatprep.mubr.bf16.mxu0 0
      %1004 = vmatmul.mubr.bf16.gmra.mrb[0].mxu0 %v969
      %v1005 = vpop.f32.mrb[0].mxu0
      %v1006 = vadd.f32 0.0, %v1005
      %v1007 = vpop.f32.mrb[0].mxu0
      %v1008 = vpop.f32.mrb[0].mxu0
      %v1009 = vpop.f32.mrb[0].mxu0
      %1010 = vdwg.mxu0
      %v1011 = vadd.f32 %v938, %v1006
      %v1012 = vld [vmem:[%s7] sm:$0x1]
      %v1013 = vlaneseq
      %v1014 = vshrl.u32 %v1013, 7
      %v1015 = vsub.s32 0, %v1014
      %v1016 = vrot.slane %v1012, %v1015
      %v1017 = vadd.f32 %v1011, %v1016
      %v1018 = vmax.f32 %v1017, 0.0
      %v1019 = vld [vmem:[%s7 + $0x1] sm:$0x1]
      %v1020 = vlaneseq
      %v1021 = vshrl.u32 %v1020, 7
      %v1022 = vsub.s32 0, %v1021
      %v1023 = vrot.slane %v1019, %v1022
      %v1024 = vmul.f32 %v1018, %v1023
      %v1025 = vld [vmem:[%s7 + $0x2] sm:$0x1]
      %v1026 = vlaneseq
      %v1027 = vshrl.u32 %v1026, 7
      %v1028 = vsub.s32 0, %v1027
      %v1029 = vrot.slane %v1025, %v1028
      %v1030 = vadd.f32 %v1024, %v1029
      %v1031 = vpack.c.bf16 %v1030, %v1030
      %v1032 = vld [vmem:[%s6] sm:$0xf]
      %v1033 = vld [vmem:[%s6 + $0x4] sm:$0xf]
      %v1034 = vld [vmem:[%s6 + $0x8] sm:$0xf]
      %v1035 = vld [vmem:[%s6 + $0xc] sm:$0xf]
      %v1040 = vunpack.c.l.b16 %v1032
      %v1041 = vunpack.c.l.b16 %v1033
      %v1042 = vunpack.c.l.b16 %v1034
      %v1043 = vunpack.c.l.b16 %v1035
      %v1044 = vpack.c.b16 %v1041, %v1040
      %v1045 = vpack.c.b16 %v1043, %v1042
      %v1049 = vsel %vm679, %v1031, 0
      %1051 = vmatprep.subr.bf16.mxu0 0
      %1052 = vmatpush1.bf16.msra.mxu0 %v1044
      %1053 = vmatprep.subr.bf16.mxu0 0
      %1054 = vmatpush1.bf16.msra.mxu0 %v1045
      %1055 = vmatprep.subr.bf16.mxu0 0
      %1056 = vmatpush1.bf16.msra.mxu0 0
      %1057 = vmatprep.subr.bf16.mxu0 0
      %1058 = vmatpush1.bf16.msra.mxu0 0
      %1059 = vmatprep.subr.bf16.mxu0 0
      %1060 = vmatpush1.bf16.msra.mxu0 0
      %1061 = vmatprep.subr.bf16.mxu0 0
      %1062 = vmatpush1.bf16.msra.mxu0 0
      %1063 = vmatprep.subr.bf16.mxu0 0
      %1064 = vmatpush1.bf16.msra.mxu0 0
      %1065 = vmatprep.subr.bf16.mxu0 0
      %1066 = vmatpush1.bf16.msra.mxu0 0
      %1067 = vmatprep.subr.bf16.mxu0 0
      %1068 = vmatpush1.bf16.msra.mxu0 0
      %1069 = vmatprep.subr.bf16.mxu0 0
      %1070 = vmatpush1.bf16.msra.mxu0 0
      %1071 = vmatprep.subr.bf16.mxu0 0
      %1072 = vmatpush1.bf16.msra.mxu0 0
      %1073 = vmatprep.subr.bf16.mxu0 0
      %1074 = vmatpush1.bf16.msra.mxu0 0
      %1075 = vmatprep.subr.bf16.mxu0 0
      %1076 = vmatpush1.bf16.msra.mxu0 0
      %1077 = vmatprep.subr.bf16.mxu0 0
      %1078 = vmatpush1.bf16.msra.mxu0 0
      %1079 = vmatprep.subr.bf16.mxu0 0
      %1080 = vmatpush1.bf16.msra.mxu0 0
      %1081 = vmatprep.subr.bf16.mxu0 0
      %1082 = vmatpush1.bf16.msra.mxu0 0
      %1083 = vmatprep.mubr.bf16.mxu0 0
      %1084 = vmatmul.mubr.bf16.gmra.mrb[0].mxu0 %v1049
      %v1085 = vpop.f32.mrb[0].mxu0
      %v1086 = vadd.f32 0.0, %v1085
      %v1087 = vpop.f32.mrb[0].mxu0
      %v1088 = vpop.f32.mrb[0].mxu0
      %v1089 = vpop.f32.mrb[0].mxu0
      %1090 = vdwg.mxu0
      %v1091 = vadd.f32 %v810, %v1086
      %v1093 = vunpack.c.l.b16 %v1031
      %v1094 = vpack.c.b16 %v1093, %v1093
      %v1095 = vrot.slane %v1094, 7
      %v1096 = vrot.slane %v1095, 4
      %vm1099 = vcmask 125953
      %1100 = vst.msk [vmem:[#allocation2] sm:$0xe] %vm1099, %v1095
      %vm1101 = vcmask 122880
      %1102 = vst.msk [vmem:[#allocation2 + $0x4] sm:$0x1] %vm1101, %v1096
      %v1103 = vld [vmem:[#allocation2] sm:$0xf]
      %v1104 = vld [vmem:[%s8] sm:$0xf]
      %v1105 = vld [vmem:[%s8 + $0x4] sm:$0xf]
      %v1106 = vld [vmem:[%s8 + $0x8] sm:$0xf]
      %v1107 = vld [vmem:[%s8 + $0xc] sm:$0xf]
      %v1108 = vld [vmem:[#allocation2] sm:$0xe]
      %v1109 = vld [vmem:[#allocation2 + $0x4] sm:$0x1]
      %s1110 = scalar_lea.vmem %s8, 16
      %v1111 = vld [vmem:[%s1110] sm:$0xf]
      %v1112 = vld [vmem:[%s1110 + $0x4] sm:$0xf]
      %v1113 = vld [vmem:[%s1110 + $0x8] sm:$0xf]
      %v1114 = vld [vmem:[%s1110 + $0xc] sm:$0xf]
      %v1117 = vunpack.c.l.b16 %v1108
      %v1118 = vunpack.c.l.b16 %v1109
      %v1119 = vpack.c.b16 %v1118, %v1117
      %v1120 = vrot.slane %v1119, 1
      %v1125 = vunpack.c.l.b16 %v1111
      %v1126 = vunpack.c.l.b16 %v1112
      %v1127 = vunpack.c.l.b16 %v1113
      %v1128 = vunpack.c.l.b16 %v1114
      %v1129 = vpack.c.b16 %v1126, %v1125
      %v1130 = vpack.c.b16 %v1128, %v1127
      %v1134 = vsel %vm679, %v1120, 0
      %1136 = vmatprep.subr.bf16.mxu0 0
      %1137 = vmatpush1.bf16.msra.mxu0 %v1129
      %1138 = vmatprep.subr.bf16.mxu0 0
      %1139 = vmatpush1.bf16.msra.mxu0 %v1130
      %1140 = vmatprep.subr.bf16.mxu0 0
      %1141 = vmatpush1.bf16.msra.mxu0 0
      %1142 = vmatprep.subr.bf16.mxu0 0
      %1143 = vmatpush1.bf16.msra.mxu0 0
      %1144 = vmatprep.subr.bf16.mxu0 0
      %1145 = vmatpush1.bf16.msra.mxu0 0
      %1146 = vmatprep.subr.bf16.mxu0 0
      %1147 = vmatpush1.bf16.msra.mxu0 0
      %1148 = vmatprep.subr.bf16.mxu0 0
      %1149 = vmatpush1.bf16.msra.mxu0 0
      %1150 = vmatprep.subr.bf16.mxu0 0
      %1151 = vmatpush1.bf16.msra.mxu0 0
      %1152 = vmatprep.subr.bf16.mxu0 0
      %1153 = vmatpush1.bf16.msra.mxu0 0
      %1154 = vmatprep.subr.bf16.mxu0 0
      %1155 = vmatpush1.bf16.msra.mxu0 0
      %1156 = vmatprep.subr.bf16.mxu0 0
      %1157 = vmatpush1.bf16.msra.mxu0 0
      %1158 = vmatprep.subr.bf16.mxu0 0
      %1159 = vmatpush1.bf16.msra.mxu0 0
      %1160 = vmatprep.subr.bf16.mxu0 0
      %1161 = vmatpush1.bf16.msra.mxu0 0
      %1162 = vmatprep.subr.bf16.mxu0 0
      %1163 = vmatpush1.bf16.msra.mxu0 0
      %1164 = vmatprep.subr.bf16.mxu0 0
      %1165 = vmatpush1.bf16.msra.mxu0 0
      %1166 = vmatprep.subr.bf16.mxu0 0
      %1167 = vmatpush1.bf16.msra.mxu0 0
      %1168 = vmatprep.mubr.bf16.mxu0 0
      %1169 = vmatmul.mubr.bf16.gmra.mrb[0].mxu0 %v1134
      %v1170 = vpop.f32.mrb[0].mxu0
      %v1171 = vadd.f32 0.0, %v1170
      %v1172 = vpop.f32.mrb[0].mxu0
      %v1173 = vpop.f32.mrb[0].mxu0
      %v1174 = vpop.f32.mrb[0].mxu0
      %1175 = vdwg.mxu0
      %v1180 = vunpack.c.l.b16 %v1104
      %v1181 = vunpack.c.l.b16 %v1105
      %v1182 = vunpack.c.l.b16 %v1106
      %v1183 = vunpack.c.l.b16 %v1107
      %v1184 = vpack.c.b16 %v1181, %v1180
      %v1185 = vpack.c.b16 %v1183, %v1182
      %v1189 = vsel %vm679, %v1103, 0
      %1191 = vmatprep.subr.bf16.mxu0 0
      %1192 = vmatpush1.bf16.msra.mxu0 %v1184
      %1193 = vmatprep.subr.bf16.mxu0 0
      %1194 = vmatpush1.bf16.msra.mxu0 %v1185
      %1195 = vmatprep.subr.bf16.mxu0 0
      %1196 = vmatpush1.bf16.msra.mxu0 0
      %1197 = vmatprep.subr.bf16.mxu0 0
      %1198 = vmatpush1.bf16.msra.mxu0 0
      %1199 = vmatprep.subr.bf16.mxu0 0
      %1200 = vmatpush1.bf16.msra.mxu0 0
      %1201 = vmatprep.subr.bf16.mxu0 0
      %1202 = vmatpush1.bf16.msra.mxu0 0
      %1203 = vmatprep.subr.bf16.mxu0 0
      %1204 = vmatpush1.bf16.msra.mxu0 0
      %1205 = vmatprep.subr.bf16.mxu0 0
      %1206 = vmatpush1.bf16.msra.mxu0 0
      %1207 = vmatprep.subr.bf16.mxu0 0
      %1208 = vmatpush1.bf16.msra.mxu0 0
      %1209 = vmatprep.subr.bf16.mxu0 0
      %1210 = vmatpush1.bf16.msra.mxu0 0
      %1211 = vmatprep.subr.bf16.mxu0 0
      %1212 = vmatpush1.bf16.msra.mxu0 0
      %1213 = vmatprep.subr.bf16.mxu0 0
      %1214 = vmatpush1.bf16.msra.mxu0 0
      %1215 = vmatprep.subr.bf16.mxu0 0
      %1216 = vmatpush1.bf16.msra.mxu0 0
      %1217 = vmatprep.subr.bf16.mxu0 0
      %1218 = vmatpush1.bf16.msra.mxu0 0
      %1219 = vmatprep.subr.bf16.mxu0 0
      %1220 = vmatpush1.bf16.msra.mxu0 0
      %1221 = vmatprep.subr.bf16.mxu0 0
      %1222 = vmatpush1.bf16.msra.mxu0 0
      %1223 = vmatprep.mubr.bf16.mxu0 0
      %1224 = vmatmul.mubr.bf16.gmra.mrb[0].mxu0 %v1189
      %v1225 = vpop.f32.mrb[0].mxu0
      %v1226 = vadd.f32 %v1171, %v1225
      %v1227 = vpop.f32.mrb[0].mxu0
      %v1228 = vpop.f32.mrb[0].mxu0
      %v1229 = vpop.f32.mrb[0].mxu0
      %1230 = vdwg.mxu0
      %v1231 = vld [vmem:[#allocation2] sm:$0xc]
      %v1232 = vld [vmem:[#allocation2 + $0x4] sm:$0x3]
      %s1233 = scalar_lea.vmem %s8, 32
      %v1234 = vld [vmem:[%s1233] sm:$0xf]
      %v1235 = vld [vmem:[%s1233 + $0x4] sm:$0xf]
      %v1236 = vld [vmem:[%s1233 + $0x8] sm:$0xf]
      %v1237 = vld [vmem:[%s1233 + $0xc] sm:$0xf]
      %v1240 = vunpack.c.l.b16 %v1231
      %v1241 = vunpack.c.l.b16 %v1232
      %v1242 = vpack.c.b16 %v1241, %v1240
      %v1243 = vrot.slane %v1242, 2
      %v1248 = vunpack.c.l.b16 %v1234
      %v1249 = vunpack.c.l.b16 %v1235
      %v1250 = vunpack.c.l.b16 %v1236
      %v1251 = vunpack.c.l.b16 %v1237
      %v1252 = vpack.c.b16 %v1249, %v1248
      %v1253 = vpack.c.b16 %v1251, %v1250
      %v1257 = vsel %vm679, %v1243, 0
      %1259 = vmatprep.subr.bf16.mxu0 0
      %1260 = vmatpush1.bf16.msra.mxu0 %v1252
      %1261 = vmatprep.subr.bf16.mxu0 0
      %1262 = vmatpush1.bf16.msra.mxu0 %v1253
      %1263 = vmatprep.subr.bf16.mxu0 0
      %1264 = vmatpush1.bf16.msra.mxu0 0
      %1265 = vmatprep.subr.bf16.mxu0 0
      %1266 = vmatpush1.bf16.msra.mxu0 0
      %1267 = vmatprep.subr.bf16.mxu0 0
      %1268 = vmatpush1.bf16.msra.mxu0 0
      %1269 = vmatprep.subr.bf16.mxu0 0
      %1270 = vmatpush1.bf16.msra.mxu0 0
      %1271 = vmatprep.subr.bf16.mxu0 0
      %1272 = vmatpush1.bf16.msra.mxu0 0
      %1273 = vmatprep.subr.bf16.mxu0 0
      %1274 = vmatpush1.bf16.msra.mxu0 0
      %1275 = vmatprep.subr.bf16.mxu0 0
      %1276 = vmatpush1.bf16.msra.mxu0 0
      %1277 = vmatprep.subr.bf16.mxu0 0
      %1278 = vmatpush1.bf16.msra.mxu0 0
      %1279 = vmatprep.subr.bf16.mxu0 0
      %1280 = vmatpush1.bf16.msra.mxu0 0
      %1281 = vmatprep.subr.bf16.mxu0 0
      %1282 = vmatpush1.bf16.msra.mxu0 0
      %1283 = vmatprep.subr.bf16.mxu0 0
      %1284 = vmatpush1.bf16.msra.mxu0 0
      %1285 = vmatprep.subr.bf16.mxu0 0
      %1286 = vmatpush1.bf16.msra.mxu0 0
      %1287 = vmatprep.subr.bf16.mxu0 0
      %1288 = vmatpush1.bf16.msra.mxu0 0
      %1289 = vmatprep.subr.bf16.mxu0 0
      %1290 = vmatpush1.bf16.msra.mxu0 0
      %1291 = vmatprep.mubr.bf16.mxu0 0
      %1292 = vmatmul.mubr.bf16.gmra.mrb[0].mxu0 %v1257
      %v1293 = vpop.f32.mrb[0].mxu0
      %v1294 = vadd.f32 0.0, %v1293
      %v1295 = vpop.f32.mrb[0].mxu0
      %v1296 = vpop.f32.mrb[0].mxu0
      %v1297 = vpop.f32.mrb[0].mxu0
      %1298 = vdwg.mxu0
      %v1299 = vadd.f32 %v1226, %v1294
      %v1300 = vld [vmem:[%s10] sm:$0x1]
      %v1301 = vlaneseq
      %v1302 = vshrl.u32 %v1301, 7
      %v1303 = vsub.s32 0, %v1302
      %v1304 = vrot.slane %v1300, %v1303
      %v1305 = vadd.f32 %v1299, %v1304
      %v1306 = vmax.f32 %v1305, 0.0
      %v1307 = vld [vmem:[%s10 + $0x1] sm:$0x1]
      %v1308 = vlaneseq
      %v1309 = vshrl.u32 %v1308, 7
      %v1310 = vsub.s32 0, %v1309
      %v1311 = vrot.slane %v1307, %v1310
      %v1312 = vmul.f32 %v1306, %v1311
      %v1313 = vld [vmem:[%s10 + $0x2] sm:$0x1]
      %v1314 = vlaneseq
      %v1315 = vshrl.u32 %v1314, 7
      %v1316 = vsub.s32 0, %v1315
      %v1317 = vrot.slane %v1313, %v1316
      %v1318 = vadd.f32 %v1312, %v1317
      %v1319 = vpack.c.bf16 %v1318, %v1318
      %v1320 = vld [vmem:[%s9] sm:$0xf]
      %v1321 = vld [vmem:[%s9 + $0x4] sm:$0xf]
      %v1322 = vld [vmem:[%s9 + $0x8] sm:$0xf]
      %v1323 = vld [vmem:[%s9 + $0xc] sm:$0xf]
      %v1328 = vunpack.c.l.b16 %v1320
      %v1329 = vunpack.c.l.b16 %v1321
      %v1330 = vunpack.c.l.b16 %v1322
      %v1331 = vunpack.c.l.b16 %v1323
      %v1332 = vpack.c.b16 %v1329, %v1328
      %v1333 = vpack.c.b16 %v1331, %v1330
      %v1337 = vsel %vm679, %v1319, 0
      %1339 = vmatprep.subr.bf16.mxu0 0
      %1340 = vmatpush1.bf16.msra.mxu0 %v1332
      %1341 = vmatprep.subr.bf16.mxu0 0
      %1342 = vmatpush1.bf16.msra.mxu0 %v1333
      %1343 = vmatprep.subr.bf16.mxu0 0
      %1344 = vmatpush1.bf16.msra.mxu0 0
      %1345 = vmatprep.subr.bf16.mxu0 0
      %1346 = vmatpush1.bf16.msra.mxu0 0
      %1347 = vmatprep.subr.bf16.mxu0 0
      %1348 = vmatpush1.bf16.msra.mxu0 0
      %1349 = vmatprep.subr.bf16.mxu0 0
      %1350 = vmatpush1.bf16.msra.mxu0 0
      %1351 = vmatprep.subr.bf16.mxu0 0
      %1352 = vmatpush1.bf16.msra.mxu0 0
      %1353 = vmatprep.subr.bf16.mxu0 0
      %1354 = vmatpush1.bf16.msra.mxu0 0
      %1355 = vmatprep.subr.bf16.mxu0 0
      %1356 = vmatpush1.bf16.msra.mxu0 0
      %1357 = vmatprep.subr.bf16.mxu0 0
      %1358 = vmatpush1.bf16.msra.mxu0 0
      %1359 = vmatprep.subr.bf16.mxu0 0
      %1360 = vmatpush1.bf16.msra.mxu0 0
      %1361 = vmatprep.subr.bf16.mxu0 0
      %1362 = vmatpush1.bf16.msra.mxu0 0
      %1363 = vmatprep.subr.bf16.mxu0 0
      %1364 = vmatpush1.bf16.msra.mxu0 0
      %1365 = vmatprep.subr.bf16.mxu0 0
      %1366 = vmatpush1.bf16.msra.mxu0 0
      %1367 = vmatprep.subr.bf16.mxu0 0
      %1368 = vmatpush1.bf16.msra.mxu0 0
      %1369 = vmatprep.subr.bf16.mxu0 0
      %1370 = vmatpush1.bf16.msra.mxu0 0
      %1371 = vmatprep.mubr.bf16.mxu0 0
      %1372 = vmatmul.mubr.bf16.gmra.mrb[0].mxu0 %v1337
      %v1373 = vpop.f32.mrb[0].mxu0
      %v1374 = vadd.f32 0.0, %v1373
      %v1375 = vpop.f32.mrb[0].mxu0
      %v1376 = vpop.f32.mrb[0].mxu0
      %v1377 = vpop.f32.mrb[0].mxu0
      %1378 = vdwg.mxu0
      %v1379 = vadd.f32 %v1091, %v1374
      %v1381 = vunpack.c.l.b16 %v1319
      %v1382 = vpack.c.b16 %v1381, %v1381
      %v1383 = vrot.slane %v1382, 7
      %v1384 = vrot.slane %v1383, 4
      %vm1387 = vcmask 191489
      %1388 = vst.msk [vmem:[#allocation2] sm:$0xe] %vm1387, %v1383
      %vm1389 = vcmask 188416
      %1390 = vst.msk [vmem:[#allocation2 + $0x4] sm:$0x1] %vm1389, %v1384
      %v1391 = vld [vmem:[#allocation2] sm:$0xf]
      %v1392 = vld [vmem:[%s11] sm:$0xf]
      %v1393 = vld [vmem:[%s11 + $0x4] sm:$0xf]
      %v1394 = vld [vmem:[%s11 + $0x8] sm:$0xf]
      %v1395 = vld [vmem:[%s11 + $0xc] sm:$0xf]
      %v1396 = vld [vmem:[#allocation2] sm:$0xe]
      %v1397 = vld [vmem:[#allocation2 + $0x4] sm:$0x1]
      %s1398 = scalar_lea.vmem %s11, 16
      %v1399 = vld [vmem:[%s1398] sm:$0xf]
      %v1400 = vld [vmem:[%s1398 + $0x4] sm:$0xf]
      %v1401 = vld [vmem:[%s1398 + $0x8] sm:$0xf]
      %v1402 = vld [vmem:[%s1398 + $0xc] sm:$0xf]
      %v1405 = vunpack.c.l.b16 %v1396
      %v1406 = vunpack.c.l.b16 %v1397
      %v1407 = vpack.c.b16 %v1406, %v1405
      %v1408 = vrot.slane %v1407, 1
      %v1413 = vunpack.c.l.b16 %v1399
      %v1414 = vunpack.c.l.b16 %v1400
      %v1415 = vunpack.c.l.b16 %v1401
      %v1416 = vunpack.c.l.b16 %v1402
      %v1417 = vpack.c.b16 %v1414, %v1413
      %v1418 = vpack.c.b16 %v1416, %v1415
      %v1422 = vsel %vm679, %v1408, 0
      %1424 = vmatprep.subr.bf16.mxu0 0
      %1425 = vmatpush1.bf16.msra.mxu0 %v1417
      %1426 = vmatprep.subr.bf16.mxu0 0
      %1427 = vmatpush1.bf16.msra.mxu0 %v1418
      %1428 = vmatprep.subr.bf16.mxu0 0
      %1429 = vmatpush1.bf16.msra.mxu0 0
      %1430 = vmatprep.subr.bf16.mxu0 0
      %1431 = vmatpush1.bf16.msra.mxu0 0
      %1432 = vmatprep.subr.bf16.mxu0 0
      %1433 = vmatpush1.bf16.msra.mxu0 0
      %1434 = vmatprep.subr.bf16.mxu0 0
      %1435 = vmatpush1.bf16.msra.mxu0 0
      %1436 = vmatprep.subr.bf16.mxu0 0
      %1437 = vmatpush1.bf16.msra.mxu0 0
      %1438 = vmatprep.subr.bf16.mxu0 0
      %1439 = vmatpush1.bf16.msra.mxu0 0
      %1440 = vmatprep.subr.bf16.mxu0 0
      %1441 = vmatpush1.bf16.msra.mxu0 0
      %1442 = vmatprep.subr.bf16.mxu0 0
      %1443 = vmatpush1.bf16.msra.mxu0 0
      %1444 = vmatprep.subr.bf16.mxu0 0
      %1445 = vmatpush1.bf16.msra.mxu0 0
      %1446 = vmatprep.subr.bf16.mxu0 0
      %1447 = vmatpush1.bf16.msra.mxu0 0
      %1448 = vmatprep.subr.bf16.mxu0 0
      %1449 = vmatpush1.bf16.msra.mxu0 0
      %1450 = vmatprep.subr.bf16.mxu0 0
      %1451 = vmatpush1.bf16.msra.mxu0 0
      %1452 = vmatprep.subr.bf16.mxu0 0
      %1453 = vmatpush1.bf16.msra.mxu0 0
      %1454 = vmatprep.subr.bf16.mxu0 0
      %1455 = vmatpush1.bf16.msra.mxu0 0
      %1456 = vmatprep.mubr.bf16.mxu0 0
      %1457 = vmatmul.mubr.bf16.gmra.mrb[0].mxu0 %v1422
      %v1458 = vpop.f32.mrb[0].mxu0
      %v1459 = vadd.f32 0.0, %v1458
      %v1460 = vpop.f32.mrb[0].mxu0
      %v1461 = vpop.f32.mrb[0].mxu0
      %v1462 = vpop.f32.mrb[0].mxu0
      %1463 = vdwg.mxu0
      %v1468 = vunpack.c.l.b16 %v1392
      %v1469 = vunpack.c.l.b16 %v1393
      %v1470 = vunpack.c.l.b16 %v1394
      %v1471 = vunpack.c.l.b16 %v1395
      %v1472 = vpack.c.b16 %v1469, %v1468
      %v1473 = vpack.c.b16 %v1471, %v1470
      %v1477 = vsel %vm679, %v1391, 0
      %1479 = vmatprep.subr.bf16.mxu0 0
      %1480 = vmatpush1.bf16.msra.mxu0 %v1472
      %1481 = vmatprep.subr.bf16.mxu0 0
      %1482 = vmatpush1.bf16.msra.mxu0 %v1473
      %1483 = vmatprep.subr.bf16.mxu0 0
      %1484 = vmatpush1.bf16.msra.mxu0 0
      %1485 = vmatprep.subr.bf16.mxu0 0
      %1486 = vmatpush1.bf16.msra.mxu0 0
      %1487 = vmatprep.subr.bf16.mxu0 0
      %1488 = vmatpush1.bf16.msra.mxu0 0
      %1489 = vmatprep.subr.bf16.mxu0 0
      %1490 = vmatpush1.bf16.msra.mxu0 0
      %1491 = vmatprep.subr.bf16.mxu0 0
      %1492 = vmatpush1.bf16.msra.mxu0 0
      %1493 = vmatprep.subr.bf16.mxu0 0
      %1494 = vmatpush1.bf16.msra.mxu0 0
      %1495 = vmatprep.subr.bf16.mxu0 0
      %1496 = vmatpush1.bf16.msra.mxu0 0
      %1497 = vmatprep.subr.bf16.mxu0 0
      %1498 = vmatpush1.bf16.msra.mxu0 0
      %1499 = vmatprep.subr.bf16.mxu0 0
      %1500 = vmatpush1.bf16.msra.mxu0 0
      %1501 = vmatprep.subr.bf16.mxu0 0
      %1502 = vmatpush1.bf16.msra.mxu0 0
      %1503 = vmatprep.subr.bf16.mxu0 0
      %1504 = vmatpush1.bf16.msra.mxu0 0
      %1505 = vmatprep.subr.bf16.mxu0 0
      %1506 = vmatpush1.bf16.msra.mxu0 0
      %1507 = vmatprep.subr.bf16.mxu0 0
      %1508 = vmatpush1.bf16.msra.mxu0 0
      %1509 = vmatprep.subr.bf16.mxu0 0
      %1510 = vmatpush1.bf16.msra.mxu0 0
      %1511 = vmatprep.mubr.bf16.mxu0 0
      %1512 = vmatmul.mubr.bf16.gmra.mrb[0].mxu0 %v1477
      %v1513 = vpop.f32.mrb[0].mxu0
      %v1514 = vadd.f32 %v1459, %v1513
      %v1515 = vpop.f32.mrb[0].mxu0
      %v1516 = vpop.f32.mrb[0].mxu0
      %v1517 = vpop.f32.mrb[0].mxu0
      %1518 = vdwg.mxu0
      %v1519 = vld [vmem:[#allocation2] sm:$0xc]
      %v1520 = vld [vmem:[#allocation2 + $0x4] sm:$0x3]
      %s1521 = scalar_lea.vmem %s11, 32
      %v1522 = vld [vmem:[%s1521] sm:$0xf]
      %v1523 = vld [vmem:[%s1521 + $0x4] sm:$0xf]
      %v1524 = vld [vmem:[%s1521 + $0x8] sm:$0xf]
      %v1525 = vld [vmem:[%s1521 + $0xc] sm:$0xf]
      %v1528 = vunpack.c.l.b16 %v1519
      %v1529 = vunpack.c.l.b16 %v1520
      %v1530 = vpack.c.b16 %v1529, %v1528
      %v1531 = vrot.slane %v1530, 2
      %v1536 = vunpack.c.l.b16 %v1522
      %v1537 = vunpack.c.l.b16 %v1523
      %v1538 = vunpack.c.l.b16 %v1524
      %v1539 = vunpack.c.l.b16 %v1525
      %v1540 = vpack.c.b16 %v1537, %v1536
      %v1541 = vpack.c.b16 %v1539, %v1538
      %v1545 = vsel %vm679, %v1531, 0
      %1547 = vmatprep.subr.bf16.mxu0 0
      %1548 = vmatpush1.bf16.msra.mxu0 %v1540
      %1549 = vmatprep.subr.bf16.mxu0 0
      %1550 = vmatpush1.bf16.msra.mxu0 %v1541
      %1551 = vmatprep.subr.bf16.mxu0 0
      %1552 = vmatpush1.bf16.msra.mxu0 0
      %1553 = vmatprep.subr.bf16.mxu0 0
      %1554 = vmatpush1.bf16.msra.mxu0 0
      %1555 = vmatprep.subr.bf16.mxu0 0
      %1556 = vmatpush1.bf16.msra.mxu0 0
      %1557 = vmatprep.subr.bf16.mxu0 0
      %1558 = vmatpush1.bf16.msra.mxu0 0
      %1559 = vmatprep.subr.bf16.mxu0 0
      %1560 = vmatpush1.bf16.msra.mxu0 0
      %1561 = vmatprep.subr.bf16.mxu0 0
      %1562 = vmatpush1.bf16.msra.mxu0 0
      %1563 = vmatprep.subr.bf16.mxu0 0
      %1564 = vmatpush1.bf16.msra.mxu0 0
      %1565 = vmatprep.subr.bf16.mxu0 0
      %1566 = vmatpush1.bf16.msra.mxu0 0
      %1567 = vmatprep.subr.bf16.mxu0 0
      %1568 = vmatpush1.bf16.msra.mxu0 0
      %1569 = vmatprep.subr.bf16.mxu0 0
      %1570 = vmatpush1.bf16.msra.mxu0 0
      %1571 = vmatprep.subr.bf16.mxu0 0
      %1572 = vmatpush1.bf16.msra.mxu0 0
      %1573 = vmatprep.subr.bf16.mxu0 0
      %1574 = vmatpush1.bf16.msra.mxu0 0
      %1575 = vmatprep.subr.bf16.mxu0 0
      %1576 = vmatpush1.bf16.msra.mxu0 0
      %1577 = vmatprep.subr.bf16.mxu0 0
      %1578 = vmatpush1.bf16.msra.mxu0 0
      %1579 = vmatprep.mubr.bf16.mxu0 0
      %1580 = vmatmul.mubr.bf16.gmra.mrb[0].mxu0 %v1545
      %v1581 = vpop.f32.mrb[0].mxu0
      %v1582 = vadd.f32 0.0, %v1581
      %v1583 = vpop.f32.mrb[0].mxu0
      %v1584 = vpop.f32.mrb[0].mxu0
      %v1585 = vpop.f32.mrb[0].mxu0
      %1586 = vdwg.mxu0
      %v1587 = vadd.f32 %v1514, %v1582
      %v1588 = vld [vmem:[%s13] sm:$0x1]
      %v1589 = vlaneseq
      %v1590 = vshrl.u32 %v1589, 7
      %v1591 = vsub.s32 0, %v1590
      %v1592 = vrot.slane %v1588, %v1591
      %v1593 = vadd.f32 %v1587, %v1592
      %v1594 = vmax.f32 %v1593, 0.0
      %v1595 = vld [vmem:[%s13 + $0x1] sm:$0x1]
      %v1596 = vlaneseq
      %v1597 = vshrl.u32 %v1596, 7
      %v1598 = vsub.s32 0, %v1597
      %v1599 = vrot.slane %v1595, %v1598
      %v1600 = vmul.f32 %v1594, %v1599
      %v1601 = vld [vmem:[%s13 + $0x2] sm:$0x1]
      %v1602 = vlaneseq
      %v1603 = vshrl.u32 %v1602, 7
      %v1604 = vsub.s32 0, %v1603
      %v1605 = vrot.slane %v1601, %v1604
      %v1606 = vadd.f32 %v1600, %v1605
      %v1607 = vpack.c.bf16 %v1606, %v1606
      %v1608 = vld [vmem:[%s12] sm:$0xf]
      %v1609 = vld [vmem:[%s12 + $0x4] sm:$0xf]
      %v1610 = vld [vmem:[%s12 + $0x8] sm:$0xf]
      %v1611 = vld [vmem:[%s12 + $0xc] sm:$0xf]
      %v1616 = vunpack.c.l.b16 %v1608
      %v1617 = vunpack.c.l.b16 %v1609
      %v1618 = vunpack.c.l.b16 %v1610
      %v1619 = vunpack.c.l.b16 %v1611
      %v1620 = vpack.c.b16 %v1617, %v1616
      %v1621 = vpack.c.b16 %v1619, %v1618
      %v1625 = vsel %vm679, %v1607, 0
      %1627 = vmatprep.subr.bf16.mxu0 0
      %1628 = vmatpush1.bf16.msra.mxu0 %v1620
      %1629 = vmatprep.subr.bf16.mxu0 0
      %1630 = vmatpush1.bf16.msra.mxu0 %v1621
      %1631 = vmatprep.subr.bf16.mxu0 0
      %1632 = vmatpush1.bf16.msra.mxu0 0
      %1633 = vmatprep.subr.bf16.mxu0 0
      %1634 = vmatpush1.bf16.msra.mxu0 0
      %1635 = vmatprep.subr.bf16.mxu0 0
      %1636 = vmatpush1.bf16.msra.mxu0 0
      %1637 = vmatprep.subr.bf16.mxu0 0
      %1638 = vmatpush1.bf16.msra.mxu0 0
      %1639 = vmatprep.subr.bf16.mxu0 0
      %1640 = vmatpush1.bf16.msra.mxu0 0
      %1641 = vmatprep.subr.bf16.mxu0 0
      %1642 = vmatpush1.bf16.msra.mxu0 0
      %1643 = vmatprep.subr.bf16.mxu0 0
      %1644 = vmatpush1.bf16.msra.mxu0 0
      %1645 = vmatprep.subr.bf16.mxu0 0
      %1646 = vmatpush1.bf16.msra.mxu0 0
      %1647 = vmatprep.subr.bf16.mxu0 0
      %1648 = vmatpush1.bf16.msra.mxu0 0
      %1649 = vmatprep.subr.bf16.mxu0 0
      %1650 = vmatpush1.bf16.msra.mxu0 0
      %1651 = vmatprep.subr.bf16.mxu0 0
      %1652 = vmatpush1.bf16.msra.mxu0 0
      %1653 = vmatprep.subr.bf16.mxu0 0
      %1654 = vmatpush1.bf16.msra.mxu0 0
      %1655 = vmatprep.subr.bf16.mxu0 0
      %1656 = vmatpush1.bf16.msra.mxu0 0
      %1657 = vmatprep.subr.bf16.mxu0 0
      %1658 = vmatpush1.bf16.msra.mxu0 0
      %1659 = vmatprep.mubr.bf16.mxu0 0
      %1660 = vmatmul.mubr.bf16.gmra.mrb[0].mxu0 %v1625
      %v1661 = vpop.f32.mrb[0].mxu0
      %v1662 = vadd.f32 0.0, %v1661
      %v1663 = vpop.f32.mrb[0].mxu0
      %v1664 = vpop.f32.mrb[0].mxu0
      %v1665 = vpop.f32.mrb[0].mxu0
      %1666 = vdwg.mxu0
      %v1667 = vadd.f32 %v1379, %v1662
      %v1668 = vmax.f32 %v1667, 0.0
      %v1669 = vld [vmem:[%s14 + $0x1] sm:$0x1]
      %v1670 = vlaneseq
      %v1671 = vshrl.u32 %v1670, 7
      %v1672 = vsub.s32 0, %v1671
      %v1673 = vrot.slane %v1669, %v1672
      %v1674 = vmul.f32 %v1668, %v1673
      %v1675 = vld [vmem:[%s14 + $0x2] sm:$0x1]
      %v1676 = vlaneseq
      %v1677 = vshrl.u32 %v1676, 7
      %v1678 = vsub.s32 0, %v1677
      %v1679 = vrot.slane %v1675, %v1678
      %v1680 = vadd.f32 %v1674, %v1679
      %v1681 = vsel %vm679, %v1680, 0.0
      %v1682 = vrot.slane %v1681, 4
      %v1683 = vadd.f32 %v1681, %v1682
      %v1684 = vrot.slane %v1683, 2
      %v1685 = vadd.f32 %v1683, %v1684
      %v1686 = vrot.slane %v1685, 1
      %v1687 = vadd.f32 %v1685, %v1686
      %v1688 = vrcp.pop 8.0
      %v1689 = vmul.f32 %v1687, %v1688
      %v1690 = vpack.c.bf16 %v1689, %v1689
      %v1691 = vld [vmem:[%s15] sm:$0xf]
      %v1692 = vld [vmem:[%s15 + $0x4] sm:$0xf]
      %v1693 = vld [vmem:[%s15 + $0x8] sm:$0xf]
      %v1694 = vld [vmem:[%s15 + $0xc] sm:$0xf]
      %v1695 = vld [vmem:[%s16] sm:$0x1]
      %v1700 = vunpack.c.l.b16 %v1691
      %v1701 = vunpack.c.l.b16 %v1692
      %v1702 = vunpack.c.l.b16 %v1693
      %v1703 = vunpack.c.l.b16 %v1694
      %v1704 = vpack.c.b16 %v1701, %v1700
      %v1705 = vpack.c.b16 %v1703, %v1702
      %v1709 = vsel %vm679, %v1690, 0
      %1711 = vmatprep.subr.bf16.mxu0 0
      %1712 = vmatpush1.bf16.msra.mxu0 %v1704
      %1713 = vmatprep.subr.bf16.mxu0 0
      %1714 = vmatpush1.bf16.msra.mxu0 %v1705
      %1715 = vmatprep.subr.bf16.mxu0 0
      %1716 = vmatpush1.bf16.msra.mxu0 0
      %1717 = vmatprep.subr.bf16.mxu0 0
      %1718 = vmatpush1.bf16.msra.mxu0 0
      %1719 = vmatprep.subr.bf16.mxu0 0
      %1720 = vmatpush1.bf16.msra.mxu0 0
      %1721 = vmatprep.subr.bf16.mxu0 0
      %1722 = vmatpush1.bf16.msra.mxu0 0
      %1723 = vmatprep.subr.bf16.mxu0 0
      %1724 = vmatpush1.bf16.msra.mxu0 0
      %1725 = vmatprep.subr.bf16.mxu0 0
      %1726 = vmatpush1.bf16.msra.mxu0 0
      %1727 = vmatprep.subr.bf16.mxu0 0
      %1728 = vmatpush1.bf16.msra.mxu0 0
      %1729 = vmatprep.subr.bf16.mxu0 0
      %1730 = vmatpush1.bf16.msra.mxu0 0
      %1731 = vmatprep.subr.bf16.mxu0 0
      %1732 = vmatpush1.bf16.msra.mxu0 0
      %1733 = vmatprep.subr.bf16.mxu0 0
      %1734 = vmatpush1.bf16.msra.mxu0 0
      %1735 = vmatprep.subr.bf16.mxu0 0
      %1736 = vmatpush1.bf16.msra.mxu0 0
      %1737 = vmatprep.subr.bf16.mxu0 0
      %1738 = vmatpush1.bf16.msra.mxu0 0
      %1739 = vmatprep.subr.bf16.mxu0 0
      %1740 = vmatpush1.bf16.msra.mxu0 0
      %1741 = vmatprep.subr.bf16.mxu0 0
      %1742 = vmatpush1.bf16.msra.mxu0 0
      %1743 = vmatprep.mubr.bf16.mxu0 0
      %1744 = vmatmul.mubr.bf16.gmra.mrb[0].mxu0 %v1709
      %v1745 = vpop.f32.mrb[0].mxu0
      %v1746 = vadd.f32 %v1695, %v1745
      %v1747 = vpop.f32.mrb[0].mxu0
      %v1748 = vpop.f32.mrb[0].mxu0
      %v1749 = vpop.f32.mrb[0].mxu0
      %1750 = vdwg.mxu0
      %v1751 = vmax.f32 %v1746, 0.0
      %v1752 = vpack.c.bf16 %v1751, %v1751
      %v1753 = vld [vmem:[%s17] sm:$0xf]
      %v1754 = vld [vmem:[%s18] sm:$0x1]
      %vm1755 = vcmask 64512
      %v1757 = vsel %vm1755, %v1752, 0
      %vm1759 = vcmask 1043456
      %v1761 = vsel %vm1759, %v1753, 0
      %1763 = vmatprep.subr.bf16.mxu0 0
      %1764 = vmatpush1.bf16.msra.mxu0 %v1761
      %1765 = vmatprep.subr.bf16.mxu0 0
      %1766 = vmatpush1.bf16.msra.mxu0 0
      %1767 = vmatprep.subr.bf16.mxu0 0
      %1768 = vmatpush1.bf16.msra.mxu0 0
      %1769 = vmatprep.subr.bf16.mxu0 0
      %1770 = vmatpush1.bf16.msra.mxu0 0
      %1771 = vmatprep.subr.bf16.mxu0 0
      %1772 = vmatpush1.bf16.msra.mxu0 0
      %1773 = vmatprep.subr.bf16.mxu0 0
      %1774 = vmatpush1.bf16.msra.mxu0 0
      %1775 = vmatprep.subr.bf16.mxu0 0
      %1776 = vmatpush1.bf16.msra.mxu0 0
      %1777 = vmatprep.subr.bf16.mxu0 0
      %1778 = vmatpush1.bf16.msra.mxu0 0
      %1779 = vmatprep.subr.bf16.mxu0 0
      %1780 = vmatpush1.bf16.msra.mxu0 0
      %1781 = vmatprep.subr.bf16.mxu0 0
      %1782 = vmatpush1.bf16.msra.mxu0 0
      %1783 = vmatprep.subr.bf16.mxu0 0
      %1784 = vmatpush1.bf16.msra.mxu0 0
      %1785 = vmatprep.subr.bf16.mxu0 0
      %1786 = vmatpush1.bf16.msra.mxu0 0
      %1787 = vmatprep.subr.bf16.mxu0 0
      %1788 = vmatpush1.bf16.msra.mxu0 0
      %1789 = vmatprep.subr.bf16.mxu0 0
      %1790 = vmatpush1.bf16.msra.mxu0 0
      %1791 = vmatprep.subr.bf16.mxu0 0
      %1792 = vmatpush1.bf16.msra.mxu0 0
      %1793 = vmatprep.subr.bf16.mxu0 0
      %1794 = vmatpush1.bf16.msra.mxu0 0
      %1795 = vmatprep.mubr.bf16.mxu0 0
      %1796 = vmatmul.mubr.bf16.gmra.mrb[0].mxu0 %v1757
      %v1797 = vpop.f32.mrb[0].mxu0
      %v1798 = vadd.f32 %v1754, %v1797
      %v1799 = vpop.f32.mrb[0].mxu0
      %v1800 = vpop.f32.mrb[0].mxu0
      %v1801 = vpop.f32.mrb[0].mxu0
      %1802 = vdwg.mxu0
      %v1803 = vxor.u32 %v1798, 2147483648
      %v1804 = vmul.f32 %v1803, 1.442695
      %v1805 = vpow.pop %v1804
      %v1806 = vadd.f32 %v1805, 1.0
      %v1807 = vrcp.pop %v1806
      %v1808 = vmul.f32 1.0, %v1807
      %v1809 = vlaneseq
      %v1810 = vshrl.u32 %v1809, 7
      %v1811 = vsub.s32 0, %v1810
      %v1812 = vrot.slane %v1808, %v1811
      %v1813 = vmul.f32 %v1680, %v1812
      %v1814 = vadd.f32 %v1813, %v656
      %v1815 = vmax.f32 %v1814, 0.0
      %v1816 = vld [vmem:[%s18 + $0x1] sm:$0x1]
      %v1817 = vlaneseq
      %v1818 = vshrl.u32 %v1817, 7
      %v1819 = vsub.s32 0, %v1818
      %v1820 = vrot.slane %v1816, %v1819
      %v1821 = vmul.f32 %v1815, %v1820
      %v1822 = vld [vmem:[%s18 + $0x2] sm:$0x1]
      %v1823 = vlaneseq
      %v1824 = vshrl.u32 %v1823, 7
      %v1825 = vsub.s32 0, %v1824
      %v1826 = vrot.slane %v1822, %v1825
      %v1827 = vadd.f32 %v1821, %v1826
      %v1828 = vpack.c.bf16 %v1827, %v1827
      %vm1829 = vcmask 257024
      %1830 = vst.msk [vmem:[%s647] sm:$0xf] %vm1829, %v1828
      %v1831 = vld [vmem:[%s18 + $0x3] sm:$0x1]
      %v1832 = vlaneseq
      %v1833 = vshrl.u32 %v1832, 7
      %v1834 = vsub.s32 0, %v1833
      %v1835 = vrot.slane %v1831, %v1834
      %v1836 = vmul.f32 %v1827, %v1835
      %v1837 = vld [vmem:[%s18 + $0x4] sm:$0x1]
      %v1838 = vlaneseq
      %v1839 = vshrl.u32 %v1838, 7
      %v1840 = vsub.s32 0, %v1839
      %v1841 = vrot.slane %v1837, %v1840
      %v1842 = vadd.f32 %v1836, %v1841
      %v1843 = vmax.f32 %v1842, 0.0
      %v1844 = vsel %vm679, %v1843, 0.0
      %v1845 = vrot.slane %v1844, 4
      %v1846 = vadd.f32 %v1844, %v1845
      %v1847 = vrot.slane %v1846, 2
      %v1848 = vadd.f32 %v1846, %v1847
      %v1849 = vrot.slane %v1848, 1
      %v1850 = vadd.f32 %v1848, %v1849
      %v1851 = vmul.f32 %v1850, 0.125
      %1852 = vst.msk [vmem:[%s650] sm:$0x1] %vm737, %v1851
      %p1853 = scmp.lt.s32.totalorder %s32, 1
      %s1854 = scalar_select %p1853, %s32, 1
      %s1855 = smul.addr %s1854, 4
      %s1856 = scalar_lea.vmem %s19, %s1855
      %p1857 = scmp.lt.s32.totalorder %s32, 1
      %s1858 = scalar_select %p1857, %s32, 1
      %s1859 = scalar_lea.vmem %s20, %s1858
      // Predicated region
      $region97: #{_lambda_.7} parent=95 // pred_check
        %p1860 = pneg %p459
      $region98: #{_lambda_.7} parent=95 // pred_check_branch
        %1862 = sbr.rel (%p1860) target = $region100
      $region99: #{_lambda_.7} parent=95 // pred_region
        _
      $region100: #{_lambda_.7} parent=95 // pred_fallthru
        _
      // Predicated region
      $region101: #{_lambda_.7} parent=95 // pred_check
        %p1863 = pneg %p485
      $region102: #{_lambda_.7} parent=95 // pred_check_branch
        %1865 = sbr.rel (%p1863) target = $region104
      $region103: #{_lambda_.7} parent=95 // pred_region
        _
      $region104: #{_lambda_.7} parent=95 // pred_fallthru
        _
    $region96: #{_lambda_.7} parent=5 // pred_fallthru
      _
    %p1866 = scmp.le.s32.totalorder 2, %s27
    // Predicated region
    $region105: #{_lambda_.7} parent=5 // pred_check
      %p1867 = pneg %p1866
    $region106: #{_lambda_.7} parent=5 // pred_check_branch
      %1869 = sbr.rel (%p1867) target = $region108
    $region107: #{_lambda_.7} parent=5 // pred_region
      %s1870 = ssub.s32 %s27, 2
      // Predicated region
      $region109: #{_lambda_.7} parent=107 // pred_check
        %p1871 = pneg %p465
      $region110: #{_lambda_.7} parent=107 // pred_check_branch
        %1873 = sbr.rel (%p1871) target = $region112
      $region111: #{_lambda_.7} parent=107 // pred_region
        %p1874 = scmp.lt.s32.totalorder %s33, 1
        %s1875 = scalar_select %p1874, %s33, 1
        %s1876 = smul.addr %s1875, 4
        %s1877 = scalar_lea.vmem %s19, %s1876
      $region112: #{_lambda_.7} parent=107 // pred_fallthru
        _
      // Predicated region
      $region113: #{_lambda_.7} parent=107 // pred_check
        %p1878 = pneg %p491
      $region114: #{_lambda_.7} parent=107 // pred_check_branch
        %1880 = sbr.rel (%p1878) target = $region116
      $region115: #{_lambda_.7} parent=107 // pred_region
        %p1881 = scmp.lt.s32.totalorder %s33, 1
        %s1882 = scalar_select %p1881, %s33, 1
        %s1883 = scalar_lea.vmem %s20, %s1882
      $region116: #{_lambda_.7} parent=107 // pred_fallthru
        _
    $region108: #{_lambda_.7} parent=5 // pred_fallthru
      _
  $region6: #{_lambda_.7} parent=0 // loop_footer
    %s31 = sadd.s32 1, %s27
  $region7: #{_lambda_.7} parent=0 // loop_footer_branch
    %26 = sbr.rel target = $region3
  $region8: #{_lambda_.7} parent=0 // loop_exit
    _

// kernel: _lambda_.8
$region0: #{_lambda_.8}
  #allocation0 [shape = 'u32[]', space=smem, size = 0x4, offset = 0x4, fixed_abs, tag = 'smem constant byte address 0x4 - core index']
  #allocation1 [shape = 'u32[144,128]{1,0:T(1,128)}', space=vmem, size = 0x12000, scoped, tag = 'internal scratch']
  #allocation2 [shape = 'bf16[12,32]{1,0:T(8,128)(2,1)}', space=vmem, size = 0x1000, scoped, tag = 'scratch operand']
  %s0 = inlined_call_operand.vmem [shape: bf16[2,8,32], index: 0, kind: input, shape index: {}]
  %s1 = inlined_call_operand.vmem [shape: bf16[2,8,32], index: 1, kind: input, shape index: {}]
  %s2 = inlined_call_operand.vmem [shape: bf16[32,32], index: 2, kind: input, shape index: {}]
  %s3 = inlined_call_operand.vmem [shape: f32[3,32], index: 3, kind: input, shape index: {}]
  %s4 = inlined_call_operand.vmem [shape: bf16[32,32], index: 4, kind: input, shape index: {}]
  %s5 = inlined_call_operand.vmem [shape: bf16[3,32,32], index: 5, kind: input, shape index: {}]
  %s6 = inlined_call_operand.vmem [shape: bf16[32,32], index: 6, kind: input, shape index: {}]
  %s7 = inlined_call_operand.vmem [shape: f32[3,32], index: 7, kind: input, shape index: {}]
  %s8 = inlined_call_operand.vmem [shape: bf16[3,32,32], index: 8, kind: input, shape index: {}]
  %s9 = inlined_call_operand.vmem [shape: bf16[32,32], index: 9, kind: input, shape index: {}]
  %s10 = inlined_call_operand.vmem [shape: f32[3,32], index: 10, kind: input, shape index: {}]
  %s11 = inlined_call_operand.vmem [shape: bf16[3,32,32], index: 11, kind: input, shape index: {}]
  %s12 = inlined_call_operand.vmem [shape: bf16[32,32], index: 12, kind: input, shape index: {}]
  %s13 = inlined_call_operand.vmem [shape: f32[3,32], index: 13, kind: input, shape index: {}]
  %s14 = inlined_call_operand.vmem [shape: f32[3,32], index: 14, kind: input, shape index: {}]
  %s15 = inlined_call_operand.vmem [shape: bf16[32,8], index: 15, kind: input, shape index: {}]
  %s16 = inlined_call_operand.vmem [shape: f32[1,8], index: 16, kind: input, shape index: {}]
  %s17 = inlined_call_operand.vmem [shape: bf16[8,32], index: 17, kind: input, shape index: {}]
  %s18 = inlined_call_operand.vmem [shape: f32[5,32], index: 18, kind: input, shape index: {}]
  %s19 = inlined_call_operand.hbm [shape: bf16[2,8,32], index: 19, kind: output, shape index: {0}]
  %s20 = inlined_call_operand.vmem [shape: f32[2,1,32], index: 20, kind: output, shape index: {1}]
  %21 = xla_tuple %s19, %s20
  %s22 = sld [smem:[#allocation0]]
  $region117: #{_lambda_.8} parent=0
    _
  %s24 = ssub.s32 1, %s22
  %s25 = scalar_select 0, %s24, %s22
  $region1: #{_lambda_.8} parent=0
    #allocation3 [shape = 'u8[4096]{0}', space=vmem, size = 0x1000, scoped, tag = 'output window, operand 0']
    #allocation4 [shape = 's32[2]{0}', space=sflag, size = 0x8, scoped, tag = 'scoped memory for _lambda_.8']
    %26 = vsyncpa [#allocation4], 0
    %s27 = scalar_lea.sflag [#allocation4], 1
    %28 = vsyncpa %s27, 0
    loop: start=0, step=1, limit=4
    $region2: #{_lambda_.8} parent=1 // loop_pre_header
      _
    $region3: #{_lambda_.8} parent=1 // loop_header
      %s30 = sphi 0, %s34
      %p31 = scmp.ge.s32.totalorder %s30, 4
      %s40 = sphi 0, %s42
      %s43 = sphi 0, %s40
      %s44 = sphi 0, %s43
      %s60 = sphi 0, %s44
      %s66 = sphi 0, %s68
      %s69 = sphi 0, %s66
      %s70 = sphi 0, %s69
      %s86 = sphi 0, %s70
      %s90 = sphi 0, %s90
      %s92 = sphi 0, %s90
      %s93 = sphi 0, %s92
      %s107 = sphi 0, %s93
      %s111 = sphi 0, %s111
      %s113 = sphi 0, %s111
      %s114 = sphi 0, %s113
      %s128 = sphi 0, %s114
      %s132 = sphi 0, %s132
      %s134 = sphi 0, %s132
      %s135 = sphi 0, %s134
      %s149 = sphi 0, %s135
      %s153 = sphi 0, %s153
      %s155 = sphi 0, %s153
      %s156 = sphi 0, %s155
      %s170 = sphi 0, %s156
      %s174 = sphi 0, %s174
      %s176 = sphi 0, %s174
      %s177 = sphi 0, %s176
      %s191 = sphi 0, %s177
      %s195 = sphi 0, %s195
      %s197 = sphi 0, %s195
      %s198 = sphi 0, %s197
      %s212 = sphi 0, %s198
      %s216 = sphi 0, %s216
      %s218 = sphi 0, %s216
      %s219 = sphi 0, %s218
      %s233 = sphi 0, %s219
      %s237 = sphi 0, %s237
      %s239 = sphi 0, %s237
      %s240 = sphi 0, %s239
      %s254 = sphi 0, %s240
      %s258 = sphi 0, %s258
      %s260 = sphi 0, %s258
      %s261 = sphi 0, %s260
      %s275 = sphi 0, %s261
      %s279 = sphi 0, %s279
      %s281 = sphi 0, %s279
      %s282 = sphi 0, %s281
      %s296 = sphi 0, %s282
      %s300 = sphi 0, %s300
      %s302 = sphi 0, %s300
      %s303 = sphi 0, %s302
      %s317 = sphi 0, %s303
      %s321 = sphi 0, %s321
      %s323 = sphi 0, %s321
      %s324 = sphi 0, %s323
      %s338 = sphi 0, %s324
      %s342 = sphi 0, %s342
      %s344 = sphi 0, %s342
      %s345 = sphi 0, %s344
      %s359 = sphi 0, %s345
      %s363 = sphi 0, %s363
      %s365 = sphi 0, %s363
      %s366 = sphi 0, %s365
      %s380 = sphi 0, %s366
      %s384 = sphi 0, %s384
      %s386 = sphi 0, %s384
      %s387 = sphi 0, %s386
      %s401 = sphi 0, %s387
      %s405 = sphi 0, %s405
      %s407 = sphi 0, %s405
      %s408 = sphi 0, %s407
      %s422 = sphi 0, %s408
      %s426 = sphi 0, %s426
      %s428 = sphi 0, %s426
      %s429 = sphi 0, %s428
      %s443 = sphi 0, %s429
      %s449 = sphi 0, %s451
      %s452 = sphi 0, %s449
      %s453 = sphi 0, %s452
      %s469 = sphi 0, %s453
      %s475 = sphi 0, %s477
      %s478 = sphi 0, %s475
      %s479 = sphi 0, %s478
      %s495 = sphi 0, %s479
    $region4: #{_lambda_.8} parent=1 // loop_header_branch
      %33 = sbr.rel (%p31) target = $region8
    $region5: #{_lambda_.8} parent=1 // loop_body
      %s35 = ssub.s32 %s30, 1
      %s36 = ssub.s32 %s30, 2
      %s37 = sadd.s32 %s30, 1
      %s38 = ssub.s32 %s30, %s37
      %p39 = scmp.eq.s32.totalorder %s38, 0
      %s41 = sadd.s32 %s40, 1
      %s42 = scalar_select %p39, %s40, %s41
      %p45 = pneg %p39
      %p46 = scmp.eq.s32.totalorder %s30, 1
      %p47 = por %p45, %p46
      %p48 = scmp.ne.s32.totalorder %s40, %s43
      %p49 = scmp.eq.s32.totalorder %s30, 0
      %p50 = por %p48, %p49
      %p51 = scmp.ne.s32.totalorder %s40, %s43
      %p52 = scmp.eq.s32.totalorder %s35, 1
      %p53 = por %p51, %p52
      %p54 = scmp.ne.s32.totalorder %s43, %s44
      %p55 = scmp.eq.s32.totalorder %s35, 0
      %p56 = por %p54, %p55
      %p57 = scmp.ne.s32.totalorder %s43, %s44
      %p58 = scmp.eq.s32.totalorder %s36, 1
      %p59 = por %p57, %p58
      %p61 = scmp.ne.s32.totalorder %s44, %s60
      %p62 = scmp.eq.s32.totalorder %s36, 0
      %p63 = por %p61, %p62
      %s64 = ssub.s32 %s30, %s37
      %p65 = scmp.eq.s32.totalorder %s64, 0
      %s67 = sadd.s32 %s66, 1
      %s68 = scalar_select %p65, %s66, %s67
      %p71 = pneg %p65
      %p72 = scmp.eq.s32.totalorder %s30, 1
      %p73 = por %p71, %p72
      %p74 = scmp.ne.s32.totalorder %s66, %s69
      %p75 = scmp.eq.s32.totalorder %s30, 0
      %p76 = por %p74, %p75
      %p77 = scmp.ne.s32.totalorder %s66, %s69
      %p78 = scmp.eq.s32.totalorder %s35, 1
      %p79 = por %p77, %p78
      %p80 = scmp.ne.s32.totalorder %s69, %s70
      %p81 = scmp.eq.s32.totalorder %s35, 0
      %p82 = por %p80, %p81
      %p83 = scmp.ne.s32.totalorder %s69, %s70
      %p84 = scmp.eq.s32.totalorder %s36, 1
      %p85 = por %p83, %p84
      %p87 = scmp.ne.s32.totalorder %s70, %s86
      %p88 = scmp.eq.s32.totalorder %s36, 0
      %p89 = por %p87, %p88
      %s91 = sadd.s32 %s90, 1
      %p94 = scmp.eq.s32.totalorder %s30, 1
      %p95 = scmp.ne.s32.totalorder %s90, %s92
      %p96 = scmp.eq.s32.totalorder %s30, 0
      %p97 = por %p95, %p96
      %p98 = scmp.ne.s32.totalorder %s90, %s92
      %p99 = scmp.eq.s32.totalorder %s35, 1
      %p100 = por %p98, %p99
      %p101 = scmp.ne.s32.totalorder %s92, %s93
      %p102 = scmp.eq.s32.totalorder %s35, 0
      %p103 = por %p101, %p102
      %p104 = scmp.ne.s32.totalorder %s92, %s93
      %p105 = scmp.eq.s32.totalorder %s36, 1
      %p106 = por %p104, %p105
      %p108 = scmp.ne.s32.totalorder %s93, %s107
      %p109 = scmp.eq.s32.totalorder %s36, 0
      %p110 = por %p108, %p109
      %s112 = sadd.s32 %s111, 1
      %p115 = scmp.eq.s32.totalorder %s30, 1
      %p116 = scmp.ne.s32.totalorder %s111, %s113
      %p117 = scmp.eq.s32.totalorder %s30, 0
      %p118 = por %p116, %p117
      %p119 = scmp.ne.s32.totalorder %s111, %s113
      %p120 = scmp.eq.s32.totalorder %s35, 1
      %p121 = por %p119, %p120
      %p122 = scmp.ne.s32.totalorder %s113, %s114
      %p123 = scmp.eq.s32.totalorder %s35, 0
      %p124 = por %p122, %p123
      %p125 = scmp.ne.s32.totalorder %s113, %s114
      %p126 = scmp.eq.s32.totalorder %s36, 1
      %p127 = por %p125, %p126
      %p129 = scmp.ne.s32.totalorder %s114, %s128
      %p130 = scmp.eq.s32.totalorder %s36, 0
      %p131 = por %p129, %p130
      %s133 = sadd.s32 %s132, 1
      %p136 = scmp.eq.s32.totalorder %s30, 1
      %p137 = scmp.ne.s32.totalorder %s132, %s134
      %p138 = scmp.eq.s32.totalorder %s30, 0
      %p139 = por %p137, %p138
      %p140 = scmp.ne.s32.totalorder %s132, %s134
      %p141 = scmp.eq.s32.totalorder %s35, 1
      %p142 = por %p140, %p141
      %p143 = scmp.ne.s32.totalorder %s134, %s135
      %p144 = scmp.eq.s32.totalorder %s35, 0
      %p145 = por %p143, %p144
      %p146 = scmp.ne.s32.totalorder %s134, %s135
      %p147 = scmp.eq.s32.totalorder %s36, 1
      %p148 = por %p146, %p147
      %p150 = scmp.ne.s32.totalorder %s135, %s149
      %p151 = scmp.eq.s32.totalorder %s36, 0
      %p152 = por %p150, %p151
      %s154 = sadd.s32 %s153, 1
      %p157 = scmp.eq.s32.totalorder %s30, 1
      %p158 = scmp.ne.s32.totalorder %s153, %s155
      %p159 = scmp.eq.s32.totalorder %s30, 0
      %p160 = por %p158, %p159
      %p161 = scmp.ne.s32.totalorder %s153, %s155
      %p162 = scmp.eq.s32.totalorder %s35, 1
      %p163 = por %p161, %p162
      %p164 = scmp.ne.s32.totalorder %s155, %s156
      %p165 = scmp.eq.s32.totalorder %s35, 0
      %p166 = por %p164, %p165
      %p167 = scmp.ne.s32.totalorder %s155, %s156
      %p168 = scmp.eq.s32.totalorder %s36, 1
      %p169 = por %p167, %p168
      %p171 = scmp.ne.s32.totalorder %s156, %s170
      %p172 = scmp.eq.s32.totalorder %s36, 0
      %p173 = por %p171, %p172
      %s175 = sadd.s32 %s174, 1
      %p178 = scmp.eq.s32.totalorder %s30, 1
      %p179 = scmp.ne.s32.totalorder %s174, %s176
      %p180 = scmp.eq.s32.totalorder %s30, 0
      %p181 = por %p179, %p180
      %p182 = scmp.ne.s32.totalorder %s174, %s176
      %p183 = scmp.eq.s32.totalorder %s35, 1
      %p184 = por %p182, %p183
      %p185 = scmp.ne.s32.totalorder %s176, %s177
      %p186 = scmp.eq.s32.totalorder %s35, 0
      %p187 = por %p185, %p186
      %p188 = scmp.ne.s32.totalorder %s176, %s177
      %p189 = scmp.eq.s32.totalorder %s36, 1
      %p190 = por %p188, %p189
      %p192 = scmp.ne.s32.totalorder %s177, %s191
      %p193 = scmp.eq.s32.totalorder %s36, 0
      %p194 = por %p192, %p193
      %s196 = sadd.s32 %s195, 1
      %p199 = scmp.eq.s32.totalorder %s30, 1
      %p200 = scmp.ne.s32.totalorder %s195, %s197
      %p201 = scmp.eq.s32.totalorder %s30, 0
      %p202 = por %p200, %p201
      %p203 = scmp.ne.s32.totalorder %s195, %s197
      %p204 = scmp.eq.s32.totalorder %s35, 1
      %p205 = por %p203, %p204
      %p206 = scmp.ne.s32.totalorder %s197, %s198
      %p207 = scmp.eq.s32.totalorder %s35, 0
      %p208 = por %p206, %p207
      %p209 = scmp.ne.s32.totalorder %s197, %s198
      %p210 = scmp.eq.s32.totalorder %s36, 1
      %p211 = por %p209, %p210
      %p213 = scmp.ne.s32.totalorder %s198, %s212
      %p214 = scmp.eq.s32.totalorder %s36, 0
      %p215 = por %p213, %p214
      %s217 = sadd.s32 %s216, 1
      %p220 = scmp.eq.s32.totalorder %s30, 1
      %p221 = scmp.ne.s32.totalorder %s216, %s218
      %p222 = scmp.eq.s32.totalorder %s30, 0
      %p223 = por %p221, %p222
      %p224 = scmp.ne.s32.totalorder %s216, %s218
      %p225 = scmp.eq.s32.totalorder %s35, 1
      %p226 = por %p224, %p225
      %p227 = scmp.ne.s32.totalorder %s218, %s219
      %p228 = scmp.eq.s32.totalorder %s35, 0
      %p229 = por %p227, %p228
      %p230 = scmp.ne.s32.totalorder %s218, %s219
      %p231 = scmp.eq.s32.totalorder %s36, 1
      %p232 = por %p230, %p231
      %p234 = scmp.ne.s32.totalorder %s219, %s233
      %p235 = scmp.eq.s32.totalorder %s36, 0
      %p236 = por %p234, %p235
      %s238 = sadd.s32 %s237, 1
      %p241 = scmp.eq.s32.totalorder %s30, 1
      %p242 = scmp.ne.s32.totalorder %s237, %s239
      %p243 = scmp.eq.s32.totalorder %s30, 0
      %p244 = por %p242, %p243
      %p245 = scmp.ne.s32.totalorder %s237, %s239
      %p246 = scmp.eq.s32.totalorder %s35, 1
      %p247 = por %p245, %p246
      %p248 = scmp.ne.s32.totalorder %s239, %s240
      %p249 = scmp.eq.s32.totalorder %s35, 0
      %p250 = por %p248, %p249
      %p251 = scmp.ne.s32.totalorder %s239, %s240
      %p252 = scmp.eq.s32.totalorder %s36, 1
      %p253 = por %p251, %p252
      %p255 = scmp.ne.s32.totalorder %s240, %s254
      %p256 = scmp.eq.s32.totalorder %s36, 0
      %p257 = por %p255, %p256
      %s259 = sadd.s32 %s258, 1
      %p262 = scmp.eq.s32.totalorder %s30, 1
      %p263 = scmp.ne.s32.totalorder %s258, %s260
      %p264 = scmp.eq.s32.totalorder %s30, 0
      %p265 = por %p263, %p264
      %p266 = scmp.ne.s32.totalorder %s258, %s260
      %p267 = scmp.eq.s32.totalorder %s35, 1
      %p268 = por %p266, %p267
      %p269 = scmp.ne.s32.totalorder %s260, %s261
      %p270 = scmp.eq.s32.totalorder %s35, 0
      %p271 = por %p269, %p270
      %p272 = scmp.ne.s32.totalorder %s260, %s261
      %p273 = scmp.eq.s32.totalorder %s36, 1
      %p274 = por %p272, %p273
      %p276 = scmp.ne.s32.totalorder %s261, %s275
      %p277 = scmp.eq.s32.totalorder %s36, 0
      %p278 = por %p276, %p277
      %s280 = sadd.s32 %s279, 1
      %p283 = scmp.eq.s32.totalorder %s30, 1
      %p284 = scmp.ne.s32.totalorder %s279, %s281
      %p285 = scmp.eq.s32.totalorder %s30, 0
      %p286 = por %p284, %p285
      %p287 = scmp.ne.s32.totalorder %s279, %s281
      %p288 = scmp.eq.s32.totalorder %s35, 1
      %p289 = por %p287, %p288
      %p290 = scmp.ne.s32.totalorder %s281, %s282
      %p291 = scmp.eq.s32.totalorder %s35, 0
      %p292 = por %p290, %p291
      %p293 = scmp.ne.s32.totalorder %s281, %s282
      %p294 = scmp.eq.s32.totalorder %s36, 1
      %p295 = por %p293, %p294
      %p297 = scmp.ne.s32.totalorder %s282, %s296
      %p298 = scmp.eq.s32.totalorder %s36, 0
      %p299 = por %p297, %p298
      %s301 = sadd.s32 %s300, 1
      %p304 = scmp.eq.s32.totalorder %s30, 1
      %p305 = scmp.ne.s32.totalorder %s300, %s302
      %p306 = scmp.eq.s32.totalorder %s30, 0
      %p307 = por %p305, %p306
      %p308 = scmp.ne.s32.totalorder %s300, %s302
      %p309 = scmp.eq.s32.totalorder %s35, 1
      %p310 = por %p308, %p309
      %p311 = scmp.ne.s32.totalorder %s302, %s303
      %p312 = scmp.eq.s32.totalorder %s35, 0
      %p313 = por %p311, %p312
      %p314 = scmp.ne.s32.totalorder %s302, %s303
      %p315 = scmp.eq.s32.totalorder %s36, 1
      %p316 = por %p314, %p315
      %p318 = scmp.ne.s32.totalorder %s303, %s317
      %p319 = scmp.eq.s32.totalorder %s36, 0
      %p320 = por %p318, %p319
      %s322 = sadd.s32 %s321, 1
      %p325 = scmp.eq.s32.totalorder %s30, 1
      %p326 = scmp.ne.s32.totalorder %s321, %s323
      %p327 = scmp.eq.s32.totalorder %s30, 0
      %p328 = por %p326, %p327
      %p329 = scmp.ne.s32.totalorder %s321, %s323
      %p330 = scmp.eq.s32.totalorder %s35, 1
      %p331 = por %p329, %p330
      %p332 = scmp.ne.s32.totalorder %s323, %s324
      %p333 = scmp.eq.s32.totalorder %s35, 0
      %p334 = por %p332, %p333
      %p335 = scmp.ne.s32.totalorder %s323, %s324
      %p336 = scmp.eq.s32.totalorder %s36, 1
      %p337 = por %p335, %p336
      %p339 = scmp.ne.s32.totalorder %s324, %s338
      %p340 = scmp.eq.s32.totalorder %s36, 0
      %p341 = por %p339, %p340
      %s343 = sadd.s32 %s342, 1
      %p346 = scmp.eq.s32.totalorder %s30, 1
      %p347 = scmp.ne.s32.totalorder %s342, %s344
      %p348 = scmp.eq.s32.totalorder %s30, 0
      %p349 = por %p347, %p348
      %p350 = scmp.ne.s32.totalorder %s342, %s344
      %p351 = scmp.eq.s32.totalorder %s35, 1
      %p352 = por %p350, %p351
      %p353 = scmp.ne.s32.totalorder %s344, %s345
      %p354 = scmp.eq.s32.totalorder %s35, 0
      %p355 = por %p353, %p354
      %p356 = scmp.ne.s32.totalorder %s344, %s345
      %p357 = scmp.eq.s32.totalorder %s36, 1
      %p358 = por %p356, %p357
      %p360 = scmp.ne.s32.totalorder %s345, %s359
      %p361 = scmp.eq.s32.totalorder %s36, 0
      %p362 = por %p360, %p361
      %s364 = sadd.s32 %s363, 1
      %p367 = scmp.eq.s32.totalorder %s30, 1
      %p368 = scmp.ne.s32.totalorder %s363, %s365
      %p369 = scmp.eq.s32.totalorder %s30, 0
      %p370 = por %p368, %p369
      %p371 = scmp.ne.s32.totalorder %s363, %s365
      %p372 = scmp.eq.s32.totalorder %s35, 1
      %p373 = por %p371, %p372
      %p374 = scmp.ne.s32.totalorder %s365, %s366
      %p375 = scmp.eq.s32.totalorder %s35, 0
      %p376 = por %p374, %p375
      %p377 = scmp.ne.s32.totalorder %s365, %s366
      %p378 = scmp.eq.s32.totalorder %s36, 1
      %p379 = por %p377, %p378
      %p381 = scmp.ne.s32.totalorder %s366, %s380
      %p382 = scmp.eq.s32.totalorder %s36, 0
      %p383 = por %p381, %p382
      %s385 = sadd.s32 %s384, 1
      %p388 = scmp.eq.s32.totalorder %s30, 1
      %p389 = scmp.ne.s32.totalorder %s384, %s386
      %p390 = scmp.eq.s32.totalorder %s30, 0
      %p391 = por %p389, %p390
      %p392 = scmp.ne.s32.totalorder %s384, %s386
      %p393 = scmp.eq.s32.totalorder %s35, 1
      %p394 = por %p392, %p393
      %p395 = scmp.ne.s32.totalorder %s386, %s387
      %p396 = scmp.eq.s32.totalorder %s35, 0
      %p397 = por %p395, %p396
      %p398 = scmp.ne.s32.totalorder %s386, %s387
      %p399 = scmp.eq.s32.totalorder %s36, 1
      %p400 = por %p398, %p399
      %p402 = scmp.ne.s32.totalorder %s387, %s401
      %p403 = scmp.eq.s32.totalorder %s36, 0
      %p404 = por %p402, %p403
      %s406 = sadd.s32 %s405, 1
      %p409 = scmp.eq.s32.totalorder %s30, 1
      %p410 = scmp.ne.s32.totalorder %s405, %s407
      %p411 = scmp.eq.s32.totalorder %s30, 0
      %p412 = por %p410, %p411
      %p413 = scmp.ne.s32.totalorder %s405, %s407
      %p414 = scmp.eq.s32.totalorder %s35, 1
      %p415 = por %p413, %p414
      %p416 = scmp.ne.s32.totalorder %s407, %s408
      %p417 = scmp.eq.s32.totalorder %s35, 0
      %p418 = por %p416, %p417
      %p419 = scmp.ne.s32.totalorder %s407, %s408
      %p420 = scmp.eq.s32.totalorder %s36, 1
      %p421 = por %p419, %p420
      %p423 = scmp.ne.s32.totalorder %s408, %s422
      %p424 = scmp.eq.s32.totalorder %s36, 0
      %p425 = por %p423, %p424
      %s427 = sadd.s32 %s426, 1
      %p430 = scmp.eq.s32.totalorder %s30, 1
      %p431 = scmp.ne.s32.totalorder %s426, %s428
      %p432 = scmp.eq.s32.totalorder %s30, 0
      %p433 = por %p431, %p432
      %p434 = scmp.ne.s32.totalorder %s426, %s428
      %p435 = scmp.eq.s32.totalorder %s35, 1
      %p436 = por %p434, %p435
      %p437 = scmp.ne.s32.totalorder %s428, %s429
      %p438 = scmp.eq.s32.totalorder %s35, 0
      %p439 = por %p437, %p438
      %p440 = scmp.ne.s32.totalorder %s428, %s429
      %p441 = scmp.eq.s32.totalorder %s36, 1
      %p442 = por %p440, %p441
      %p444 = scmp.ne.s32.totalorder %s429, %s443
      %p445 = scmp.eq.s32.totalorder %s36, 0
      %p446 = por %p444, %p445
      %s447 = ssub.s32 %s30, %s37
      %p448 = scmp.eq.s32.totalorder %s447, 0
      %s450 = sadd.s32 %s449, 1
      %s451 = scalar_select %p448, %s449, %s450
      %p454 = pneg %p448
      %p455 = scmp.eq.s32.totalorder %s30, 1
      %p456 = por %p454, %p455
      %p457 = scmp.ne.s32.totalorder %s449, %s452
      %p458 = scmp.eq.s32.totalorder %s30, 0
      %p459 = por %p457, %p458
      %p460 = scmp.ne.s32.totalorder %s449, %s452
      %p461 = scmp.eq.s32.totalorder %s35, 1
      %p462 = por %p460, %p461
      %p463 = scmp.ne.s32.totalorder %s452, %s453
      %p464 = scmp.eq.s32.totalorder %s35, 0
      %p465 = por %p463, %p464
      %p466 = scmp.ne.s32.totalorder %s452, %s453
      %p467 = scmp.eq.s32.totalorder %s36, 1
      %p468 = por %p466, %p467
      %p470 = scmp.ne.s32.totalorder %s453, %s469
      %p471 = scmp.eq.s32.totalorder %s36, 0
      %p472 = por %p470, %p471
      %s473 = ssub.s32 %s30, %s37
      %p474 = scmp.eq.s32.totalorder %s473, 0
      %s476 = sadd.s32 %s475, 1
      %s477 = scalar_select %p474, %s475, %s476
      %p480 = pneg %p474
      %p481 = scmp.eq.s32.totalorder %s30, 1
      %p482 = por %p480, %p481
      %p483 = scmp.ne.s32.totalorder %s475, %s478
      %p484 = scmp.eq.s32.totalorder %s30, 0
      %p485 = por %p483, %p484
      %p486 = scmp.ne.s32.totalorder %s475, %s478
      %p487 = scmp.eq.s32.totalorder %s35, 1
      %p488 = por %p486, %p487
      %p489 = scmp.ne.s32.totalorder %s478, %s479
      %p490 = scmp.eq.s32.totalorder %s35, 0
      %p491 = por %p489, %p490
      %p492 = scmp.ne.s32.totalorder %s478, %s479
      %p493 = scmp.eq.s32.totalorder %s36, 1
      %p494 = por %p492, %p493
      %p496 = scmp.ne.s32.totalorder %s479, %s495
      %p497 = scmp.eq.s32.totalorder %s36, 0
      %p498 = por %p496, %p497
      %p499 = scmp.le.s32.totalorder 1, %s30
      %p500 = scmp.lt.s32.totalorder %s30, 3
      %p501 = pnand %p499, %p500
      %p502 = pneg %p501
      // Predicated region
      $region9: #{_lambda_.8} parent=5 // pred_check
        _
      $region10: #{_lambda_.8} parent=5 // pred_check_branch
        %504 = sbr.rel (%p501) target = $region12
      $region11: #{_lambda_.8} parent=5 // pred_region
        %s505 = ssub.s32 %s30, 1
        // Predicated region
        $region13: #{_lambda_.8} parent=11 // pred_check
          %p506 = pneg %p103
        $region14: #{_lambda_.8} parent=11 // pred_check_branch
          %508 = sbr.rel (%p506) target = $region16
        $region15: #{_lambda_.8} parent=11 // pred_region
          _
        $region16: #{_lambda_.8} parent=11 // pred_fallthru
          _
        // Predicated region
        $region17: #{_lambda_.8} parent=11 // pred_check
          %p509 = pneg %p124
        $region18: #{_lambda_.8} parent=11 // pred_check_branch
          %511 = sbr.rel (%p509) target = $region20
        $region19: #{_lambda_.8} parent=11 // pred_region
          _
        $region20: #{_lambda_.8} parent=11 // pred_fallthru
          _
        // Predicated region
        $region21: #{_lambda_.8} parent=11 // pred_check
          %p512 = pneg %p145
        $region22: #{_lambda_.8} parent=11 // pred_check_branch
          %514 = sbr.rel (%p512) target = $region24
        $region23: #{_lambda_.8} parent=11 // pred_region
          _
        $region24: #{_lambda_.8} parent=11 // pred_fallthru
          _
        // Predicated region
        $region25: #{_lambda_.8} parent=11 // pred_check
          %p515 = pneg %p166
        $region26: #{_lambda_.8} parent=11 // pred_check_branch
          %517 = sbr.rel (%p515) target = $region28
        $region27: #{_lambda_.8} parent=11 // pred_region
          _
        $region28: #{_lambda_.8} parent=11 // pred_fallthru
          _
        // Predicated region
        $region29: #{_lambda_.8} parent=11 // pred_check
          %p518 = pneg %p187
        $region30: #{_lambda_.8} parent=11 // pred_check_branch
          %520 = sbr.rel (%p518) target = $region32
        $region31: #{_lambda_.8} parent=11 // pred_region
          _
        $region32: #{_lambda_.8} parent=11 // pred_fallthru
          _
        // Predicated region
        $region33: #{_lambda_.8} parent=11 // pred_check
          %p521 = pneg %p208
        $region34: #{_lambda_.8} parent=11 // pred_check_branch
          %523 = sbr.rel (%p521) target = $region36
        $region35: #{_lambda_.8} parent=11 // pred_region
          _
        $region36: #{_lambda_.8} parent=11 // pred_fallthru
          _
        // Predicated region
        $region37: #{_lambda_.8} parent=11 // pred_check
          %p524 = pneg %p229
        $region38: #{_lambda_.8} parent=11 // pred_check_branch
          %526 = sbr.rel (%p524) target = $region40
        $region39: #{_lambda_.8} parent=11 // pred_region
          _
        $region40: #{_lambda_.8} parent=11 // pred_fallthru
          _
        // Predicated region
        $region41: #{_lambda_.8} parent=11 // pred_check
          %p527 = pneg %p250
        $region42: #{_lambda_.8} parent=11 // pred_check_branch
          %529 = sbr.rel (%p527) target = $region44
        $region43: #{_lambda_.8} parent=11 // pred_region
          _
        $region44: #{_lambda_.8} parent=11 // pred_fallthru
          _
        // Predicated region
        $region45: #{_lambda_.8} parent=11 // pred_check
          %p530 = pneg %p271
        $region46: #{_lambda_.8} parent=11 // pred_check_branch
          %532 = sbr.rel (%p530) target = $region48
        $region47: #{_lambda_.8} parent=11 // pred_region
          _
        $region48: #{_lambda_.8} parent=11 // pred_fallthru
          _
        // Predicated region
        $region49: #{_lambda_.8} parent=11 // pred_check
          %p533 = pneg %p292
        $region50: #{_lambda_.8} parent=11 // pred_check_branch
          %535 = sbr.rel (%p533) target = $region52
        $region51: #{_lambda_.8} parent=11 // pred_region
          _
        $region52: #{_lambda_.8} parent=11 // pred_fallthru
          _
        // Predicated region
        $region53: #{_lambda_.8} parent=11 // pred_check
          %p536 = pneg %p313
        $region54: #{_lambda_.8} parent=11 // pred_check_branch
          %538 = sbr.rel (%p536) target = $region56
        $region55: #{_lambda_.8} parent=11 // pred_region
          _
        $region56: #{_lambda_.8} parent=11 // pred_fallthru
          _
        // Predicated region
        $region57: #{_lambda_.8} parent=11 // pred_check
          %p539 = pneg %p334
        $region58: #{_lambda_.8} parent=11 // pred_check_branch
          %541 = sbr.rel (%p539) target = $region60
        $region59: #{_lambda_.8} parent=11 // pred_region
          _
        $region60: #{_lambda_.8} parent=11 // pred_fallthru
          _
        // Predicated region
        $region61: #{_lambda_.8} parent=11 // pred_check
          %p542 = pneg %p355
        $region62: #{_lambda_.8} parent=11 // pred_check_branch
          %544 = sbr.rel (%p542) target = $region64
        $region63: #{_lambda_.8} parent=11 // pred_region
          _
        $region64: #{_lambda_.8} parent=11 // pred_fallthru
          _
        // Predicated region
        $region65: #{_lambda_.8} parent=11 // pred_check
          %p545 = pneg %p376
        $region66: #{_lambda_.8} parent=11 // pred_check_branch
          %547 = sbr.rel (%p545) target = $region68
        $region67: #{_lambda_.8} parent=11 // pred_region
          _
        $region68: #{_lambda_.8} parent=11 // pred_fallthru
          _
        // Predicated region
        $region69: #{_lambda_.8} parent=11 // pred_check
          %p548 = pneg %p397
        $region70: #{_lambda_.8} parent=11 // pred_check_branch
          %550 = sbr.rel (%p548) target = $region72
        $region71: #{_lambda_.8} parent=11 // pred_region
          _
        $region72: #{_lambda_.8} parent=11 // pred_fallthru
          _
        // Predicated region
        $region73: #{_lambda_.8} parent=11 // pred_check
          %p551 = pneg %p418
        $region74: #{_lambda_.8} parent=11 // pred_check_branch
          %553 = sbr.rel (%p551) target = $region76
        $region75: #{_lambda_.8} parent=11 // pred_region
          _
        $region76: #{_lambda_.8} parent=11 // pred_fallthru
          _
        // Predicated region
        $region77: #{_lambda_.8} parent=11 // pred_check
          %p554 = pneg %p439
        $region78: #{_lambda_.8} parent=11 // pred_check_branch
          %556 = sbr.rel (%p554) target = $region80
        $region79: #{_lambda_.8} parent=11 // pred_region
          _
        $region80: #{_lambda_.8} parent=11 // pred_fallthru
          _
      $region12: #{_lambda_.8} parent=5 // pred_fallthru
        _
      %p557 = scmp.lt.s32.totalorder %s30, 2
      // Predicated region
      $region81: #{_lambda_.8} parent=5 // pred_check
        %p558 = pneg %p557
      $region82: #{_lambda_.8} parent=5 // pred_check_branch
        %560 = sbr.rel (%p558) target = $region84
      $region83: #{_lambda_.8} parent=5 // pred_region
        // Predicated region
        $region85: #{_lambda_.8} parent=83 // pred_check
          %p561 = pneg %p50
        $region86: #{_lambda_.8} parent=83 // pred_check_branch
          %563 = sbr.rel (%p561) target = $region88
        $region87: #{_lambda_.8} parent=83 // pred_region
          %p564 = scmp.lt.s32.totalorder %s30, 1
          %s565 = scalar_select %p564, %s30, 1
          %s566 = smul.addr %s565, 4
          %s567 = scalar_lea.vmem %s0, %s566
        $region88: #{_lambda_.8} parent=83 // pred_fallthru
          _
        // Predicated region
        $region89: #{_lambda_.8} parent=83 // pred_check
          %p568 = pneg %p76
        $region90: #{_lambda_.8} parent=83 // pred_check_branch
          %570 = sbr.rel (%p568) target = $region92
        $region91: #{_lambda_.8} parent=83 // pred_region
          %p571 = scmp.lt.s32.totalorder %s30, 1
          %s572 = scalar_select %p571, %s30, 1
          %s573 = smul.addr %s572, 4
          %s574 = scalar_lea.vmem %s1, %s573
        $region92: #{_lambda_.8} parent=83 // pred_fallthru
          _
      $region84: #{_lambda_.8} parent=5 // pred_fallthru
        _
      %p575 = scmp.le.s32.totalorder 1, %s30
      %p576 = scmp.lt.s32.totalorder %s30, 3
      %p577 = pnand %p575, %p576
      %p578 = pneg %p577
      // Predicated region
      $region93: #{_lambda_.8} parent=5 // pred_check
        _
      $region94: #{_lambda_.8} parent=5 // pred_check_branch
        %580 = sbr.rel (%p577) target = $region96
      $region95: #{_lambda_.8} parent=5 // pred_region
        %s581 = ssub.s32 %s30, 1
        %p582 = scmp.lt.s32.totalorder %s35, 1
        %s583 = scalar_select %p582, %s35, 1
        %s584 = smul.addr %s583, 4
        %s585 = scalar_lea.vmem %s0, %s584
        %p586 = pneg %p56
        %p587 = pneg %p53
        %p588 = scmp.lt.s32.totalorder %s35, 1
        %s589 = scalar_select %p588, %s35, 1
        %s590 = smul.addr %s589, 4
        %s591 = scalar_lea.vmem %s1, %s590
        %p592 = pneg %p82
        %p593 = pneg %p79
        %p594 = pneg %p103
        %p595 = pneg %p100
        %p596 = pneg %p124
        %p597 = pneg %p121
        %p598 = pneg %p145
        %p599 = pneg %p142
        %p600 = pneg %p166
        %p601 = pneg %p163
        %p602 = pneg %p187
        %p603 = pneg %p184
        %p604 = pneg %p208
        %p605 = pneg %p205
        %p606 = pneg %p229
        %p607 = pneg %p226
        %p608 = pneg %p250
        %p609 = pneg %p247
        %p610 = pneg %p271
        %p611 = pneg %p268
        %p612 = pneg %p292
        %p613 = pneg %p289
        %p614 = pneg %p313
        %p615 = pneg %p310
        %p616 = pneg %p334
        %p617 = pneg %p331
        %p618 = pneg %p355
        %p619 = pneg %p352
        %p620 = pneg %p376
        %p621 = pneg %p373
        %p622 = pneg %p397
        %p623 = pneg %p394
        %p624 = pneg %p418
        %p625 = pneg %p415
        %p626 = pneg %p439
        %p627 = pneg %p436
        %p628 = pneg %p465
        %p629 = pneg %p462
        %s630 = sand.u32 %s452, 1
        %s631 = scalar_lea.sflag [#allocation4], %s630
        %s632 = sand.u32 %s452, 1
        %s633 = smul.addr %s632, 4
        %s634 = scalar_lea.vmem [#allocation3], %s633
        %p635 = pneg %p491
        %p636 = pneg %p488
        %p637 = scmp.lt.s32.totalorder %s35, 1
        %s638 = scalar_select %p637, %s35, 1
        %s639 = scalar_lea.vmem %s20, %s638
        %p640 = scmp.lt.s32.totalorder %s35, 1
        %s641 = scalar_select %p640, %s35, 1
        %s642 = smul.addr %s641, 4
        %s643 = scalar_lea.vmem %s0, %s642
        %p644 = scmp.lt.s32.totalorder %s35, 1
        %s645 = scalar_select %p644, %s35, 1
        %s646 = smul.addr %s645, 4
        %s647 = scalar_lea.vmem %s1, %s646
        %p648 = scmp.lt.s32.totalorder %s35, 1
        %s649 = scalar_select %p648, %s35, 1
        %s650 = scalar_lea.vmem %s20, %s649
        %v652 = vld [vmem:[%s643] sm:$0xf]
        %v653 = vunpack.c.l.bf16 %v652
        %v654 = vld [vmem:[%s647] sm:$0xf]
        %v655 = vunpack.c.l.bf16 %v654
        %v656 = vadd.f32 %v653, %v655
        %v657 = vpack.c.bf16 %v656, %v656
        %v658 = vld [vmem:[%s2] sm:$0xf]
        %v659 = vld [vmem:[%s2 + $0x4] sm:$0xf]
        %v660 = vld [vmem:[%s2 + $0x8] sm:$0xf]
        %v661 = vld [vmem:[%s2 + $0xc] sm:$0xf]
        %v662 = vld [vmem:[%s3] sm:$0x1]
        %v663 = vlaneseq
        %v664 = vshrl.u32 %v663, 7
        %v665 = vsub.s32 0, %v664
        %v666 = vrot.slane %v662, %v665
        %v671 = vunpack.c.l.b16 %v658
        %v672 = vunpack.c.l.b16 %v659
        %v673 = vunpack.c.l.b16 %v660
        %v674 = vunpack.c.l.b16 %v661
        %v675 = vpack.c.b16 %v672, %v671
        %v676 = vpack.c.b16 %v674, %v673
        %vm679 = vcmask 261120
        %v681 = vsel %vm679, %v657, 0
        %683 = vmatprep.subr.bf16.mxu0 0
        %684 = vmatpush1.bf16.msra.mxu0 %v675
        %685 = vmatprep.subr.bf16.mxu0 0
        %686 = vmatpush1.bf16.msra.mxu0 %v676
        %687 = vmatprep.subr.bf16.mxu0 0
        %688 = vmatpush1.bf16.msra.mxu0 0
        %689 = vmatprep.subr.bf16.mxu0 0
        %690 = vmatpush1.bf16.msra.mxu0 0
        %691 = vmatprep.subr.bf16.mxu0 0
        %692 = vmatpush1.bf16.msra.mxu0 0
        %693 = vmatprep.subr.bf16.mxu0 0
        %694 = vmatpush1.bf16.msra.mxu0 0
        %695 = vmatprep.subr.bf16.mxu0 0
        %696 = vmatpush1.bf16.msra.mxu0 0
        %697 = vmatprep.subr.bf16.mxu0 0
        %698 = vmatpush1.bf16.msra.mxu0 0
        %699 = vmatprep.subr.bf16.mxu0 0
        %700 = vmatpush1.bf16.msra.mxu0 0
        %701 = vmatprep.subr.bf16.mxu0 0
        %702 = vmatpush1.bf16.msra.mxu0 0
        %703 = vmatprep.subr.bf16.mxu0 0
        %704 = vmatpush1.bf16.msra.mxu0 0
        %705 = vmatprep.subr.bf16.mxu0 0
        %706 = vmatpush1.bf16.msra.mxu0 0
        %707 = vmatprep.subr.bf16.mxu0 0
        %708 = vmatpush1.bf16.msra.mxu0 0
        %709 = vmatprep.subr.bf16.mxu0 0
        %710 = vmatpush1.bf16.msra.mxu0 0
        %711 = vmatprep.subr.bf16.mxu0 0
        %712 = vmatpush1.bf16.msra.mxu0 0
        %713 = vmatprep.subr.bf16.mxu0 0
        %714 = vmatpush1.bf16.msra.mxu0 0
        %715 = vmatprep.mubr.bf16.mxu0 0
        %716 = vmatmul.mubr.bf16.gmra.mrb[0].mxu0 %v681
        %v717 = vpop.f32.mrb[0].mxu0
        %v718 = vadd.f32 %v666, %v717
        %v719 = vpop.f32.mrb[0].mxu0
        %v720 = vpop.f32.mrb[0].mxu0
        %v721 = vpop.f32.mrb[0].mxu0
        %722 = vdwg.mxu0
        %v723 = vmax.f32 %v718, 0.0
        %v724 = vld [vmem:[%s3 + $0x1] sm:$0x1]
        %v725 = vlaneseq
        %v726 = vshrl.u32 %v725, 7
        %v727 = vsub.s32 0, %v726
        %v728 = vrot.slane %v724, %v727
        %v729 = vmul.f32 %v723, %v728
        %v730 = vld [vmem:[%s3 + $0x2] sm:$0x1]
        %v731 = vlaneseq
        %v732 = vshrl.u32 %v731, 7
        %v733 = vsub.s32 0, %v732
        %v734 = vrot.slane %v730, %v733
        %v735 = vadd.f32 %v729, %v734
        %v736 = vpack.c.bf16 %v735, %v735
        %vm737 = vcmask 253952
        %738 = vst.msk [vmem:[#allocation2] sm:$0x1] %vm737, 0
        %vm739 = vcmask 254977
        %740 = vst.msk [vmem:[#allocation2 + $0x4] sm:$0x2] %vm739, 0
        %v742 = vunpack.c.l.b16 %v736
        %v743 = vpack.c.b16 %v742, %v742
        %v744 = vrot.slane %v743, 7
        %v745 = vrot.slane %v744, 4
        %vm748 = vcmask 257025
        %749 = vst.msk [vmem:[#allocation2] sm:$0xe] %vm748, %v744
        %750 = vst.msk [vmem:[#allocation2 + $0x4] sm:$0x1] %vm737, %v745
        %v751 = vld [vmem:[%s4] sm:$0xf]
        %v752 = vld [vmem:[%s4 + $0x4] sm:$0xf]
        %v753 = vld [vmem:[%s4 + $0x8] sm:$0xf]
        %v754 = vld [vmem:[%s4 + $0xc] sm:$0xf]
        %v755 = vld [vmem:[%s14] sm:$0x1]
        %v756 = vlaneseq
        %v757 = vshrl.u32 %v756, 7
        %v758 = vsub.s32 0, %v757
        %v759 = vrot.slane %v755, %v758
        %v764 = vunpack.c.l.b16 %v751
        %v765 = vunpack.c.l.b16 %v752
        %v766 = vunpack.c.l.b16 %v753
        %v767 = vunpack.c.l.b16 %v754
        %v768 = vpack.c.b16 %v765, %v764
        %v769 = vpack.c.b16 %v767, %v766
        %v773 = vsel %vm679, %v736, 0
        %775 = vmatprep.subr.bf16.mxu0 0
        %776 = vmatpush1.bf16.msra.mxu0 %v768
        %777 = vmatprep.subr.bf16.mxu0 0
        %778 = vmatpush1.bf16.msra.mxu0 %v769
        %779 = vmatprep.subr.bf16.mxu0 0
        %780 = vmatpush1.bf16.msra.mxu0 0
        %781 = vmatprep.subr.bf16.mxu0 0
        %782 = vmatpush1.bf16.msra.mxu0 0
        %783 = vmatprep.subr.bf16.mxu0 0
        %784 = vmatpush1.bf16.msra.mxu0 0
        %785 = vmatprep.subr.bf16.mxu0 0
        %786 = vmatpush1.bf16.msra.mxu0 0
        %787 = vmatprep.subr.bf16.mxu0 0
        %788 = vmatpush1.bf16.msra.mxu0 0
        %789 = vmatprep.subr.bf16.mxu0 0
        %790 = vmatpush1.bf16.msra.mxu0 0
        %791 = vmatprep.subr.bf16.mxu0 0
        %792 = vmatpush1.bf16.msra.mxu0 0
        %793 = vmatprep.subr.bf16.mxu0 0
        %794 = vmatpush1.bf16.msra.mxu0 0
        %795 = vmatprep.subr.bf16.mxu0 0
        %796 = vmatpush1.bf16.msra.mxu0 0
        %797 = vmatprep.subr.bf16.mxu0 0
        %798 = vmatpush1.bf16.msra.mxu0 0
        %799 = vmatprep.subr.bf16.mxu0 0
        %800 = vmatpush1.bf16.msra.mxu0 0
        %801 = vmatprep.subr.bf16.mxu0 0
        %802 = vmatpush1.bf16.msra.mxu0 0
        %803 = vmatprep.subr.bf16.mxu0 0
        %804 = vmatpush1.bf16.msra.mxu0 0
        %805 = vmatprep.subr.bf16.mxu0 0
        %806 = vmatpush1.bf16.msra.mxu0 0
        %807 = vmatprep.mubr.bf16.mxu0 0
        %808 = vmatmul.mubr.bf16.gmra.mrb[0].mxu0 %v773
        %v809 = vpop.f32.mrb[0].mxu0
        %v810 = vadd.f32 %v759, %v809
        %v811 = vpop.f32.mrb[0].mxu0
        %v812 = vpop.f32.mrb[0].mxu0
        %v813 = vpop.f32.mrb[0].mxu0
        %814 = vdwg.mxu0
        %v815 = vld [vmem:[#allocation2] sm:$0xf]
        %v816 = vld [vmem:[%s5] sm:$0xf]
        %v817 = vld [vmem:[%s5 + $0x4] sm:$0xf]
        %v818 = vld [vmem:[%s5 + $0x8] sm:$0xf]
        %v819 = vld [vmem:[%s5 + $0xc] sm:$0xf]
        %v820 = vld [vmem:[#allocation2] sm:$0xe]
        %v821 = vld [vmem:[#allocation2 + $0x4] sm:$0x1]
        %s822 = scalar_lea.vmem %s5, 16
        %v823 = vld [vmem:[%s822] sm:$0xf]
        %v824 = vld [vmem:[%s822 + $0x4] sm:$0xf]
        %v825 = vld [vmem:[%s822 + $0x8] sm:$0xf]
        %v826 = vld [vmem:[%s822 + $0xc] sm:$0xf]
        %v829 = vunpack.c.l.b16 %v820
        %v830 = vunpack.c.l.b16 %v821
        %v831 = vpack.c.b16 %v830, %v829
        %v832 = vrot.slane %v831, 1
        %v837 = vunpack.c.l.b16 %v823
        %v838 = vunpack.c.l.b16 %v824
        %v839 = vunpack.c.l.b16 %v825
        %v840 = vunpack.c.l.b16 %v826
        %v841 = vpack.c.b16 %v838, %v837
        %v842 = vpack.c.b16 %v840, %v839
        %v846 = vsel %vm679, %v832, 0
        %848 = vmatprep.subr.bf16.mxu0 0
        %849 = vmatpush1.bf16.msra.mxu0 %v841
        %850 = vmatprep.subr.bf16.mxu0 0
        %851 = vmatpush1.bf16.msra.mxu0 %v842
        %852 = vmatprep.subr.bf16.mxu0 0
        %853 = vmatpush1.bf16.msra.mxu0 0
        %854 = vmatprep.subr.bf16.mxu0 0
        %855 = vmatpush1.bf16.msra.mxu0 0
        %856 = vmatprep.subr.bf16.mxu0 0
        %857 = vmatpush1.bf16.msra.mxu0 0
        %858 = vmatprep.subr.bf16.mxu0 0
        %859 = vmatpush1.bf16.msra.mxu0 0
        %860 = vmatprep.subr.bf16.mxu0 0
        %861 = vmatpush1.bf16.msra.mxu0 0
        %862 = vmatprep.subr.bf16.mxu0 0
        %863 = vmatpush1.bf16.msra.mxu0 0
        %864 = vmatprep.subr.bf16.mxu0 0
        %865 = vmatpush1.bf16.msra.mxu0 0
        %866 = vmatprep.subr.bf16.mxu0 0
        %867 = vmatpush1.bf16.msra.mxu0 0
        %868 = vmatprep.subr.bf16.mxu0 0
        %869 = vmatpush1.bf16.msra.mxu0 0
        %870 = vmatprep.subr.bf16.mxu0 0
        %871 = vmatpush1.bf16.msra.mxu0 0
        %872 = vmatprep.subr.bf16.mxu0 0
        %873 = vmatpush1.bf16.msra.mxu0 0
        %874 = vmatprep.subr.bf16.mxu0 0
        %875 = vmatpush1.bf16.msra.mxu0 0
        %876 = vmatprep.subr.bf16.mxu0 0
        %877 = vmatpush1.bf16.msra.mxu0 0
        %878 = vmatprep.subr.bf16.mxu0 0
        %879 = vmatpush1.bf16.msra.mxu0 0
        %880 = vmatprep.mubr.bf16.mxu0 0
        %881 = vmatmul.mubr.bf16.gmra.mrb[0].mxu0 %v846
        %v882 = vpop.f32.mrb[0].mxu0
        %v883 = vadd.f32 0.0, %v882
        %v884 = vpop.f32.mrb[0].mxu0
        %v885 = vpop.f32.mrb[0].mxu0
        %v886 = vpop.f32.mrb[0].mxu0
        %887 = vdwg.mxu0
        %v892 = vunpack.c.l.b16 %v816
        %v893 = vunpack.c.l.b16 %v817
        %v894 = vunpack.c.l.b16 %v818
        %v895 = vunpack.c.l.b16 %v819
        %v896 = vpack.c.b16 %v893, %v892
        %v897 = vpack.c.b16 %v895, %v894
        %v901 = vsel %vm679, %v815, 0
        %903 = vmatprep.subr.bf16.mxu0 0
        %904 = vmatpush1.bf16.msra.mxu0 %v896
        %905 = vmatprep.subr.bf16.mxu0 0
        %906 = vmatpush1.bf16.msra.mxu0 %v897
        %907 = vmatprep.subr.bf16.mxu0 0
        %908 = vmatpush1.bf16.msra.mxu0 0
        %909 = vmatprep.subr.bf16.mxu0 0
        %910 = vmatpush1.bf16.msra.mxu0 0
        %911 = vmatprep.subr.bf16.mxu0 0
        %912 = vmatpush1.bf16.msra.mxu0 0
        %913 = vmatprep.subr.bf16.mxu0 0
        %914 = vmatpush1.bf16.msra.mxu0 0
        %915 = vmatprep.subr.bf16.mxu0 0
        %916 = vmatpush1.bf16.msra.mxu0 0
        %917 = vmatprep.subr.bf16.mxu0 0
        %918 = vmatpush1.bf16.msra.mxu0 0
        %919 = vmatprep.subr.bf16.mxu0 0
        %920 = vmatpush1.bf16.msra.mxu0 0
        %921 = vmatprep.subr.bf16.mxu0 0
        %922 = vmatpush1.bf16.msra.mxu0 0
        %923 = vmatprep.subr.bf16.mxu0 0
        %924 = vmatpush1.bf16.msra.mxu0 0
        %925 = vmatprep.subr.bf16.mxu0 0
        %926 = vmatpush1.bf16.msra.mxu0 0
        %927 = vmatprep.subr.bf16.mxu0 0
        %928 = vmatpush1.bf16.msra.mxu0 0
        %929 = vmatprep.subr.bf16.mxu0 0
        %930 = vmatpush1.bf16.msra.mxu0 0
        %931 = vmatprep.subr.bf16.mxu0 0
        %932 = vmatpush1.bf16.msra.mxu0 0
        %933 = vmatprep.subr.bf16.mxu0 0
        %934 = vmatpush1.bf16.msra.mxu0 0
        %935 = vmatprep.mubr.bf16.mxu0 0
        %936 = vmatmul.mubr.bf16.gmra.mrb[0].mxu0 %v901
        %v937 = vpop.f32.mrb[0].mxu0
        %v938 = vadd.f32 %v883, %v937
        %v939 = vpop.f32.mrb[0].mxu0
        %v940 = vpop.f32.mrb[0].mxu0
        %v941 = vpop.f32.mrb[0].mxu0
        %942 = vdwg.mxu0
        %v943 = vld [vmem:[#allocation2] sm:$0xc]
        %v944 = vld [vmem:[#allocation2 + $0x4] sm:$0x3]
        %s945 = scalar_lea.vmem %s5, 32
        %v946 = vld [vmem:[%s945] sm:$0xf]
        %v947 = vld [vmem:[%s945 + $0x4] sm:$0xf]
        %v948 = vld [vmem:[%s945 + $0x8] sm:$0xf]
        %v949 = vld [vmem:[%s945 + $0xc] sm:$0xf]
        %v952 = vunpack.c.l.b16 %v943
        %v953 = vunpack.c.l.b16 %v944
        %v954 = vpack.c.b16 %v953, %v952
        %v955 = vrot.slane %v954, 2
        %v960 = vunpack.c.l.b16 %v946
        %v961 = vunpack.c.l.b16 %v947
        %v962 = vunpack.c.l.b16 %v948
        %v963 = vunpack.c.l.b16 %v949
        %v964 = vpack.c.b16 %v961, %v960
        %v965 = vpack.c.b16 %v963, %v962
        %v969 = vsel %vm679, %v955, 0
        %971 = vmatprep.subr.bf16.mxu0 0
        %972 = vmatpush1.bf16.msra.mxu0 %v964
        %973 = vmatprep.subr.bf16.mxu0 0
        %974 = vmatpush1.bf16.msra.mxu0 %v965
        %975 = vmatprep.subr.bf16.mxu0 0
        %976 = vmatpush1.bf16.msra.mxu0 0
        %977 = vmatprep.subr.bf16.mxu0 0
        %978 = vmatpush1.bf16.msra.mxu0 0
        %979 = vmatprep.subr.bf16.mxu0 0
        %980 = vmatpush1.bf16.msra.mxu0 0
        %981 = vmatprep.subr.bf16.mxu0 0
        %982 = vmatpush1.bf16.msra.mxu0 0
        %983 = vmatprep.subr.bf16.mxu0 0
        %984 = vmatpush1.bf16.msra.mxu0 0
        %985 = vmatprep.subr.bf16.mxu0 0
        %986 = vmatpush1.bf16.msra.mxu0 0
        %987 = vmatprep.subr.bf16.mxu0 0
        %988 = vmatpush1.bf16.msra.mxu0 0
        %989 = vmatprep.subr.bf16.mxu0 0
        %990 = vmatpush1.bf16.msra.mxu0 0
        %991 = vmatprep.subr.bf16.mxu0 0
        %992 = vmatpush1.bf16.msra.mxu0 0
        %993 = vmatprep.subr.bf16.mxu0 0
        %994 = vmatpush1.bf16.msra.mxu0 0
        %995 = vmatprep.subr.bf16.mxu0 0
        %996 = vmatpush1.bf16.msra.mxu0 0
        %997 = vmatprep.subr.bf16.mxu0 0
        %998 = vmatpush1.bf16.msra.mxu0 0
        %999 = vmatprep.subr.bf16.mxu0 0
        %1000 = vmatpush1.bf16.msra.mxu0 0
        %1001 = vmatprep.subr.bf16.mxu0 0
        %1002 = vmatpush1.bf16.msra.mxu0 0
        %1003 = vmatprep.mubr.bf16.mxu0 0
        %1004 = vmatmul.mubr.bf16.gmra.mrb[0].mxu0 %v969
        %v1005 = vpop.f32.mrb[0].mxu0
        %v1006 = vadd.f32 0.0, %v1005
        %v1007 = vpop.f32.mrb[0].mxu0
        %v1008 = vpop.f32.mrb[0].mxu0
        %v1009 = vpop.f32.mrb[0].mxu0
        %1010 = vdwg.mxu0
        %v1011 = vadd.f32 %v938, %v1006
        %v1012 = vld [vmem:[%s7] sm:$0x1]
        %v1013 = vlaneseq
        %v1014 = vshrl.u32 %v1013, 7
        %v1015 = vsub.s32 0, %v1014
        %v1016 = vrot.slane %v1012, %v1015
        %v1017 = vadd.f32 %v1011, %v1016
        %v1018 = vmax.f32 %v1017, 0.0
        %v1019 = vld [vmem:[%s7 + $0x1] sm:$0x1]
        %v1020 = vlaneseq
        %v1021 = vshrl.u32 %v1020, 7
        %v1022 = vsub.s32 0, %v1021
        %v1023 = vrot.slane %v1019, %v1022
        %v1024 = vmul.f32 %v1018, %v1023
        %v1025 = vld [vmem:[%s7 + $0x2] sm:$0x1]
        %v1026 = vlaneseq
        %v1027 = vshrl.u32 %v1026, 7
        %v1028 = vsub.s32 0, %v1027
        %v1029 = vrot.slane %v1025, %v1028
        %v1030 = vadd.f32 %v1024, %v1029
        %v1031 = vpack.c.bf16 %v1030, %v1030
        %v1032 = vld [vmem:[%s6] sm:$0xf]
        %v1033 = vld [vmem:[%s6 + $0x4] sm:$0xf]
        %v1034 = vld [vmem:[%s6 + $0x8] sm:$0xf]
        %v1035 = vld [vmem:[%s6 + $0xc] sm:$0xf]
        %v1040 = vunpack.c.l.b16 %v1032
        %v1041 = vunpack.c.l.b16 %v1033
        %v1042 = vunpack.c.l.b16 %v1034
        %v1043 = vunpack.c.l.b16 %v1035
        %v1044 = vpack.c.b16 %v1041, %v1040
        %v1045 = vpack.c.b16 %v1043, %v1042
        %v1049 = vsel %vm679, %v1031, 0
        %1051 = vmatprep.subr.bf16.mxu0 0
        %1052 = vmatpush1.bf16.msra.mxu0 %v1044
        %1053 = vmatprep.subr.bf16.mxu0 0
        %1054 = vmatpush1.bf16.msra.mxu0 %v1045
        %1055 = vmatprep.subr.bf16.mxu0 0
        %1056 = vmatpush1.bf16.msra.mxu0 0
        %1057 = vmatprep.subr.bf16.mxu0 0
        %1058 = vmatpush1.bf16.msra.mxu0 0
        %1059 = vmatprep.subr.bf16.mxu0 0
        %1060 = vmatpush1.bf16.msra.mxu0 0
        %1061 = vmatprep.subr.bf16.mxu0 0
        %1062 = vmatpush1.bf16.msra.mxu0 0
        %1063 = vmatprep.subr.bf16.mxu0 0
        %1064 = vmatpush1.bf16.msra.mxu0 0
        %1065 = vmatprep.subr.bf16.mxu0 0
        %1066 = vmatpush1.bf16.msra.mxu0 0
        %1067 = vmatprep.subr.bf16.mxu0 0
        %1068 = vmatpush1.bf16.msra.mxu0 0
        %1069 = vmatprep.subr.bf16.mxu0 0
        %1070 = vmatpush1.bf16.msra.mxu0 0
        %1071 = vmatprep.subr.bf16.mxu0 0
        %1072 = vmatpush1.bf16.msra.mxu0 0
        %1073 = vmatprep.subr.bf16.mxu0 0
        %1074 = vmatpush1.bf16.msra.mxu0 0
        %1075 = vmatprep.subr.bf16.mxu0 0
        %1076 = vmatpush1.bf16.msra.mxu0 0
        %1077 = vmatprep.subr.bf16.mxu0 0
        %1078 = vmatpush1.bf16.msra.mxu0 0
        %1079 = vmatprep.subr.bf16.mxu0 0
        %1080 = vmatpush1.bf16.msra.mxu0 0
        %1081 = vmatprep.subr.bf16.mxu0 0
        %1082 = vmatpush1.bf16.msra.mxu0 0
        %1083 = vmatprep.mubr.bf16.mxu0 0
        %1084 = vmatmul.mubr.bf16.gmra.mrb[0].mxu0 %v1049
        %v1085 = vpop.f32.mrb[0].mxu0
        %v1086 = vadd.f32 0.0, %v1085
        %v1087 = vpop.f32.mrb[0].mxu0
        %v1088 = vpop.f32.mrb[0].mxu0
        %v1089 = vpop.f32.mrb[0].mxu0
        %1090 = vdwg.mxu0
        %v1091 = vadd.f32 %v810, %v1086
        %v1093 = vunpack.c.l.b16 %v1031
        %v1094 = vpack.c.b16 %v1093, %v1093
        %v1095 = vrot.slane %v1094, 7
        %v1096 = vrot.slane %v1095, 4
        %vm1099 = vcmask 125953
        %1100 = vst.msk [vmem:[#allocation2] sm:$0xe] %vm1099, %v1095
        %vm1101 = vcmask 122880
        %1102 = vst.msk [vmem:[#allocation2 + $0x4] sm:$0x1] %vm1101, %v1096
        %v1103 = vld [vmem:[#allocation2] sm:$0xf]
        %v1104 = vld [vmem:[%s8] sm:$0xf]
        %v1105 = vld [vmem:[%s8 + $0x4] sm:$0xf]
        %v1106 = vld [vmem:[%s8 + $0x8] sm:$0xf]
        %v1107 = vld [vmem:[%s8 + $0xc] sm:$0xf]
        %v1108 = vld [vmem:[#allocation2] sm:$0xe]
        %v1109 = vld [vmem:[#allocation2 + $0x4] sm:$0x1]
        %s1110 = scalar_lea.vmem %s8, 16
        %v1111 = vld [vmem:[%s1110] sm:$0xf]
        %v1112 = vld [vmem:[%s1110 + $0x4] sm:$0xf]
        %v1113 = vld [vmem:[%s1110 + $0x8] sm:$0xf]
        %v1114 = vld [vmem:[%s1110 + $0xc] sm:$0xf]
        %v1117 = vunpack.c.l.b16 %v1108
        %v1118 = vunpack.c.l.b16 %v1109
        %v1119 = vpack.c.b16 %v1118, %v1117
        %v1120 = vrot.slane %v1119, 1
        %v1125 = vunpack.c.l.b16 %v1111
        %v1126 = vunpack.c.l.b16 %v1112
        %v1127 = vunpack.c.l.b16 %v1113
        %v1128 = vunpack.c.l.b16 %v1114
        %v1129 = vpack.c.b16 %v1126, %v1125
        %v1130 = vpack.c.b16 %v1128, %v1127
        %v1134 = vsel %vm679, %v1120, 0
        %1136 = vmatprep.subr.bf16.mxu0 0
        %1137 = vmatpush1.bf16.msra.mxu0 %v1129
        %1138 = vmatprep.subr.bf16.mxu0 0
        %1139 = vmatpush1.bf16.msra.mxu0 %v1130
        %1140 = vmatprep.subr.bf16.mxu0 0
        %1141 = vmatpush1.bf16.msra.mxu0 0
        %1142 = vmatprep.subr.bf16.mxu0 0
        %1143 = vmatpush1.bf16.msra.mxu0 0
        %1144 = vmatprep.subr.bf16.mxu0 0
        %1145 = vmatpush1.bf16.msra.mxu0 0
        %1146 = vmatprep.subr.bf16.mxu0 0
        %1147 = vmatpush1.bf16.msra.mxu0 0
        %1148 = vmatprep.subr.bf16.mxu0 0
        %1149 = vmatpush1.bf16.msra.mxu0 0
        %1150 = vmatprep.subr.bf16.mxu0 0
        %1151 = vmatpush1.bf16.msra.mxu0 0
        %1152 = vmatprep.subr.bf16.mxu0 0
        %1153 = vmatpush1.bf16.msra.mxu0 0
        %1154 = vmatprep.subr.bf16.mxu0 0
        %1155 = vmatpush1.bf16.msra.mxu0 0
        %1156 = vmatprep.subr.bf16.mxu0 0
        %1157 = vmatpush1.bf16.msra.mxu0 0
        %1158 = vmatprep.subr.bf16.mxu0 0
        %1159 = vmatpush1.bf16.msra.mxu0 0
        %1160 = vmatprep.subr.bf16.mxu0 0
        %1161 = vmatpush1.bf16.msra.mxu0 0
        %1162 = vmatprep.subr.bf16.mxu0 0
        %1163 = vmatpush1.bf16.msra.mxu0 0
        %1164 = vmatprep.subr.bf16.mxu0 0
        %1165 = vmatpush1.bf16.msra.mxu0 0
        %1166 = vmatprep.subr.bf16.mxu0 0
        %1167 = vmatpush1.bf16.msra.mxu0 0
        %1168 = vmatprep.mubr.bf16.mxu0 0
        %1169 = vmatmul.mubr.bf16.gmra.mrb[0].mxu0 %v1134
        %v1170 = vpop.f32.mrb[0].mxu0
        %v1171 = vadd.f32 0.0, %v1170
        %v1172 = vpop.f32.mrb[0].mxu0
        %v1173 = vpop.f32.mrb[0].mxu0
        %v1174 = vpop.f32.mrb[0].mxu0
        %1175 = vdwg.mxu0
        %v1180 = vunpack.c.l.b16 %v1104
        %v1181 = vunpack.c.l.b16 %v1105
        %v1182 = vunpack.c.l.b16 %v1106
        %v1183 = vunpack.c.l.b16 %v1107
        %v1184 = vpack.c.b16 %v1181, %v1180
        %v1185 = vpack.c.b16 %v1183, %v1182
        %v1189 = vsel %vm679, %v1103, 0
        %1191 = vmatprep.subr.bf16.mxu0 0
        %1192 = vmatpush1.bf16.msra.mxu0 %v1184
        %1193 = vmatprep.subr.bf16.mxu0 0
        %1194 = vmatpush1.bf16.msra.mxu0 %v1185
        %1195 = vmatprep.subr.bf16.mxu0 0
        %1196 = vmatpush1.bf16.msra.mxu0 0
        %1197 = vmatprep.subr.bf16.mxu0 0
        %1198 = vmatpush1.bf16.msra.mxu0 0
        %1199 = vmatprep.subr.bf16.mxu0 0
        %1200 = vmatpush1.bf16.msra.mxu0 0
        %1201 = vmatprep.subr.bf16.mxu0 0
        %1202 = vmatpush1.bf16.msra.mxu0 0
        %1203 = vmatprep.subr.bf16.mxu0 0
        %1204 = vmatpush1.bf16.msra.mxu0 0
        %1205 = vmatprep.subr.bf16.mxu0 0
        %1206 = vmatpush1.bf16.msra.mxu0 0
        %1207 = vmatprep.subr.bf16.mxu0 0
        %1208 = vmatpush1.bf16.msra.mxu0 0
        %1209 = vmatprep.subr.bf16.mxu0 0
        %1210 = vmatpush1.bf16.msra.mxu0 0
        %1211 = vmatprep.subr.bf16.mxu0 0
        %1212 = vmatpush1.bf16.msra.mxu0 0
        %1213 = vmatprep.subr.bf16.mxu0 0
        %1214 = vmatpush1.bf16.msra.mxu0 0
        %1215 = vmatprep.subr.bf16.mxu0 0
        %1216 = vmatpush1.bf16.msra.mxu0 0
        %1217 = vmatprep.subr.bf16.mxu0 0
        %1218 = vmatpush1.bf16.msra.mxu0 0
        %1219 = vmatprep.subr.bf16.mxu0 0
        %1220 = vmatpush1.bf16.msra.mxu0 0
        %1221 = vmatprep.subr.bf16.mxu0 0
        %1222 = vmatpush1.bf16.msra.mxu0 0
        %1223 = vmatprep.mubr.bf16.mxu0 0
        %1224 = vmatmul.mubr.bf16.gmra.mrb[0].mxu0 %v1189
        %v1225 = vpop.f32.mrb[0].mxu0
        %v1226 = vadd.f32 %v1171, %v1225
        %v1227 = vpop.f32.mrb[0].mxu0
        %v1228 = vpop.f32.mrb[0].mxu0
        %v1229 = vpop.f32.mrb[0].mxu0
        %1230 = vdwg.mxu0
        %v1231 = vld [vmem:[#allocation2] sm:$0xc]
        %v1232 = vld [vmem:[#allocation2 + $0x4] sm:$0x3]
        %s1233 = scalar_lea.vmem %s8, 32
        %v1234 = vld [vmem:[%s1233] sm:$0xf]
        %v1235 = vld [vmem:[%s1233 + $0x4] sm:$0xf]
        %v1236 = vld [vmem:[%s1233 + $0x8] sm:$0xf]
        %v1237 = vld [vmem:[%s1233 + $0xc] sm:$0xf]
        %v1240 = vunpack.c.l.b16 %v1231
        %v1241 = vunpack.c.l.b16 %v1232
        %v1242 = vpack.c.b16 %v1241, %v1240
        %v1243 = vrot.slane %v1242, 2
        %v1248 = vunpack.c.l.b16 %v1234
        %v1249 = vunpack.c.l.b16 %v1235
        %v1250 = vunpack.c.l.b16 %v1236
        %v1251 = vunpack.c.l.b16 %v1237
        %v1252 = vpack.c.b16 %v1249, %v1248
        %v1253 = vpack.c.b16 %v1251, %v1250
        %v1257 = vsel %vm679, %v1243, 0
        %1259 = vmatprep.subr.bf16.mxu0 0
        %1260 = vmatpush1.bf16.msra.mxu0 %v1252
        %1261 = vmatprep.subr.bf16.mxu0 0
        %1262 = vmatpush1.bf16.msra.mxu0 %v1253
        %1263 = vmatprep.subr.bf16.mxu0 0
        %1264 = vmatpush1.bf16.msra.mxu0 0
        %1265 = vmatprep.subr.bf16.mxu0 0
        %1266 = vmatpush1.bf16.msra.mxu0 0
        %1267 = vmatprep.subr.bf16.mxu0 0
        %1268 = vmatpush1.bf16.msra.mxu0 0
        %1269 = vmatprep.subr.bf16.mxu0 0
        %1270 = vmatpush1.bf16.msra.mxu0 0
        %1271 = vmatprep.subr.bf16.mxu0 0
        %1272 = vmatpush1.bf16.msra.mxu0 0
        %1273 = vmatprep.subr.bf16.mxu0 0
        %1274 = vmatpush1.bf16.msra.mxu0 0
        %1275 = vmatprep.subr.bf16.mxu0 0
        %1276 = vmatpush1.bf16.msra.mxu0 0
        %1277 = vmatprep.subr.bf16.mxu0 0
        %1278 = vmatpush1.bf16.msra.mxu0 0
        %1279 = vmatprep.subr.bf16.mxu0 0
        %1280 = vmatpush1.bf16.msra.mxu0 0
        %1281 = vmatprep.subr.bf16.mxu0 0
        %1282 = vmatpush1.bf16.msra.mxu0 0
        %1283 = vmatprep.subr.bf16.mxu0 0
        %1284 = vmatpush1.bf16.msra.mxu0 0
        %1285 = vmatprep.subr.bf16.mxu0 0
        %1286 = vmatpush1.bf16.msra.mxu0 0
        %1287 = vmatprep.subr.bf16.mxu0 0
        %1288 = vmatpush1.bf16.msra.mxu0 0
        %1289 = vmatprep.subr.bf16.mxu0 0
        %1290 = vmatpush1.bf16.msra.mxu0 0
        %1291 = vmatprep.mubr.bf16.mxu0 0
        %1292 = vmatmul.mubr.bf16.gmra.mrb[0].mxu0 %v1257
        %v1293 = vpop.f32.mrb[0].mxu0
        %v1294 = vadd.f32 0.0, %v1293
        %v1295 = vpop.f32.mrb[0].mxu0
        %v1296 = vpop.f32.mrb[0].mxu0
        %v1297 = vpop.f32.mrb[0].mxu0
        %1298 = vdwg.mxu0
        %v1299 = vadd.f32 %v1226, %v1294
        %v1300 = vld [vmem:[%s10] sm:$0x1]
        %v1301 = vlaneseq
        %v1302 = vshrl.u32 %v1301, 7
        %v1303 = vsub.s32 0, %v1302
        %v1304 = vrot.slane %v1300, %v1303
        %v1305 = vadd.f32 %v1299, %v1304
        %v1306 = vmax.f32 %v1305, 0.0
        %v1307 = vld [vmem:[%s10 + $0x1] sm:$0x1]
        %v1308 = vlaneseq
        %v1309 = vshrl.u32 %v1308, 7
        %v1310 = vsub.s32 0, %v1309
        %v1311 = vrot.slane %v1307, %v1310
        %v1312 = vmul.f32 %v1306, %v1311
        %v1313 = vld [vmem:[%s10 + $0x2] sm:$0x1]
        %v1314 = vlaneseq
        %v1315 = vshrl.u32 %v1314, 7
        %v1316 = vsub.s32 0, %v1315
        %v1317 = vrot.slane %v1313, %v1316
        %v1318 = vadd.f32 %v1312, %v1317
        %v1319 = vpack.c.bf16 %v1318, %v1318
        %v1320 = vld [vmem:[%s9] sm:$0xf]
        %v1321 = vld [vmem:[%s9 + $0x4] sm:$0xf]
        %v1322 = vld [vmem:[%s9 + $0x8] sm:$0xf]
        %v1323 = vld [vmem:[%s9 + $0xc] sm:$0xf]
        %v1328 = vunpack.c.l.b16 %v1320
        %v1329 = vunpack.c.l.b16 %v1321
        %v1330 = vunpack.c.l.b16 %v1322
        %v1331 = vunpack.c.l.b16 %v1323
        %v1332 = vpack.c.b16 %v1329, %v1328
        %v1333 = vpack.c.b16 %v1331, %v1330
        %v1337 = vsel %vm679, %v1319, 0
        %1339 = vmatprep.subr.bf16.mxu0 0
        %1340 = vmatpush1.bf16.msra.mxu0 %v1332
        %1341 = vmatprep.subr.bf16.mxu0 0
        %1342 = vmatpush1.bf16.msra.mxu0 %v1333
        %1343 = vmatprep.subr.bf16.mxu0 0
        %1344 = vmatpush1.bf16.msra.mxu0 0
        %1345 = vmatprep.subr.bf16.mxu0 0
        %1346 = vmatpush1.bf16.msra.mxu0 0
        %1347 = vmatprep.subr.bf16.mxu0 0
        %1348 = vmatpush1.bf16.msra.mxu0 0
        %1349 = vmatprep.subr.bf16.mxu0 0
        %1350 = vmatpush1.bf16.msra.mxu0 0
        %1351 = vmatprep.subr.bf16.mxu0 0
        %1352 = vmatpush1.bf16.msra.mxu0 0
        %1353 = vmatprep.subr.bf16.mxu0 0
        %1354 = vmatpush1.bf16.msra.mxu0 0
        %1355 = vmatprep.subr.bf16.mxu0 0
        %1356 = vmatpush1.bf16.msra.mxu0 0
        %1357 = vmatprep.subr.bf16.mxu0 0
        %1358 = vmatpush1.bf16.msra.mxu0 0
        %1359 = vmatprep.subr.bf16.mxu0 0
        %1360 = vmatpush1.bf16.msra.mxu0 0
        %1361 = vmatprep.subr.bf16.mxu0 0
        %1362 = vmatpush1.bf16.msra.mxu0 0
        %1363 = vmatprep.subr.bf16.mxu0 0
        %1364 = vmatpush1.bf16.msra.mxu0 0
        %1365 = vmatprep.subr.bf16.mxu0 0
        %1366 = vmatpush1.bf16.msra.mxu0 0
        %1367 = vmatprep.subr.bf16.mxu0 0
        %1368 = vmatpush1.bf16.msra.mxu0 0
        %1369 = vmatprep.subr.bf16.mxu0 0
        %1370 = vmatpush1.bf16.msra.mxu0 0
        %1371 = vmatprep.mubr.bf16.mxu0 0
        %1372 = vmatmul.mubr.bf16.gmra.mrb[0].mxu0 %v1337
        %v1373 = vpop.f32.mrb[0].mxu0
        %v1374 = vadd.f32 0.0, %v1373
        %v1375 = vpop.f32.mrb[0].mxu0
        %v1376 = vpop.f32.mrb[0].mxu0
        %v1377 = vpop.f32.mrb[0].mxu0
        %1378 = vdwg.mxu0
        %v1379 = vadd.f32 %v1091, %v1374
        %v1381 = vunpack.c.l.b16 %v1319
        %v1382 = vpack.c.b16 %v1381, %v1381
        %v1383 = vrot.slane %v1382, 7
        %v1384 = vrot.slane %v1383, 4
        %vm1387 = vcmask 191489
        %1388 = vst.msk [vmem:[#allocation2] sm:$0xe] %vm1387, %v1383
        %vm1389 = vcmask 188416
        %1390 = vst.msk [vmem:[#allocation2 + $0x4] sm:$0x1] %vm1389, %v1384
        %v1391 = vld [vmem:[#allocation2] sm:$0xf]
        %v1392 = vld [vmem:[%s11] sm:$0xf]
        %v1393 = vld [vmem:[%s11 + $0x4] sm:$0xf]
        %v1394 = vld [vmem:[%s11 + $0x8] sm:$0xf]
        %v1395 = vld [vmem:[%s11 + $0xc] sm:$0xf]
        %v1396 = vld [vmem:[#allocation2] sm:$0xe]
        %v1397 = vld [vmem:[#allocation2 + $0x4] sm:$0x1]
        %s1398 = scalar_lea.vmem %s11, 16
        %v1399 = vld [vmem:[%s1398] sm:$0xf]
        %v1400 = vld [vmem:[%s1398 + $0x4] sm:$0xf]
        %v1401 = vld [vmem:[%s1398 + $0x8] sm:$0xf]
        %v1402 = vld [vmem:[%s1398 + $0xc] sm:$0xf]
        %v1405 = vunpack.c.l.b16 %v1396
        %v1406 = vunpack.c.l.b16 %v1397
        %v1407 = vpack.c.b16 %v1406, %v1405
        %v1408 = vrot.slane %v1407, 1
        %v1413 = vunpack.c.l.b16 %v1399
        %v1414 = vunpack.c.l.b16 %v1400
        %v1415 = vunpack.c.l.b16 %v1401
        %v1416 = vunpack.c.l.b16 %v1402
        %v1417 = vpack.c.b16 %v1414, %v1413
        %v1418 = vpack.c.b16 %v1416, %v1415
        %v1422 = vsel %vm679, %v1408, 0
        %1424 = vmatprep.subr.bf16.mxu0 0
        %1425 = vmatpush1.bf16.msra.mxu0 %v1417
        %1426 = vmatprep.subr.bf16.mxu0 0
        %1427 = vmatpush1.bf16.msra.mxu0 %v1418
        %1428 = vmatprep.subr.bf16.mxu0 0
        %1429 = vmatpush1.bf16.msra.mxu0 0
        %1430 = vmatprep.subr.bf16.mxu0 0
        %1431 = vmatpush1.bf16.msra.mxu0 0
        %1432 = vmatprep.subr.bf16.mxu0 0
        %1433 = vmatpush1.bf16.msra.mxu0 0
        %1434 = vmatprep.subr.bf16.mxu0 0
        %1435 = vmatpush1.bf16.msra.mxu0 0
        %1436 = vmatprep.subr.bf16.mxu0 0
        %1437 = vmatpush1.bf16.msra.mxu0 0
        %1438 = vmatprep.subr.bf16.mxu0 0
        %1439 = vmatpush1.bf16.msra.mxu0 0
        %1440 = vmatprep.subr.bf16.mxu0 0
        %1441 = vmatpush1.bf16.msra.mxu0 0
        %1442 = vmatprep.subr.bf16.mxu0 0
        %1443 = vmatpush1.bf16.msra.mxu0 0
        %1444 = vmatprep.subr.bf16.mxu0 0
        %1445 = vmatpush1.bf16.msra.mxu0 0
        %1446 = vmatprep.subr.bf16.mxu0 0
        %1447 = vmatpush1.bf16.msra.mxu0 0
        %1448 = vmatprep.subr.bf16.mxu0 0
        %1449 = vmatpush1.bf16.msra.mxu0 0
        %1450 = vmatprep.subr.bf16.mxu0 0
        %1451 = vmatpush1.bf16.msra.mxu0 0
        %1452 = vmatprep.subr.bf16.mxu0 0
        %1453 = vmatpush1.bf16.msra.mxu0 0
        %1454 = vmatprep.subr.bf16.mxu0 0
        %1455 = vmatpush1.bf16.msra.mxu0 0
        %1456 = vmatprep.mubr.bf16.mxu0 0
        %1457 = vmatmul.mubr.bf16.gmra.mrb[0].mxu0 %v1422
        %v1458 = vpop.f32.mrb[0].mxu0
        %v1459 = vadd.f32 0.0, %v1458
        %v1460 = vpop.f32.mrb[0].mxu0
        %v1461 = vpop.f32.mrb[0].mxu0
        %v1462 = vpop.f32.mrb[0].mxu0
        %1463 = vdwg.mxu0
        %v1468 = vunpack.c.l.b16 %v1392
        %v1469 = vunpack.c.l.b16 %v1393
        %v1470 = vunpack.c.l.b16 %v1394
        %v1471 = vunpack.c.l.b16 %v1395
        %v1472 = vpack.c.b16 %v1469, %v1468
        %v1473 = vpack.c.b16 %v1471, %v1470
        %v1477 = vsel %vm679, %v1391, 0
        %1479 = vmatprep.subr.bf16.mxu0 0
        %1480 = vmatpush1.bf16.msra.mxu0 %v1472
        %1481 = vmatprep.subr.bf16.mxu0 0
        %1482 = vmatpush1.bf16.msra.mxu0 %v1473
        %1483 = vmatprep.subr.bf16.mxu0 0
        %1484 = vmatpush1.bf16.msra.mxu0 0
        %1485 = vmatprep.subr.bf16.mxu0 0
        %1486 = vmatpush1.bf16.msra.mxu0 0
        %1487 = vmatprep.subr.bf16.mxu0 0
        %1488 = vmatpush1.bf16.msra.mxu0 0
        %1489 = vmatprep.subr.bf16.mxu0 0
        %1490 = vmatpush1.bf16.msra.mxu0 0
        %1491 = vmatprep.subr.bf16.mxu0 0
        %1492 = vmatpush1.bf16.msra.mxu0 0
        %1493 = vmatprep.subr.bf16.mxu0 0
        %1494 = vmatpush1.bf16.msra.mxu0 0
        %1495 = vmatprep.subr.bf16.mxu0 0
        %1496 = vmatpush1.bf16.msra.mxu0 0
        %1497 = vmatprep.subr.bf16.mxu0 0
        %1498 = vmatpush1.bf16.msra.mxu0 0
        %1499 = vmatprep.subr.bf16.mxu0 0
        %1500 = vmatpush1.bf16.msra.mxu0 0
        %1501 = vmatprep.subr.bf16.mxu0 0
        %1502 = vmatpush1.bf16.msra.mxu0 0
        %1503 = vmatprep.subr.bf16.mxu0 0
        %1504 = vmatpush1.bf16.msra.mxu0 0
        %1505 = vmatprep.subr.bf16.mxu0 0
        %1506 = vmatpush1.bf16.msra.mxu0 0
        %1507 = vmatprep.subr.bf16.mxu0 0
        %1508 = vmatpush1.bf16.msra.mxu0 0
        %1509 = vmatprep.subr.bf16.mxu0 0
        %1510 = vmatpush1.bf16.msra.mxu0 0
        %1511 = vmatprep.mubr.bf16.mxu0 0
        %1512 = vmatmul.mubr.bf16.gmra.mrb[0].mxu0 %v1477
        %v1513 = vpop.f32.mrb[0].mxu0
        %v1514 = vadd.f32 %v1459, %v1513
        %v1515 = vpop.f32.mrb[0].mxu0
        %v1516 = vpop.f32.mrb[0].mxu0
        %v1517 = vpop.f32.mrb[0].mxu0
        %1518 = vdwg.mxu0
        %v1519 = vld [vmem:[#allocation2] sm:$0xc]
        %v1520 = vld [vmem:[#allocation2 + $0x4] sm:$0x3]
        %s1521 = scalar_lea.vmem %s11, 32
        %v1522 = vld [vmem:[%s1521] sm:$0xf]
        %v1523 = vld [vmem:[%s1521 + $0x4] sm:$0xf]
        %v1524 = vld [vmem:[%s1521 + $0x8] sm:$0xf]
        %v1525 = vld [vmem:[%s1521 + $0xc] sm:$0xf]
        %v1528 = vunpack.c.l.b16 %v1519
        %v1529 = vunpack.c.l.b16 %v1520
        %v1530 = vpack.c.b16 %v1529, %v1528
        %v1531 = vrot.slane %v1530, 2
        %v1536 = vunpack.c.l.b16 %v1522
        %v1537 = vunpack.c.l.b16 %v1523
        %v1538 = vunpack.c.l.b16 %v1524
        %v1539 = vunpack.c.l.b16 %v1525
        %v1540 = vpack.c.b16 %v1537, %v1536
        %v1541 = vpack.c.b16 %v1539, %v1538
        %v1545 = vsel %vm679, %v1531, 0
        %1547 = vmatprep.subr.bf16.mxu0 0
        %1548 = vmatpush1.bf16.msra.mxu0 %v1540
        %1549 = vmatprep.subr.bf16.mxu0 0
        %1550 = vmatpush1.bf16.msra.mxu0 %v1541
        %1551 = vmatprep.subr.bf16.mxu0 0
        %1552 = vmatpush1.bf16.msra.mxu0 0
        %1553 = vmatprep.subr.bf16.mxu0 0
        %1554 = vmatpush1.bf16.msra.mxu0 0
        %1555 = vmatprep.subr.bf16.mxu0 0
        %1556 = vmatpush1.bf16.msra.mxu0 0
        %1557 = vmatprep.subr.bf16.mxu0 0
        %1558 = vmatpush1.bf16.msra.mxu0 0
        %1559 = vmatprep.subr.bf16.mxu0 0
        %1560 = vmatpush1.bf16.msra.mxu0 0
        %1561 = vmatprep.subr.bf16.mxu0 0
        %1562 = vmatpush1.bf16.msra.mxu0 0
        %1563 = vmatprep.subr.bf16.mxu0 0
        %1564 = vmatpush1.bf16.msra.mxu0 0
        %1565 = vmatprep.subr.bf16.mxu0 0
        %1566 = vmatpush1.bf16.msra.mxu0 0
        %1567 = vmatprep.subr.bf16.mxu0 0
        %1568 = vmatpush1.bf16.msra.mxu0 0
        %1569 = vmatprep.subr.bf16.mxu0 0
        %1570 = vmatpush1.bf16.msra.mxu0 0
        %1571 = vmatprep.subr.bf16.mxu0 0
        %1572 = vmatpush1.bf16.msra.mxu0 0
        %1573 = vmatprep.subr.bf16.mxu0 0
        %1574 = vmatpush1.bf16.msra.mxu0 0
        %1575 = vmatprep.subr.bf16.mxu0 0
        %1576 = vmatpush1.bf16.msra.mxu0 0
        %1577 = vmatprep.subr.bf16.mxu0 0
        %1578 = vmatpush1.bf16.msra.mxu0 0
        %1579 = vmatprep.mubr.bf16.mxu0 0
        %1580 = vmatmul.mubr.bf16.gmra.mrb[0].mxu0 %v1545
        %v1581 = vpop.f32.mrb[0].mxu0
        %v1582 = vadd.f32 0.0, %v1581
        %v1583 = vpop.f32.mrb[0].mxu0
        %v1584 = vpop.f32.mrb[0].mxu0
        %v1585 = vpop.f32.mrb[0].mxu0
        %1586 = vdwg.mxu0
        %v1587 = vadd.f32 %v1514, %v1582
        %v1588 = vld [vmem:[%s13] sm:$0x1]
        %v1589 = vlaneseq
        %v1590 = vshrl.u32 %v1589, 7
        %v1591 = vsub.s32 0, %v1590
        %v1592 = vrot.slane %v1588, %v1591
        %v1593 = vadd.f32 %v1587, %v1592
        %v1594 = vmax.f32 %v1593, 0.0
        %v1595 = vld [vmem:[%s13 + $0x1] sm:$0x1]
        %v1596 = vlaneseq
        %v1597 = vshrl.u32 %v1596, 7
        %v1598 = vsub.s32 0, %v1597
        %v1599 = vrot.slane %v1595, %v1598
        %v1600 = vmul.f32 %v1594, %v1599
        %v1601 = vld [vmem:[%s13 + $0x2] sm:$0x1]
        %v1602 = vlaneseq
        %v1603 = vshrl.u32 %v1602, 7
        %v1604 = vsub.s32 0, %v1603
        %v1605 = vrot.slane %v1601, %v1604
        %v1606 = vadd.f32 %v1600, %v1605
        %v1607 = vpack.c.bf16 %v1606, %v1606
        %v1608 = vld [vmem:[%s12] sm:$0xf]
        %v1609 = vld [vmem:[%s12 + $0x4] sm:$0xf]
        %v1610 = vld [vmem:[%s12 + $0x8] sm:$0xf]
        %v1611 = vld [vmem:[%s12 + $0xc] sm:$0xf]
        %v1616 = vunpack.c.l.b16 %v1608
        %v1617 = vunpack.c.l.b16 %v1609
        %v1618 = vunpack.c.l.b16 %v1610
        %v1619 = vunpack.c.l.b16 %v1611
        %v1620 = vpack.c.b16 %v1617, %v1616
        %v1621 = vpack.c.b16 %v1619, %v1618
        %v1625 = vsel %vm679, %v1607, 0
        %1627 = vmatprep.subr.bf16.mxu0 0
        %1628 = vmatpush1.bf16.msra.mxu0 %v1620
        %1629 = vmatprep.subr.bf16.mxu0 0
        %1630 = vmatpush1.bf16.msra.mxu0 %v1621
        %1631 = vmatprep.subr.bf16.mxu0 0
        %1632 = vmatpush1.bf16.msra.mxu0 0
        %1633 = vmatprep.subr.bf16.mxu0 0
        %1634 = vmatpush1.bf16.msra.mxu0 0
        %1635 = vmatprep.subr.bf16.mxu0 0
        %1636 = vmatpush1.bf16.msra.mxu0 0
        %1637 = vmatprep.subr.bf16.mxu0 0
        %1638 = vmatpush1.bf16.msra.mxu0 0
        %1639 = vmatprep.subr.bf16.mxu0 0
        %1640 = vmatpush1.bf16.msra.mxu0 0
        %1641 = vmatprep.subr.bf16.mxu0 0
        %1642 = vmatpush1.bf16.msra.mxu0 0
        %1643 = vmatprep.subr.bf16.mxu0 0
        %1644 = vmatpush1.bf16.msra.mxu0 0
        %1645 = vmatprep.subr.bf16.mxu0 0
        %1646 = vmatpush1.bf16.msra.mxu0 0
        %1647 = vmatprep.subr.bf16.mxu0 0
        %1648 = vmatpush1.bf16.msra.mxu0 0
        %1649 = vmatprep.subr.bf16.mxu0 0
        %1650 = vmatpush1.bf16.msra.mxu0 0
        %1651 = vmatprep.subr.bf16.mxu0 0
        %1652 = vmatpush1.bf16.msra.mxu0 0
        %1653 = vmatprep.subr.bf16.mxu0 0
        %1654 = vmatpush1.bf16.msra.mxu0 0
        %1655 = vmatprep.subr.bf16.mxu0 0
        %1656 = vmatpush1.bf16.msra.mxu0 0
        %1657 = vmatprep.subr.bf16.mxu0 0
        %1658 = vmatpush1.bf16.msra.mxu0 0
        %1659 = vmatprep.mubr.bf16.mxu0 0
        %1660 = vmatmul.mubr.bf16.gmra.mrb[0].mxu0 %v1625
        %v1661 = vpop.f32.mrb[0].mxu0
        %v1662 = vadd.f32 0.0, %v1661
        %v1663 = vpop.f32.mrb[0].mxu0
        %v1664 = vpop.f32.mrb[0].mxu0
        %v1665 = vpop.f32.mrb[0].mxu0
        %1666 = vdwg.mxu0
        %v1667 = vadd.f32 %v1379, %v1662
        %v1668 = vmax.f32 %v1667, 0.0
        %v1669 = vld [vmem:[%s14 + $0x1] sm:$0x1]
        %v1670 = vlaneseq
        %v1671 = vshrl.u32 %v1670, 7
        %v1672 = vsub.s32 0, %v1671
        %v1673 = vrot.slane %v1669, %v1672
        %v1674 = vmul.f32 %v1668, %v1673
        %v1675 = vld [vmem:[%s14 + $0x2] sm:$0x1]
        %v1676 = vlaneseq
        %v1677 = vshrl.u32 %v1676, 7
        %v1678 = vsub.s32 0, %v1677
        %v1679 = vrot.slane %v1675, %v1678
        %v1680 = vadd.f32 %v1674, %v1679
        %v1681 = vsel %vm679, %v1680, 0.0
        %v1682 = vrot.slane %v1681, 4
        %v1683 = vadd.f32 %v1681, %v1682
        %v1684 = vrot.slane %v1683, 2
        %v1685 = vadd.f32 %v1683, %v1684
        %v1686 = vrot.slane %v1685, 1
        %v1687 = vadd.f32 %v1685, %v1686
        %v1688 = vrcp.pop 8.0
        %v1689 = vmul.f32 %v1687, %v1688
        %v1690 = vpack.c.bf16 %v1689, %v1689
        %v1691 = vld [vmem:[%s15] sm:$0xf]
        %v1692 = vld [vmem:[%s15 + $0x4] sm:$0xf]
        %v1693 = vld [vmem:[%s15 + $0x8] sm:$0xf]
        %v1694 = vld [vmem:[%s15 + $0xc] sm:$0xf]
        %v1695 = vld [vmem:[%s16] sm:$0x1]
        %v1700 = vunpack.c.l.b16 %v1691
        %v1701 = vunpack.c.l.b16 %v1692
        %v1702 = vunpack.c.l.b16 %v1693
        %v1703 = vunpack.c.l.b16 %v1694
        %v1704 = vpack.c.b16 %v1701, %v1700
        %v1705 = vpack.c.b16 %v1703, %v1702
        %v1709 = vsel %vm679, %v1690, 0
        %1711 = vmatprep.subr.bf16.mxu0 0
        %1712 = vmatpush1.bf16.msra.mxu0 %v1704
        %1713 = vmatprep.subr.bf16.mxu0 0
        %1714 = vmatpush1.bf16.msra.mxu0 %v1705
        %1715 = vmatprep.subr.bf16.mxu0 0
        %1716 = vmatpush1.bf16.msra.mxu0 0
        %1717 = vmatprep.subr.bf16.mxu0 0
        %1718 = vmatpush1.bf16.msra.mxu0 0
        %1719 = vmatprep.subr.bf16.mxu0 0
        %1720 = vmatpush1.bf16.msra.mxu0 0
        %1721 = vmatprep.subr.bf16.mxu0 0
        %1722 = vmatpush1.bf16.msra.mxu0 0
        %1723 = vmatprep.subr.bf16.mxu0 0
        %1724 = vmatpush1.bf16.msra.mxu0 0
        %1725 = vmatprep.subr.bf16.mxu0 0
        %1726 = vmatpush1.bf16.msra.mxu0 0
        %1727 = vmatprep.subr.bf16.mxu0 0
        %1728 = vmatpush1.bf16.msra.mxu0 0
        %1729 = vmatprep.subr.bf16.mxu0 0
        %1730 = vmatpush1.bf16.msra.mxu0 0
        %1731 = vmatprep.subr.bf16.mxu0 0
        %1732 = vmatpush1.bf16.msra.mxu0 0
        %1733 = vmatprep.subr.bf16.mxu0 0
        %1734 = vmatpush1.bf16.msra.mxu0 0
        %1735 = vmatprep.subr.bf16.mxu0 0
        %1736 = vmatpush1.bf16.msra.mxu0 0
        %1737 = vmatprep.subr.bf16.mxu0 0
        %1738 = vmatpush1.bf16.msra.mxu0 0
        %1739 = vmatprep.subr.bf16.mxu0 0
        %1740 = vmatpush1.bf16.msra.mxu0 0
        %1741 = vmatprep.subr.bf16.mxu0 0
        %1742 = vmatpush1.bf16.msra.mxu0 0
        %1743 = vmatprep.mubr.bf16.mxu0 0
        %1744 = vmatmul.mubr.bf16.gmra.mrb[0].mxu0 %v1709
        %v1745 = vpop.f32.mrb[0].mxu0
        %v1746 = vadd.f32 %v1695, %v1745
        %v1747 = vpop.f32.mrb[0].mxu0
        %v1748 = vpop.f32.mrb[0].mxu0
        %v1749 = vpop.f32.mrb[0].mxu0
        %1750 = vdwg.mxu0
        %v1751 = vmax.f32 %v1746, 0.0
        %v1752 = vpack.c.bf16 %v1751, %v1751
        %v1753 = vld [vmem:[%s17] sm:$0xf]
        %v1754 = vld [vmem:[%s18] sm:$0x1]
        %vm1755 = vcmask 64512
        %v1757 = vsel %vm1755, %v1752, 0
        %vm1759 = vcmask 1043456
        %v1761 = vsel %vm1759, %v1753, 0
        %1763 = vmatprep.subr.bf16.mxu0 0
        %1764 = vmatpush1.bf16.msra.mxu0 %v1761
        %1765 = vmatprep.subr.bf16.mxu0 0
        %1766 = vmatpush1.bf16.msra.mxu0 0
        %1767 = vmatprep.subr.bf16.mxu0 0
        %1768 = vmatpush1.bf16.msra.mxu0 0
        %1769 = vmatprep.subr.bf16.mxu0 0
        %1770 = vmatpush1.bf16.msra.mxu0 0
        %1771 = vmatprep.subr.bf16.mxu0 0
        %1772 = vmatpush1.bf16.msra.mxu0 0
        %1773 = vmatprep.subr.bf16.mxu0 0
        %1774 = vmatpush1.bf16.msra.mxu0 0
        %1775 = vmatprep.subr.bf16.mxu0 0
        %1776 = vmatpush1.bf16.msra.mxu0 0
        %1777 = vmatprep.subr.bf16.mxu0 0
        %1778 = vmatpush1.bf16.msra.mxu0 0
        %1779 = vmatprep.subr.bf16.mxu0 0
        %1780 = vmatpush1.bf16.msra.mxu0 0
        %1781 = vmatprep.subr.bf16.mxu0 0
        %1782 = vmatpush1.bf16.msra.mxu0 0
        %1783 = vmatprep.subr.bf16.mxu0 0
        %1784 = vmatpush1.bf16.msra.mxu0 0
        %1785 = vmatprep.subr.bf16.mxu0 0
        %1786 = vmatpush1.bf16.msra.mxu0 0
        %1787 = vmatprep.subr.bf16.mxu0 0
        %1788 = vmatpush1.bf16.msra.mxu0 0
        %1789 = vmatprep.subr.bf16.mxu0 0
        %1790 = vmatpush1.bf16.msra.mxu0 0
        %1791 = vmatprep.subr.bf16.mxu0 0
        %1792 = vmatpush1.bf16.msra.mxu0 0
        %1793 = vmatprep.subr.bf16.mxu0 0
        %1794 = vmatpush1.bf16.msra.mxu0 0
        %1795 = vmatprep.mubr.bf16.mxu0 0
        %1796 = vmatmul.mubr.bf16.gmra.mrb[0].mxu0 %v1757
        %v1797 = vpop.f32.mrb[0].mxu0
        %v1798 = vadd.f32 %v1754, %v1797
        %v1799 = vpop.f32.mrb[0].mxu0
        %v1800 = vpop.f32.mrb[0].mxu0
        %v1801 = vpop.f32.mrb[0].mxu0
        %1802 = vdwg.mxu0
        %v1803 = vxor.u32 %v1798, 2147483648
        %v1804 = vmul.f32 %v1803, 1.442695
        %v1805 = vpow.pop %v1804
        %v1806 = vadd.f32 %v1805, 1.0
        %v1807 = vrcp.pop %v1806
        %v1808 = vmul.f32 1.0, %v1807
        %v1809 = vlaneseq
        %v1810 = vshrl.u32 %v1809, 7
        %v1811 = vsub.s32 0, %v1810
        %v1812 = vrot.slane %v1808, %v1811
        %v1813 = vmul.f32 %v1680, %v1812
        %v1814 = vadd.f32 %v1813, %v656
        %v1815 = vmax.f32 %v1814, 0.0
        %v1816 = vld [vmem:[%s18 + $0x1] sm:$0x1]
        %v1817 = vlaneseq
        %v1818 = vshrl.u32 %v1817, 7
        %v1819 = vsub.s32 0, %v1818
        %v1820 = vrot.slane %v1816, %v1819
        %v1821 = vmul.f32 %v1815, %v1820
        %v1822 = vld [vmem:[%s18 + $0x2] sm:$0x1]
        %v1823 = vlaneseq
        %v1824 = vshrl.u32 %v1823, 7
        %v1825 = vsub.s32 0, %v1824
        %v1826 = vrot.slane %v1822, %v1825
        %v1827 = vadd.f32 %v1821, %v1826
        %v1828 = vpack.c.bf16 %v1827, %v1827
        %vm1829 = vcmask 257024
        %1830 = vst.msk [vmem:[%s634] sm:$0xf] %vm1829, %v1828
        %v1831 = vld [vmem:[%s18 + $0x3] sm:$0x1]
        %v1832 = vlaneseq
        %v1833 = vshrl.u32 %v1832, 7
        %v1834 = vsub.s32 0, %v1833
        %v1835 = vrot.slane %v1831, %v1834
        %v1836 = vmul.f32 %v1827, %v1835
        %v1837 = vld [vmem:[%s18 + $0x4] sm:$0x1]
        %v1838 = vlaneseq
        %v1839 = vshrl.u32 %v1838, 7
        %v1840 = vsub.s32 0, %v1839
        %v1841 = vrot.slane %v1837, %v1840
        %v1842 = vadd.f32 %v1836, %v1841
        %v1843 = vmax.f32 %v1842, 0.0
        %v1844 = vsel %vm679, %v1843, 0.0
        %v1845 = vrot.slane %v1844, 4
        %v1846 = vadd.f32 %v1844, %v1845
        %v1847 = vrot.slane %v1846, 2
        %v1848 = vadd.f32 %v1846, %v1847
        %v1849 = vrot.slane %v1848, 1
        %v1850 = vadd.f32 %v1848, %v1849
        %v1851 = vmul.f32 %v1850, 0.125
        %1852 = vst.msk [vmem:[%s650] sm:$0x1] %vm737, %v1851
        %s1853 = sand.u32 %s452, 1
        %s1854 = scalar_lea.sflag [#allocation4], %s1853
        %s1855 = sand.u32 %s452, 1
        %s1856 = smul.addr %s1855, 4
        %s1857 = scalar_lea.vmem [#allocation3], %s1856
        %p1858 = scmp.lt.s32.totalorder %s35, 1
        %s1859 = scalar_select %p1858, %s35, 1
        %s1860 = scalar_lea.vmem %s20, %s1859
        // Predicated region
        $region97: #{_lambda_.8} parent=95 // pred_check
          %p1861 = pneg %p462
        $region98: #{_lambda_.8} parent=95 // pred_check_branch
          %1863 = sbr.rel (%p1861) target = $region100
        $region99: #{_lambda_.8} parent=95 // pred_region
          %s1865 = ssub.s32 64, 64
          %1866 = vsyncadd %s1854, %s1865
          %s1867 = smul.addr %s35, 64
          %s1868 = scalar_lea.hbm %s19, %s1867
          %s1870 = sshll.u32 %s1857, 4
          %s1871 = int_to_ptr.vmem [resolvable:$true] %s1870
          %1873 = dma.vmem_to_hbm [thread:$0]  %s1871, 64, %s1868, %s1854
        $region100: #{_lambda_.8} parent=95 // pred_fallthru
          _
        // Predicated region
        $region101: #{_lambda_.8} parent=95 // pred_check
          %p1874 = pneg %p488
        $region102: #{_lambda_.8} parent=95 // pred_check_branch
          %1876 = sbr.rel (%p1874) target = $region104
        $region103: #{_lambda_.8} parent=95 // pred_region
          _
        $region104: #{_lambda_.8} parent=95 // pred_fallthru
          _
      $region96: #{_lambda_.8} parent=5 // pred_fallthru
        _
      %p1877 = scmp.le.s32.totalorder 2, %s30
      // Predicated region
      $region105: #{_lambda_.8} parent=5 // pred_check
        %p1878 = pneg %p1877
      $region106: #{_lambda_.8} parent=5 // pred_check_branch
        %1880 = sbr.rel (%p1878) target = $region108
      $region107: #{_lambda_.8} parent=5 // pred_region
        %s1881 = ssub.s32 %s30, 2
        // Predicated region
        $region109: #{_lambda_.8} parent=107 // pred_check
          %p1882 = pneg %p468
        $region110: #{_lambda_.8} parent=107 // pred_check_branch
          %1884 = sbr.rel (%p1882) target = $region112
        $region111: #{_lambda_.8} parent=107 // pred_region
          %s1885 = sand.u32 %s453, 1
          %s1886 = scalar_lea.sflag [#allocation4], %s1885
          %s1887 = sand.u32 %s453, 1
          %s1888 = smul.addr %s1887, 4
          %s1889 = scalar_lea.vmem [#allocation3], %s1888
          %1890 = dma.done %s1886, 64
        $region112: #{_lambda_.8} parent=107 // pred_fallthru
          _
        // Predicated region
        $region113: #{_lambda_.8} parent=107 // pred_check
          %p1891 = pneg %p494
        $region114: #{_lambda_.8} parent=107 // pred_check_branch
          %1893 = sbr.rel (%p1891) target = $region116
        $region115: #{_lambda_.8} parent=107 // pred_region
          %p1894 = scmp.lt.s32.totalorder %s36, 1
          %s1895 = scalar_select %p1894, %s36, 1
          %s1896 = scalar_lea.vmem %s20, %s1895
        $region116: #{_lambda_.8} parent=107 // pred_fallthru
          _
      $region108: #{_lambda_.8} parent=5 // pred_fallthru
        _
    $region6: #{_lambda_.8} parent=1 // loop_footer
      %s34 = sadd.s32 1, %s30
    $region7: #{_lambda_.8} parent=1 // loop_footer_branch
      %29 = sbr.rel target = $region3
    $region8: #{_lambda_.8} parent=1 // loop_exit
      _
    %1897 = vsyncpa [#allocation4], 1
    %s1898 = scalar_lea.sflag [#allocation4], 1
    %1899 = vsyncpa %s1898, 1

</llo_original>
